<compile_context>
chip_gen: v7x
topology: tpu7x:2x2x1
jax: 0.10.0
libtpu: 0.0.40
codegen_flags: <defaults>
</compile_context>

<pallas_src>
import jax
import jax.numpy as jnp
from jax.experimental import pallas as pl
from jax.experimental.pallas import tpu as pltpu

EPS = 1e-5


# ----------------------------- Pallas kernels ------------------------------

def _conv_block_kernel(p_ref, w_ref, b_ref, a_ref, m_ref, o_ref):
    """Fused conv(im2col matmul) + folded-BN + PReLU + ScaleLayer merge + MaxPool(1,3).

    p_ref : (3, R, K)  im2col patches.  Leading axis = W position inside the pool
            window; rows ordered (n, oh, ow//3); cols ordered (cin, kh, kw).
    w_ref : (K, C)     BN-folded weights, [source | target] output channels.
    b_ref : (1, C)     BN-folded bias.
    a_ref : (1, C)     PReLU slopes, [source | target].
    m_ref : (C, C)     merge matrix: m[c, C/2+c] = scale[c]; adds scale*src_act to
                       the target half without any lane slicing.
    o_ref : (R, C)     pooled output: [pooled source | pooled merged target].
    """
    def tap(k):
        y = jnp.dot(p_ref[k], w_ref[...], preferred_element_type=jnp.float32)
        y = y + b_ref[...]
        y = jnp.where(y >= 0.0, y, a_ref[...] * y)                         # PReLU
        return y + jnp.dot(y, m_ref[...], preferred_element_type=jnp.float32)
    # MaxPool2d(kernel_size=(1, 3)) over the three window taps.
    o_ref[...] = jnp.maximum(jnp.maximum(tap(0), tap(1)), tap(2))


def _fc_output_kernel(xs_ref, xt_ref, ws_ref, bs_ref, as_ref,
                      wt_ref, bt_ref, at_ref, s3_ref, wo_ref, bo_ref, o_ref):
    """Fused source FC + target FC (folded BN, PReLU) + ScaleLayer merge + output Linear."""
    ys = jnp.dot(xs_ref[...], ws_ref[...], preferred_element_type=jnp.float32) + bs_ref[...]
    ys = jnp.where(ys >= 0.0, ys, as_ref[...] * ys)
    yt = jnp.dot(xt_ref[...], wt_ref[...], preferred_element_type=jnp.float32) + bt_ref[...]
    yt = jnp.where(yt >= 0.0, yt, at_ref[...] * yt)
    merged = yt + s3_ref[...] * ys
    o_ref[...] = jnp.dot(merged, wo_ref[...],
                         preferred_element_type=jnp.float32) + bo_ref[...]


# ------------------------------ call helpers -------------------------------

def _vmem_spec():
    return pl.BlockSpec(memory_space=pltpu.MemorySpace.VMEM)


def _call(kernel, out_rows_cols, *args):
    return pl.pallas_call(
        kernel,
        out_shape=jax.ShapeDtypeStruct(out_rows_cols, jnp.float32),
        in_specs=[_vmem_spec() for _ in args],
        out_specs=_vmem_spec(),
    )(*args)


def _conv_block(p, w, b, a, m):
    return _call(_conv_block_kernel, (p.shape[1], w.shape[1]), p, w, b, a, m)


# ------------------------------- JAX glue ----------------------------------

def _im2col_pooled(x_nhwc, kh, kw, pool_w=3):
    """Channel-last im2col grouped by MaxPool2d((1, pool_w)) windows.

    Returns (pool_w, N*OH*(OW//pool_w), C*KH*KW): rows ordered (n, oh, ow//pool_w),
    leading axis = ow % pool_w, cols ordered (cin, kh, kw) (PyTorch Conv2d layout).
    A trailing W remainder is truncated, matching PyTorch MaxPool2d.
    """
    n, h, w, c = x_nhwc.shape
    oh, ow = h - kh + 1, w - kw + 1
    owp = ow // pool_w
    taps = [x_nhwc[:, i:i + oh, j:j + ow, :] for i in range(kh) for j in range(kw)]
    p = jnp.stack(taps, axis=-1)                                 # (N, OH, OW, C, KH*KW)
    p = p.reshape(n, oh, ow, c * kh * kw)[:, :, :owp * pool_w, :]
    p = p.reshape(n, oh, owp, pool_w, c * kh * kw)
    return jnp.transpose(p, (3, 0, 1, 2, 4)).reshape(pool_w, n * oh * owp, c * kh * kw)


# ------------------------------- parameters --------------------------------

def _kaiming(key, shape):
    fan_in = shape[0]
    return jax.random.normal(key, shape, jnp.float32) * jnp.sqrt(2.0 / fan_in)


def _bn_params(key, c):
    k1, k2, k3, k4 = jax.random.split(key, 4)
    gamma = 1.0 + 0.1 * jax.random.normal(k1, (1, c), jnp.float32)
    beta = 0.1 * jax.random.normal(k2, (1, c), jnp.float32)
    mean = 0.1 * jax.random.normal(k3, (1, c), jnp.float32)
    var = 1.0 + 0.5 * jax.random.uniform(k4, (1, c), jnp.float32)
    return gamma, beta, mean, var


def _branch_params(key, n_class, is_target):
    ks = jax.random.split(key, 8)
    p = {}
    p['w1'] = _kaiming(ks[0], (1 * 3 * 5, 32))      # (Cin*KH*KW, Cout), rows (c,kh,kw)
    p['b1'] = jnp.zeros((1, 32), jnp.float32)
    p['g1'], p['be1'], p['m1'], p['v1'] = _bn_params(ks[1], 32)
    p['a1'] = jnp.full((1, 32), 0.25, jnp.float32)  # PReLU default init

    p['w2'] = _kaiming(ks[2], (32 * 3 * 5, 64))
    p['b2'] = jnp.zeros((1, 64), jnp.float32)
    p['g2'], p['be2'], p['m2'], p['v2'] = _bn_params(ks[3], 64)
    p['a2'] = jnp.full((1, 64), 0.25, jnp.float32)

    p['wf'] = _kaiming(ks[4], (1024, 500))          # rows ordered (c, h, w) like PyTorch
    p['bf'] = jnp.zeros((1, 500), jnp.float32)
    p['gf'], p['bef'], p['mf'], p['vf'] = _bn_params(ks[5], 500)
    p['af'] = jnp.full((1, 500), 0.25, jnp.float32)

    if is_target:
        p['wo'] = _kaiming(ks[6], (500, n_class))
        p['bo'] = jnp.zeros((1, n_class), jnp.float32)
        # ScaleLayer((1,32,1,1)), ((1,64,1,1)), ((1,500)) -> per-channel scales
        p['scale1'] = jnp.ones((1, 32), jnp.float32)
        p['scale2'] = jnp.ones((1, 64), jnp.float32)
        p['scale3'] = jnp.ones((1, 500), jnp.float32)
    return p


def make_params(key, n_class):
    ksrc, ktgt = jax.random.split(key)
    return {'src': _branch_params(ksrc, n_class, is_target=False),
            'tgt': _branch_params(ktgt, n_class, is_target=True)}


# --------------------------- parameter preparation --------------------------

def _fold_bn(w, b, gamma, beta, mean, var):
    # Eval-mode BN(y) = y*s + (beta - mean*s), s = gamma*rsqrt(var+eps); fold into w, b.
    s = gamma * jax.lax.rsqrt(var + EPS)
    return w * s, b * s + (beta - mean * s)


def _merge_matrix(scale):
    # scale: (1, C).  Returns (2C, 2C) with m[c, C+c] = scale[c]; y + y@m adds the
    # ScaleLayer-scaled source activations onto the target half of the channels.
    c = scale.shape[1]
    m = jnp.zeros((2 * c, 2 * c), jnp.float32)
    return m.at[jnp.arange(c), jnp.arange(c) + c].set(scale[0])


def _permute_fc_rows(wf, c, h, w):
    # PyTorch flattens pool2 in (c, h, w) order; the kernels flatten channel-last
    # (h, w, c).  Permute the FC weight rows once so activations are never transposed.
    return wf.reshape(c, h, w, wf.shape[1]).transpose(1, 2, 0, 3).reshape(c * h * w, wf.shape[1])


def prepare_params(params):
    """One-time weight-sized transforms: fold eval BN, fuse src/tgt branches,
    build ScaleLayer merge matrices, permute FC weight rows for channel-last flatten."""
    src, tgt = params['src'], params['tgt']
    prep = {}

    # ---- block 1: conv(1->32,(3,5)); branches share the input -> concat out channels.
    w1s, b1s = _fold_bn(src['w1'], src['b1'], src['g1'], src['be1'], src['m1'], src['v1'])
    w1t, b1t = _fold_bn(tgt['w1'], tgt['b1'], tgt['g1'], tgt['be1'], tgt['m1'], tgt['v1'])
    prep['w1'] = jnp.concatenate([w1s, w1t], axis=1)           # (15, 64)
    prep['b1'] = jnp.concatenate([b1s, b1t], axis=1)
    prep['a1'] = jnp.concatenate([src['a1'], tgt['a1']], axis=1)
    prep['m1'] = _merge_matrix(tgt['scale1'])                  # (64, 64)

    # ---- block 2: conv(32->64,(3,5)); branches read different inputs, so the fused
    # weight is block-diagonal over [src patches | tgt patches] -> 128 output lanes.
    w2s, b2s = _fold_bn(src['w2'], src['b2'], src['g2'], src['be2'], src['m2'], src['v2'])
    w2t, b2t = _fold_bn(tgt['w2'], tgt['b2'], tgt['g2'], tgt['be2'], tgt['m2'], tgt['v2'])
    ks, cs = w2s.shape
    kt, ct = w2t.shape
    w2 = jnp.zeros((ks + kt, cs + ct), jnp.float32)
    prep['w2'] = w2.at[:ks, :cs].set(w2s).at[ks:, cs:].set(w2t)   # (960, 128)
    prep['b2'] = jnp.concatenate([b2s, b2t], axis=1)
    prep['a2'] = jnp.concatenate([src['a2'], tgt['a2']], axis=1)
    prep['m2'] = _merge_matrix(tgt['scale2'])                  # (128, 128)

    # ---- FC block + output ----
    wfs, bfs = _fold_bn(_permute_fc_rows(src['wf'], 64, 4, 4), src['bf'],
                        src['gf'], src['bef'], src['mf'], src['vf'])
    wft, bft = _fold_bn(_permute_fc_rows(tgt['wf'], 64, 4, 4), tgt['bf'],
                        tgt['gf'], tgt['bef'], tgt['mf'], tgt['vf'])
    prep['wfs'], prep['bfs'], prep['afs'] = wfs, bfs, src['af']
    prep['wft'], prep['bft'], prep['aft'] = wft, bft, tgt['af']
    prep['s3'] = tgt['scale3']
    prep['wo'], prep['bo'] = tgt['wo'], tgt['bo']
    return prep


# --------------------------------- forward ---------------------------------

def target_network_forward(prep, x):
    """x: (N, 1, 8, 52) float32, NCHW (as in the PyTorch module)."""
    n, _, h, w = x.shape
    oh1, ow1p = h - 2, (w - 4) // 3            # 6, 16
    oh2, ow2p = oh1 - 2, (ow1p - 4) // 3       # 4, 4

    # ---- block 1: conv1(src+tgt) -> BN(folded) -> PReLU -> merge -> MaxPool(1,3) ----
    p1 = _im2col_pooled(jnp.transpose(x, (0, 2, 3, 1)), 3, 5)            # (3, N*96, 15)
    slab1 = _conv_block(p1, prep['w1'], prep['b1'], prep['a1'], prep['m1'])  # (N*96, 64)

    # ---- block 2 ----
    s1 = slab1.reshape(n, oh1, ow1p, 64)
    p2 = jnp.concatenate([_im2col_pooled(s1[..., :32], 3, 5),            # source patches
                          _im2col_pooled(s1[..., 32:], 3, 5)], axis=-1)  # target patches
    slab2 = _conv_block(p2, prep['w2'], prep['b2'], prep['a2'], prep['m2'])  # (N*16, 128)

    # ---- flatten channel-last (h, w, c); FC weight rows were permuted to match ----
    s2 = slab2.reshape(n, oh2 * ow2p, 128)
    flat_s = s2[:, :, :64].reshape(n, oh2 * ow2p * 64)
    flat_t = s2[:, :, 64:].reshape(n, oh2 * ow2p * 64)

    # ---- FC(src+tgt) -> PReLU -> merge -> output Linear ----
    n_class = prep['wo'].shape[1]
    return _call(_fc_output_kernel, (n, n_class),
                 flat_s, flat_t, prep['wfs'], prep['bfs'], prep['afs'],
                 prep['wft'], prep['bft'], prep['aft'], prep['s3'],
                 prep['wo'], prep['bo'])


# ---------------------- pure-JAX reference (validation) ---------------------

def _reference_forward(params, x):
    src, tgt = params['src'], params['tgt']
    n = x.shape[0]

    def conv2d(x_nchw, w_mat, b, cin, kh, kw):
        cout = w_mat.shape[1]
        w4 = w_mat.T.reshape(cout, cin, kh, kw)
        y = jax.lax.conv_general_dilated(x_nchw, w4, (1, 1), 'VALID',
                                         dimension_numbers=('NCHW', 'OIHW', 'NCHW'))
        return y + b.reshape(1, cout, 1, 1)

    def bn_prelu4(y, g, be, m, v, a):
        sh = (1, -1, 1, 1)
        yn = g.reshape(sh) * (y - m.reshape(sh)) * jax.lax.rsqrt(v.reshape(sh) + EPS) \
            + be.reshape(sh)
        return jnp.where(yn >= 0, yn, a.reshape(sh) * yn)

    def pool13(y):
        nn, c, hh, ww = y.shape
        return y[:, :, :, :(ww // 3) * 3].reshape(nn, c, hh, ww // 3, 3).max(axis=-1)

    def fc_bn_prelu(xf, wm, b, g, be, m, v, a):
        y = xf @ wm + b
        yn = g * (y - m) * jax.lax.rsqrt(v + EPS) + be
        return jnp.where(yn >= 0, yn, a * yn)

    c1s = bn_prelu4(conv2d(x, src['w1'], src['b1'], 1, 3, 5),
                    src['g1'], src['be1'], src['m1'], src['v1'], src['a1'])
    c1t = bn_prelu4(conv2d(x, tgt['w1'], tgt['b1'], 1, 3, 5),
                    tgt['g1'], tgt['be1'], tgt['m1'], tgt['v1'], tgt['a1'])
    c1t_added = c1t + tgt['scale1'].reshape(1, -1, 1, 1) * c1s
    p1s, p1t = pool13(c1s), pool13(c1t_added)

    c2s = bn_prelu4(conv2d(p1s, src['w2'], src['b2'], 32, 3, 5),
                    src['g2'], src['be2'], src['m2'], src['v2'], src['a2'])
    c2t = bn_prelu4(conv2d(p1t, tgt['w2'], tgt['b2'], 32, 3, 5),
                    tgt['g2'], tgt['be2'], tgt['m2'], tgt['v2'], tgt['a2'])
    c2t_added = c2t + tgt['scale2'].reshape(1, -1, 1, 1) * c2s
    p2s, p2t = pool13(c2s), pool13(c2t_added)

    fs, ft = p2s.reshape(n, -1), p2t.reshape(n, -1)            # NCHW flatten (c, h, w)
    f1s = fc_bn_prelu(fs, src['wf'], src['bf'], src['gf'], src['bef'],
                      src['mf'], src['vf'], src['af'])
    f1t = fc_bn_prelu(ft, tgt['wf'], tgt['bf'], tgt['gf'], tgt['bef'],
                      tgt['mf'], tgt['vf'], tgt['af'])
    f1t_added = f1t + tgt['scale3'] * f1s
    return f1t_added @ tgt['wo'] + tgt['bo']


# ----------------------------------- main -----------------------------------

if __name__ == "__main__":
    number_of_class = 7
    key = jax.random.PRNGKey(0)
    kp, kx = jax.random.split(key)

    params = make_params(kp, number_of_class)
    prep = prepare_params(params)      # one-time: fold BN, fuse branches, permute FC rows
    # Input implied by the module: (N, 1, 8, 52) so that the flatten width is 1024.
    x = jax.random.normal(kx, (2, 1, 8, 52), jnp.float32)

    fwd = jax.jit(target_network_forward)
    out = fwd(prep, x)
    jax.block_until_ready(out)

    assert out.shape == (2, number_of_class), out.shape
    assert out.dtype == jnp.float32

    # Validate the fused Pallas path against an un-fused pure-JAX reference.
    ref = jax.jit(_reference_forward)(params, x)
    jax.block_until_ready(ref)
    err = float(jnp.max(jnp.abs(out - ref)))
    assert err < 5e-3, f"max |out - ref| = {err}"

    # TODO(synk): training-mode Dropout2d channel masking intentionally omitted (eval semantics).
    print("KERNEL_OK")
</pallas_src>

<mosaic_0001>
module attributes {stable_mosaic.version = 11 : i64} {
  func.func @_conv_block_kernel(%arg0: memref<3x192x15xf32, #tpu.memory_space<vmem>>, %arg1: memref<15x64xf32, #tpu.memory_space<vmem>>, %arg2: memref<1x64xf32, #tpu.memory_space<vmem>>, %arg3: memref<1x64xf32, #tpu.memory_space<vmem>>, %arg4: memref<64x64xf32, #tpu.memory_space<vmem>>, %arg5: memref<192x64xf32, #tpu.memory_space<vmem>>) attributes {dimension_semantics = [], scalar_prefetch = 0 : i64, scratch_operands = 0 : i64, tpu.core_type = #tpu.core_type<tc>} {
    %c0 = arith.constant 0 : index
    %c0_0 = arith.constant 0 : index
    %c0_1 = arith.constant 0 : index
    %0 = vector.load %arg0[%c0, %c0_0, %c0_1] : memref<3x192x15xf32, #tpu.memory_space<vmem>>, vector<1x192x15xf32>
    %1 = vector.shape_cast %0 : vector<1x192x15xf32> to vector<192x15xf32>
    %c0_2 = arith.constant 0 : index
    %c0_3 = arith.constant 0 : index
    %2 = vector.load %arg1[%c0_2, %c0_3] : memref<15x64xf32, #tpu.memory_space<vmem>>, vector<15x64xf32>
    %cst = arith.constant dense<0.000000e+00> : vector<192x64xf32>
    %3 = tpu.matmul %1, %2, %cst {dimension_numbers = #tpu.dot_dimension_numbers<[1], [0], [0], [1], [0, 0, 1, 1], [], []>} : vector<192x15xf32>, vector<15x64xf32>, vector<192x64xf32> -> vector<192x64xf32>
    %c0_4 = arith.constant 0 : index
    %c0_5 = arith.constant 0 : index
    %4 = vector.load %arg2[%c0_4, %c0_5] : memref<1x64xf32, #tpu.memory_space<vmem>>, vector<1x64xf32>
    %5 = vector.broadcast %4 : vector<1x64xf32> to vector<192x64xf32>
    %6 = arith.addf %3, %5 : vector<192x64xf32>
    %cst_6 = arith.constant 0.000000e+00 : f32
    %7 = vector.broadcast %cst_6 : f32 to vector<192x64xf32>
    %8 = arith.cmpf oge, %6, %7 : vector<192x64xf32>
    %c0_7 = arith.constant 0 : index
    %c0_8 = arith.constant 0 : index
    %9 = vector.load %arg3[%c0_7, %c0_8] : memref<1x64xf32, #tpu.memory_space<vmem>>, vector<1x64xf32>
    %10 = vector.broadcast %9 : vector<1x64xf32> to vector<192x64xf32>
    %11 = arith.mulf %10, %6 : vector<192x64xf32>
    %12 = arith.select %8, %6, %11 : vector<192x64xi1>, vector<192x64xf32>
    %c0_9 = arith.constant 0 : index
    %c0_10 = arith.constant 0 : index
    %13 = vector.load %arg4[%c0_9, %c0_10] : memref<64x64xf32, #tpu.memory_space<vmem>>, vector<64x64xf32>
    %cst_11 = arith.constant dense<0.000000e+00> : vector<192x64xf32>
    %14 = tpu.matmul %12, %13, %cst_11 {dimension_numbers = #tpu.dot_dimension_numbers<[1], [0], [0], [1], [0, 0, 1, 1], [], []>} : vector<192x64xf32>, vector<64x64xf32>, vector<192x64xf32> -> vector<192x64xf32>
    %15 = arith.addf %12, %14 : vector<192x64xf32>
    %c1 = arith.constant 1 : index
    %c0_12 = arith.constant 0 : index
    %c0_13 = arith.constant 0 : index
    %16 = vector.load %arg0[%c1, %c0_12, %c0_13] : memref<3x192x15xf32, #tpu.memory_space<vmem>>, vector<1x192x15xf32>
    %17 = vector.shape_cast %16 : vector<1x192x15xf32> to vector<192x15xf32>
    %c0_14 = arith.constant 0 : index
    %c0_15 = arith.constant 0 : index
    %18 = vector.load %arg1[%c0_14, %c0_15] : memref<15x64xf32, #tpu.memory_space<vmem>>, vector<15x64xf32>
    %cst_16 = arith.constant dense<0.000000e+00> : vector<192x64xf32>
    %19 = tpu.matmul %17, %18, %cst_16 {dimension_numbers = #tpu.dot_dimension_numbers<[1], [0], [0], [1], [0, 0, 1, 1], [], []>} : vector<192x15xf32>, vector<15x64xf32>, vector<192x64xf32> -> vector<192x64xf32>
    %c0_17 = arith.constant 0 : index
    %c0_18 = arith.constant 0 : index
    %20 = vector.load %arg2[%c0_17, %c0_18] : memref<1x64xf32, #tpu.memory_space<vmem>>, vector<1x64xf32>
    %21 = vector.broadcast %20 : vector<1x64xf32> to vector<192x64xf32>
    %22 = arith.addf %19, %21 : vector<192x64xf32>
    %cst_19 = arith.constant 0.000000e+00 : f32
    %23 = vector.broadcast %cst_19 : f32 to vector<192x64xf32>
    %24 = arith.cmpf oge, %22, %23 : vector<192x64xf32>
    %c0_20 = arith.constant 0 : index
    %c0_21 = arith.constant 0 : index
    %25 = vector.load %arg3[%c0_20, %c0_21] : memref<1x64xf32, #tpu.memory_space<vmem>>, vector<1x64xf32>
    %26 = vector.broadcast %25 : vector<1x64xf32> to vector<192x64xf32>
    %27 = arith.mulf %26, %22 : vector<192x64xf32>
    %28 = arith.select %24, %22, %27 : vector<192x64xi1>, vector<192x64xf32>
    %c0_22 = arith.constant 0 : index
    %c0_23 = arith.constant 0 : index
    %29 = vector.load %arg4[%c0_22, %c0_23] : memref<64x64xf32, #tpu.memory_space<vmem>>, vector<64x64xf32>
    %cst_24 = arith.constant dense<0.000000e+00> : vector<192x64xf32>
    %30 = tpu.matmul %28, %29, %cst_24 {dimension_numbers = #tpu.dot_dimension_numbers<[1], [0], [0], [1], [0, 0, 1, 1], [], []>} : vector<192x64xf32>, vector<64x64xf32>, vector<192x64xf32> -> vector<192x64xf32>
    %31 = arith.addf %28, %30 : vector<192x64xf32>
    %32 = arith.maximumf %15, %31 : vector<192x64xf32>
    %c2 = arith.constant 2 : index
    %c0_25 = arith.constant 0 : index
    %c0_26 = arith.constant 0 : index
    %33 = vector.load %arg0[%c2, %c0_25, %c0_26] : memref<3x192x15xf32, #tpu.memory_space<vmem>>, vector<1x192x15xf32>
    %34 = vector.shape_cast %33 : vector<1x192x15xf32> to vector<192x15xf32>
    %c0_27 = arith.constant 0 : index
    %c0_28 = arith.constant 0 : index
    %35 = vector.load %arg1[%c0_27, %c0_28] : memref<15x64xf32, #tpu.memory_space<vmem>>, vector<15x64xf32>
    %cst_29 = arith.constant dense<0.000000e+00> : vector<192x64xf32>
    %36 = tpu.matmul %34, %35, %cst_29 {dimension_numbers = #tpu.dot_dimension_numbers<[1], [0], [0], [1], [0, 0, 1, 1], [], []>} : vector<192x15xf32>, vector<15x64xf32>, vector<192x64xf32> -> vector<192x64xf32>
    %c0_30 = arith.constant 0 : index
    %c0_31 = arith.constant 0 : index
    %37 = vector.load %arg2[%c0_30, %c0_31] : memref<1x64xf32, #tpu.memory_space<vmem>>, vector<1x64xf32>
    %38 = vector.broadcast %37 : vector<1x64xf32> to vector<192x64xf32>
    %39 = arith.addf %36, %38 : vector<192x64xf32>
    %cst_32 = arith.constant 0.000000e+00 : f32
    %40 = vector.broadcast %cst_32 : f32 to vector<192x64xf32>
    %41 = arith.cmpf oge, %39, %40 : vector<192x64xf32>
    %c0_33 = arith.constant 0 : index
    %c0_34 = arith.constant 0 : index
    %42 = vector.load %arg3[%c0_33, %c0_34] : memref<1x64xf32, #tpu.memory_space<vmem>>, vector<1x64xf32>
    %43 = vector.broadcast %42 : vector<1x64xf32> to vector<192x64xf32>
    %44 = arith.mulf %43, %39 : vector<192x64xf32>
    %45 = arith.select %41, %39, %44 : vector<192x64xi1>, vector<192x64xf32>
    %c0_35 = arith.constant 0 : index
    %c0_36 = arith.constant 0 : index
    %46 = vector.load %arg4[%c0_35, %c0_36] : memref<64x64xf32, #tpu.memory_space<vmem>>, vector<64x64xf32>
    %cst_37 = arith.constant dense<0.000000e+00> : vector<192x64xf32>
    %47 = tpu.matmul %45, %46, %cst_37 {dimension_numbers = #tpu.dot_dimension_numbers<[1], [0], [0], [1], [0, 0, 1, 1], [], []>} : vector<192x64xf32>, vector<64x64xf32>, vector<192x64xf32> -> vector<192x64xf32>
    %48 = arith.addf %45, %47 : vector<192x64xf32>
    %49 = arith.maximumf %32, %48 : vector<192x64xf32>
    %c0_38 = arith.constant 0 : index
    %c0_39 = arith.constant 0 : index
    %50 = vector.load %arg5[%c0_38, %c0_39] : memref<192x64xf32, #tpu.memory_space<vmem>>, vector<192x64xf32>
    tpu.vector_store %arg5[%c0_38, %c0_39], %49 {strides = array<i32>} : memref<192x64xf32, #tpu.memory_space<vmem>>, vector<192x64xf32>,
    return
  }
}

module attributes {stable_mosaic.version = 11 : i64} {
  func.func @_conv_block_kernel(%arg0: memref<3x32x960xf32, #tpu.memory_space<vmem>>, %arg1: memref<960x128xf32, #tpu.memory_space<vmem>>, %arg2: memref<1x128xf32, #tpu.memory_space<vmem>>, %arg3: memref<1x128xf32, #tpu.memory_space<vmem>>, %arg4: memref<128x128xf32, #tpu.memory_space<vmem>>, %arg5: memref<32x128xf32, #tpu.memory_space<vmem>>) attributes {dimension_semantics = [], scalar_prefetch = 0 : i64, scratch_operands = 0 : i64, tpu.core_type = #tpu.core_type<tc>} {
    %c0 = arith.constant 0 : index
    %c0_0 = arith.constant 0 : index
    %c0_1 = arith.constant 0 : index
    %0 = vector.load %arg0[%c0, %c0_0, %c0_1] : memref<3x32x960xf32, #tpu.memory_space<vmem>>, vector<1x32x960xf32>
    %1 = vector.shape_cast %0 : vector<1x32x960xf32> to vector<32x960xf32>
    %c0_2 = arith.constant 0 : index
    %c0_3 = arith.constant 0 : index
    %2 = vector.load %arg1[%c0_2, %c0_3] : memref<960x128xf32, #tpu.memory_space<vmem>>, vector<960x128xf32>
    %cst = arith.constant dense<0.000000e+00> : vector<32x128xf32>
    %3 = tpu.matmul %1, %2, %cst {dimension_numbers = #tpu.dot_dimension_numbers<[1], [0], [0], [1], [0, 0, 1, 1], [], []>} : vector<32x960xf32>, vector<960x128xf32>, vector<32x128xf32> -> vector<32x128xf32>
    %c0_4 = arith.constant 0 : index
    %c0_5 = arith.constant 0 : index
    %4 = vector.load %arg2[%c0_4, %c0_5] : memref<1x128xf32, #tpu.memory_space<vmem>>, vector<1x128xf32>
    %5 = vector.broadcast %4 : vector<1x128xf32> to vector<32x128xf32>
    %6 = arith.addf %3, %5 : vector<32x128xf32>
    %cst_6 = arith.constant 0.000000e+00 : f32
    %7 = vector.broadcast %cst_6 : f32 to vector<32x128xf32>
    %8 = arith.cmpf oge, %6, %7 : vector<32x128xf32>
    %c0_7 = arith.constant 0 : index
    %c0_8 = arith.constant 0 : index
    %9 = vector.load %arg3[%c0_7, %c0_8] : memref<1x128xf32, #tpu.memory_space<vmem>>, vector<1x128xf32>
    %10 = vector.broadcast %9 : vector<1x128xf32> to vector<32x128xf32>
    %11 = arith.mulf %10, %6 : vector<32x128xf32>
    %12 = arith.select %8, %6, %11 : vector<32x128xi1>, vector<32x128xf32>
    %c0_9 = arith.constant 0 : index
    %c0_10 = arith.constant 0 : index
    %13 = vector.load %arg4[%c0_9, %c0_10] : memref<128x128xf32, #tpu.memory_space<vmem>>, vector<128x128xf32>
    %cst_11 = arith.constant dense<0.000000e+00> : vector<32x128xf32>
    %14 = tpu.matmul %12, %13, %cst_11 {dimension_numbers = #tpu.dot_dimension_numbers<[1], [0], [0], [1], [0, 0, 1, 1], [], []>} : vector<32x128xf32>, vector<128x128xf32>, vector<32x128xf32> -> vector<32x128xf32>
    %15 = arith.addf %12, %14 : vector<32x128xf32>
    %c1 = arith.constant 1 : index
    %c0_12 = arith.constant 0 : index
    %c0_13 = arith.constant 0 : index
    %16 = vector.load %arg0[%c1, %c0_12, %c0_13] : memref<3x32x960xf32, #tpu.memory_space<vmem>>, vector<1x32x960xf32>
    %17 = vector.shape_cast %16 : vector<1x32x960xf32> to vector<32x960xf32>
    %c0_14 = arith.constant 0 : index
    %c0_15 = arith.constant 0 : index
    %18 = vector.load %arg1[%c0_14, %c0_15] : memref<960x128xf32, #tpu.memory_space<vmem>>, vector<960x128xf32>
    %cst_16 = arith.constant dense<0.000000e+00> : vector<32x128xf32>
    %19 = tpu.matmul %17, %18, %cst_16 {dimension_numbers = #tpu.dot_dimension_numbers<[1], [0], [0], [1], [0, 0, 1, 1], [], []>} : vector<32x960xf32>, vector<960x128xf32>, vector<32x128xf32> -> vector<32x128xf32>
    %c0_17 = arith.constant 0 : index
    %c0_18 = arith.constant 0 : index
    %20 = vector.load %arg2[%c0_17, %c0_18] : memref<1x128xf32, #tpu.memory_space<vmem>>, vector<1x128xf32>
    %21 = vector.broadcast %20 : vector<1x128xf32> to vector<32x128xf32>
    %22 = arith.addf %19, %21 : vector<32x128xf32>
    %cst_19 = arith.constant 0.000000e+00 : f32
    %23 = vector.broadcast %cst_19 : f32 to vector<32x128xf32>
    %24 = arith.cmpf oge, %22, %23 : vector<32x128xf32>
    %c0_20 = arith.constant 0 : index
    %c0_21 = arith.constant 0 : index
    %25 = vector.load %arg3[%c0_20, %c0_21] : memref<1x128xf32, #tpu.memory_space<vmem>>, vector<1x128xf32>
    %26 = vector.broadcast %25 : vector<1x128xf32> to vector<32x128xf32>
    %27 = arith.mulf %26, %22 : vector<32x128xf32>
    %28 = arith.select %24, %22, %27 : vector<32x128xi1>, vector<32x128xf32>
    %c0_22 = arith.constant 0 : index
    %c0_23 = arith.constant 0 : index
    %29 = vector.load %arg4[%c0_22, %c0_23] : memref<128x128xf32, #tpu.memory_space<vmem>>, vector<128x128xf32>
    %cst_24 = arith.constant dense<0.000000e+00> : vector<32x128xf32>
    %30 = tpu.matmul %28, %29, %cst_24 {dimension_numbers = #tpu.dot_dimension_numbers<[1], [0], [0], [1], [0, 0, 1, 1], [], []>} : vector<32x128xf32>, vector<128x128xf32>, vector<32x128xf32> -> vector<32x128xf32>
    %31 = arith.addf %28, %30 : vector<32x128xf32>
    %32 = arith.maximumf %15, %31 : vector<32x128xf32>
    %c2 = arith.constant 2 : index
    %c0_25 = arith.constant 0 : index
    %c0_26 = arith.constant 0 : index
    %33 = vector.load %arg0[%c2, %c0_25, %c0_26] : memref<3x32x960xf32, #tpu.memory_space<vmem>>, vector<1x32x960xf32>
    %34 = vector.shape_cast %33 : vector<1x32x960xf32> to vector<32x960xf32>
    %c0_27 = arith.constant 0 : index
    %c0_28 = arith.constant 0 : index
    %35 = vector.load %arg1[%c0_27, %c0_28] : memref<960x128xf32, #tpu.memory_space<vmem>>, vector<960x128xf32>
    %cst_29 = arith.constant dense<0.000000e+00> : vector<32x128xf32>
    %36 = tpu.matmul %34, %35, %cst_29 {dimension_numbers = #tpu.dot_dimension_numbers<[1], [0], [0], [1], [0, 0, 1, 1], [], []>} : vector<32x960xf32>, vector<960x128xf32>, vector<32x128xf32> -> vector<32x128xf32>
    %c0_30 = arith.constant 0 : index
    %c0_31 = arith.constant 0 : index
    %37 = vector.load %arg2[%c0_30, %c0_31] : memref<1x128xf32, #tpu.memory_space<vmem>>, vector<1x128xf32>
    %38 = vector.broadcast %37 : vector<1x128xf32> to vector<32x128xf32>
    %39 = arith.addf %36, %38 : vector<32x128xf32>
    %cst_32 = arith.constant 0.000000e+00 : f32
    %40 = vector.broadcast %cst_32 : f32 to vector<32x128xf32>
    %41 = arith.cmpf oge, %39, %40 : vector<32x128xf32>
    %c0_33 = arith.constant 0 : index
    %c0_34 = arith.constant 0 : index
    %42 = vector.load %arg3[%c0_33, %c0_34] : memref<1x128xf32, #tpu.memory_space<vmem>>, vector<1x128xf32>
    %43 = vector.broadcast %42 : vector<1x128xf32> to vector<32x128xf32>
    %44 = arith.mulf %43, %39 : vector<32x128xf32>
    %45 = arith.select %41, %39, %44 : vector<32x128xi1>, vector<32x128xf32>
    %c0_35 = arith.constant 0 : index
    %c0_36 = arith.constant 0 : index
    %46 = vector.load %arg4[%c0_35, %c0_36] : memref<128x128xf32, #tpu.memory_space<vmem>>, vector<128x128xf32>
    %cst_37 = arith.constant dense<0.000000e+00> : vector<32x128xf32>
    %47 = tpu.matmul %45, %46, %cst_37 {dimension_numbers = #tpu.dot_dimension_numbers<[1], [0], [0], [1], [0, 0, 1, 1], [], []>} : vector<32x128xf32>, vector<128x128xf32>, vector<32x128xf32> -> vector<32x128xf32>
    %48 = arith.addf %45, %47 : vector<32x128xf32>
    %49 = arith.maximumf %32, %48 : vector<32x128xf32>
    %c0_38 = arith.constant 0 : index
    %c0_39 = arith.constant 0 : index
    %50 = vector.load %arg5[%c0_38, %c0_39] : memref<32x128xf32, #tpu.memory_space<vmem>>, vector<32x128xf32>
    tpu.vector_store %arg5[%c0_38, %c0_39], %49 {strides = array<i32>} : memref<32x128xf32, #tpu.memory_space<vmem>>, vector<32x128xf32>,
    return
  }
}

module attributes {stable_mosaic.version = 11 : i64} {
  func.func @_fc_output_kernel(%arg0: memref<2x1024xf32, #tpu.memory_space<vmem>>, %arg1: memref<2x1024xf32, #tpu.memory_space<vmem>>, %arg2: memref<1024x500xf32, #tpu.memory_space<vmem>>, %arg3: memref<1x500xf32, #tpu.memory_space<vmem>>, %arg4: memref<1x500xf32, #tpu.memory_space<vmem>>, %arg5: memref<1024x500xf32, #tpu.memory_space<vmem>>, %arg6: memref<1x500xf32, #tpu.memory_space<vmem>>, %arg7: memref<1x500xf32, #tpu.memory_space<vmem>>, %arg8: memref<1x500xf32, #tpu.memory_space<vmem>>, %arg9: memref<500x7xf32, #tpu.memory_space<vmem>>, %arg10: memref<1x7xf32, #tpu.memory_space<vmem>>, %arg11: memref<2x7xf32, #tpu.memory_space<vmem>>) attributes {dimension_semantics = [], scalar_prefetch = 0 : i64, scratch_operands = 0 : i64, tpu.core_type = #tpu.core_type<tc>} {
    %c0 = arith.constant 0 : index
    %c0_0 = arith.constant 0 : index
    %0 = vector.load %arg0[%c0, %c0_0] : memref<2x1024xf32, #tpu.memory_space<vmem>>, vector<2x1024xf32>
    %c0_1 = arith.constant 0 : index
    %c0_2 = arith.constant 0 : index
    %1 = vector.load %arg2[%c0_1, %c0_2] : memref<1024x500xf32, #tpu.memory_space<vmem>>, vector<1024x500xf32>
    %cst = arith.constant dense<0.000000e+00> : vector<2x500xf32>
    %2 = tpu.matmul %0, %1, %cst {dimension_numbers = #tpu.dot_dimension_numbers<[1], [0], [0], [1], [0, 0, 1, 1], [], []>} : vector<2x1024xf32>, vector<1024x500xf32>, vector<2x500xf32> -> vector<2x500xf32>
    %c0_3 = arith.constant 0 : index
    %c0_4 = arith.constant 0 : index
    %3 = vector.load %arg3[%c0_3, %c0_4] : memref<1x500xf32, #tpu.memory_space<vmem>>, vector<1x500xf32>
    %4 = vector.broadcast %3 : vector<1x500xf32> to vector<2x500xf32>
    %5 = arith.addf %2, %4 : vector<2x500xf32>
    %cst_5 = arith.constant 0.000000e+00 : f32
    %6 = vector.broadcast %cst_5 : f32 to vector<2x500xf32>
    %7 = arith.cmpf oge, %5, %6 : vector<2x500xf32>
    %c0_6 = arith.constant 0 : index
    %c0_7 = arith.constant 0 : index
    %8 = vector.load %arg4[%c0_6, %c0_7] : memref<1x500xf32, #tpu.memory_space<vmem>>, vector<1x500xf32>
    %9 = vector.broadcast %8 : vector<1x500xf32> to vector<2x500xf32>
    %10 = arith.mulf %9, %5 : vector<2x500xf32>
    %11 = arith.select %7, %5, %10 : vector<2x500xi1>, vector<2x500xf32>
    %c0_8 = arith.constant 0 : index
    %c0_9 = arith.constant 0 : index
    %12 = vector.load %arg1[%c0_8, %c0_9] : memref<2x1024xf32, #tpu.memory_space<vmem>>, vector<2x1024xf32>
    %c0_10 = arith.constant 0 : index
    %c0_11 = arith.constant 0 : index
    %13 = vector.load %arg5[%c0_10, %c0_11] : memref<1024x500xf32, #tpu.memory_space<vmem>>, vector<1024x500xf32>
    %cst_12 = arith.constant dense<0.000000e+00> : vector<2x500xf32>
    %14 = tpu.matmul %12, %13, %cst_12 {dimension_numbers = #tpu.dot_dimension_numbers<[1], [0], [0], [1], [0, 0, 1, 1], [], []>} : vector<2x1024xf32>, vector<1024x500xf32>, vector<2x500xf32> -> vector<2x500xf32>
    %c0_13 = arith.constant 0 : index
    %c0_14 = arith.constant 0 : index
    %15 = vector.load %arg6[%c0_13, %c0_14] : memref<1x500xf32, #tpu.memory_space<vmem>>, vector<1x500xf32>
    %16 = vector.broadcast %15 : vector<1x500xf32> to vector<2x500xf32>
    %17 = arith.addf %14, %16 : vector<2x500xf32>
    %cst_15 = arith.constant 0.000000e+00 : f32
    %18 = vector.broadcast %cst_15 : f32 to vector<2x500xf32>
    %19 = arith.cmpf oge, %17, %18 : vector<2x500xf32>
    %c0_16 = arith.constant 0 : index
    %c0_17 = arith.constant 0 : index
    %20 = vector.load %arg7[%c0_16, %c0_17] : memref<1x500xf32, #tpu.memory_space<vmem>>, vector<1x500xf32>
    %21 = vector.broadcast %20 : vector<1x500xf32> to vector<2x500xf32>
    %22 = arith.mulf %21, %17 : vector<2x500xf32>
    %23 = arith.select %19, %17, %22 : vector<2x500xi1>, vector<2x500xf32>
    %c0_18 = arith.constant 0 : index
    %c0_19 = arith.constant 0 : index
    %24 = vector.load %arg8[%c0_18, %c0_19] : memref<1x500xf32, #tpu.memory_space<vmem>>, vector<1x500xf32>
    %25 = vector.broadcast %24 : vector<1x500xf32> to vector<2x500xf32>
    %26 = arith.mulf %25, %11 : vector<2x500xf32>
    %27 = arith.addf %23, %26 : vector<2x500xf32>
    %c0_20 = arith.constant 0 : index
    %c0_21 = arith.constant 0 : index
    %28 = vector.load %arg9[%c0_20, %c0_21] : memref<500x7xf32, #tpu.memory_space<vmem>>, vector<500x7xf32>
    %cst_22 = arith.constant dense<0.000000e+00> : vector<2x7xf32>
    %29 = tpu.matmul %27, %28, %cst_22 {dimension_numbers = #tpu.dot_dimension_numbers<[1], [0], [0], [1], [0, 0, 1, 1], [], []>} : vector<2x500xf32>, vector<500x7xf32>, vector<2x7xf32> -> vector<2x7xf32>
    %c0_23 = arith.constant 0 : index
    %c0_24 = arith.constant 0 : index
    %30 = vector.load %arg10[%c0_23, %c0_24] : memref<1x7xf32, #tpu.memory_space<vmem>>, vector<1x7xf32>
    %31 = vector.broadcast %30 : vector<1x7xf32> to vector<2x7xf32>
    %32 = arith.addf %29, %31 : vector<2x7xf32>
    %c0_25 = arith.constant 0 : index
    %c0_26 = arith.constant 0 : index
    %33 = vector.load %arg11[%c0_25, %c0_26] : memref<2x7xf32, #tpu.memory_space<vmem>>, vector<2x7xf32>
    tpu.vector_store %arg11[%c0_25, %c0_26], %32 {strides = array<i32>} : memref<2x7xf32, #tpu.memory_space<vmem>>, vector<2x7xf32>,
    return
  }
}

</mosaic_0001>

<llo_original>
// kernel: target_network_forward.3
$region0: #{target_network_forward.3}
  #allocation0 [shape = 'u32[]', space=smem, size = 0x4, offset = 0x4, fixed_abs, tag = 'smem constant byte address 0x4 - core index']
  #allocation1 [shape = 'u32[144,128]{1,0:T(1,128)}', space=vmem, size = 0x12000, scoped, tag = 'internal scratch']
  %s0 = inlined_call_operand.vmem [shape: f32[3,192,15], index: 0, kind: input, shape index: {}]
  %s1 = inlined_call_operand.vmem [shape: f32[15,64], index: 1, kind: input, shape index: {}]
  %s2 = inlined_call_operand.vmem [shape: f32[1,64], index: 2, kind: input, shape index: {}]
  %s3 = inlined_call_operand.vmem [shape: f32[1,64], index: 3, kind: input, shape index: {}]
  %s4 = inlined_call_operand.vmem [shape: f32[64,64], index: 4, kind: input, shape index: {}]
  %s5 = inlined_call_operand.vmem [shape: f32[192,64], index: 5, kind: output, shape index: {}]
  %s6 = sld [smem:[#allocation0]]
  $region30: #{target_network_forward.3} parent=0
    _
  %s8 = ssub.s32 1, %s6
  %s9 = scalar_select 0, %s8, %s6
  // Predicated region
  $region2: #{target_network_forward.3} parent=0 // pred_check
    _
  $region3: #{target_network_forward.3} parent=0 // pred_check_branch
    %11 = sbr.rel (0) target = $region5
  $region4: #{target_network_forward.3} parent=0 // pred_region
    _
  $region5: #{target_network_forward.3} parent=0 // pred_fallthru
    _
  // Predicated region
  $region6: #{target_network_forward.3} parent=0 // pred_check
    _
  $region7: #{target_network_forward.3} parent=0 // pred_check_branch
    %13 = sbr.rel (0) target = $region9
  $region8: #{target_network_forward.3} parent=0 // pred_region
    _
  $region9: #{target_network_forward.3} parent=0 // pred_fallthru
    _
  // Predicated region
  $region10: #{target_network_forward.3} parent=0 // pred_check
    _
  $region11: #{target_network_forward.3} parent=0 // pred_check_branch
    %15 = sbr.rel (0) target = $region13
  $region12: #{target_network_forward.3} parent=0 // pred_region
    _
  $region13: #{target_network_forward.3} parent=0 // pred_fallthru
    _
  // Predicated region
  $region14: #{target_network_forward.3} parent=0 // pred_check
    _
  $region15: #{target_network_forward.3} parent=0 // pred_check_branch
    %17 = sbr.rel (0) target = $region17
  $region16: #{target_network_forward.3} parent=0 // pred_region
    _
  $region17: #{target_network_forward.3} parent=0 // pred_fallthru
    _
  // Predicated region
  $region18: #{target_network_forward.3} parent=0 // pred_check
    _
  $region19: #{target_network_forward.3} parent=0 // pred_check_branch
    %19 = sbr.rel (0) target = $region21
  $region20: #{target_network_forward.3} parent=0 // pred_region
    _
  $region21: #{target_network_forward.3} parent=0 // pred_fallthru
    _
  %v20 = vld [vmem:[%s0] sm:$0xff]
  %v21 = vld [vmem:[%s0 + $0x8] sm:$0xff]
  %v22 = vld [vmem:[%s0 + $0x10] sm:$0xff]
  %v23 = vld [vmem:[%s0 + $0x18] sm:$0xff]
  %v24 = vld [vmem:[%s0 + $0x20] sm:$0xff]
  %v25 = vld [vmem:[%s0 + $0x28] sm:$0xff]
  %v26 = vld [vmem:[%s0 + $0x30] sm:$0xff]
  %v27 = vld [vmem:[%s0 + $0x38] sm:$0xff]
  %v28 = vld [vmem:[%s0 + $0x40] sm:$0xff]
  %v29 = vld [vmem:[%s0 + $0x48] sm:$0xff]
  %v30 = vld [vmem:[%s0 + $0x50] sm:$0xff]
  %v31 = vld [vmem:[%s0 + $0x58] sm:$0xff]
  %v32 = vld [vmem:[%s0 + $0x60] sm:$0xff]
  %v33 = vld [vmem:[%s0 + $0x68] sm:$0xff]
  %v34 = vld [vmem:[%s0 + $0x70] sm:$0xff]
  %v35 = vld [vmem:[%s0 + $0x78] sm:$0xff]
  %v36 = vld [vmem:[%s0 + $0x80] sm:$0xff]
  %v37 = vld [vmem:[%s0 + $0x88] sm:$0xff]
  %v38 = vld [vmem:[%s0 + $0x90] sm:$0xff]
  %v39 = vld [vmem:[%s0 + $0x98] sm:$0xff]
  %v40 = vld [vmem:[%s0 + $0xa0] sm:$0xff]
  %v41 = vld [vmem:[%s0 + $0xa8] sm:$0xff]
  %v42 = vld [vmem:[%s0 + $0xb0] sm:$0xff]
  %v43 = vld [vmem:[%s0 + $0xb8] sm:$0xff]
  %v44 = vld [vmem:[%s1] sm:$0xff]
  %v45 = vld [vmem:[%s1 + $0x8] sm:$0x7f]
  %v46 = vld [vmem:[%s2] sm:$0x1]
  %v48 = vlaneseq
  %v49 = vshrl.u32 %v48, 7
  %v50 = vsub.s32 0, %v49
  %v51 = vrot.slane %v46, %v50
  %vm53 = vcmask 121856
  %v55 = vsel %vm53, %v20, 0
  %v58 = vsel %vm53, %v21, 0
  %v61 = vsel %vm53, %v22, 0
  %v64 = vsel %vm53, %v23, 0
  %v67 = vsel %vm53, %v24, 0
  %v70 = vsel %vm53, %v25, 0
  %v73 = vsel %vm53, %v26, 0
  %v76 = vsel %vm53, %v27, 0
  %v79 = vsel %vm53, %v28, 0
  %v82 = vsel %vm53, %v29, 0
  %v85 = vsel %vm53, %v30, 0
  %v88 = vsel %vm53, %v31, 0
  %v91 = vsel %vm53, %v32, 0
  %v94 = vsel %vm53, %v33, 0
  %v97 = vsel %vm53, %v34, 0
  %v100 = vsel %vm53, %v35, 0
  %v103 = vsel %vm53, %v36, 0
  %v106 = vsel %vm53, %v37, 0
  %v109 = vsel %vm53, %v38, 0
  %v112 = vsel %vm53, %v39, 0
  %v115 = vsel %vm53, %v40, 0
  %v118 = vsel %vm53, %v41, 0
  %v121 = vsel %vm53, %v42, 0
  %v124 = vsel %vm53, %v43, 0
  %vm126 = vcmask 1046528
  %v128 = vsel %vm126, %v45, 0
  %130 = vmatprep.subr.mxu0 0.0
  %131 = vmatpush1.msra.mxu0 %v44
  %132 = vmatprep.subr.mxu0 0.0
  %133 = vmatpush1.msra.mxu0 %v128
  %134 = vmatprep.subr.mxu0 0.0
  %135 = vmatpush1.msra.mxu0 0.0
  %136 = vmatprep.subr.mxu0 0.0
  %137 = vmatpush1.msra.mxu0 0.0
  %138 = vmatprep.subr.mxu0 0.0
  %139 = vmatpush1.msra.mxu0 0.0
  %140 = vmatprep.subr.mxu0 0.0
  %141 = vmatpush1.msra.mxu0 0.0
  %142 = vmatprep.subr.mxu0 0.0
  %143 = vmatpush1.msra.mxu0 0.0
  %144 = vmatprep.subr.mxu0 0.0
  %145 = vmatpush1.msra.mxu0 0.0
  %146 = vmatprep.subr.mxu0 0.0
  %147 = vmatpush1.msra.mxu0 0.0
  %148 = vmatprep.subr.mxu0 0.0
  %149 = vmatpush1.msra.mxu0 0.0
  %150 = vmatprep.subr.mxu0 0.0
  %151 = vmatpush1.msra.mxu0 0.0
  %152 = vmatprep.subr.mxu0 0.0
  %153 = vmatpush1.msra.mxu0 0.0
  %154 = vmatprep.subr.mxu0 0.0
  %155 = vmatpush1.msra.mxu0 0.0
  %156 = vmatprep.subr.mxu0 0.0
  %157 = vmatpush1.msra.mxu0 0.0
  %158 = vmatprep.subr.mxu0 0.0
  %159 = vmatpush1.msra.mxu0 0.0
  %160 = vmatprep.subr.mxu0 0.0
  %161 = vmatpush1.msra.mxu0 0.0
  %162 = vmatprep.subr.mxu0 0.0
  %163 = vmatpush1.msra.mxu0 0.0
  %164 = vmatprep.subr.mxu0 0.0
  %165 = vmatpush1.msra.mxu0 0.0
  %166 = vmatprep.subr.mxu0 0.0
  %167 = vmatpush1.msra.mxu0 0.0
  %168 = vmatprep.subr.mxu0 0.0
  %169 = vmatpush1.msra.mxu0 0.0
  %170 = vmatprep.subr.mxu0 0.0
  %171 = vmatpush1.msra.mxu0 0.0
  %172 = vmatprep.subr.mxu0 0.0
  %173 = vmatpush1.msra.mxu0 0.0
  %174 = vmatprep.subr.mxu0 0.0
  %175 = vmatpush1.msra.mxu0 0.0
  %176 = vmatprep.subr.mxu0 0.0
  %177 = vmatpush1.msra.mxu0 0.0
  %178 = vmatprep.subr.mxu0 0.0
  %179 = vmatpush1.msra.mxu0 0.0
  %180 = vmatprep.subr.mxu0 0.0
  %181 = vmatpush1.msra.mxu0 0.0
  %182 = vmatprep.subr.mxu0 0.0
  %183 = vmatpush1.msra.mxu0 0.0
  %184 = vmatprep.subr.mxu0 0.0
  %185 = vmatpush1.msra.mxu0 0.0
  %186 = vmatprep.subr.mxu0 0.0
  %187 = vmatpush1.msra.mxu0 0.0
  %188 = vmatprep.subr.mxu0 0.0
  %189 = vmatpush1.msra.mxu0 0.0
  %190 = vmatprep.subr.mxu0 0.0
  %191 = vmatpush1.msra.mxu0 0.0
  %192 = vmatprep.subr.mxu0 0.0
  %193 = vmatpush1.msra.mxu0 0.0
  %194 = vmatprep.mubr.f32.mxu0 0.0
  %195 = vmatmul.mubr.f32.gmra.mrb[0].mxu0 %v55
  %v196 = vpop.f32.mrb[0].mxu0
  %v197 = vadd.f32 %v51, %v196
  %v198 = vpop.f32.mrb[0].mxu0
  %199 = vmatprep.mubr.f32.mxu0 0.0
  %200 = vmatmul.mubr.f32.gmra.mrb[0].mxu0 %v58
  %v201 = vpop.f32.mrb[0].mxu0
  %v202 = vadd.f32 %v51, %v201
  %v203 = vpop.f32.mrb[0].mxu0
  %204 = vmatprep.mubr.f32.mxu0 0.0
  %205 = vmatmul.mubr.f32.gmra.mrb[0].mxu0 %v61
  %v206 = vpop.f32.mrb[0].mxu0
  %v207 = vadd.f32 %v51, %v206
  %v208 = vpop.f32.mrb[0].mxu0
  %209 = vmatprep.mubr.f32.mxu0 0.0
  %210 = vmatmul.mubr.f32.gmra.mrb[0].mxu0 %v64
  %v211 = vpop.f32.mrb[0].mxu0
  %v212 = vadd.f32 %v51, %v211
  %v213 = vpop.f32.mrb[0].mxu0
  %214 = vmatprep.mubr.f32.mxu0 0.0
  %215 = vmatmul.mubr.f32.gmra.mrb[0].mxu0 %v67
  %v216 = vpop.f32.mrb[0].mxu0
  %v217 = vadd.f32 %v51, %v216
  %v218 = vpop.f32.mrb[0].mxu0
  %219 = vmatprep.mubr.f32.mxu0 0.0
  %220 = vmatmul.mubr.f32.gmra.mrb[0].mxu0 %v70
  %v221 = vpop.f32.mrb[0].mxu0
  %v222 = vadd.f32 %v51, %v221
  %v223 = vpop.f32.mrb[0].mxu0
  %224 = vmatprep.mubr.f32.mxu0 0.0
  %225 = vmatmul.mubr.f32.gmra.mrb[0].mxu0 %v73
  %v226 = vpop.f32.mrb[0].mxu0
  %v227 = vadd.f32 %v51, %v226
  %v228 = vpop.f32.mrb[0].mxu0
  %229 = vmatprep.mubr.f32.mxu0 0.0
  %230 = vmatmul.mubr.f32.gmra.mrb[0].mxu0 %v76
  %v231 = vpop.f32.mrb[0].mxu0
  %v232 = vadd.f32 %v51, %v231
  %v233 = vpop.f32.mrb[0].mxu0
  %234 = vmatprep.mubr.f32.mxu0 0.0
  %235 = vmatmul.mubr.f32.gmra.mrb[0].mxu0 %v79
  %v236 = vpop.f32.mrb[0].mxu0
  %v237 = vadd.f32 %v51, %v236
  %v238 = vpop.f32.mrb[0].mxu0
  %239 = vmatprep.mubr.f32.mxu0 0.0
  %240 = vmatmul.mubr.f32.gmra.mrb[0].mxu0 %v82
  %v241 = vpop.f32.mrb[0].mxu0
  %v242 = vadd.f32 %v51, %v241
  %v243 = vpop.f32.mrb[0].mxu0
  %244 = vmatprep.mubr.f32.mxu0 0.0
  %245 = vmatmul.mubr.f32.gmra.mrb[0].mxu0 %v85
  %v246 = vpop.f32.mrb[0].mxu0
  %v247 = vadd.f32 %v51, %v246
  %v248 = vpop.f32.mrb[0].mxu0
  %249 = vmatprep.mubr.f32.mxu0 0.0
  %250 = vmatmul.mubr.f32.gmra.mrb[0].mxu0 %v88
  %v251 = vpop.f32.mrb[0].mxu0
  %v252 = vadd.f32 %v51, %v251
  %v253 = vpop.f32.mrb[0].mxu0
  %254 = vmatprep.mubr.f32.mxu0 0.0
  %255 = vmatmul.mubr.f32.gmra.mrb[0].mxu0 %v91
  %v256 = vpop.f32.mrb[0].mxu0
  %v257 = vadd.f32 %v51, %v256
  %v258 = vpop.f32.mrb[0].mxu0
  %259 = vmatprep.mubr.f32.mxu0 0.0
  %260 = vmatmul.mubr.f32.gmra.mrb[0].mxu0 %v94
  %v261 = vpop.f32.mrb[0].mxu0
  %v262 = vadd.f32 %v51, %v261
  %v263 = vpop.f32.mrb[0].mxu0
  %264 = vmatprep.mubr.f32.mxu0 0.0
  %265 = vmatmul.mubr.f32.gmra.mrb[0].mxu0 %v97
  %v266 = vpop.f32.mrb[0].mxu0
  %v267 = vadd.f32 %v51, %v266
  %v268 = vpop.f32.mrb[0].mxu0
  %269 = vmatprep.mubr.f32.mxu0 0.0
  %270 = vmatmul.mubr.f32.gmra.mrb[0].mxu0 %v100
  %v271 = vpop.f32.mrb[0].mxu0
  %v272 = vadd.f32 %v51, %v271
  %v273 = vpop.f32.mrb[0].mxu0
  %274 = vmatprep.mubr.f32.mxu0 0.0
  %275 = vmatmul.mubr.f32.gmra.mrb[0].mxu0 %v103
  %v276 = vpop.f32.mrb[0].mxu0
  %v277 = vadd.f32 %v51, %v276
  %v278 = vpop.f32.mrb[0].mxu0
  %279 = vmatprep.mubr.f32.mxu0 0.0
  %280 = vmatmul.mubr.f32.gmra.mrb[0].mxu0 %v106
  %v281 = vpop.f32.mrb[0].mxu0
  %v282 = vadd.f32 %v51, %v281
  %v283 = vpop.f32.mrb[0].mxu0
  %284 = vmatprep.mubr.f32.mxu0 0.0
  %285 = vmatmul.mubr.f32.gmra.mrb[0].mxu0 %v109
  %v286 = vpop.f32.mrb[0].mxu0
  %v287 = vadd.f32 %v51, %v286
  %v288 = vpop.f32.mrb[0].mxu0
  %289 = vmatprep.mubr.f32.mxu0 0.0
  %290 = vmatmul.mubr.f32.gmra.mrb[0].mxu0 %v112
  %v291 = vpop.f32.mrb[0].mxu0
  %v292 = vadd.f32 %v51, %v291
  %v293 = vpop.f32.mrb[0].mxu0
  %294 = vmatprep.mubr.f32.mxu0 0.0
  %295 = vmatmul.mubr.f32.gmra.mrb[0].mxu0 %v115
  %v296 = vpop.f32.mrb[0].mxu0
  %v297 = vadd.f32 %v51, %v296
  %v298 = vpop.f32.mrb[0].mxu0
  %299 = vmatprep.mubr.f32.mxu0 0.0
  %300 = vmatmul.mubr.f32.gmra.mrb[0].mxu0 %v118
  %v301 = vpop.f32.mrb[0].mxu0
  %v302 = vadd.f32 %v51, %v301
  %v303 = vpop.f32.mrb[0].mxu0
  %304 = vmatprep.mubr.f32.mxu0 0.0
  %305 = vmatmul.mubr.f32.gmra.mrb[0].mxu0 %v121
  %v306 = vpop.f32.mrb[0].mxu0
  %v307 = vadd.f32 %v51, %v306
  %v308 = vpop.f32.mrb[0].mxu0
  %309 = vmatprep.mubr.f32.mxu0 0.0
  %310 = vmatmul.mubr.f32.gmra.mrb[0].mxu0 %v124
  %v311 = vpop.f32.mrb[0].mxu0
  %v312 = vadd.f32 %v51, %v311
  %v313 = vpop.f32.mrb[0].mxu0
  %314 = vdwg.mxu0
  %vm315 = vcmp.ge.f32.partialorder %v197, 0.0
  %vm316 = vcmp.ge.f32.partialorder %v202, 0.0
  %vm317 = vcmp.ge.f32.partialorder %v207, 0.0
  %vm318 = vcmp.ge.f32.partialorder %v212, 0.0
  %vm319 = vcmp.ge.f32.partialorder %v217, 0.0
  %vm320 = vcmp.ge.f32.partialorder %v222, 0.0
  %vm321 = vcmp.ge.f32.partialorder %v227, 0.0
  %vm322 = vcmp.ge.f32.partialorder %v232, 0.0
  %vm323 = vcmp.ge.f32.partialorder %v237, 0.0
  %vm324 = vcmp.ge.f32.partialorder %v242, 0.0
  %vm325 = vcmp.ge.f32.partialorder %v247, 0.0
  %vm326 = vcmp.ge.f32.partialorder %v252, 0.0
  %vm327 = vcmp.ge.f32.partialorder %v257, 0.0
  %vm328 = vcmp.ge.f32.partialorder %v262, 0.0
  %vm329 = vcmp.ge.f32.partialorder %v267, 0.0
  %vm330 = vcmp.ge.f32.partialorder %v272, 0.0
  %vm331 = vcmp.ge.f32.partialorder %v277, 0.0
  %vm332 = vcmp.ge.f32.partialorder %v282, 0.0
  %vm333 = vcmp.ge.f32.partialorder %v287, 0.0
  %vm334 = vcmp.ge.f32.partialorder %v292, 0.0
  %vm335 = vcmp.ge.f32.partialorder %v297, 0.0
  %vm336 = vcmp.ge.f32.partialorder %v302, 0.0
  %vm337 = vcmp.ge.f32.partialorder %v307, 0.0
  %vm338 = vcmp.ge.f32.partialorder %v312, 0.0
  %v339 = vld [vmem:[%s3] sm:$0x1]
  %v341 = vlaneseq
  %v342 = vshrl.u32 %v341, 7
  %v343 = vsub.s32 0, %v342
  %v344 = vrot.slane %v339, %v343
  %v346 = vmul.f32 %v344, %v197
  %v347 = vmul.f32 %v344, %v202
  %v348 = vmul.f32 %v344, %v207
  %v349 = vmul.f32 %v344, %v212
  %v350 = vmul.f32 %v344, %v217
  %v351 = vmul.f32 %v344, %v222
  %v352 = vmul.f32 %v344, %v227
  %v353 = vmul.f32 %v344, %v232
  %v354 = vmul.f32 %v344, %v237
  %v355 = vmul.f32 %v344, %v242
  %v356 = vmul.f32 %v344, %v247
  %v357 = vmul.f32 %v344, %v252
  %v358 = vmul.f32 %v344, %v257
  %v359 = vmul.f32 %v344, %v262
  %v360 = vmul.f32 %v344, %v267
  %v361 = vmul.f32 %v344, %v272
  %v362 = vmul.f32 %v344, %v277
  %v363 = vmul.f32 %v344, %v282
  %v364 = vmul.f32 %v344, %v287
  %v365 = vmul.f32 %v344, %v292
  %v366 = vmul.f32 %v344, %v297
  %v367 = vmul.f32 %v344, %v302
  %v368 = vmul.f32 %v344, %v307
  %v369 = vmul.f32 %v344, %v312
  %v370 = vsel %vm315, %v197, %v346
  %v371 = vsel %vm316, %v202, %v347
  %v372 = vsel %vm317, %v207, %v348
  %v373 = vsel %vm318, %v212, %v349
  %v374 = vsel %vm319, %v217, %v350
  %v375 = vsel %vm320, %v222, %v351
  %v376 = vsel %vm321, %v227, %v352
  %v377 = vsel %vm322, %v232, %v353
  %v378 = vsel %vm323, %v237, %v354
  %v379 = vsel %vm324, %v242, %v355
  %v380 = vsel %vm325, %v247, %v356
  %v381 = vsel %vm326, %v252, %v357
  %v382 = vsel %vm327, %v257, %v358
  %v383 = vsel %vm328, %v262, %v359
  %v384 = vsel %vm329, %v267, %v360
  %v385 = vsel %vm330, %v272, %v361
  %v386 = vsel %vm331, %v277, %v362
  %v387 = vsel %vm332, %v282, %v363
  %v388 = vsel %vm333, %v287, %v364
  %v389 = vsel %vm334, %v292, %v365
  %v390 = vsel %vm335, %v297, %v366
  %v391 = vsel %vm336, %v302, %v367
  %v392 = vsel %vm337, %v307, %v368
  %v393 = vsel %vm338, %v312, %v369
  %v394 = vld [vmem:[%s4] sm:$0xff]
  %v395 = vld [vmem:[%s4 + $0x8] sm:$0xff]
  %v396 = vld [vmem:[%s4 + $0x10] sm:$0xff]
  %v397 = vld [vmem:[%s4 + $0x18] sm:$0xff]
  %v398 = vld [vmem:[%s4 + $0x20] sm:$0xff]
  %v399 = vld [vmem:[%s4 + $0x28] sm:$0xff]
  %v400 = vld [vmem:[%s4 + $0x30] sm:$0xff]
  %v401 = vld [vmem:[%s4 + $0x38] sm:$0xff]
  %vm402 = vcmask 523264
  %v404 = vsel %vm402, %v370, 0
  %v407 = vsel %vm402, %v371, 0
  %v410 = vsel %vm402, %v372, 0
  %v413 = vsel %vm402, %v373, 0
  %v416 = vsel %vm402, %v374, 0
  %v419 = vsel %vm402, %v375, 0
  %v422 = vsel %vm402, %v376, 0
  %v425 = vsel %vm402, %v377, 0
  %v428 = vsel %vm402, %v378, 0
  %v431 = vsel %vm402, %v379, 0
  %v434 = vsel %vm402, %v380, 0
  %v437 = vsel %vm402, %v381, 0
  %v440 = vsel %vm402, %v382, 0
  %v443 = vsel %vm402, %v383, 0
  %v446 = vsel %vm402, %v384, 0
  %v449 = vsel %vm402, %v385, 0
  %v452 = vsel %vm402, %v386, 0
  %v455 = vsel %vm402, %v387, 0
  %v458 = vsel %vm402, %v388, 0
  %v461 = vsel %vm402, %v389, 0
  %v464 = vsel %vm402, %v390, 0
  %v467 = vsel %vm402, %v391, 0
  %v470 = vsel %vm402, %v392, 0
  %v473 = vsel %vm402, %v393, 0
  %475 = vmatprep.subr.mxu0 0.0
  %476 = vmatpush1.msra.mxu0 %v394
  %477 = vmatprep.subr.mxu0 0.0
  %478 = vmatpush1.msra.mxu0 %v395
  %479 = vmatprep.subr.mxu0 0.0
  %480 = vmatpush1.msra.mxu0 %v396
  %481 = vmatprep.subr.mxu0 0.0
  %482 = vmatpush1.msra.mxu0 %v397
  %483 = vmatprep.subr.mxu0 0.0
  %484 = vmatpush1.msra.mxu0 %v398
  %485 = vmatprep.subr.mxu0 0.0
  %486 = vmatpush1.msra.mxu0 %v399
  %487 = vmatprep.subr.mxu0 0.0
  %488 = vmatpush1.msra.mxu0 %v400
  %489 = vmatprep.subr.mxu0 0.0
  %490 = vmatpush1.msra.mxu0 %v401
  %491 = vmatprep.subr.mxu0 0.0
  %492 = vmatpush1.msra.mxu0 0.0
  %493 = vmatprep.subr.mxu0 0.0
  %494 = vmatpush1.msra.mxu0 0.0
  %495 = vmatprep.subr.mxu0 0.0
  %496 = vmatpush1.msra.mxu0 0.0
  %497 = vmatprep.subr.mxu0 0.0
  %498 = vmatpush1.msra.mxu0 0.0
  %499 = vmatprep.subr.mxu0 0.0
  %500 = vmatpush1.msra.mxu0 0.0
  %501 = vmatprep.subr.mxu0 0.0
  %502 = vmatpush1.msra.mxu0 0.0
  %503 = vmatprep.subr.mxu0 0.0
  %504 = vmatpush1.msra.mxu0 0.0
  %505 = vmatprep.subr.mxu0 0.0
  %506 = vmatpush1.msra.mxu0 0.0
  %507 = vmatprep.subr.mxu0 0.0
  %508 = vmatpush1.msra.mxu0 0.0
  %509 = vmatprep.subr.mxu0 0.0
  %510 = vmatpush1.msra.mxu0 0.0
  %511 = vmatprep.subr.mxu0 0.0
  %512 = vmatpush1.msra.mxu0 0.0
  %513 = vmatprep.subr.mxu0 0.0
  %514 = vmatpush1.msra.mxu0 0.0
  %515 = vmatprep.subr.mxu0 0.0
  %516 = vmatpush1.msra.mxu0 0.0
  %517 = vmatprep.subr.mxu0 0.0
  %518 = vmatpush1.msra.mxu0 0.0
  %519 = vmatprep.subr.mxu0 0.0
  %520 = vmatpush1.msra.mxu0 0.0
  %521 = vmatprep.subr.mxu0 0.0
  %522 = vmatpush1.msra.mxu0 0.0
  %523 = vmatprep.subr.mxu0 0.0
  %524 = vmatpush1.msra.mxu0 0.0
  %525 = vmatprep.subr.mxu0 0.0
  %526 = vmatpush1.msra.mxu0 0.0
  %527 = vmatprep.subr.mxu0 0.0
  %528 = vmatpush1.msra.mxu0 0.0
  %529 = vmatprep.subr.mxu0 0.0
  %530 = vmatpush1.msra.mxu0 0.0
  %531 = vmatprep.subr.mxu0 0.0
  %532 = vmatpush1.msra.mxu0 0.0
  %533 = vmatprep.subr.mxu0 0.0
  %534 = vmatpush1.msra.mxu0 0.0
  %535 = vmatprep.subr.mxu0 0.0
  %536 = vmatpush1.msra.mxu0 0.0
  %537 = vmatprep.subr.mxu0 0.0
  %538 = vmatpush1.msra.mxu0 0.0
  %539 = vmatprep.mubr.f32.mxu0 0.0
  %540 = vmatmul.mubr.f32.gmra.mrb[0].mxu0 %v404
  %v541 = vpop.f32.mrb[0].mxu0
  %v542 = vadd.f32 0.0, %v541
  %v543 = vpop.f32.mrb[0].mxu0
  %544 = vmatprep.mubr.f32.mxu0 0.0
  %545 = vmatmul.mubr.f32.gmra.mrb[0].mxu0 %v407
  %v546 = vpop.f32.mrb[0].mxu0
  %v547 = vadd.f32 0.0, %v546
  %v548 = vpop.f32.mrb[0].mxu0
  %549 = vmatprep.mubr.f32.mxu0 0.0
  %550 = vmatmul.mubr.f32.gmra.mrb[0].mxu0 %v410
  %v551 = vpop.f32.mrb[0].mxu0
  %v552 = vadd.f32 0.0, %v551
  %v553 = vpop.f32.mrb[0].mxu0
  %554 = vmatprep.mubr.f32.mxu0 0.0
  %555 = vmatmul.mubr.f32.gmra.mrb[0].mxu0 %v413
  %v556 = vpop.f32.mrb[0].mxu0
  %v557 = vadd.f32 0.0, %v556
  %v558 = vpop.f32.mrb[0].mxu0
  %559 = vmatprep.mubr.f32.mxu0 0.0
  %560 = vmatmul.mubr.f32.gmra.mrb[0].mxu0 %v416
  %v561 = vpop.f32.mrb[0].mxu0
  %v562 = vadd.f32 0.0, %v561
  %v563 = vpop.f32.mrb[0].mxu0
  %564 = vmatprep.mubr.f32.mxu0 0.0
  %565 = vmatmul.mubr.f32.gmra.mrb[0].mxu0 %v419
  %v566 = vpop.f32.mrb[0].mxu0
  %v567 = vadd.f32 0.0, %v566
  %v568 = vpop.f32.mrb[0].mxu0
  %569 = vmatprep.mubr.f32.mxu0 0.0
  %570 = vmatmul.mubr.f32.gmra.mrb[0].mxu0 %v422
  %v571 = vpop.f32.mrb[0].mxu0
  %v572 = vadd.f32 0.0, %v571
  %v573 = vpop.f32.mrb[0].mxu0
  %574 = vmatprep.mubr.f32.mxu0 0.0
  %575 = vmatmul.mubr.f32.gmra.mrb[0].mxu0 %v425
  %v576 = vpop.f32.mrb[0].mxu0
  %v577 = vadd.f32 0.0, %v576
  %v578 = vpop.f32.mrb[0].mxu0
  %579 = vmatprep.mubr.f32.mxu0 0.0
  %580 = vmatmul.mubr.f32.gmra.mrb[0].mxu0 %v428
  %v581 = vpop.f32.mrb[0].mxu0
  %v582 = vadd.f32 0.0, %v581
  %v583 = vpop.f32.mrb[0].mxu0
  %584 = vmatprep.mubr.f32.mxu0 0.0
  %585 = vmatmul.mubr.f32.gmra.mrb[0].mxu0 %v431
  %v586 = vpop.f32.mrb[0].mxu0
  %v587 = vadd.f32 0.0, %v586
  %v588 = vpop.f32.mrb[0].mxu0
  %589 = vmatprep.mubr.f32.mxu0 0.0
  %590 = vmatmul.mubr.f32.gmra.mrb[0].mxu0 %v434
  %v591 = vpop.f32.mrb[0].mxu0
  %v592 = vadd.f32 0.0, %v591
  %v593 = vpop.f32.mrb[0].mxu0
  %594 = vmatprep.mubr.f32.mxu0 0.0
  %595 = vmatmul.mubr.f32.gmra.mrb[0].mxu0 %v437
  %v596 = vpop.f32.mrb[0].mxu0
  %v597 = vadd.f32 0.0, %v596
  %v598 = vpop.f32.mrb[0].mxu0
  %599 = vmatprep.mubr.f32.mxu0 0.0
  %600 = vmatmul.mubr.f32.gmra.mrb[0].mxu0 %v440
  %v601 = vpop.f32.mrb[0].mxu0
  %v602 = vadd.f32 0.0, %v601
  %v603 = vpop.f32.mrb[0].mxu0
  %604 = vmatprep.mubr.f32.mxu0 0.0
  %605 = vmatmul.mubr.f32.gmra.mrb[0].mxu0 %v443
  %v606 = vpop.f32.mrb[0].mxu0
  %v607 = vadd.f32 0.0, %v606
  %v608 = vpop.f32.mrb[0].mxu0
  %609 = vmatprep.mubr.f32.mxu0 0.0
  %610 = vmatmul.mubr.f32.gmra.mrb[0].mxu0 %v446
  %v611 = vpop.f32.mrb[0].mxu0
  %v612 = vadd.f32 0.0, %v611
  %v613 = vpop.f32.mrb[0].mxu0
  %614 = vmatprep.mubr.f32.mxu0 0.0
  %615 = vmatmul.mubr.f32.gmra.mrb[0].mxu0 %v449
  %v616 = vpop.f32.mrb[0].mxu0
  %v617 = vadd.f32 0.0, %v616
  %v618 = vpop.f32.mrb[0].mxu0
  %619 = vmatprep.mubr.f32.mxu0 0.0
  %620 = vmatmul.mubr.f32.gmra.mrb[0].mxu0 %v452
  %v621 = vpop.f32.mrb[0].mxu0
  %v622 = vadd.f32 0.0, %v621
  %v623 = vpop.f32.mrb[0].mxu0
  %624 = vmatprep.mubr.f32.mxu0 0.0
  %625 = vmatmul.mubr.f32.gmra.mrb[0].mxu0 %v455
  %v626 = vpop.f32.mrb[0].mxu0
  %v627 = vadd.f32 0.0, %v626
  %v628 = vpop.f32.mrb[0].mxu0
  %629 = vmatprep.mubr.f32.mxu0 0.0
  %630 = vmatmul.mubr.f32.gmra.mrb[0].mxu0 %v458
  %v631 = vpop.f32.mrb[0].mxu0
  %v632 = vadd.f32 0.0, %v631
  %v633 = vpop.f32.mrb[0].mxu0
  %634 = vmatprep.mubr.f32.mxu0 0.0
  %635 = vmatmul.mubr.f32.gmra.mrb[0].mxu0 %v461
  %v636 = vpop.f32.mrb[0].mxu0
  %v637 = vadd.f32 0.0, %v636
  %v638 = vpop.f32.mrb[0].mxu0
  %639 = vmatprep.mubr.f32.mxu0 0.0
  %640 = vmatmul.mubr.f32.gmra.mrb[0].mxu0 %v464
  %v641 = vpop.f32.mrb[0].mxu0
  %v642 = vadd.f32 0.0, %v641
  %v643 = vpop.f32.mrb[0].mxu0
  %644 = vmatprep.mubr.f32.mxu0 0.0
  %645 = vmatmul.mubr.f32.gmra.mrb[0].mxu0 %v467
  %v646 = vpop.f32.mrb[0].mxu0
  %v647 = vadd.f32 0.0, %v646
  %v648 = vpop.f32.mrb[0].mxu0
  %649 = vmatprep.mubr.f32.mxu0 0.0
  %650 = vmatmul.mubr.f32.gmra.mrb[0].mxu0 %v470
  %v651 = vpop.f32.mrb[0].mxu0
  %v652 = vadd.f32 0.0, %v651
  %v653 = vpop.f32.mrb[0].mxu0
  %654 = vmatprep.mubr.f32.mxu0 0.0
  %655 = vmatmul.mubr.f32.gmra.mrb[0].mxu0 %v473
  %v656 = vpop.f32.mrb[0].mxu0
  %v657 = vadd.f32 0.0, %v656
  %v658 = vpop.f32.mrb[0].mxu0
  %659 = vdwg.mxu0
  %v660 = vadd.f32 %v370, %v542
  %v661 = vadd.f32 %v371, %v547
  %v662 = vadd.f32 %v372, %v552
  %v663 = vadd.f32 %v373, %v557
  %v664 = vadd.f32 %v374, %v562
  %v665 = vadd.f32 %v375, %v567
  %v666 = vadd.f32 %v376, %v572
  %v667 = vadd.f32 %v377, %v577
  %v668 = vadd.f32 %v378, %v582
  %v669 = vadd.f32 %v379, %v587
  %v670 = vadd.f32 %v380, %v592
  %v671 = vadd.f32 %v381, %v597
  %v672 = vadd.f32 %v382, %v602
  %v673 = vadd.f32 %v383, %v607
  %v674 = vadd.f32 %v384, %v612
  %v675 = vadd.f32 %v385, %v617
  %v676 = vadd.f32 %v386, %v622
  %v677 = vadd.f32 %v387, %v627
  %v678 = vadd.f32 %v388, %v632
  %v679 = vadd.f32 %v389, %v637
  %v680 = vadd.f32 %v390, %v642
  %v681 = vadd.f32 %v391, %v647
  %v682 = vadd.f32 %v392, %v652
  %v683 = vadd.f32 %v393, %v657
  %s684 = scalar_lea.vmem %s0, 192
  %v685 = vld [vmem:[%s684] sm:$0xff]
  %v686 = vld [vmem:[%s684 + $0x8] sm:$0xff]
  %v687 = vld [vmem:[%s684 + $0x10] sm:$0xff]
  %v688 = vld [vmem:[%s684 + $0x18] sm:$0xff]
  %v689 = vld [vmem:[%s684 + $0x20] sm:$0xff]
  %v690 = vld [vmem:[%s684 + $0x28] sm:$0xff]
  %v691 = vld [vmem:[%s684 + $0x30] sm:$0xff]
  %v692 = vld [vmem:[%s684 + $0x38] sm:$0xff]
  %v693 = vld [vmem:[%s684 + $0x40] sm:$0xff]
  %v694 = vld [vmem:[%s684 + $0x48] sm:$0xff]
  %v695 = vld [vmem:[%s684 + $0x50] sm:$0xff]
  %v696 = vld [vmem:[%s684 + $0x58] sm:$0xff]
  %v697 = vld [vmem:[%s684 + $0x60] sm:$0xff]
  %v698 = vld [vmem:[%s684 + $0x68] sm:$0xff]
  %v699 = vld [vmem:[%s684 + $0x70] sm:$0xff]
  %v700 = vld [vmem:[%s684 + $0x78] sm:$0xff]
  %v701 = vld [vmem:[%s684 + $0x80] sm:$0xff]
  %v702 = vld [vmem:[%s684 + $0x88] sm:$0xff]
  %v703 = vld [vmem:[%s684 + $0x90] sm:$0xff]
  %v704 = vld [vmem:[%s684 + $0x98] sm:$0xff]
  %v705 = vld [vmem:[%s684 + $0xa0] sm:$0xff]
  %v706 = vld [vmem:[%s684 + $0xa8] sm:$0xff]
  %v707 = vld [vmem:[%s684 + $0xb0] sm:$0xff]
  %v708 = vld [vmem:[%s684 + $0xb8] sm:$0xff]
  %v710 = vsel %vm53, %v685, 0
  %v713 = vsel %vm53, %v686, 0
  %v716 = vsel %vm53, %v687, 0
  %v719 = vsel %vm53, %v688, 0
  %v722 = vsel %vm53, %v689, 0
  %v725 = vsel %vm53, %v690, 0
  %v728 = vsel %vm53, %v691, 0
  %v731 = vsel %vm53, %v692, 0
  %v734 = vsel %vm53, %v693, 0
  %v737 = vsel %vm53, %v694, 0
  %v740 = vsel %vm53, %v695, 0
  %v743 = vsel %vm53, %v696, 0
  %v746 = vsel %vm53, %v697, 0
  %v749 = vsel %vm53, %v698, 0
  %v752 = vsel %vm53, %v699, 0
  %v755 = vsel %vm53, %v700, 0
  %v758 = vsel %vm53, %v701, 0
  %v761 = vsel %vm53, %v702, 0
  %v764 = vsel %vm53, %v703, 0
  %v767 = vsel %vm53, %v704, 0
  %v770 = vsel %vm53, %v705, 0
  %v773 = vsel %vm53, %v706, 0
  %v776 = vsel %vm53, %v707, 0
  %v779 = vsel %vm53, %v708, 0
  %781 = vmatprep.subr.mxu0 0.0
  %782 = vmatpush1.msra.mxu0 %v44
  %783 = vmatprep.subr.mxu0 0.0
  %784 = vmatpush1.msra.mxu0 %v128
  %785 = vmatprep.subr.mxu0 0.0
  %786 = vmatpush1.msra.mxu0 0.0
  %787 = vmatprep.subr.mxu0 0.0
  %788 = vmatpush1.msra.mxu0 0.0
  %789 = vmatprep.subr.mxu0 0.0
  %790 = vmatpush1.msra.mxu0 0.0
  %791 = vmatprep.subr.mxu0 0.0
  %792 = vmatpush1.msra.mxu0 0.0
  %793 = vmatprep.subr.mxu0 0.0
  %794 = vmatpush1.msra.mxu0 0.0
  %795 = vmatprep.subr.mxu0 0.0
  %796 = vmatpush1.msra.mxu0 0.0
  %797 = vmatprep.subr.mxu0 0.0
  %798 = vmatpush1.msra.mxu0 0.0
  %799 = vmatprep.subr.mxu0 0.0
  %800 = vmatpush1.msra.mxu0 0.0
  %801 = vmatprep.subr.mxu0 0.0
  %802 = vmatpush1.msra.mxu0 0.0
  %803 = vmatprep.subr.mxu0 0.0
  %804 = vmatpush1.msra.mxu0 0.0
  %805 = vmatprep.subr.mxu0 0.0
  %806 = vmatpush1.msra.mxu0 0.0
  %807 = vmatprep.subr.mxu0 0.0
  %808 = vmatpush1.msra.mxu0 0.0
  %809 = vmatprep.subr.mxu0 0.0
  %810 = vmatpush1.msra.mxu0 0.0
  %811 = vmatprep.subr.mxu0 0.0
  %812 = vmatpush1.msra.mxu0 0.0
  %813 = vmatprep.subr.mxu0 0.0
  %814 = vmatpush1.msra.mxu0 0.0
  %815 = vmatprep.subr.mxu0 0.0
  %816 = vmatpush1.msra.mxu0 0.0
  %817 = vmatprep.subr.mxu0 0.0
  %818 = vmatpush1.msra.mxu0 0.0
  %819 = vmatprep.subr.mxu0 0.0
  %820 = vmatpush1.msra.mxu0 0.0
  %821 = vmatprep.subr.mxu0 0.0
  %822 = vmatpush1.msra.mxu0 0.0
  %823 = vmatprep.subr.mxu0 0.0
  %824 = vmatpush1.msra.mxu0 0.0
  %825 = vmatprep.subr.mxu0 0.0
  %826 = vmatpush1.msra.mxu0 0.0
  %827 = vmatprep.subr.mxu0 0.0
  %828 = vmatpush1.msra.mxu0 0.0
  %829 = vmatprep.subr.mxu0 0.0
  %830 = vmatpush1.msra.mxu0 0.0
  %831 = vmatprep.subr.mxu0 0.0
  %832 = vmatpush1.msra.mxu0 0.0
  %833 = vmatprep.subr.mxu0 0.0
  %834 = vmatpush1.msra.mxu0 0.0
  %835 = vmatprep.subr.mxu0 0.0
  %836 = vmatpush1.msra.mxu0 0.0
  %837 = vmatprep.subr.mxu0 0.0
  %838 = vmatpush1.msra.mxu0 0.0
  %839 = vmatprep.subr.mxu0 0.0
  %840 = vmatpush1.msra.mxu0 0.0
  %841 = vmatprep.subr.mxu0 0.0
  %842 = vmatpush1.msra.mxu0 0.0
  %843 = vmatprep.subr.mxu0 0.0
  %844 = vmatpush1.msra.mxu0 0.0
  %845 = vmatprep.mubr.f32.mxu0 0.0
  %846 = vmatmul.mubr.f32.gmra.mrb[0].mxu0 %v710
  %v847 = vpop.f32.mrb[0].mxu0
  %v848 = vadd.f32 %v51, %v847
  %v849 = vpop.f32.mrb[0].mxu0
  %850 = vmatprep.mubr.f32.mxu0 0.0
  %851 = vmatmul.mubr.f32.gmra.mrb[0].mxu0 %v713
  %v852 = vpop.f32.mrb[0].mxu0
  %v853 = vadd.f32 %v51, %v852
  %v854 = vpop.f32.mrb[0].mxu0
  %855 = vmatprep.mubr.f32.mxu0 0.0
  %856 = vmatmul.mubr.f32.gmra.mrb[0].mxu0 %v716
  %v857 = vpop.f32.mrb[0].mxu0
  %v858 = vadd.f32 %v51, %v857
  %v859 = vpop.f32.mrb[0].mxu0
  %860 = vmatprep.mubr.f32.mxu0 0.0
  %861 = vmatmul.mubr.f32.gmra.mrb[0].mxu0 %v719
  %v862 = vpop.f32.mrb[0].mxu0
  %v863 = vadd.f32 %v51, %v862
  %v864 = vpop.f32.mrb[0].mxu0
  %865 = vmatprep.mubr.f32.mxu0 0.0
  %866 = vmatmul.mubr.f32.gmra.mrb[0].mxu0 %v722
  %v867 = vpop.f32.mrb[0].mxu0
  %v868 = vadd.f32 %v51, %v867
  %v869 = vpop.f32.mrb[0].mxu0
  %870 = vmatprep.mubr.f32.mxu0 0.0
  %871 = vmatmul.mubr.f32.gmra.mrb[0].mxu0 %v725
  %v872 = vpop.f32.mrb[0].mxu0
  %v873 = vadd.f32 %v51, %v872
  %v874 = vpop.f32.mrb[0].mxu0
  %875 = vmatprep.mubr.f32.mxu0 0.0
  %876 = vmatmul.mubr.f32.gmra.mrb[0].mxu0 %v728
  %v877 = vpop.f32.mrb[0].mxu0
  %v878 = vadd.f32 %v51, %v877
  %v879 = vpop.f32.mrb[0].mxu0
  %880 = vmatprep.mubr.f32.mxu0 0.0
  %881 = vmatmul.mubr.f32.gmra.mrb[0].mxu0 %v731
  %v882 = vpop.f32.mrb[0].mxu0
  %v883 = vadd.f32 %v51, %v882
  %v884 = vpop.f32.mrb[0].mxu0
  %885 = vmatprep.mubr.f32.mxu0 0.0
  %886 = vmatmul.mubr.f32.gmra.mrb[0].mxu0 %v734
  %v887 = vpop.f32.mrb[0].mxu0
  %v888 = vadd.f32 %v51, %v887
  %v889 = vpop.f32.mrb[0].mxu0
  %890 = vmatprep.mubr.f32.mxu0 0.0
  %891 = vmatmul.mubr.f32.gmra.mrb[0].mxu0 %v737
  %v892 = vpop.f32.mrb[0].mxu0
  %v893 = vadd.f32 %v51, %v892
  %v894 = vpop.f32.mrb[0].mxu0
  %895 = vmatprep.mubr.f32.mxu0 0.0
  %896 = vmatmul.mubr.f32.gmra.mrb[0].mxu0 %v740
  %v897 = vpop.f32.mrb[0].mxu0
  %v898 = vadd.f32 %v51, %v897
  %v899 = vpop.f32.mrb[0].mxu0
  %900 = vmatprep.mubr.f32.mxu0 0.0
  %901 = vmatmul.mubr.f32.gmra.mrb[0].mxu0 %v743
  %v902 = vpop.f32.mrb[0].mxu0
  %v903 = vadd.f32 %v51, %v902
  %v904 = vpop.f32.mrb[0].mxu0
  %905 = vmatprep.mubr.f32.mxu0 0.0
  %906 = vmatmul.mubr.f32.gmra.mrb[0].mxu0 %v746
  %v907 = vpop.f32.mrb[0].mxu0
  %v908 = vadd.f32 %v51, %v907
  %v909 = vpop.f32.mrb[0].mxu0
  %910 = vmatprep.mubr.f32.mxu0 0.0
  %911 = vmatmul.mubr.f32.gmra.mrb[0].mxu0 %v749
  %v912 = vpop.f32.mrb[0].mxu0
  %v913 = vadd.f32 %v51, %v912
  %v914 = vpop.f32.mrb[0].mxu0
  %915 = vmatprep.mubr.f32.mxu0 0.0
  %916 = vmatmul.mubr.f32.gmra.mrb[0].mxu0 %v752
  %v917 = vpop.f32.mrb[0].mxu0
  %v918 = vadd.f32 %v51, %v917
  %v919 = vpop.f32.mrb[0].mxu0
  %920 = vmatprep.mubr.f32.mxu0 0.0
  %921 = vmatmul.mubr.f32.gmra.mrb[0].mxu0 %v755
  %v922 = vpop.f32.mrb[0].mxu0
  %v923 = vadd.f32 %v51, %v922
  %v924 = vpop.f32.mrb[0].mxu0
  %925 = vmatprep.mubr.f32.mxu0 0.0
  %926 = vmatmul.mubr.f32.gmra.mrb[0].mxu0 %v758
  %v927 = vpop.f32.mrb[0].mxu0
  %v928 = vadd.f32 %v51, %v927
  %v929 = vpop.f32.mrb[0].mxu0
  %930 = vmatprep.mubr.f32.mxu0 0.0
  %931 = vmatmul.mubr.f32.gmra.mrb[0].mxu0 %v761
  %v932 = vpop.f32.mrb[0].mxu0
  %v933 = vadd.f32 %v51, %v932
  %v934 = vpop.f32.mrb[0].mxu0
  %935 = vmatprep.mubr.f32.mxu0 0.0
  %936 = vmatmul.mubr.f32.gmra.mrb[0].mxu0 %v764
  %v937 = vpop.f32.mrb[0].mxu0
  %v938 = vadd.f32 %v51, %v937
  %v939 = vpop.f32.mrb[0].mxu0
  %940 = vmatprep.mubr.f32.mxu0 0.0
  %941 = vmatmul.mubr.f32.gmra.mrb[0].mxu0 %v767
  %v942 = vpop.f32.mrb[0].mxu0
  %v943 = vadd.f32 %v51, %v942
  %v944 = vpop.f32.mrb[0].mxu0
  %945 = vmatprep.mubr.f32.mxu0 0.0
  %946 = vmatmul.mubr.f32.gmra.mrb[0].mxu0 %v770
  %v947 = vpop.f32.mrb[0].mxu0
  %v948 = vadd.f32 %v51, %v947
  %v949 = vpop.f32.mrb[0].mxu0
  %950 = vmatprep.mubr.f32.mxu0 0.0
  %951 = vmatmul.mubr.f32.gmra.mrb[0].mxu0 %v773
  %v952 = vpop.f32.mrb[0].mxu0
  %v953 = vadd.f32 %v51, %v952
  %v954 = vpop.f32.mrb[0].mxu0
  %955 = vmatprep.mubr.f32.mxu0 0.0
  %956 = vmatmul.mubr.f32.gmra.mrb[0].mxu0 %v776
  %v957 = vpop.f32.mrb[0].mxu0
  %v958 = vadd.f32 %v51, %v957
  %v959 = vpop.f32.mrb[0].mxu0
  %960 = vmatprep.mubr.f32.mxu0 0.0
  %961 = vmatmul.mubr.f32.gmra.mrb[0].mxu0 %v779
  %v962 = vpop.f32.mrb[0].mxu0
  %v963 = vadd.f32 %v51, %v962
  %v964 = vpop.f32.mrb[0].mxu0
  %965 = vdwg.mxu0
  %vm966 = vcmp.ge.f32.partialorder %v848, 0.0
  %vm967 = vcmp.ge.f32.partialorder %v853, 0.0
  %vm968 = vcmp.ge.f32.partialorder %v858, 0.0
  %vm969 = vcmp.ge.f32.partialorder %v863, 0.0
  %vm970 = vcmp.ge.f32.partialorder %v868, 0.0
  %vm971 = vcmp.ge.f32.partialorder %v873, 0.0
  %vm972 = vcmp.ge.f32.partialorder %v878, 0.0
  %vm973 = vcmp.ge.f32.partialorder %v883, 0.0
  %vm974 = vcmp.ge.f32.partialorder %v888, 0.0
  %vm975 = vcmp.ge.f32.partialorder %v893, 0.0
  %vm976 = vcmp.ge.f32.partialorder %v898, 0.0
  %vm977 = vcmp.ge.f32.partialorder %v903, 0.0
  %vm978 = vcmp.ge.f32.partialorder %v908, 0.0
  %vm979 = vcmp.ge.f32.partialorder %v913, 0.0
  %vm980 = vcmp.ge.f32.partialorder %v918, 0.0
  %vm981 = vcmp.ge.f32.partialorder %v923, 0.0
  %vm982 = vcmp.ge.f32.partialorder %v928, 0.0
  %vm983 = vcmp.ge.f32.partialorder %v933, 0.0
  %vm984 = vcmp.ge.f32.partialorder %v938, 0.0
  %vm985 = vcmp.ge.f32.partialorder %v943, 0.0
  %vm986 = vcmp.ge.f32.partialorder %v948, 0.0
  %vm987 = vcmp.ge.f32.partialorder %v953, 0.0
  %vm988 = vcmp.ge.f32.partialorder %v958, 0.0
  %vm989 = vcmp.ge.f32.partialorder %v963, 0.0
  %v990 = vmul.f32 %v344, %v848
  %v991 = vmul.f32 %v344, %v853
  %v992 = vmul.f32 %v344, %v858
  %v993 = vmul.f32 %v344, %v863
  %v994 = vmul.f32 %v344, %v868
  %v995 = vmul.f32 %v344, %v873
  %v996 = vmul.f32 %v344, %v878
  %v997 = vmul.f32 %v344, %v883
  %v998 = vmul.f32 %v344, %v888
  %v999 = vmul.f32 %v344, %v893
  %v1000 = vmul.f32 %v344, %v898
  %v1001 = vmul.f32 %v344, %v903
  %v1002 = vmul.f32 %v344, %v908
  %v1003 = vmul.f32 %v344, %v913
  %v1004 = vmul.f32 %v344, %v918
  %v1005 = vmul.f32 %v344, %v923
  %v1006 = vmul.f32 %v344, %v928
  %v1007 = vmul.f32 %v344, %v933
  %v1008 = vmul.f32 %v344, %v938
  %v1009 = vmul.f32 %v344, %v943
  %v1010 = vmul.f32 %v344, %v948
  %v1011 = vmul.f32 %v344, %v953
  %v1012 = vmul.f32 %v344, %v958
  %v1013 = vmul.f32 %v344, %v963
  %v1014 = vsel %vm966, %v848, %v990
  %v1015 = vsel %vm967, %v853, %v991
  %v1016 = vsel %vm968, %v858, %v992
  %v1017 = vsel %vm969, %v863, %v993
  %v1018 = vsel %vm970, %v868, %v994
  %v1019 = vsel %vm971, %v873, %v995
  %v1020 = vsel %vm972, %v878, %v996
  %v1021 = vsel %vm973, %v883, %v997
  %v1022 = vsel %vm974, %v888, %v998
  %v1023 = vsel %vm975, %v893, %v999
  %v1024 = vsel %vm976, %v898, %v1000
  %v1025 = vsel %vm977, %v903, %v1001
  %v1026 = vsel %vm978, %v908, %v1002
  %v1027 = vsel %vm979, %v913, %v1003
  %v1028 = vsel %vm980, %v918, %v1004
  %v1029 = vsel %vm981, %v923, %v1005
  %v1030 = vsel %vm982, %v928, %v1006
  %v1031 = vsel %vm983, %v933, %v1007
  %v1032 = vsel %vm984, %v938, %v1008
  %v1033 = vsel %vm985, %v943, %v1009
  %v1034 = vsel %vm986, %v948, %v1010
  %v1035 = vsel %vm987, %v953, %v1011
  %v1036 = vsel %vm988, %v958, %v1012
  %v1037 = vsel %vm989, %v963, %v1013
  %v1039 = vsel %vm402, %v1014, 0
  %v1042 = vsel %vm402, %v1015, 0
  %v1045 = vsel %vm402, %v1016, 0
  %v1048 = vsel %vm402, %v1017, 0
  %v1051 = vsel %vm402, %v1018, 0
  %v1054 = vsel %vm402, %v1019, 0
  %v1057 = vsel %vm402, %v1020, 0
  %v1060 = vsel %vm402, %v1021, 0
  %v1063 = vsel %vm402, %v1022, 0
  %v1066 = vsel %vm402, %v1023, 0
  %v1069 = vsel %vm402, %v1024, 0
  %v1072 = vsel %vm402, %v1025, 0
  %v1075 = vsel %vm402, %v1026, 0
  %v1078 = vsel %vm402, %v1027, 0
  %v1081 = vsel %vm402, %v1028, 0
  %v1084 = vsel %vm402, %v1029, 0
  %v1087 = vsel %vm402, %v1030, 0
  %v1090 = vsel %vm402, %v1031, 0
  %v1093 = vsel %vm402, %v1032, 0
  %v1096 = vsel %vm402, %v1033, 0
  %v1099 = vsel %vm402, %v1034, 0
  %v1102 = vsel %vm402, %v1035, 0
  %v1105 = vsel %vm402, %v1036, 0
  %v1108 = vsel %vm402, %v1037, 0
  %1110 = vmatprep.subr.mxu0 0.0
  %1111 = vmatpush1.msra.mxu0 %v394
  %1112 = vmatprep.subr.mxu0 0.0
  %1113 = vmatpush1.msra.mxu0 %v395
  %1114 = vmatprep.subr.mxu0 0.0
  %1115 = vmatpush1.msra.mxu0 %v396
  %1116 = vmatprep.subr.mxu0 0.0
  %1117 = vmatpush1.msra.mxu0 %v397
  %1118 = vmatprep.subr.mxu0 0.0
  %1119 = vmatpush1.msra.mxu0 %v398
  %1120 = vmatprep.subr.mxu0 0.0
  %1121 = vmatpush1.msra.mxu0 %v399
  %1122 = vmatprep.subr.mxu0 0.0
  %1123 = vmatpush1.msra.mxu0 %v400
  %1124 = vmatprep.subr.mxu0 0.0
  %1125 = vmatpush1.msra.mxu0 %v401
  %1126 = vmatprep.subr.mxu0 0.0
  %1127 = vmatpush1.msra.mxu0 0.0
  %1128 = vmatprep.subr.mxu0 0.0
  %1129 = vmatpush1.msra.mxu0 0.0
  %1130 = vmatprep.subr.mxu0 0.0
  %1131 = vmatpush1.msra.mxu0 0.0
  %1132 = vmatprep.subr.mxu0 0.0
  %1133 = vmatpush1.msra.mxu0 0.0
  %1134 = vmatprep.subr.mxu0 0.0
  %1135 = vmatpush1.msra.mxu0 0.0
  %1136 = vmatprep.subr.mxu0 0.0
  %1137 = vmatpush1.msra.mxu0 0.0
  %1138 = vmatprep.subr.mxu0 0.0
  %1139 = vmatpush1.msra.mxu0 0.0
  %1140 = vmatprep.subr.mxu0 0.0
  %1141 = vmatpush1.msra.mxu0 0.0
  %1142 = vmatprep.subr.mxu0 0.0
  %1143 = vmatpush1.msra.mxu0 0.0
  %1144 = vmatprep.subr.mxu0 0.0
  %1145 = vmatpush1.msra.mxu0 0.0
  %1146 = vmatprep.subr.mxu0 0.0
  %1147 = vmatpush1.msra.mxu0 0.0
  %1148 = vmatprep.subr.mxu0 0.0
  %1149 = vmatpush1.msra.mxu0 0.0
  %1150 = vmatprep.subr.mxu0 0.0
  %1151 = vmatpush1.msra.mxu0 0.0
  %1152 = vmatprep.subr.mxu0 0.0
  %1153 = vmatpush1.msra.mxu0 0.0
  %1154 = vmatprep.subr.mxu0 0.0
  %1155 = vmatpush1.msra.mxu0 0.0
  %1156 = vmatprep.subr.mxu0 0.0
  %1157 = vmatpush1.msra.mxu0 0.0
  %1158 = vmatprep.subr.mxu0 0.0
  %1159 = vmatpush1.msra.mxu0 0.0
  %1160 = vmatprep.subr.mxu0 0.0
  %1161 = vmatpush1.msra.mxu0 0.0
  %1162 = vmatprep.subr.mxu0 0.0
  %1163 = vmatpush1.msra.mxu0 0.0
  %1164 = vmatprep.subr.mxu0 0.0
  %1165 = vmatpush1.msra.mxu0 0.0
  %1166 = vmatprep.subr.mxu0 0.0
  %1167 = vmatpush1.msra.mxu0 0.0
  %1168 = vmatprep.subr.mxu0 0.0
  %1169 = vmatpush1.msra.mxu0 0.0
  %1170 = vmatprep.subr.mxu0 0.0
  %1171 = vmatpush1.msra.mxu0 0.0
  %1172 = vmatprep.subr.mxu0 0.0
  %1173 = vmatpush1.msra.mxu0 0.0
  %1174 = vmatprep.mubr.f32.mxu0 0.0
  %1175 = vmatmul.mubr.f32.gmra.mrb[0].mxu0 %v1039
  %v1176 = vpop.f32.mrb[0].mxu0
  %v1177 = vadd.f32 0.0, %v1176
  %v1178 = vpop.f32.mrb[0].mxu0
  %1179 = vmatprep.mubr.f32.mxu0 0.0
  %1180 = vmatmul.mubr.f32.gmra.mrb[0].mxu0 %v1042
  %v1181 = vpop.f32.mrb[0].mxu0
  %v1182 = vadd.f32 0.0, %v1181
  %v1183 = vpop.f32.mrb[0].mxu0
  %1184 = vmatprep.mubr.f32.mxu0 0.0
  %1185 = vmatmul.mubr.f32.gmra.mrb[0].mxu0 %v1045
  %v1186 = vpop.f32.mrb[0].mxu0
  %v1187 = vadd.f32 0.0, %v1186
  %v1188 = vpop.f32.mrb[0].mxu0
  %1189 = vmatprep.mubr.f32.mxu0 0.0
  %1190 = vmatmul.mubr.f32.gmra.mrb[0].mxu0 %v1048
  %v1191 = vpop.f32.mrb[0].mxu0
  %v1192 = vadd.f32 0.0, %v1191
  %v1193 = vpop.f32.mrb[0].mxu0
  %1194 = vmatprep.mubr.f32.mxu0 0.0
  %1195 = vmatmul.mubr.f32.gmra.mrb[0].mxu0 %v1051
  %v1196 = vpop.f32.mrb[0].mxu0
  %v1197 = vadd.f32 0.0, %v1196
  %v1198 = vpop.f32.mrb[0].mxu0
  %1199 = vmatprep.mubr.f32.mxu0 0.0
  %1200 = vmatmul.mubr.f32.gmra.mrb[0].mxu0 %v1054
  %v1201 = vpop.f32.mrb[0].mxu0
  %v1202 = vadd.f32 0.0, %v1201
  %v1203 = vpop.f32.mrb[0].mxu0
  %1204 = vmatprep.mubr.f32.mxu0 0.0
  %1205 = vmatmul.mubr.f32.gmra.mrb[0].mxu0 %v1057
  %v1206 = vpop.f32.mrb[0].mxu0
  %v1207 = vadd.f32 0.0, %v1206
  %v1208 = vpop.f32.mrb[0].mxu0
  %1209 = vmatprep.mubr.f32.mxu0 0.0
  %1210 = vmatmul.mubr.f32.gmra.mrb[0].mxu0 %v1060
  %v1211 = vpop.f32.mrb[0].mxu0
  %v1212 = vadd.f32 0.0, %v1211
  %v1213 = vpop.f32.mrb[0].mxu0
  %1214 = vmatprep.mubr.f32.mxu0 0.0
  %1215 = vmatmul.mubr.f32.gmra.mrb[0].mxu0 %v1063
  %v1216 = vpop.f32.mrb[0].mxu0
  %v1217 = vadd.f32 0.0, %v1216
  %v1218 = vpop.f32.mrb[0].mxu0
  %1219 = vmatprep.mubr.f32.mxu0 0.0
  %1220 = vmatmul.mubr.f32.gmra.mrb[0].mxu0 %v1066
  %v1221 = vpop.f32.mrb[0].mxu0
  %v1222 = vadd.f32 0.0, %v1221
  %v1223 = vpop.f32.mrb[0].mxu0
  %1224 = vmatprep.mubr.f32.mxu0 0.0
  %1225 = vmatmul.mubr.f32.gmra.mrb[0].mxu0 %v1069
  %v1226 = vpop.f32.mrb[0].mxu0
  %v1227 = vadd.f32 0.0, %v1226
  %v1228 = vpop.f32.mrb[0].mxu0
  %1229 = vmatprep.mubr.f32.mxu0 0.0
  %1230 = vmatmul.mubr.f32.gmra.mrb[0].mxu0 %v1072
  %v1231 = vpop.f32.mrb[0].mxu0
  %v1232 = vadd.f32 0.0, %v1231
  %v1233 = vpop.f32.mrb[0].mxu0
  %1234 = vmatprep.mubr.f32.mxu0 0.0
  %1235 = vmatmul.mubr.f32.gmra.mrb[0].mxu0 %v1075
  %v1236 = vpop.f32.mrb[0].mxu0
  %v1237 = vadd.f32 0.0, %v1236
  %v1238 = vpop.f32.mrb[0].mxu0
  %1239 = vmatprep.mubr.f32.mxu0 0.0
  %1240 = vmatmul.mubr.f32.gmra.mrb[0].mxu0 %v1078
  %v1241 = vpop.f32.mrb[0].mxu0
  %v1242 = vadd.f32 0.0, %v1241
  %v1243 = vpop.f32.mrb[0].mxu0
  %1244 = vmatprep.mubr.f32.mxu0 0.0
  %1245 = vmatmul.mubr.f32.gmra.mrb[0].mxu0 %v1081
  %v1246 = vpop.f32.mrb[0].mxu0
  %v1247 = vadd.f32 0.0, %v1246
  %v1248 = vpop.f32.mrb[0].mxu0
  %1249 = vmatprep.mubr.f32.mxu0 0.0
  %1250 = vmatmul.mubr.f32.gmra.mrb[0].mxu0 %v1084
  %v1251 = vpop.f32.mrb[0].mxu0
  %v1252 = vadd.f32 0.0, %v1251
  %v1253 = vpop.f32.mrb[0].mxu0
  %1254 = vmatprep.mubr.f32.mxu0 0.0
  %1255 = vmatmul.mubr.f32.gmra.mrb[0].mxu0 %v1087
  %v1256 = vpop.f32.mrb[0].mxu0
  %v1257 = vadd.f32 0.0, %v1256
  %v1258 = vpop.f32.mrb[0].mxu0
  %1259 = vmatprep.mubr.f32.mxu0 0.0
  %1260 = vmatmul.mubr.f32.gmra.mrb[0].mxu0 %v1090
  %v1261 = vpop.f32.mrb[0].mxu0
  %v1262 = vadd.f32 0.0, %v1261
  %v1263 = vpop.f32.mrb[0].mxu0
  %1264 = vmatprep.mubr.f32.mxu0 0.0
  %1265 = vmatmul.mubr.f32.gmra.mrb[0].mxu0 %v1093
  %v1266 = vpop.f32.mrb[0].mxu0
  %v1267 = vadd.f32 0.0, %v1266
  %v1268 = vpop.f32.mrb[0].mxu0
  %1269 = vmatprep.mubr.f32.mxu0 0.0
  %1270 = vmatmul.mubr.f32.gmra.mrb[0].mxu0 %v1096
  %v1271 = vpop.f32.mrb[0].mxu0
  %v1272 = vadd.f32 0.0, %v1271
  %v1273 = vpop.f32.mrb[0].mxu0
  %1274 = vmatprep.mubr.f32.mxu0 0.0
  %1275 = vmatmul.mubr.f32.gmra.mrb[0].mxu0 %v1099
  %v1276 = vpop.f32.mrb[0].mxu0
  %v1277 = vadd.f32 0.0, %v1276
  %v1278 = vpop.f32.mrb[0].mxu0
  %1279 = vmatprep.mubr.f32.mxu0 0.0
  %1280 = vmatmul.mubr.f32.gmra.mrb[0].mxu0 %v1102
  %v1281 = vpop.f32.mrb[0].mxu0
  %v1282 = vadd.f32 0.0, %v1281
  %v1283 = vpop.f32.mrb[0].mxu0
  %1284 = vmatprep.mubr.f32.mxu0 0.0
  %1285 = vmatmul.mubr.f32.gmra.mrb[0].mxu0 %v1105
  %v1286 = vpop.f32.mrb[0].mxu0
  %v1287 = vadd.f32 0.0, %v1286
  %v1288 = vpop.f32.mrb[0].mxu0
  %1289 = vmatprep.mubr.f32.mxu0 0.0
  %1290 = vmatmul.mubr.f32.gmra.mrb[0].mxu0 %v1108
  %v1291 = vpop.f32.mrb[0].mxu0
  %v1292 = vadd.f32 0.0, %v1291
  %v1293 = vpop.f32.mrb[0].mxu0
  %1294 = vdwg.mxu0
  %v1295 = vadd.f32 %v1014, %v1177
  %v1296 = vadd.f32 %v1015, %v1182
  %v1297 = vadd.f32 %v1016, %v1187
  %v1298 = vadd.f32 %v1017, %v1192
  %v1299 = vadd.f32 %v1018, %v1197
  %v1300 = vadd.f32 %v1019, %v1202
  %v1301 = vadd.f32 %v1020, %v1207
  %v1302 = vadd.f32 %v1021, %v1212
  %v1303 = vadd.f32 %v1022, %v1217
  %v1304 = vadd.f32 %v1023, %v1222
  %v1305 = vadd.f32 %v1024, %v1227
  %v1306 = vadd.f32 %v1025, %v1232
  %v1307 = vadd.f32 %v1026, %v1237
  %v1308 = vadd.f32 %v1027, %v1242
  %v1309 = vadd.f32 %v1028, %v1247
  %v1310 = vadd.f32 %v1029, %v1252
  %v1311 = vadd.f32 %v1030, %v1257
  %v1312 = vadd.f32 %v1031, %v1262
  %v1313 = vadd.f32 %v1032, %v1267
  %v1314 = vadd.f32 %v1033, %v1272
  %v1315 = vadd.f32 %v1034, %v1277
  %v1316 = vadd.f32 %v1035, %v1282
  %v1317 = vadd.f32 %v1036, %v1287
  %v1318 = vadd.f32 %v1037, %v1292
  %v1319 = vmax.f32 %v660, %v1295
  %v1320 = vmax.f32 %v661, %v1296
  %v1321 = vmax.f32 %v662, %v1297
  %v1322 = vmax.f32 %v663, %v1298
  %v1323 = vmax.f32 %v664, %v1299
  %v1324 = vmax.f32 %v665, %v1300
  %v1325 = vmax.f32 %v666, %v1301
  %v1326 = vmax.f32 %v667, %v1302
  %v1327 = vmax.f32 %v668, %v1303
  %v1328 = vmax.f32 %v669, %v1304
  %v1329 = vmax.f32 %v670, %v1305
  %v1330 = vmax.f32 %v671, %v1306
  %v1331 = vmax.f32 %v672, %v1307
  %v1332 = vmax.f32 %v673, %v1308
  %v1333 = vmax.f32 %v674, %v1309
  %v1334 = vmax.f32 %v675, %v1310
  %v1335 = vmax.f32 %v676, %v1311
  %v1336 = vmax.f32 %v677, %v1312
  %v1337 = vmax.f32 %v678, %v1313
  %v1338 = vmax.f32 %v679, %v1314
  %v1339 = vmax.f32 %v680, %v1315
  %v1340 = vmax.f32 %v681, %v1316
  %v1341 = vmax.f32 %v682, %v1317
  %v1342 = vmax.f32 %v683, %v1318
  %s1343 = scalar_lea.vmem %s0, 384
  %v1344 = vld [vmem:[%s1343] sm:$0xff]
  %v1345 = vld [vmem:[%s1343 + $0x8] sm:$0xff]
  %v1346 = vld [vmem:[%s1343 + $0x10] sm:$0xff]
  %v1347 = vld [vmem:[%s1343 + $0x18] sm:$0xff]
  %v1348 = vld [vmem:[%s1343 + $0x20] sm:$0xff]
  %v1349 = vld [vmem:[%s1343 + $0x28] sm:$0xff]
  %v1350 = vld [vmem:[%s1343 + $0x30] sm:$0xff]
  %v1351 = vld [vmem:[%s1343 + $0x38] sm:$0xff]
  %v1352 = vld [vmem:[%s1343 + $0x40] sm:$0xff]
  %v1353 = vld [vmem:[%s1343 + $0x48] sm:$0xff]
  %v1354 = vld [vmem:[%s1343 + $0x50] sm:$0xff]
  %v1355 = vld [vmem:[%s1343 + $0x58] sm:$0xff]
  %v1356 = vld [vmem:[%s1343 + $0x60] sm:$0xff]
  %v1357 = vld [vmem:[%s1343 + $0x68] sm:$0xff]
  %v1358 = vld [vmem:[%s1343 + $0x70] sm:$0xff]
  %v1359 = vld [vmem:[%s1343 + $0x78] sm:$0xff]
  %v1360 = vld [vmem:[%s1343 + $0x80] sm:$0xff]
  %v1361 = vld [vmem:[%s1343 + $0x88] sm:$0xff]
  %v1362 = vld [vmem:[%s1343 + $0x90] sm:$0xff]
  %v1363 = vld [vmem:[%s1343 + $0x98] sm:$0xff]
  %v1364 = vld [vmem:[%s1343 + $0xa0] sm:$0xff]
  %v1365 = vld [vmem:[%s1343 + $0xa8] sm:$0xff]
  %v1366 = vld [vmem:[%s1343 + $0xb0] sm:$0xff]
  %v1367 = vld [vmem:[%s1343 + $0xb8] sm:$0xff]
  %v1369 = vsel %vm53, %v1344, 0
  %v1372 = vsel %vm53, %v1345, 0
  %v1375 = vsel %vm53, %v1346, 0
  %v1378 = vsel %vm53, %v1347, 0
  %v1381 = vsel %vm53, %v1348, 0
  %v1384 = vsel %vm53, %v1349, 0
  %v1387 = vsel %vm53, %v1350, 0
  %v1390 = vsel %vm53, %v1351, 0
  %v1393 = vsel %vm53, %v1352, 0
  %v1396 = vsel %vm53, %v1353, 0
  %v1399 = vsel %vm53, %v1354, 0
  %v1402 = vsel %vm53, %v1355, 0
  %v1405 = vsel %vm53, %v1356, 0
  %v1408 = vsel %vm53, %v1357, 0
  %v1411 = vsel %vm53, %v1358, 0
  %v1414 = vsel %vm53, %v1359, 0
  %v1417 = vsel %vm53, %v1360, 0
  %v1420 = vsel %vm53, %v1361, 0
  %v1423 = vsel %vm53, %v1362, 0
  %v1426 = vsel %vm53, %v1363, 0
  %v1429 = vsel %vm53, %v1364, 0
  %v1432 = vsel %vm53, %v1365, 0
  %v1435 = vsel %vm53, %v1366, 0
  %v1438 = vsel %vm53, %v1367, 0
  %1440 = vmatprep.subr.mxu0 0.0
  %1441 = vmatpush1.msra.mxu0 %v44
  %1442 = vmatprep.subr.mxu0 0.0
  %1443 = vmatpush1.msra.mxu0 %v128
  %1444 = vmatprep.subr.mxu0 0.0
  %1445 = vmatpush1.msra.mxu0 0.0
  %1446 = vmatprep.subr.mxu0 0.0
  %1447 = vmatpush1.msra.mxu0 0.0
  %1448 = vmatprep.subr.mxu0 0.0
  %1449 = vmatpush1.msra.mxu0 0.0
  %1450 = vmatprep.subr.mxu0 0.0
  %1451 = vmatpush1.msra.mxu0 0.0
  %1452 = vmatprep.subr.mxu0 0.0
  %1453 = vmatpush1.msra.mxu0 0.0
  %1454 = vmatprep.subr.mxu0 0.0
  %1455 = vmatpush1.msra.mxu0 0.0
  %1456 = vmatprep.subr.mxu0 0.0
  %1457 = vmatpush1.msra.mxu0 0.0
  %1458 = vmatprep.subr.mxu0 0.0
  %1459 = vmatpush1.msra.mxu0 0.0
  %1460 = vmatprep.subr.mxu0 0.0
  %1461 = vmatpush1.msra.mxu0 0.0
  %1462 = vmatprep.subr.mxu0 0.0
  %1463 = vmatpush1.msra.mxu0 0.0
  %1464 = vmatprep.subr.mxu0 0.0
  %1465 = vmatpush1.msra.mxu0 0.0
  %1466 = vmatprep.subr.mxu0 0.0
  %1467 = vmatpush1.msra.mxu0 0.0
  %1468 = vmatprep.subr.mxu0 0.0
  %1469 = vmatpush1.msra.mxu0 0.0
  %1470 = vmatprep.subr.mxu0 0.0
  %1471 = vmatpush1.msra.mxu0 0.0
  %1472 = vmatprep.subr.mxu0 0.0
  %1473 = vmatpush1.msra.mxu0 0.0
  %1474 = vmatprep.subr.mxu0 0.0
  %1475 = vmatpush1.msra.mxu0 0.0
  %1476 = vmatprep.subr.mxu0 0.0
  %1477 = vmatpush1.msra.mxu0 0.0
  %1478 = vmatprep.subr.mxu0 0.0
  %1479 = vmatpush1.msra.mxu0 0.0
  %1480 = vmatprep.subr.mxu0 0.0
  %1481 = vmatpush1.msra.mxu0 0.0
  %1482 = vmatprep.subr.mxu0 0.0
  %1483 = vmatpush1.msra.mxu0 0.0
  %1484 = vmatprep.subr.mxu0 0.0
  %1485 = vmatpush1.msra.mxu0 0.0
  %1486 = vmatprep.subr.mxu0 0.0
  %1487 = vmatpush1.msra.mxu0 0.0
  %1488 = vmatprep.subr.mxu0 0.0
  %1489 = vmatpush1.msra.mxu0 0.0
  %1490 = vmatprep.subr.mxu0 0.0
  %1491 = vmatpush1.msra.mxu0 0.0
  %1492 = vmatprep.subr.mxu0 0.0
  %1493 = vmatpush1.msra.mxu0 0.0
  %1494 = vmatprep.subr.mxu0 0.0
  %1495 = vmatpush1.msra.mxu0 0.0
  %1496 = vmatprep.subr.mxu0 0.0
  %1497 = vmatpush1.msra.mxu0 0.0
  %1498 = vmatprep.subr.mxu0 0.0
  %1499 = vmatpush1.msra.mxu0 0.0
  %1500 = vmatprep.subr.mxu0 0.0
  %1501 = vmatpush1.msra.mxu0 0.0
  %1502 = vmatprep.subr.mxu0 0.0
  %1503 = vmatpush1.msra.mxu0 0.0
  %1504 = vmatprep.mubr.f32.mxu0 0.0
  %1505 = vmatmul.mubr.f32.gmra.mrb[0].mxu0 %v1369
  %v1506 = vpop.f32.mrb[0].mxu0
  %v1507 = vadd.f32 %v51, %v1506
  %v1508 = vpop.f32.mrb[0].mxu0
  %1509 = vmatprep.mubr.f32.mxu0 0.0
  %1510 = vmatmul.mubr.f32.gmra.mrb[0].mxu0 %v1372
  %v1511 = vpop.f32.mrb[0].mxu0
  %v1512 = vadd.f32 %v51, %v1511
  %v1513 = vpop.f32.mrb[0].mxu0
  %1514 = vmatprep.mubr.f32.mxu0 0.0
  %1515 = vmatmul.mubr.f32.gmra.mrb[0].mxu0 %v1375
  %v1516 = vpop.f32.mrb[0].mxu0
  %v1517 = vadd.f32 %v51, %v1516
  %v1518 = vpop.f32.mrb[0].mxu0
  %1519 = vmatprep.mubr.f32.mxu0 0.0
  %1520 = vmatmul.mubr.f32.gmra.mrb[0].mxu0 %v1378
  %v1521 = vpop.f32.mrb[0].mxu0
  %v1522 = vadd.f32 %v51, %v1521
  %v1523 = vpop.f32.mrb[0].mxu0
  %1524 = vmatprep.mubr.f32.mxu0 0.0
  %1525 = vmatmul.mubr.f32.gmra.mrb[0].mxu0 %v1381
  %v1526 = vpop.f32.mrb[0].mxu0
  %v1527 = vadd.f32 %v51, %v1526
  %v1528 = vpop.f32.mrb[0].mxu0
  %1529 = vmatprep.mubr.f32.mxu0 0.0
  %1530 = vmatmul.mubr.f32.gmra.mrb[0].mxu0 %v1384
  %v1531 = vpop.f32.mrb[0].mxu0
  %v1532 = vadd.f32 %v51, %v1531
  %v1533 = vpop.f32.mrb[0].mxu0
  %1534 = vmatprep.mubr.f32.mxu0 0.0
  %1535 = vmatmul.mubr.f32.gmra.mrb[0].mxu0 %v1387
  %v1536 = vpop.f32.mrb[0].mxu0
  %v1537 = vadd.f32 %v51, %v1536
  %v1538 = vpop.f32.mrb[0].mxu0
  %1539 = vmatprep.mubr.f32.mxu0 0.0
  %1540 = vmatmul.mubr.f32.gmra.mrb[0].mxu0 %v1390
  %v1541 = vpop.f32.mrb[0].mxu0
  %v1542 = vadd.f32 %v51, %v1541
  %v1543 = vpop.f32.mrb[0].mxu0
  %1544 = vmatprep.mubr.f32.mxu0 0.0
  %1545 = vmatmul.mubr.f32.gmra.mrb[0].mxu0 %v1393
  %v1546 = vpop.f32.mrb[0].mxu0
  %v1547 = vadd.f32 %v51, %v1546
  %v1548 = vpop.f32.mrb[0].mxu0
  %1549 = vmatprep.mubr.f32.mxu0 0.0
  %1550 = vmatmul.mubr.f32.gmra.mrb[0].mxu0 %v1396
  %v1551 = vpop.f32.mrb[0].mxu0
  %v1552 = vadd.f32 %v51, %v1551
  %v1553 = vpop.f32.mrb[0].mxu0
  %1554 = vmatprep.mubr.f32.mxu0 0.0
  %1555 = vmatmul.mubr.f32.gmra.mrb[0].mxu0 %v1399
  %v1556 = vpop.f32.mrb[0].mxu0
  %v1557 = vadd.f32 %v51, %v1556
  %v1558 = vpop.f32.mrb[0].mxu0
  %1559 = vmatprep.mubr.f32.mxu0 0.0
  %1560 = vmatmul.mubr.f32.gmra.mrb[0].mxu0 %v1402
  %v1561 = vpop.f32.mrb[0].mxu0
  %v1562 = vadd.f32 %v51, %v1561
  %v1563 = vpop.f32.mrb[0].mxu0
  %1564 = vmatprep.mubr.f32.mxu0 0.0
  %1565 = vmatmul.mubr.f32.gmra.mrb[0].mxu0 %v1405
  %v1566 = vpop.f32.mrb[0].mxu0
  %v1567 = vadd.f32 %v51, %v1566
  %v1568 = vpop.f32.mrb[0].mxu0
  %1569 = vmatprep.mubr.f32.mxu0 0.0
  %1570 = vmatmul.mubr.f32.gmra.mrb[0].mxu0 %v1408
  %v1571 = vpop.f32.mrb[0].mxu0
  %v1572 = vadd.f32 %v51, %v1571
  %v1573 = vpop.f32.mrb[0].mxu0
  %1574 = vmatprep.mubr.f32.mxu0 0.0
  %1575 = vmatmul.mubr.f32.gmra.mrb[0].mxu0 %v1411
  %v1576 = vpop.f32.mrb[0].mxu0
  %v1577 = vadd.f32 %v51, %v1576
  %v1578 = vpop.f32.mrb[0].mxu0
  %1579 = vmatprep.mubr.f32.mxu0 0.0
  %1580 = vmatmul.mubr.f32.gmra.mrb[0].mxu0 %v1414
  %v1581 = vpop.f32.mrb[0].mxu0
  %v1582 = vadd.f32 %v51, %v1581
  %v1583 = vpop.f32.mrb[0].mxu0
  %1584 = vmatprep.mubr.f32.mxu0 0.0
  %1585 = vmatmul.mubr.f32.gmra.mrb[0].mxu0 %v1417
  %v1586 = vpop.f32.mrb[0].mxu0
  %v1587 = vadd.f32 %v51, %v1586
  %v1588 = vpop.f32.mrb[0].mxu0
  %1589 = vmatprep.mubr.f32.mxu0 0.0
  %1590 = vmatmul.mubr.f32.gmra.mrb[0].mxu0 %v1420
  %v1591 = vpop.f32.mrb[0].mxu0
  %v1592 = vadd.f32 %v51, %v1591
  %v1593 = vpop.f32.mrb[0].mxu0
  %1594 = vmatprep.mubr.f32.mxu0 0.0
  %1595 = vmatmul.mubr.f32.gmra.mrb[0].mxu0 %v1423
  %v1596 = vpop.f32.mrb[0].mxu0
  %v1597 = vadd.f32 %v51, %v1596
  %v1598 = vpop.f32.mrb[0].mxu0
  %1599 = vmatprep.mubr.f32.mxu0 0.0
  %1600 = vmatmul.mubr.f32.gmra.mrb[0].mxu0 %v1426
  %v1601 = vpop.f32.mrb[0].mxu0
  %v1602 = vadd.f32 %v51, %v1601
  %v1603 = vpop.f32.mrb[0].mxu0
  %1604 = vmatprep.mubr.f32.mxu0 0.0
  %1605 = vmatmul.mubr.f32.gmra.mrb[0].mxu0 %v1429
  %v1606 = vpop.f32.mrb[0].mxu0
  %v1607 = vadd.f32 %v51, %v1606
  %v1608 = vpop.f32.mrb[0].mxu0
  %1609 = vmatprep.mubr.f32.mxu0 0.0
  %1610 = vmatmul.mubr.f32.gmra.mrb[0].mxu0 %v1432
  %v1611 = vpop.f32.mrb[0].mxu0
  %v1612 = vadd.f32 %v51, %v1611
  %v1613 = vpop.f32.mrb[0].mxu0
  %1614 = vmatprep.mubr.f32.mxu0 0.0
  %1615 = vmatmul.mubr.f32.gmra.mrb[0].mxu0 %v1435
  %v1616 = vpop.f32.mrb[0].mxu0
  %v1617 = vadd.f32 %v51, %v1616
  %v1618 = vpop.f32.mrb[0].mxu0
  %1619 = vmatprep.mubr.f32.mxu0 0.0
  %1620 = vmatmul.mubr.f32.gmra.mrb[0].mxu0 %v1438
  %v1621 = vpop.f32.mrb[0].mxu0
  %v1622 = vadd.f32 %v51, %v1621
  %v1623 = vpop.f32.mrb[0].mxu0
  %1624 = vdwg.mxu0
  %vm1625 = vcmp.ge.f32.partialorder %v1507, 0.0
  %vm1626 = vcmp.ge.f32.partialorder %v1512, 0.0
  %vm1627 = vcmp.ge.f32.partialorder %v1517, 0.0
  %vm1628 = vcmp.ge.f32.partialorder %v1522, 0.0
  %vm1629 = vcmp.ge.f32.partialorder %v1527, 0.0
  %vm1630 = vcmp.ge.f32.partialorder %v1532, 0.0
  %vm1631 = vcmp.ge.f32.partialorder %v1537, 0.0
  %vm1632 = vcmp.ge.f32.partialorder %v1542, 0.0
  %vm1633 = vcmp.ge.f32.partialorder %v1547, 0.0
  %vm1634 = vcmp.ge.f32.partialorder %v1552, 0.0
  %vm1635 = vcmp.ge.f32.partialorder %v1557, 0.0
  %vm1636 = vcmp.ge.f32.partialorder %v1562, 0.0
  %vm1637 = vcmp.ge.f32.partialorder %v1567, 0.0
  %vm1638 = vcmp.ge.f32.partialorder %v1572, 0.0
  %vm1639 = vcmp.ge.f32.partialorder %v1577, 0.0
  %vm1640 = vcmp.ge.f32.partialorder %v1582, 0.0
  %vm1641 = vcmp.ge.f32.partialorder %v1587, 0.0
  %vm1642 = vcmp.ge.f32.partialorder %v1592, 0.0
  %vm1643 = vcmp.ge.f32.partialorder %v1597, 0.0
  %vm1644 = vcmp.ge.f32.partialorder %v1602, 0.0
  %vm1645 = vcmp.ge.f32.partialorder %v1607, 0.0
  %vm1646 = vcmp.ge.f32.partialorder %v1612, 0.0
  %vm1647 = vcmp.ge.f32.partialorder %v1617, 0.0
  %vm1648 = vcmp.ge.f32.partialorder %v1622, 0.0
  %v1649 = vmul.f32 %v344, %v1507
  %v1650 = vmul.f32 %v344, %v1512
  %v1651 = vmul.f32 %v344, %v1517
  %v1652 = vmul.f32 %v344, %v1522
  %v1653 = vmul.f32 %v344, %v1527
  %v1654 = vmul.f32 %v344, %v1532
  %v1655 = vmul.f32 %v344, %v1537
  %v1656 = vmul.f32 %v344, %v1542
  %v1657 = vmul.f32 %v344, %v1547
  %v1658 = vmul.f32 %v344, %v1552
  %v1659 = vmul.f32 %v344, %v1557
  %v1660 = vmul.f32 %v344, %v1562
  %v1661 = vmul.f32 %v344, %v1567
  %v1662 = vmul.f32 %v344, %v1572
  %v1663 = vmul.f32 %v344, %v1577
  %v1664 = vmul.f32 %v344, %v1582
  %v1665 = vmul.f32 %v344, %v1587
  %v1666 = vmul.f32 %v344, %v1592
  %v1667 = vmul.f32 %v344, %v1597
  %v1668 = vmul.f32 %v344, %v1602
  %v1669 = vmul.f32 %v344, %v1607
  %v1670 = vmul.f32 %v344, %v1612
  %v1671 = vmul.f32 %v344, %v1617
  %v1672 = vmul.f32 %v344, %v1622
  %v1673 = vsel %vm1625, %v1507, %v1649
  %v1674 = vsel %vm1626, %v1512, %v1650
  %v1675 = vsel %vm1627, %v1517, %v1651
  %v1676 = vsel %vm1628, %v1522, %v1652
  %v1677 = vsel %vm1629, %v1527, %v1653
  %v1678 = vsel %vm1630, %v1532, %v1654
  %v1679 = vsel %vm1631, %v1537, %v1655
  %v1680 = vsel %vm1632, %v1542, %v1656
  %v1681 = vsel %vm1633, %v1547, %v1657
  %v1682 = vsel %vm1634, %v1552, %v1658
  %v1683 = vsel %vm1635, %v1557, %v1659
  %v1684 = vsel %vm1636, %v1562, %v1660
  %v1685 = vsel %vm1637, %v1567, %v1661
  %v1686 = vsel %vm1638, %v1572, %v1662
  %v1687 = vsel %vm1639, %v1577, %v1663
  %v1688 = vsel %vm1640, %v1582, %v1664
  %v1689 = vsel %vm1641, %v1587, %v1665
  %v1690 = vsel %vm1642, %v1592, %v1666
  %v1691 = vsel %vm1643, %v1597, %v1667
  %v1692 = vsel %vm1644, %v1602, %v1668
  %v1693 = vsel %vm1645, %v1607, %v1669
  %v1694 = vsel %vm1646, %v1612, %v1670
  %v1695 = vsel %vm1647, %v1617, %v1671
  %v1696 = vsel %vm1648, %v1622, %v1672
  %v1698 = vsel %vm402, %v1673, 0
  %v1701 = vsel %vm402, %v1674, 0
  %v1704 = vsel %vm402, %v1675, 0
  %v1707 = vsel %vm402, %v1676, 0
  %v1710 = vsel %vm402, %v1677, 0
  %v1713 = vsel %vm402, %v1678, 0
  %v1716 = vsel %vm402, %v1679, 0
  %v1719 = vsel %vm402, %v1680, 0
  %v1722 = vsel %vm402, %v1681, 0
  %v1725 = vsel %vm402, %v1682, 0
  %v1728 = vsel %vm402, %v1683, 0
  %v1731 = vsel %vm402, %v1684, 0
  %v1734 = vsel %vm402, %v1685, 0
  %v1737 = vsel %vm402, %v1686, 0
  %v1740 = vsel %vm402, %v1687, 0
  %v1743 = vsel %vm402, %v1688, 0
  %v1746 = vsel %vm402, %v1689, 0
  %v1749 = vsel %vm402, %v1690, 0
  %v1752 = vsel %vm402, %v1691, 0
  %v1755 = vsel %vm402, %v1692, 0
  %v1758 = vsel %vm402, %v1693, 0
  %v1761 = vsel %vm402, %v1694, 0
  %v1764 = vsel %vm402, %v1695, 0
  %v1767 = vsel %vm402, %v1696, 0
  %1769 = vmatprep.subr.mxu0 0.0
  %1770 = vmatpush1.msra.mxu0 %v394
  %1771 = vmatprep.subr.mxu0 0.0
  %1772 = vmatpush1.msra.mxu0 %v395
  %1773 = vmatprep.subr.mxu0 0.0
  %1774 = vmatpush1.msra.mxu0 %v396
  %1775 = vmatprep.subr.mxu0 0.0
  %1776 = vmatpush1.msra.mxu0 %v397
  %1777 = vmatprep.subr.mxu0 0.0
  %1778 = vmatpush1.msra.mxu0 %v398
  %1779 = vmatprep.subr.mxu0 0.0
  %1780 = vmatpush1.msra.mxu0 %v399
  %1781 = vmatprep.subr.mxu0 0.0
  %1782 = vmatpush1.msra.mxu0 %v400
  %1783 = vmatprep.subr.mxu0 0.0
  %1784 = vmatpush1.msra.mxu0 %v401
  %1785 = vmatprep.subr.mxu0 0.0
  %1786 = vmatpush1.msra.mxu0 0.0
  %1787 = vmatprep.subr.mxu0 0.0
  %1788 = vmatpush1.msra.mxu0 0.0
  %1789 = vmatprep.subr.mxu0 0.0
  %1790 = vmatpush1.msra.mxu0 0.0
  %1791 = vmatprep.subr.mxu0 0.0
  %1792 = vmatpush1.msra.mxu0 0.0
  %1793 = vmatprep.subr.mxu0 0.0
  %1794 = vmatpush1.msra.mxu0 0.0
  %1795 = vmatprep.subr.mxu0 0.0
  %1796 = vmatpush1.msra.mxu0 0.0
  %1797 = vmatprep.subr.mxu0 0.0
  %1798 = vmatpush1.msra.mxu0 0.0
  %1799 = vmatprep.subr.mxu0 0.0
  %1800 = vmatpush1.msra.mxu0 0.0
  %1801 = vmatprep.subr.mxu0 0.0
  %1802 = vmatpush1.msra.mxu0 0.0
  %1803 = vmatprep.subr.mxu0 0.0
  %1804 = vmatpush1.msra.mxu0 0.0
  %1805 = vmatprep.subr.mxu0 0.0
  %1806 = vmatpush1.msra.mxu0 0.0
  %1807 = vmatprep.subr.mxu0 0.0
  %1808 = vmatpush1.msra.mxu0 0.0
  %1809 = vmatprep.subr.mxu0 0.0
  %1810 = vmatpush1.msra.mxu0 0.0
  %1811 = vmatprep.subr.mxu0 0.0
  %1812 = vmatpush1.msra.mxu0 0.0
  %1813 = vmatprep.subr.mxu0 0.0
  %1814 = vmatpush1.msra.mxu0 0.0
  %1815 = vmatprep.subr.mxu0 0.0
  %1816 = vmatpush1.msra.mxu0 0.0
  %1817 = vmatprep.subr.mxu0 0.0
  %1818 = vmatpush1.msra.mxu0 0.0
  %1819 = vmatprep.subr.mxu0 0.0
  %1820 = vmatpush1.msra.mxu0 0.0
  %1821 = vmatprep.subr.mxu0 0.0
  %1822 = vmatpush1.msra.mxu0 0.0
  %1823 = vmatprep.subr.mxu0 0.0
  %1824 = vmatpush1.msra.mxu0 0.0
  %1825 = vmatprep.subr.mxu0 0.0
  %1826 = vmatpush1.msra.mxu0 0.0
  %1827 = vmatprep.subr.mxu0 0.0
  %1828 = vmatpush1.msra.mxu0 0.0
  %1829 = vmatprep.subr.mxu0 0.0
  %1830 = vmatpush1.msra.mxu0 0.0
  %1831 = vmatprep.subr.mxu0 0.0
  %1832 = vmatpush1.msra.mxu0 0.0
  %1833 = vmatprep.mubr.f32.mxu0 0.0
  %1834 = vmatmul.mubr.f32.gmra.mrb[0].mxu0 %v1698
  %v1835 = vpop.f32.mrb[0].mxu0
  %v1836 = vadd.f32 0.0, %v1835
  %v1837 = vpop.f32.mrb[0].mxu0
  %1838 = vmatprep.mubr.f32.mxu0 0.0
  %1839 = vmatmul.mubr.f32.gmra.mrb[0].mxu0 %v1701
  %v1840 = vpop.f32.mrb[0].mxu0
  %v1841 = vadd.f32 0.0, %v1840
  %v1842 = vpop.f32.mrb[0].mxu0
  %1843 = vmatprep.mubr.f32.mxu0 0.0
  %1844 = vmatmul.mubr.f32.gmra.mrb[0].mxu0 %v1704
  %v1845 = vpop.f32.mrb[0].mxu0
  %v1846 = vadd.f32 0.0, %v1845
  %v1847 = vpop.f32.mrb[0].mxu0
  %1848 = vmatprep.mubr.f32.mxu0 0.0
  %1849 = vmatmul.mubr.f32.gmra.mrb[0].mxu0 %v1707
  %v1850 = vpop.f32.mrb[0].mxu0
  %v1851 = vadd.f32 0.0, %v1850
  %v1852 = vpop.f32.mrb[0].mxu0
  %1853 = vmatprep.mubr.f32.mxu0 0.0
  %1854 = vmatmul.mubr.f32.gmra.mrb[0].mxu0 %v1710
  %v1855 = vpop.f32.mrb[0].mxu0
  %v1856 = vadd.f32 0.0, %v1855
  %v1857 = vpop.f32.mrb[0].mxu0
  %1858 = vmatprep.mubr.f32.mxu0 0.0
  %1859 = vmatmul.mubr.f32.gmra.mrb[0].mxu0 %v1713
  %v1860 = vpop.f32.mrb[0].mxu0
  %v1861 = vadd.f32 0.0, %v1860
  %v1862 = vpop.f32.mrb[0].mxu0
  %1863 = vmatprep.mubr.f32.mxu0 0.0
  %1864 = vmatmul.mubr.f32.gmra.mrb[0].mxu0 %v1716
  %v1865 = vpop.f32.mrb[0].mxu0
  %v1866 = vadd.f32 0.0, %v1865
  %v1867 = vpop.f32.mrb[0].mxu0
  %1868 = vmatprep.mubr.f32.mxu0 0.0
  %1869 = vmatmul.mubr.f32.gmra.mrb[0].mxu0 %v1719
  %v1870 = vpop.f32.mrb[0].mxu0
  %v1871 = vadd.f32 0.0, %v1870
  %v1872 = vpop.f32.mrb[0].mxu0
  %1873 = vmatprep.mubr.f32.mxu0 0.0
  %1874 = vmatmul.mubr.f32.gmra.mrb[0].mxu0 %v1722
  %v1875 = vpop.f32.mrb[0].mxu0
  %v1876 = vadd.f32 0.0, %v1875
  %v1877 = vpop.f32.mrb[0].mxu0
  %1878 = vmatprep.mubr.f32.mxu0 0.0
  %1879 = vmatmul.mubr.f32.gmra.mrb[0].mxu0 %v1725
  %v1880 = vpop.f32.mrb[0].mxu0
  %v1881 = vadd.f32 0.0, %v1880
  %v1882 = vpop.f32.mrb[0].mxu0
  %1883 = vmatprep.mubr.f32.mxu0 0.0
  %1884 = vmatmul.mubr.f32.gmra.mrb[0].mxu0 %v1728
  %v1885 = vpop.f32.mrb[0].mxu0
  %v1886 = vadd.f32 0.0, %v1885
  %v1887 = vpop.f32.mrb[0].mxu0
  %1888 = vmatprep.mubr.f32.mxu0 0.0
  %1889 = vmatmul.mubr.f32.gmra.mrb[0].mxu0 %v1731
  %v1890 = vpop.f32.mrb[0].mxu0
  %v1891 = vadd.f32 0.0, %v1890
  %v1892 = vpop.f32.mrb[0].mxu0
  %1893 = vmatprep.mubr.f32.mxu0 0.0
  %1894 = vmatmul.mubr.f32.gmra.mrb[0].mxu0 %v1734
  %v1895 = vpop.f32.mrb[0].mxu0
  %v1896 = vadd.f32 0.0, %v1895
  %v1897 = vpop.f32.mrb[0].mxu0
  %1898 = vmatprep.mubr.f32.mxu0 0.0
  %1899 = vmatmul.mubr.f32.gmra.mrb[0].mxu0 %v1737
  %v1900 = vpop.f32.mrb[0].mxu0
  %v1901 = vadd.f32 0.0, %v1900
  %v1902 = vpop.f32.mrb[0].mxu0
  %1903 = vmatprep.mubr.f32.mxu0 0.0
  %1904 = vmatmul.mubr.f32.gmra.mrb[0].mxu0 %v1740
  %v1905 = vpop.f32.mrb[0].mxu0
  %v1906 = vadd.f32 0.0, %v1905
  %v1907 = vpop.f32.mrb[0].mxu0
  %1908 = vmatprep.mubr.f32.mxu0 0.0
  %1909 = vmatmul.mubr.f32.gmra.mrb[0].mxu0 %v1743
  %v1910 = vpop.f32.mrb[0].mxu0
  %v1911 = vadd.f32 0.0, %v1910
  %v1912 = vpop.f32.mrb[0].mxu0
  %1913 = vmatprep.mubr.f32.mxu0 0.0
  %1914 = vmatmul.mubr.f32.gmra.mrb[0].mxu0 %v1746
  %v1915 = vpop.f32.mrb[0].mxu0
  %v1916 = vadd.f32 0.0, %v1915
  %v1917 = vpop.f32.mrb[0].mxu0
  %1918 = vmatprep.mubr.f32.mxu0 0.0
  %1919 = vmatmul.mubr.f32.gmra.mrb[0].mxu0 %v1749
  %v1920 = vpop.f32.mrb[0].mxu0
  %v1921 = vadd.f32 0.0, %v1920
  %v1922 = vpop.f32.mrb[0].mxu0
  %1923 = vmatprep.mubr.f32.mxu0 0.0
  %1924 = vmatmul.mubr.f32.gmra.mrb[0].mxu0 %v1752
  %v1925 = vpop.f32.mrb[0].mxu0
  %v1926 = vadd.f32 0.0, %v1925
  %v1927 = vpop.f32.mrb[0].mxu0
  %1928 = vmatprep.mubr.f32.mxu0 0.0
  %1929 = vmatmul.mubr.f32.gmra.mrb[0].mxu0 %v1755
  %v1930 = vpop.f32.mrb[0].mxu0
  %v1931 = vadd.f32 0.0, %v1930
  %v1932 = vpop.f32.mrb[0].mxu0
  %1933 = vmatprep.mubr.f32.mxu0 0.0
  %1934 = vmatmul.mubr.f32.gmra.mrb[0].mxu0 %v1758
  %v1935 = vpop.f32.mrb[0].mxu0
  %v1936 = vadd.f32 0.0, %v1935
  %v1937 = vpop.f32.mrb[0].mxu0
  %1938 = vmatprep.mubr.f32.mxu0 0.0
  %1939 = vmatmul.mubr.f32.gmra.mrb[0].mxu0 %v1761
  %v1940 = vpop.f32.mrb[0].mxu0
  %v1941 = vadd.f32 0.0, %v1940
  %v1942 = vpop.f32.mrb[0].mxu0
  %1943 = vmatprep.mubr.f32.mxu0 0.0
  %1944 = vmatmul.mubr.f32.gmra.mrb[0].mxu0 %v1764
  %v1945 = vpop.f32.mrb[0].mxu0
  %v1946 = vadd.f32 0.0, %v1945
  %v1947 = vpop.f32.mrb[0].mxu0
  %1948 = vmatprep.mubr.f32.mxu0 0.0
  %1949 = vmatmul.mubr.f32.gmra.mrb[0].mxu0 %v1767
  %v1950 = vpop.f32.mrb[0].mxu0
  %v1951 = vadd.f32 0.0, %v1950
  %v1952 = vpop.f32.mrb[0].mxu0
  %1953 = vdwg.mxu0
  %v1954 = vadd.f32 %v1673, %v1836
  %v1955 = vadd.f32 %v1674, %v1841
  %v1956 = vadd.f32 %v1675, %v1846
  %v1957 = vadd.f32 %v1676, %v1851
  %v1958 = vadd.f32 %v1677, %v1856
  %v1959 = vadd.f32 %v1678, %v1861
  %v1960 = vadd.f32 %v1679, %v1866
  %v1961 = vadd.f32 %v1680, %v1871
  %v1962 = vadd.f32 %v1681, %v1876
  %v1963 = vadd.f32 %v1682, %v1881
  %v1964 = vadd.f32 %v1683, %v1886
  %v1965 = vadd.f32 %v1684, %v1891
  %v1966 = vadd.f32 %v1685, %v1896
  %v1967 = vadd.f32 %v1686, %v1901
  %v1968 = vadd.f32 %v1687, %v1906
  %v1969 = vadd.f32 %v1688, %v1911
  %v1970 = vadd.f32 %v1689, %v1916
  %v1971 = vadd.f32 %v1690, %v1921
  %v1972 = vadd.f32 %v1691, %v1926
  %v1973 = vadd.f32 %v1692, %v1931
  %v1974 = vadd.f32 %v1693, %v1936
  %v1975 = vadd.f32 %v1694, %v1941
  %v1976 = vadd.f32 %v1695, %v1946
  %v1977 = vadd.f32 %v1696, %v1951
  %v1978 = vmax.f32 %v1319, %v1954
  %v1979 = vmax.f32 %v1320, %v1955
  %v1980 = vmax.f32 %v1321, %v1956
  %v1981 = vmax.f32 %v1322, %v1957
  %v1982 = vmax.f32 %v1323, %v1958
  %v1983 = vmax.f32 %v1324, %v1959
  %v1984 = vmax.f32 %v1325, %v1960
  %v1985 = vmax.f32 %v1326, %v1961
  %v1986 = vmax.f32 %v1327, %v1962
  %v1987 = vmax.f32 %v1328, %v1963
  %v1988 = vmax.f32 %v1329, %v1964
  %v1989 = vmax.f32 %v1330, %v1965
  %v1990 = vmax.f32 %v1331, %v1966
  %v1991 = vmax.f32 %v1332, %v1967
  %v1992 = vmax.f32 %v1333, %v1968
  %v1993 = vmax.f32 %v1334, %v1969
  %v1994 = vmax.f32 %v1335, %v1970
  %v1995 = vmax.f32 %v1336, %v1971
  %v1996 = vmax.f32 %v1337, %v1972
  %v1997 = vmax.f32 %v1338, %v1973
  %v1998 = vmax.f32 %v1339, %v1974
  %v1999 = vmax.f32 %v1340, %v1975
  %v2000 = vmax.f32 %v1341, %v1976
  %v2001 = vmax.f32 %v1342, %v1977
  %2002 = vst.msk [vmem:[%s5] sm:$0xff] %vm402, %v1978
  %2003 = vst.msk [vmem:[%s5 + $0x8] sm:$0xff] %vm402, %v1979
  %2004 = vst.msk [vmem:[%s5 + $0x10] sm:$0xff] %vm402, %v1980
  %2005 = vst.msk [vmem:[%s5 + $0x18] sm:$0xff] %vm402, %v1981
  %2006 = vst.msk [vmem:[%s5 + $0x20] sm:$0xff] %vm402, %v1982
  %2007 = vst.msk [vmem:[%s5 + $0x28] sm:$0xff] %vm402, %v1983
  %2008 = vst.msk [vmem:[%s5 + $0x30] sm:$0xff] %vm402, %v1984
  %2009 = vst.msk [vmem:[%s5 + $0x38] sm:$0xff] %vm402, %v1985
  %2010 = vst.msk [vmem:[%s5 + $0x40] sm:$0xff] %vm402, %v1986
  %2011 = vst.msk [vmem:[%s5 + $0x48] sm:$0xff] %vm402, %v1987
  %2012 = vst.msk [vmem:[%s5 + $0x50] sm:$0xff] %vm402, %v1988
  %2013 = vst.msk [vmem:[%s5 + $0x58] sm:$0xff] %vm402, %v1989
  %2014 = vst.msk [vmem:[%s5 + $0x60] sm:$0xff] %vm402, %v1990
  %2015 = vst.msk [vmem:[%s5 + $0x68] sm:$0xff] %vm402, %v1991
  %2016 = vst.msk [vmem:[%s5 + $0x70] sm:$0xff] %vm402, %v1992
  %2017 = vst.msk [vmem:[%s5 + $0x78] sm:$0xff] %vm402, %v1993
  %2018 = vst.msk [vmem:[%s5 + $0x80] sm:$0xff] %vm402, %v1994
  %2019 = vst.msk [vmem:[%s5 + $0x88] sm:$0xff] %vm402, %v1995
  %2020 = vst.msk [vmem:[%s5 + $0x90] sm:$0xff] %vm402, %v1996
  %2021 = vst.msk [vmem:[%s5 + $0x98] sm:$0xff] %vm402, %v1997
  %2022 = vst.msk [vmem:[%s5 + $0xa0] sm:$0xff] %vm402, %v1998
  %2023 = vst.msk [vmem:[%s5 + $0xa8] sm:$0xff] %vm402, %v1999
  %2024 = vst.msk [vmem:[%s5 + $0xb0] sm:$0xff] %vm402, %v2000
  %2025 = vst.msk [vmem:[%s5 + $0xb8] sm:$0xff] %vm402, %v2001
  // Predicated region
  $region22: #{target_network_forward.3} parent=0 // pred_check
    _
  $region23: #{target_network_forward.3} parent=0 // pred_check_branch
    %2027 = sbr.rel (0) target = $region25
  $region24: #{target_network_forward.3} parent=0 // pred_region
    _
  $region25: #{target_network_forward.3} parent=0 // pred_fallthru
    _
  // Predicated region
  $region26: #{target_network_forward.3} parent=0 // pred_check
    _
  $region27: #{target_network_forward.3} parent=0 // pred_check_branch
    %2029 = sbr.rel (0) target = $region29
  $region28: #{target_network_forward.3} parent=0 // pred_region
    _
  $region29: #{target_network_forward.3} parent=0 // pred_fallthru
    _

// kernel: target_network_forward.4
$region0: #{target_network_forward.4}
  #allocation0 [shape = 'u32[]', space=smem, size = 0x4, offset = 0x4, fixed_abs, tag = 'smem constant byte address 0x4 - core index']
  #allocation1 [shape = 'u32[144,128]{1,0:T(1,128)}', space=vmem, size = 0x12000, scoped, tag = 'internal scratch']
  %s0 = inlined_call_operand.vmem [shape: f32[3,32,960], index: 0, kind: input, shape index: {}]
  %s1 = inlined_call_operand.vmem [shape: f32[960,128], index: 1, kind: input, shape index: {}]
  %s2 = inlined_call_operand.vmem [shape: f32[1,128], index: 2, kind: input, shape index: {}]
  %s3 = inlined_call_operand.vmem [shape: f32[1,128], index: 3, kind: input, shape index: {}]
  %s4 = inlined_call_operand.vmem [shape: f32[128,128], index: 4, kind: input, shape index: {}]
  %s5 = inlined_call_operand.vmem [shape: f32[32,128], index: 5, kind: output, shape index: {}]
  %s6 = sld [smem:[#allocation0]]
  $region30: #{target_network_forward.4} parent=0
    _
  %s8 = ssub.s32 1, %s6
  %s9 = scalar_select 0, %s8, %s6
  // Predicated region
  $region2: #{target_network_forward.4} parent=0 // pred_check
    _
  $region3: #{target_network_forward.4} parent=0 // pred_check_branch
    %11 = sbr.rel (0) target = $region5
  $region4: #{target_network_forward.4} parent=0 // pred_region
    _
  $region5: #{target_network_forward.4} parent=0 // pred_fallthru
    _
  // Predicated region
  $region6: #{target_network_forward.4} parent=0 // pred_check
    _
  $region7: #{target_network_forward.4} parent=0 // pred_check_branch
    %13 = sbr.rel (0) target = $region9
  $region8: #{target_network_forward.4} parent=0 // pred_region
    _
  $region9: #{target_network_forward.4} parent=0 // pred_fallthru
    _
  // Predicated region
  $region10: #{target_network_forward.4} parent=0 // pred_check
    _
  $region11: #{target_network_forward.4} parent=0 // pred_check_branch
    %15 = sbr.rel (0) target = $region13
  $region12: #{target_network_forward.4} parent=0 // pred_region
    _
  $region13: #{target_network_forward.4} parent=0 // pred_fallthru
    _
  // Predicated region
  $region14: #{target_network_forward.4} parent=0 // pred_check
    _
  $region15: #{target_network_forward.4} parent=0 // pred_check_branch
    %17 = sbr.rel (0) target = $region17
  $region16: #{target_network_forward.4} parent=0 // pred_region
    _
  $region17: #{target_network_forward.4} parent=0 // pred_fallthru
    _
  // Predicated region
  $region18: #{target_network_forward.4} parent=0 // pred_check
    _
  $region19: #{target_network_forward.4} parent=0 // pred_check_branch
    %19 = sbr.rel (0) target = $region21
  $region20: #{target_network_forward.4} parent=0 // pred_region
    _
  $region21: #{target_network_forward.4} parent=0 // pred_fallthru
    _
  %v20 = vld [vmem:[%s0] sm:$0xff]
  %v21 = vld [vmem:[%s0 + $0x8] sm:$0xff]
  %v22 = vld [vmem:[%s0 + $0x10] sm:$0xff]
  %v23 = vld [vmem:[%s0 + $0x18] sm:$0xff]
  %v24 = vld [vmem:[%s0 + $0x20] sm:$0xff]
  %v25 = vld [vmem:[%s0 + $0x28] sm:$0xff]
  %v26 = vld [vmem:[%s0 + $0x30] sm:$0xff]
  %v27 = vld [vmem:[%s0 + $0x38] sm:$0xff]
  %v28 = vld [vmem:[%s0 + $0x40] sm:$0xff]
  %v29 = vld [vmem:[%s0 + $0x48] sm:$0xff]
  %v30 = vld [vmem:[%s0 + $0x50] sm:$0xff]
  %v31 = vld [vmem:[%s0 + $0x58] sm:$0xff]
  %v32 = vld [vmem:[%s0 + $0x60] sm:$0xff]
  %v33 = vld [vmem:[%s0 + $0x68] sm:$0xff]
  %v34 = vld [vmem:[%s0 + $0x70] sm:$0xff]
  %v35 = vld [vmem:[%s0 + $0x78] sm:$0xff]
  %v36 = vld [vmem:[%s0 + $0x80] sm:$0xff]
  %v37 = vld [vmem:[%s0 + $0x88] sm:$0xff]
  %v38 = vld [vmem:[%s0 + $0x90] sm:$0xff]
  %v39 = vld [vmem:[%s0 + $0x98] sm:$0xff]
  %v40 = vld [vmem:[%s0 + $0xa0] sm:$0xff]
  %v41 = vld [vmem:[%s0 + $0xa8] sm:$0xff]
  %v42 = vld [vmem:[%s0 + $0xb0] sm:$0xff]
  %v43 = vld [vmem:[%s0 + $0xb8] sm:$0xff]
  %v44 = vld [vmem:[%s0 + $0xc0] sm:$0xff]
  %v45 = vld [vmem:[%s0 + $0xc8] sm:$0xff]
  %v46 = vld [vmem:[%s0 + $0xd0] sm:$0xff]
  %v47 = vld [vmem:[%s0 + $0xd8] sm:$0xff]
  %v48 = vld [vmem:[%s0 + $0xe0] sm:$0xff]
  %v49 = vld [vmem:[%s0 + $0xe8] sm:$0xff]
  %v50 = vld [vmem:[%s0 + $0xf0] sm:$0xff]
  %v51 = vld [vmem:[%s0 + $0xf8] sm:$0xff]
  %v52 = vld [vmem:[%s1] sm:$0xff]
  %v53 = vld [vmem:[%s1 + $0x8] sm:$0xff]
  %v54 = vld [vmem:[%s1 + $0x10] sm:$0xff]
  %v55 = vld [vmem:[%s1 + $0x18] sm:$0xff]
  %v56 = vld [vmem:[%s1 + $0x20] sm:$0xff]
  %v57 = vld [vmem:[%s1 + $0x28] sm:$0xff]
  %v58 = vld [vmem:[%s1 + $0x30] sm:$0xff]
  %v59 = vld [vmem:[%s1 + $0x38] sm:$0xff]
  %v60 = vld [vmem:[%s1 + $0x40] sm:$0xff]
  %v61 = vld [vmem:[%s1 + $0x48] sm:$0xff]
  %v62 = vld [vmem:[%s1 + $0x50] sm:$0xff]
  %v63 = vld [vmem:[%s1 + $0x58] sm:$0xff]
  %v64 = vld [vmem:[%s1 + $0x60] sm:$0xff]
  %v65 = vld [vmem:[%s1 + $0x68] sm:$0xff]
  %v66 = vld [vmem:[%s1 + $0x70] sm:$0xff]
  %v67 = vld [vmem:[%s1 + $0x78] sm:$0xff]
  %v68 = vld [vmem:[%s1 + $0x80] sm:$0xff]
  %v69 = vld [vmem:[%s1 + $0x88] sm:$0xff]
  %v70 = vld [vmem:[%s1 + $0x90] sm:$0xff]
  %v71 = vld [vmem:[%s1 + $0x98] sm:$0xff]
  %v72 = vld [vmem:[%s1 + $0xa0] sm:$0xff]
  %v73 = vld [vmem:[%s1 + $0xa8] sm:$0xff]
  %v74 = vld [vmem:[%s1 + $0xb0] sm:$0xff]
  %v75 = vld [vmem:[%s1 + $0xb8] sm:$0xff]
  %v76 = vld [vmem:[%s1 + $0xc0] sm:$0xff]
  %v77 = vld [vmem:[%s1 + $0xc8] sm:$0xff]
  %v78 = vld [vmem:[%s1 + $0xd0] sm:$0xff]
  %v79 = vld [vmem:[%s1 + $0xd8] sm:$0xff]
  %v80 = vld [vmem:[%s1 + $0xe0] sm:$0xff]
  %v81 = vld [vmem:[%s1 + $0xe8] sm:$0xff]
  %v82 = vld [vmem:[%s1 + $0xf0] sm:$0xff]
  %v83 = vld [vmem:[%s1 + $0xf8] sm:$0xff]
  %v84 = vld [vmem:[%s1 + $0x100] sm:$0xff]
  %v85 = vld [vmem:[%s1 + $0x108] sm:$0xff]
  %v86 = vld [vmem:[%s1 + $0x110] sm:$0xff]
  %v87 = vld [vmem:[%s1 + $0x118] sm:$0xff]
  %v88 = vld [vmem:[%s1 + $0x120] sm:$0xff]
  %v89 = vld [vmem:[%s1 + $0x128] sm:$0xff]
  %v90 = vld [vmem:[%s1 + $0x130] sm:$0xff]
  %v91 = vld [vmem:[%s1 + $0x138] sm:$0xff]
  %v92 = vld [vmem:[%s1 + $0x140] sm:$0xff]
  %v93 = vld [vmem:[%s1 + $0x148] sm:$0xff]
  %v94 = vld [vmem:[%s1 + $0x150] sm:$0xff]
  %v95 = vld [vmem:[%s1 + $0x158] sm:$0xff]
  %v96 = vld [vmem:[%s1 + $0x160] sm:$0xff]
  %v97 = vld [vmem:[%s1 + $0x168] sm:$0xff]
  %v98 = vld [vmem:[%s1 + $0x170] sm:$0xff]
  %v99 = vld [vmem:[%s1 + $0x178] sm:$0xff]
  %v100 = vld [vmem:[%s1 + $0x180] sm:$0xff]
  %v101 = vld [vmem:[%s1 + $0x188] sm:$0xff]
  %v102 = vld [vmem:[%s1 + $0x190] sm:$0xff]
  %v103 = vld [vmem:[%s1 + $0x198] sm:$0xff]
  %v104 = vld [vmem:[%s1 + $0x1a0] sm:$0xff]
  %v105 = vld [vmem:[%s1 + $0x1a8] sm:$0xff]
  %v106 = vld [vmem:[%s1 + $0x1b0] sm:$0xff]
  %v107 = vld [vmem:[%s1 + $0x1b8] sm:$0xff]
  %v108 = vld [vmem:[%s1 + $0x1c0] sm:$0xff]
  %v109 = vld [vmem:[%s1 + $0x1c8] sm:$0xff]
  %v110 = vld [vmem:[%s1 + $0x1d0] sm:$0xff]
  %v111 = vld [vmem:[%s1 + $0x1d8] sm:$0xff]
  %v112 = vld [vmem:[%s1 + $0x1e0] sm:$0xff]
  %v113 = vld [vmem:[%s1 + $0x1e8] sm:$0xff]
  %v114 = vld [vmem:[%s1 + $0x1f0] sm:$0xff]
  %v115 = vld [vmem:[%s1 + $0x1f8] sm:$0xff]
  %v116 = vld [vmem:[%s1 + $0x200] sm:$0xff]
  %v117 = vld [vmem:[%s1 + $0x208] sm:$0xff]
  %v118 = vld [vmem:[%s1 + $0x210] sm:$0xff]
  %v119 = vld [vmem:[%s1 + $0x218] sm:$0xff]
  %v120 = vld [vmem:[%s1 + $0x220] sm:$0xff]
  %v121 = vld [vmem:[%s1 + $0x228] sm:$0xff]
  %v122 = vld [vmem:[%s1 + $0x230] sm:$0xff]
  %v123 = vld [vmem:[%s1 + $0x238] sm:$0xff]
  %v124 = vld [vmem:[%s1 + $0x240] sm:$0xff]
  %v125 = vld [vmem:[%s1 + $0x248] sm:$0xff]
  %v126 = vld [vmem:[%s1 + $0x250] sm:$0xff]
  %v127 = vld [vmem:[%s1 + $0x258] sm:$0xff]
  %v128 = vld [vmem:[%s1 + $0x260] sm:$0xff]
  %v129 = vld [vmem:[%s1 + $0x268] sm:$0xff]
  %v130 = vld [vmem:[%s1 + $0x270] sm:$0xff]
  %v131 = vld [vmem:[%s1 + $0x278] sm:$0xff]
  %v132 = vld [vmem:[%s1 + $0x280] sm:$0xff]
  %v133 = vld [vmem:[%s1 + $0x288] sm:$0xff]
  %v134 = vld [vmem:[%s1 + $0x290] sm:$0xff]
  %v135 = vld [vmem:[%s1 + $0x298] sm:$0xff]
  %v136 = vld [vmem:[%s1 + $0x2a0] sm:$0xff]
  %v137 = vld [vmem:[%s1 + $0x2a8] sm:$0xff]
  %v138 = vld [vmem:[%s1 + $0x2b0] sm:$0xff]
  %v139 = vld [vmem:[%s1 + $0x2b8] sm:$0xff]
  %v140 = vld [vmem:[%s1 + $0x2c0] sm:$0xff]
  %v141 = vld [vmem:[%s1 + $0x2c8] sm:$0xff]
  %v142 = vld [vmem:[%s1 + $0x2d0] sm:$0xff]
  %v143 = vld [vmem:[%s1 + $0x2d8] sm:$0xff]
  %v144 = vld [vmem:[%s1 + $0x2e0] sm:$0xff]
  %v145 = vld [vmem:[%s1 + $0x2e8] sm:$0xff]
  %v146 = vld [vmem:[%s1 + $0x2f0] sm:$0xff]
  %v147 = vld [vmem:[%s1 + $0x2f8] sm:$0xff]
  %v148 = vld [vmem:[%s1 + $0x300] sm:$0xff]
  %v149 = vld [vmem:[%s1 + $0x308] sm:$0xff]
  %v150 = vld [vmem:[%s1 + $0x310] sm:$0xff]
  %v151 = vld [vmem:[%s1 + $0x318] sm:$0xff]
  %v152 = vld [vmem:[%s1 + $0x320] sm:$0xff]
  %v153 = vld [vmem:[%s1 + $0x328] sm:$0xff]
  %v154 = vld [vmem:[%s1 + $0x330] sm:$0xff]
  %v155 = vld [vmem:[%s1 + $0x338] sm:$0xff]
  %v156 = vld [vmem:[%s1 + $0x340] sm:$0xff]
  %v157 = vld [vmem:[%s1 + $0x348] sm:$0xff]
  %v158 = vld [vmem:[%s1 + $0x350] sm:$0xff]
  %v159 = vld [vmem:[%s1 + $0x358] sm:$0xff]
  %v160 = vld [vmem:[%s1 + $0x360] sm:$0xff]
  %v161 = vld [vmem:[%s1 + $0x368] sm:$0xff]
  %v162 = vld [vmem:[%s1 + $0x370] sm:$0xff]
  %v163 = vld [vmem:[%s1 + $0x378] sm:$0xff]
  %v164 = vld [vmem:[%s1 + $0x380] sm:$0xff]
  %v165 = vld [vmem:[%s1 + $0x388] sm:$0xff]
  %v166 = vld [vmem:[%s1 + $0x390] sm:$0xff]
  %v167 = vld [vmem:[%s1 + $0x398] sm:$0xff]
  %v168 = vld [vmem:[%s1 + $0x3a0] sm:$0xff]
  %v169 = vld [vmem:[%s1 + $0x3a8] sm:$0xff]
  %v170 = vld [vmem:[%s1 + $0x3b0] sm:$0xff]
  %v171 = vld [vmem:[%s1 + $0x3b8] sm:$0xff]
  %v172 = vld [vmem:[%s2] sm:$0x1]
  %v174 = vlaneseq
  %v175 = vshrl.u32 %v174, 7
  %v176 = vsub.s32 0, %v175
  %v177 = vrot.slane %v172, %v176
  %vm179 = vcmask 523264
  %v181 = vsel %vm179, %v27, 0
  %v184 = vsel %vm179, %v35, 0
  %v187 = vsel %vm179, %v43, 0
  %v190 = vsel %vm179, %v51, 0
  %192 = vmatprep.subr.mxu0 0.0
  %193 = vmatpush1.msra.mxu0 %v52
  %194 = vmatprep.subr.mxu0 0.0
  %195 = vmatpush1.msra.mxu0 %v53
  %196 = vmatprep.subr.mxu0 0.0
  %197 = vmatpush1.msra.mxu0 %v54
  %198 = vmatprep.subr.mxu0 0.0
  %199 = vmatpush1.msra.mxu0 %v55
  %200 = vmatprep.subr.mxu0 0.0
  %201 = vmatpush1.msra.mxu0 %v56
  %202 = vmatprep.subr.mxu0 0.0
  %203 = vmatpush1.msra.mxu0 %v57
  %204 = vmatprep.subr.mxu0 0.0
  %205 = vmatpush1.msra.mxu0 %v58
  %206 = vmatprep.subr.mxu0 0.0
  %207 = vmatpush1.msra.mxu0 %v59
  %208 = vmatprep.subr.mxu0 0.0
  %209 = vmatpush1.msra.mxu0 %v60
  %210 = vmatprep.subr.mxu0 0.0
  %211 = vmatpush1.msra.mxu0 %v61
  %212 = vmatprep.subr.mxu0 0.0
  %213 = vmatpush1.msra.mxu0 %v62
  %214 = vmatprep.subr.mxu0 0.0
  %215 = vmatpush1.msra.mxu0 %v63
  %216 = vmatprep.subr.mxu0 0.0
  %217 = vmatpush1.msra.mxu0 %v64
  %218 = vmatprep.subr.mxu0 0.0
  %219 = vmatpush1.msra.mxu0 %v65
  %220 = vmatprep.subr.mxu0 0.0
  %221 = vmatpush1.msra.mxu0 %v66
  %222 = vmatprep.subr.mxu0 0.0
  %223 = vmatpush1.msra.mxu0 %v67
  %224 = vmatprep.subr.mxu0 0.0
  %225 = vmatpush1.msra.mxu0 %v68
  %226 = vmatprep.subr.mxu0 0.0
  %227 = vmatpush1.msra.mxu0 %v69
  %228 = vmatprep.subr.mxu0 0.0
  %229 = vmatpush1.msra.mxu0 %v70
  %230 = vmatprep.subr.mxu0 0.0
  %231 = vmatpush1.msra.mxu0 %v71
  %232 = vmatprep.subr.mxu0 0.0
  %233 = vmatpush1.msra.mxu0 %v72
  %234 = vmatprep.subr.mxu0 0.0
  %235 = vmatpush1.msra.mxu0 %v73
  %236 = vmatprep.subr.mxu0 0.0
  %237 = vmatpush1.msra.mxu0 %v74
  %238 = vmatprep.subr.mxu0 0.0
  %239 = vmatpush1.msra.mxu0 %v75
  %240 = vmatprep.subr.mxu0 0.0
  %241 = vmatpush1.msra.mxu0 %v76
  %242 = vmatprep.subr.mxu0 0.0
  %243 = vmatpush1.msra.mxu0 %v77
  %244 = vmatprep.subr.mxu0 0.0
  %245 = vmatpush1.msra.mxu0 %v78
  %246 = vmatprep.subr.mxu0 0.0
  %247 = vmatpush1.msra.mxu0 %v79
  %248 = vmatprep.subr.mxu0 0.0
  %249 = vmatpush1.msra.mxu0 %v80
  %250 = vmatprep.subr.mxu0 0.0
  %251 = vmatpush1.msra.mxu0 %v81
  %252 = vmatprep.subr.mxu0 0.0
  %253 = vmatpush1.msra.mxu0 %v82
  %254 = vmatprep.subr.mxu0 0.0
  %255 = vmatpush1.msra.mxu0 %v83
  %256 = vmatprep.mubr.f32.mxu0 %v21
  %257 = vmatmul.mubr.f32.gmra.mrb[0].mxu0 %v20
  %v258 = vpop.f32.mrb[0].mxu0
  %v259 = vadd.f32 %v177, %v258
  %v260 = vpop.f32.mrb[0].mxu0
  %261 = vmatprep.mubr.f32.mxu0 %v29
  %262 = vmatmul.mubr.f32.gmra.mrb[0].mxu0 %v28
  %v263 = vpop.f32.mrb[0].mxu0
  %v264 = vadd.f32 %v177, %v263
  %v265 = vpop.f32.mrb[0].mxu0
  %266 = vmatprep.mubr.f32.mxu0 %v37
  %267 = vmatmul.mubr.f32.gmra.mrb[0].mxu0 %v36
  %v268 = vpop.f32.mrb[0].mxu0
  %v269 = vadd.f32 %v177, %v268
  %v270 = vpop.f32.mrb[0].mxu0
  %271 = vmatprep.mubr.f32.mxu0 %v45
  %272 = vmatmul.mubr.f32.gmra.mrb[0].mxu0 %v44
  %v273 = vpop.f32.mrb[0].mxu0
  %v274 = vadd.f32 %v177, %v273
  %v275 = vpop.f32.mrb[0].mxu0
  %276 = vdwg.mxu0
  %277 = vmatprep.subr.mxu0 0.0
  %278 = vmatpush1.msra.mxu0 %v84
  %279 = vmatprep.subr.mxu0 0.0
  %280 = vmatpush1.msra.mxu0 %v85
  %281 = vmatprep.subr.mxu0 0.0
  %282 = vmatpush1.msra.mxu0 %v86
  %283 = vmatprep.subr.mxu0 0.0
  %284 = vmatpush1.msra.mxu0 %v87
  %285 = vmatprep.subr.mxu0 0.0
  %286 = vmatpush1.msra.mxu0 %v88
  %287 = vmatprep.subr.mxu0 0.0
  %288 = vmatpush1.msra.mxu0 %v89
  %289 = vmatprep.subr.mxu0 0.0
  %290 = vmatpush1.msra.mxu0 %v90
  %291 = vmatprep.subr.mxu0 0.0
  %292 = vmatpush1.msra.mxu0 %v91
  %293 = vmatprep.subr.mxu0 0.0
  %294 = vmatpush1.msra.mxu0 %v92
  %295 = vmatprep.subr.mxu0 0.0
  %296 = vmatpush1.msra.mxu0 %v93
  %297 = vmatprep.subr.mxu0 0.0
  %298 = vmatpush1.msra.mxu0 %v94
  %299 = vmatprep.subr.mxu0 0.0
  %300 = vmatpush1.msra.mxu0 %v95
  %301 = vmatprep.subr.mxu0 0.0
  %302 = vmatpush1.msra.mxu0 %v96
  %303 = vmatprep.subr.mxu0 0.0
  %304 = vmatpush1.msra.mxu0 %v97
  %305 = vmatprep.subr.mxu0 0.0
  %306 = vmatpush1.msra.mxu0 %v98
  %307 = vmatprep.subr.mxu0 0.0
  %308 = vmatpush1.msra.mxu0 %v99
  %309 = vmatprep.subr.mxu0 0.0
  %310 = vmatpush1.msra.mxu0 %v100
  %311 = vmatprep.subr.mxu0 0.0
  %312 = vmatpush1.msra.mxu0 %v101
  %313 = vmatprep.subr.mxu0 0.0
  %314 = vmatpush1.msra.mxu0 %v102
  %315 = vmatprep.subr.mxu0 0.0
  %316 = vmatpush1.msra.mxu0 %v103
  %317 = vmatprep.subr.mxu0 0.0
  %318 = vmatpush1.msra.mxu0 %v104
  %319 = vmatprep.subr.mxu0 0.0
  %320 = vmatpush1.msra.mxu0 %v105
  %321 = vmatprep.subr.mxu0 0.0
  %322 = vmatpush1.msra.mxu0 %v106
  %323 = vmatprep.subr.mxu0 0.0
  %324 = vmatpush1.msra.mxu0 %v107
  %325 = vmatprep.subr.mxu0 0.0
  %326 = vmatpush1.msra.mxu0 %v108
  %327 = vmatprep.subr.mxu0 0.0
  %328 = vmatpush1.msra.mxu0 %v109
  %329 = vmatprep.subr.mxu0 0.0
  %330 = vmatpush1.msra.mxu0 %v110
  %331 = vmatprep.subr.mxu0 0.0
  %332 = vmatpush1.msra.mxu0 %v111
  %333 = vmatprep.subr.mxu0 0.0
  %334 = vmatpush1.msra.mxu0 %v112
  %335 = vmatprep.subr.mxu0 0.0
  %336 = vmatpush1.msra.mxu0 %v113
  %337 = vmatprep.subr.mxu0 0.0
  %338 = vmatpush1.msra.mxu0 %v114
  %339 = vmatprep.subr.mxu0 0.0
  %340 = vmatpush1.msra.mxu0 %v115
  %341 = vmatprep.mubr.f32.mxu0 %v23
  %342 = vmatmul.mubr.f32.gmra.mrb[0].mxu0 %v22
  %v343 = vpop.f32.mrb[0].mxu0
  %v344 = vadd.f32 %v259, %v343
  %v345 = vpop.f32.mrb[0].mxu0
  %346 = vmatprep.mubr.f32.mxu0 %v31
  %347 = vmatmul.mubr.f32.gmra.mrb[0].mxu0 %v30
  %v348 = vpop.f32.mrb[0].mxu0
  %v349 = vadd.f32 %v264, %v348
  %v350 = vpop.f32.mrb[0].mxu0
  %351 = vmatprep.mubr.f32.mxu0 %v39
  %352 = vmatmul.mubr.f32.gmra.mrb[0].mxu0 %v38
  %v353 = vpop.f32.mrb[0].mxu0
  %v354 = vadd.f32 %v269, %v353
  %v355 = vpop.f32.mrb[0].mxu0
  %356 = vmatprep.mubr.f32.mxu0 %v47
  %357 = vmatmul.mubr.f32.gmra.mrb[0].mxu0 %v46
  %v358 = vpop.f32.mrb[0].mxu0
  %v359 = vadd.f32 %v274, %v358
  %v360 = vpop.f32.mrb[0].mxu0
  %361 = vdwg.mxu0
  %362 = vmatprep.subr.mxu0 0.0
  %363 = vmatpush1.msra.mxu0 %v116
  %364 = vmatprep.subr.mxu0 0.0
  %365 = vmatpush1.msra.mxu0 %v117
  %366 = vmatprep.subr.mxu0 0.0
  %367 = vmatpush1.msra.mxu0 %v118
  %368 = vmatprep.subr.mxu0 0.0
  %369 = vmatpush1.msra.mxu0 %v119
  %370 = vmatprep.subr.mxu0 0.0
  %371 = vmatpush1.msra.mxu0 %v120
  %372 = vmatprep.subr.mxu0 0.0
  %373 = vmatpush1.msra.mxu0 %v121
  %374 = vmatprep.subr.mxu0 0.0
  %375 = vmatpush1.msra.mxu0 %v122
  %376 = vmatprep.subr.mxu0 0.0
  %377 = vmatpush1.msra.mxu0 %v123
  %378 = vmatprep.subr.mxu0 0.0
  %379 = vmatpush1.msra.mxu0 %v124
  %380 = vmatprep.subr.mxu0 0.0
  %381 = vmatpush1.msra.mxu0 %v125
  %382 = vmatprep.subr.mxu0 0.0
  %383 = vmatpush1.msra.mxu0 %v126
  %384 = vmatprep.subr.mxu0 0.0
  %385 = vmatpush1.msra.mxu0 %v127
  %386 = vmatprep.subr.mxu0 0.0
  %387 = vmatpush1.msra.mxu0 %v128
  %388 = vmatprep.subr.mxu0 0.0
  %389 = vmatpush1.msra.mxu0 %v129
  %390 = vmatprep.subr.mxu0 0.0
  %391 = vmatpush1.msra.mxu0 %v130
  %392 = vmatprep.subr.mxu0 0.0
  %393 = vmatpush1.msra.mxu0 %v131
  %394 = vmatprep.subr.mxu0 0.0
  %395 = vmatpush1.msra.mxu0 %v132
  %396 = vmatprep.subr.mxu0 0.0
  %397 = vmatpush1.msra.mxu0 %v133
  %398 = vmatprep.subr.mxu0 0.0
  %399 = vmatpush1.msra.mxu0 %v134
  %400 = vmatprep.subr.mxu0 0.0
  %401 = vmatpush1.msra.mxu0 %v135
  %402 = vmatprep.subr.mxu0 0.0
  %403 = vmatpush1.msra.mxu0 %v136
  %404 = vmatprep.subr.mxu0 0.0
  %405 = vmatpush1.msra.mxu0 %v137
  %406 = vmatprep.subr.mxu0 0.0
  %407 = vmatpush1.msra.mxu0 %v138
  %408 = vmatprep.subr.mxu0 0.0
  %409 = vmatpush1.msra.mxu0 %v139
  %410 = vmatprep.subr.mxu0 0.0
  %411 = vmatpush1.msra.mxu0 %v140
  %412 = vmatprep.subr.mxu0 0.0
  %413 = vmatpush1.msra.mxu0 %v141
  %414 = vmatprep.subr.mxu0 0.0
  %415 = vmatpush1.msra.mxu0 %v142
  %416 = vmatprep.subr.mxu0 0.0
  %417 = vmatpush1.msra.mxu0 %v143
  %418 = vmatprep.subr.mxu0 0.0
  %419 = vmatpush1.msra.mxu0 %v144
  %420 = vmatprep.subr.mxu0 0.0
  %421 = vmatpush1.msra.mxu0 %v145
  %422 = vmatprep.subr.mxu0 0.0
  %423 = vmatpush1.msra.mxu0 %v146
  %424 = vmatprep.subr.mxu0 0.0
  %425 = vmatpush1.msra.mxu0 %v147
  %426 = vmatprep.mubr.f32.mxu0 %v25
  %427 = vmatmul.mubr.f32.gmra.mrb[0].mxu0 %v24
  %v428 = vpop.f32.mrb[0].mxu0
  %v429 = vadd.f32 %v344, %v428
  %v430 = vpop.f32.mrb[0].mxu0
  %431 = vmatprep.mubr.f32.mxu0 %v33
  %432 = vmatmul.mubr.f32.gmra.mrb[0].mxu0 %v32
  %v433 = vpop.f32.mrb[0].mxu0
  %v434 = vadd.f32 %v349, %v433
  %v435 = vpop.f32.mrb[0].mxu0
  %436 = vmatprep.mubr.f32.mxu0 %v41
  %437 = vmatmul.mubr.f32.gmra.mrb[0].mxu0 %v40
  %v438 = vpop.f32.mrb[0].mxu0
  %v439 = vadd.f32 %v354, %v438
  %v440 = vpop.f32.mrb[0].mxu0
  %441 = vmatprep.mubr.f32.mxu0 %v49
  %442 = vmatmul.mubr.f32.gmra.mrb[0].mxu0 %v48
  %v443 = vpop.f32.mrb[0].mxu0
  %v444 = vadd.f32 %v359, %v443
  %v445 = vpop.f32.mrb[0].mxu0
  %446 = vdwg.mxu0
  %447 = vmatprep.subr.mxu0 0.0
  %448 = vmatpush1.msra.mxu0 %v148
  %449 = vmatprep.subr.mxu0 0.0
  %450 = vmatpush1.msra.mxu0 %v149
  %451 = vmatprep.subr.mxu0 0.0
  %452 = vmatpush1.msra.mxu0 %v150
  %453 = vmatprep.subr.mxu0 0.0
  %454 = vmatpush1.msra.mxu0 %v151
  %455 = vmatprep.subr.mxu0 0.0
  %456 = vmatpush1.msra.mxu0 %v152
  %457 = vmatprep.subr.mxu0 0.0
  %458 = vmatpush1.msra.mxu0 %v153
  %459 = vmatprep.subr.mxu0 0.0
  %460 = vmatpush1.msra.mxu0 %v154
  %461 = vmatprep.subr.mxu0 0.0
  %462 = vmatpush1.msra.mxu0 %v155
  %463 = vmatprep.subr.mxu0 0.0
  %464 = vmatpush1.msra.mxu0 %v156
  %465 = vmatprep.subr.mxu0 0.0
  %466 = vmatpush1.msra.mxu0 %v157
  %467 = vmatprep.subr.mxu0 0.0
  %468 = vmatpush1.msra.mxu0 %v158
  %469 = vmatprep.subr.mxu0 0.0
  %470 = vmatpush1.msra.mxu0 %v159
  %471 = vmatprep.subr.mxu0 0.0
  %472 = vmatpush1.msra.mxu0 %v160
  %473 = vmatprep.subr.mxu0 0.0
  %474 = vmatpush1.msra.mxu0 %v161
  %475 = vmatprep.subr.mxu0 0.0
  %476 = vmatpush1.msra.mxu0 %v162
  %477 = vmatprep.subr.mxu0 0.0
  %478 = vmatpush1.msra.mxu0 %v163
  %479 = vmatprep.subr.mxu0 0.0
  %480 = vmatpush1.msra.mxu0 %v164
  %481 = vmatprep.subr.mxu0 0.0
  %482 = vmatpush1.msra.mxu0 %v165
  %483 = vmatprep.subr.mxu0 0.0
  %484 = vmatpush1.msra.mxu0 %v166
  %485 = vmatprep.subr.mxu0 0.0
  %486 = vmatpush1.msra.mxu0 %v167
  %487 = vmatprep.subr.mxu0 0.0
  %488 = vmatpush1.msra.mxu0 %v168
  %489 = vmatprep.subr.mxu0 0.0
  %490 = vmatpush1.msra.mxu0 %v169
  %491 = vmatprep.subr.mxu0 0.0
  %492 = vmatpush1.msra.mxu0 %v170
  %493 = vmatprep.subr.mxu0 0.0
  %494 = vmatpush1.msra.mxu0 %v171
  %495 = vmatprep.subr.mxu0 0.0
  %496 = vmatpush1.msra.mxu0 0.0
  %497 = vmatprep.subr.mxu0 0.0
  %498 = vmatpush1.msra.mxu0 0.0
  %499 = vmatprep.subr.mxu0 0.0
  %500 = vmatpush1.msra.mxu0 0.0
  %501 = vmatprep.subr.mxu0 0.0
  %502 = vmatpush1.msra.mxu0 0.0
  %503 = vmatprep.subr.mxu0 0.0
  %504 = vmatpush1.msra.mxu0 0.0
  %505 = vmatprep.subr.mxu0 0.0
  %506 = vmatpush1.msra.mxu0 0.0
  %507 = vmatprep.subr.mxu0 0.0
  %508 = vmatpush1.msra.mxu0 0.0
  %509 = vmatprep.subr.mxu0 0.0
  %510 = vmatpush1.msra.mxu0 0.0
  %511 = vmatprep.mubr.f32.mxu0 %v181
  %512 = vmatmul.mubr.f32.gmra.mrb[0].mxu0 %v26
  %v513 = vpop.f32.mrb[0].mxu0
  %v514 = vadd.f32 %v429, %v513
  %v515 = vpop.f32.mrb[0].mxu0
  %516 = vmatprep.mubr.f32.mxu0 %v184
  %517 = vmatmul.mubr.f32.gmra.mrb[0].mxu0 %v34
  %v518 = vpop.f32.mrb[0].mxu0
  %v519 = vadd.f32 %v434, %v518
  %v520 = vpop.f32.mrb[0].mxu0
  %521 = vmatprep.mubr.f32.mxu0 %v187
  %522 = vmatmul.mubr.f32.gmra.mrb[0].mxu0 %v42
  %v523 = vpop.f32.mrb[0].mxu0
  %v524 = vadd.f32 %v439, %v523
  %v525 = vpop.f32.mrb[0].mxu0
  %526 = vmatprep.mubr.f32.mxu0 %v190
  %527 = vmatmul.mubr.f32.gmra.mrb[0].mxu0 %v50
  %v528 = vpop.f32.mrb[0].mxu0
  %v529 = vadd.f32 %v444, %v528
  %v530 = vpop.f32.mrb[0].mxu0
  %531 = vdwg.mxu0
  %vm532 = vcmp.ge.f32.partialorder %v514, 0.0
  %vm533 = vcmp.ge.f32.partialorder %v519, 0.0
  %vm534 = vcmp.ge.f32.partialorder %v524, 0.0
  %vm535 = vcmp.ge.f32.partialorder %v529, 0.0
  %v536 = vld [vmem:[%s3] sm:$0x1]
  %v538 = vlaneseq
  %v539 = vshrl.u32 %v538, 7
  %v540 = vsub.s32 0, %v539
  %v541 = vrot.slane %v536, %v540
  %v543 = vmul.f32 %v541, %v514
  %v544 = vmul.f32 %v541, %v519
  %v545 = vmul.f32 %v541, %v524
  %v546 = vmul.f32 %v541, %v529
  %v547 = vsel %vm532, %v514, %v543
  %v548 = vsel %vm533, %v519, %v544
  %v549 = vsel %vm534, %v524, %v545
  %v550 = vsel %vm535, %v529, %v546
  %v551 = vld [vmem:[%s4] sm:$0xff]
  %v552 = vld [vmem:[%s4 + $0x8] sm:$0xff]
  %v553 = vld [vmem:[%s4 + $0x10] sm:$0xff]
  %v554 = vld [vmem:[%s4 + $0x18] sm:$0xff]
  %v555 = vld [vmem:[%s4 + $0x20] sm:$0xff]
  %v556 = vld [vmem:[%s4 + $0x28] sm:$0xff]
  %v557 = vld [vmem:[%s4 + $0x30] sm:$0xff]
  %v558 = vld [vmem:[%s4 + $0x38] sm:$0xff]
  %v559 = vld [vmem:[%s4 + $0x40] sm:$0xff]
  %v560 = vld [vmem:[%s4 + $0x48] sm:$0xff]
  %v561 = vld [vmem:[%s4 + $0x50] sm:$0xff]
  %v562 = vld [vmem:[%s4 + $0x58] sm:$0xff]
  %v563 = vld [vmem:[%s4 + $0x60] sm:$0xff]
  %v564 = vld [vmem:[%s4 + $0x68] sm:$0xff]
  %v565 = vld [vmem:[%s4 + $0x70] sm:$0xff]
  %v566 = vld [vmem:[%s4 + $0x78] sm:$0xff]
  %567 = vmatprep.subr.mxu0 0.0
  %568 = vmatpush1.msra.mxu0 %v551
  %569 = vmatprep.subr.mxu0 0.0
  %570 = vmatpush1.msra.mxu0 %v552
  %571 = vmatprep.subr.mxu0 0.0
  %572 = vmatpush1.msra.mxu0 %v553
  %573 = vmatprep.subr.mxu0 0.0
  %574 = vmatpush1.msra.mxu0 %v554
  %575 = vmatprep.subr.mxu0 0.0
  %576 = vmatpush1.msra.mxu0 %v555
  %577 = vmatprep.subr.mxu0 0.0
  %578 = vmatpush1.msra.mxu0 %v556
  %579 = vmatprep.subr.mxu0 0.0
  %580 = vmatpush1.msra.mxu0 %v557
  %581 = vmatprep.subr.mxu0 0.0
  %582 = vmatpush1.msra.mxu0 %v558
  %583 = vmatprep.subr.mxu0 0.0
  %584 = vmatpush1.msra.mxu0 %v559
  %585 = vmatprep.subr.mxu0 0.0
  %586 = vmatpush1.msra.mxu0 %v560
  %587 = vmatprep.subr.mxu0 0.0
  %588 = vmatpush1.msra.mxu0 %v561
  %589 = vmatprep.subr.mxu0 0.0
  %590 = vmatpush1.msra.mxu0 %v562
  %591 = vmatprep.subr.mxu0 0.0
  %592 = vmatpush1.msra.mxu0 %v563
  %593 = vmatprep.subr.mxu0 0.0
  %594 = vmatpush1.msra.mxu0 %v564
  %595 = vmatprep.subr.mxu0 0.0
  %596 = vmatpush1.msra.mxu0 %v565
  %597 = vmatprep.subr.mxu0 0.0
  %598 = vmatpush1.msra.mxu0 %v566
  %599 = vmatprep.subr.mxu0 0.0
  %600 = vmatpush1.msra.mxu0 0.0
  %601 = vmatprep.subr.mxu0 0.0
  %602 = vmatpush1.msra.mxu0 0.0
  %603 = vmatprep.subr.mxu0 0.0
  %604 = vmatpush1.msra.mxu0 0.0
  %605 = vmatprep.subr.mxu0 0.0
  %606 = vmatpush1.msra.mxu0 0.0
  %607 = vmatprep.subr.mxu0 0.0
  %608 = vmatpush1.msra.mxu0 0.0
  %609 = vmatprep.subr.mxu0 0.0
  %610 = vmatpush1.msra.mxu0 0.0
  %611 = vmatprep.subr.mxu0 0.0
  %612 = vmatpush1.msra.mxu0 0.0
  %613 = vmatprep.subr.mxu0 0.0
  %614 = vmatpush1.msra.mxu0 0.0
  %615 = vmatprep.subr.mxu0 0.0
  %616 = vmatpush1.msra.mxu0 0.0
  %617 = vmatprep.subr.mxu0 0.0
  %618 = vmatpush1.msra.mxu0 0.0
  %619 = vmatprep.subr.mxu0 0.0
  %620 = vmatpush1.msra.mxu0 0.0
  %621 = vmatprep.subr.mxu0 0.0
  %622 = vmatpush1.msra.mxu0 0.0
  %623 = vmatprep.subr.mxu0 0.0
  %624 = vmatpush1.msra.mxu0 0.0
  %625 = vmatprep.subr.mxu0 0.0
  %626 = vmatpush1.msra.mxu0 0.0
  %627 = vmatprep.subr.mxu0 0.0
  %628 = vmatpush1.msra.mxu0 0.0
  %629 = vmatprep.subr.mxu0 0.0
  %630 = vmatpush1.msra.mxu0 0.0
  %631 = vmatprep.mubr.f32.mxu0 0.0
  %632 = vmatmul.mubr.f32.gmra.mrb[0].mxu0 %v547
  %v633 = vpop.f32.mrb[0].mxu0
  %v634 = vadd.f32 0.0, %v633
  %v635 = vpop.f32.mrb[0].mxu0
  %636 = vmatprep.mubr.f32.mxu0 0.0
  %637 = vmatmul.mubr.f32.gmra.mrb[0].mxu0 %v548
  %v638 = vpop.f32.mrb[0].mxu0
  %v639 = vadd.f32 0.0, %v638
  %v640 = vpop.f32.mrb[0].mxu0
  %641 = vmatprep.mubr.f32.mxu0 0.0
  %642 = vmatmul.mubr.f32.gmra.mrb[0].mxu0 %v549
  %v643 = vpop.f32.mrb[0].mxu0
  %v644 = vadd.f32 0.0, %v643
  %v645 = vpop.f32.mrb[0].mxu0
  %646 = vmatprep.mubr.f32.mxu0 0.0
  %647 = vmatmul.mubr.f32.gmra.mrb[0].mxu0 %v550
  %v648 = vpop.f32.mrb[0].mxu0
  %v649 = vadd.f32 0.0, %v648
  %v650 = vpop.f32.mrb[0].mxu0
  %651 = vdwg.mxu0
  %v652 = vadd.f32 %v547, %v634
  %v653 = vadd.f32 %v548, %v639
  %v654 = vadd.f32 %v549, %v644
  %v655 = vadd.f32 %v550, %v649
  %s656 = scalar_lea.vmem %s0, 256
  %v657 = vld [vmem:[%s656] sm:$0xff]
  %v658 = vld [vmem:[%s656 + $0x8] sm:$0xff]
  %v659 = vld [vmem:[%s656 + $0x10] sm:$0xff]
  %v660 = vld [vmem:[%s656 + $0x18] sm:$0xff]
  %v661 = vld [vmem:[%s656 + $0x20] sm:$0xff]
  %v662 = vld [vmem:[%s656 + $0x28] sm:$0xff]
  %v663 = vld [vmem:[%s656 + $0x30] sm:$0xff]
  %v664 = vld [vmem:[%s656 + $0x38] sm:$0xff]
  %v665 = vld [vmem:[%s656 + $0x40] sm:$0xff]
  %v666 = vld [vmem:[%s656 + $0x48] sm:$0xff]
  %v667 = vld [vmem:[%s656 + $0x50] sm:$0xff]
  %v668 = vld [vmem:[%s656 + $0x58] sm:$0xff]
  %v669 = vld [vmem:[%s656 + $0x60] sm:$0xff]
  %v670 = vld [vmem:[%s656 + $0x68] sm:$0xff]
  %v671 = vld [vmem:[%s656 + $0x70] sm:$0xff]
  %v672 = vld [vmem:[%s656 + $0x78] sm:$0xff]
  %v673 = vld [vmem:[%s656 + $0x80] sm:$0xff]
  %v674 = vld [vmem:[%s656 + $0x88] sm:$0xff]
  %v675 = vld [vmem:[%s656 + $0x90] sm:$0xff]
  %v676 = vld [vmem:[%s656 + $0x98] sm:$0xff]
  %v677 = vld [vmem:[%s656 + $0xa0] sm:$0xff]
  %v678 = vld [vmem:[%s656 + $0xa8] sm:$0xff]
  %v679 = vld [vmem:[%s656 + $0xb0] sm:$0xff]
  %v680 = vld [vmem:[%s656 + $0xb8] sm:$0xff]
  %v681 = vld [vmem:[%s656 + $0xc0] sm:$0xff]
  %v682 = vld [vmem:[%s656 + $0xc8] sm:$0xff]
  %v683 = vld [vmem:[%s656 + $0xd0] sm:$0xff]
  %v684 = vld [vmem:[%s656 + $0xd8] sm:$0xff]
  %v685 = vld [vmem:[%s656 + $0xe0] sm:$0xff]
  %v686 = vld [vmem:[%s656 + $0xe8] sm:$0xff]
  %v687 = vld [vmem:[%s656 + $0xf0] sm:$0xff]
  %v688 = vld [vmem:[%s656 + $0xf8] sm:$0xff]
  %v690 = vsel %vm179, %v664, 0
  %v693 = vsel %vm179, %v672, 0
  %v696 = vsel %vm179, %v680, 0
  %v699 = vsel %vm179, %v688, 0
  %701 = vmatprep.subr.mxu0 0.0
  %702 = vmatpush1.msra.mxu0 %v52
  %703 = vmatprep.subr.mxu0 0.0
  %704 = vmatpush1.msra.mxu0 %v53
  %705 = vmatprep.subr.mxu0 0.0
  %706 = vmatpush1.msra.mxu0 %v54
  %707 = vmatprep.subr.mxu0 0.0
  %708 = vmatpush1.msra.mxu0 %v55
  %709 = vmatprep.subr.mxu0 0.0
  %710 = vmatpush1.msra.mxu0 %v56
  %711 = vmatprep.subr.mxu0 0.0
  %712 = vmatpush1.msra.mxu0 %v57
  %713 = vmatprep.subr.mxu0 0.0
  %714 = vmatpush1.msra.mxu0 %v58
  %715 = vmatprep.subr.mxu0 0.0
  %716 = vmatpush1.msra.mxu0 %v59
  %717 = vmatprep.subr.mxu0 0.0
  %718 = vmatpush1.msra.mxu0 %v60
  %719 = vmatprep.subr.mxu0 0.0
  %720 = vmatpush1.msra.mxu0 %v61
  %721 = vmatprep.subr.mxu0 0.0
  %722 = vmatpush1.msra.mxu0 %v62
  %723 = vmatprep.subr.mxu0 0.0
  %724 = vmatpush1.msra.mxu0 %v63
  %725 = vmatprep.subr.mxu0 0.0
  %726 = vmatpush1.msra.mxu0 %v64
  %727 = vmatprep.subr.mxu0 0.0
  %728 = vmatpush1.msra.mxu0 %v65
  %729 = vmatprep.subr.mxu0 0.0
  %730 = vmatpush1.msra.mxu0 %v66
  %731 = vmatprep.subr.mxu0 0.0
  %732 = vmatpush1.msra.mxu0 %v67
  %733 = vmatprep.subr.mxu0 0.0
  %734 = vmatpush1.msra.mxu0 %v68
  %735 = vmatprep.subr.mxu0 0.0
  %736 = vmatpush1.msra.mxu0 %v69
  %737 = vmatprep.subr.mxu0 0.0
  %738 = vmatpush1.msra.mxu0 %v70
  %739 = vmatprep.subr.mxu0 0.0
  %740 = vmatpush1.msra.mxu0 %v71
  %741 = vmatprep.subr.mxu0 0.0
  %742 = vmatpush1.msra.mxu0 %v72
  %743 = vmatprep.subr.mxu0 0.0
  %744 = vmatpush1.msra.mxu0 %v73
  %745 = vmatprep.subr.mxu0 0.0
  %746 = vmatpush1.msra.mxu0 %v74
  %747 = vmatprep.subr.mxu0 0.0
  %748 = vmatpush1.msra.mxu0 %v75
  %749 = vmatprep.subr.mxu0 0.0
  %750 = vmatpush1.msra.mxu0 %v76
  %751 = vmatprep.subr.mxu0 0.0
  %752 = vmatpush1.msra.mxu0 %v77
  %753 = vmatprep.subr.mxu0 0.0
  %754 = vmatpush1.msra.mxu0 %v78
  %755 = vmatprep.subr.mxu0 0.0
  %756 = vmatpush1.msra.mxu0 %v79
  %757 = vmatprep.subr.mxu0 0.0
  %758 = vmatpush1.msra.mxu0 %v80
  %759 = vmatprep.subr.mxu0 0.0
  %760 = vmatpush1.msra.mxu0 %v81
  %761 = vmatprep.subr.mxu0 0.0
  %762 = vmatpush1.msra.mxu0 %v82
  %763 = vmatprep.subr.mxu0 0.0
  %764 = vmatpush1.msra.mxu0 %v83
  %765 = vmatprep.mubr.f32.mxu0 %v658
  %766 = vmatmul.mubr.f32.gmra.mrb[0].mxu0 %v657
  %v767 = vpop.f32.mrb[0].mxu0
  %v768 = vadd.f32 %v177, %v767
  %v769 = vpop.f32.mrb[0].mxu0
  %770 = vmatprep.mubr.f32.mxu0 %v666
  %771 = vmatmul.mubr.f32.gmra.mrb[0].mxu0 %v665
  %v772 = vpop.f32.mrb[0].mxu0
  %v773 = vadd.f32 %v177, %v772
  %v774 = vpop.f32.mrb[0].mxu0
  %775 = vmatprep.mubr.f32.mxu0 %v674
  %776 = vmatmul.mubr.f32.gmra.mrb[0].mxu0 %v673
  %v777 = vpop.f32.mrb[0].mxu0
  %v778 = vadd.f32 %v177, %v777
  %v779 = vpop.f32.mrb[0].mxu0
  %780 = vmatprep.mubr.f32.mxu0 %v682
  %781 = vmatmul.mubr.f32.gmra.mrb[0].mxu0 %v681
  %v782 = vpop.f32.mrb[0].mxu0
  %v783 = vadd.f32 %v177, %v782
  %v784 = vpop.f32.mrb[0].mxu0
  %785 = vdwg.mxu0
  %786 = vmatprep.subr.mxu0 0.0
  %787 = vmatpush1.msra.mxu0 %v84
  %788 = vmatprep.subr.mxu0 0.0
  %789 = vmatpush1.msra.mxu0 %v85
  %790 = vmatprep.subr.mxu0 0.0
  %791 = vmatpush1.msra.mxu0 %v86
  %792 = vmatprep.subr.mxu0 0.0
  %793 = vmatpush1.msra.mxu0 %v87
  %794 = vmatprep.subr.mxu0 0.0
  %795 = vmatpush1.msra.mxu0 %v88
  %796 = vmatprep.subr.mxu0 0.0
  %797 = vmatpush1.msra.mxu0 %v89
  %798 = vmatprep.subr.mxu0 0.0
  %799 = vmatpush1.msra.mxu0 %v90
  %800 = vmatprep.subr.mxu0 0.0
  %801 = vmatpush1.msra.mxu0 %v91
  %802 = vmatprep.subr.mxu0 0.0
  %803 = vmatpush1.msra.mxu0 %v92
  %804 = vmatprep.subr.mxu0 0.0
  %805 = vmatpush1.msra.mxu0 %v93
  %806 = vmatprep.subr.mxu0 0.0
  %807 = vmatpush1.msra.mxu0 %v94
  %808 = vmatprep.subr.mxu0 0.0
  %809 = vmatpush1.msra.mxu0 %v95
  %810 = vmatprep.subr.mxu0 0.0
  %811 = vmatpush1.msra.mxu0 %v96
  %812 = vmatprep.subr.mxu0 0.0
  %813 = vmatpush1.msra.mxu0 %v97
  %814 = vmatprep.subr.mxu0 0.0
  %815 = vmatpush1.msra.mxu0 %v98
  %816 = vmatprep.subr.mxu0 0.0
  %817 = vmatpush1.msra.mxu0 %v99
  %818 = vmatprep.subr.mxu0 0.0
  %819 = vmatpush1.msra.mxu0 %v100
  %820 = vmatprep.subr.mxu0 0.0
  %821 = vmatpush1.msra.mxu0 %v101
  %822 = vmatprep.subr.mxu0 0.0
  %823 = vmatpush1.msra.mxu0 %v102
  %824 = vmatprep.subr.mxu0 0.0
  %825 = vmatpush1.msra.mxu0 %v103
  %826 = vmatprep.subr.mxu0 0.0
  %827 = vmatpush1.msra.mxu0 %v104
  %828 = vmatprep.subr.mxu0 0.0
  %829 = vmatpush1.msra.mxu0 %v105
  %830 = vmatprep.subr.mxu0 0.0
  %831 = vmatpush1.msra.mxu0 %v106
  %832 = vmatprep.subr.mxu0 0.0
  %833 = vmatpush1.msra.mxu0 %v107
  %834 = vmatprep.subr.mxu0 0.0
  %835 = vmatpush1.msra.mxu0 %v108
  %836 = vmatprep.subr.mxu0 0.0
  %837 = vmatpush1.msra.mxu0 %v109
  %838 = vmatprep.subr.mxu0 0.0
  %839 = vmatpush1.msra.mxu0 %v110
  %840 = vmatprep.subr.mxu0 0.0
  %841 = vmatpush1.msra.mxu0 %v111
  %842 = vmatprep.subr.mxu0 0.0
  %843 = vmatpush1.msra.mxu0 %v112
  %844 = vmatprep.subr.mxu0 0.0
  %845 = vmatpush1.msra.mxu0 %v113
  %846 = vmatprep.subr.mxu0 0.0
  %847 = vmatpush1.msra.mxu0 %v114
  %848 = vmatprep.subr.mxu0 0.0
  %849 = vmatpush1.msra.mxu0 %v115
  %850 = vmatprep.mubr.f32.mxu0 %v660
  %851 = vmatmul.mubr.f32.gmra.mrb[0].mxu0 %v659
  %v852 = vpop.f32.mrb[0].mxu0
  %v853 = vadd.f32 %v768, %v852
  %v854 = vpop.f32.mrb[0].mxu0
  %855 = vmatprep.mubr.f32.mxu0 %v668
  %856 = vmatmul.mubr.f32.gmra.mrb[0].mxu0 %v667
  %v857 = vpop.f32.mrb[0].mxu0
  %v858 = vadd.f32 %v773, %v857
  %v859 = vpop.f32.mrb[0].mxu0
  %860 = vmatprep.mubr.f32.mxu0 %v676
  %861 = vmatmul.mubr.f32.gmra.mrb[0].mxu0 %v675
  %v862 = vpop.f32.mrb[0].mxu0
  %v863 = vadd.f32 %v778, %v862
  %v864 = vpop.f32.mrb[0].mxu0
  %865 = vmatprep.mubr.f32.mxu0 %v684
  %866 = vmatmul.mubr.f32.gmra.mrb[0].mxu0 %v683
  %v867 = vpop.f32.mrb[0].mxu0
  %v868 = vadd.f32 %v783, %v867
  %v869 = vpop.f32.mrb[0].mxu0
  %870 = vdwg.mxu0
  %871 = vmatprep.subr.mxu0 0.0
  %872 = vmatpush1.msra.mxu0 %v116
  %873 = vmatprep.subr.mxu0 0.0
  %874 = vmatpush1.msra.mxu0 %v117
  %875 = vmatprep.subr.mxu0 0.0
  %876 = vmatpush1.msra.mxu0 %v118
  %877 = vmatprep.subr.mxu0 0.0
  %878 = vmatpush1.msra.mxu0 %v119
  %879 = vmatprep.subr.mxu0 0.0
  %880 = vmatpush1.msra.mxu0 %v120
  %881 = vmatprep.subr.mxu0 0.0
  %882 = vmatpush1.msra.mxu0 %v121
  %883 = vmatprep.subr.mxu0 0.0
  %884 = vmatpush1.msra.mxu0 %v122
  %885 = vmatprep.subr.mxu0 0.0
  %886 = vmatpush1.msra.mxu0 %v123
  %887 = vmatprep.subr.mxu0 0.0
  %888 = vmatpush1.msra.mxu0 %v124
  %889 = vmatprep.subr.mxu0 0.0
  %890 = vmatpush1.msra.mxu0 %v125
  %891 = vmatprep.subr.mxu0 0.0
  %892 = vmatpush1.msra.mxu0 %v126
  %893 = vmatprep.subr.mxu0 0.0
  %894 = vmatpush1.msra.mxu0 %v127
  %895 = vmatprep.subr.mxu0 0.0
  %896 = vmatpush1.msra.mxu0 %v128
  %897 = vmatprep.subr.mxu0 0.0
  %898 = vmatpush1.msra.mxu0 %v129
  %899 = vmatprep.subr.mxu0 0.0
  %900 = vmatpush1.msra.mxu0 %v130
  %901 = vmatprep.subr.mxu0 0.0
  %902 = vmatpush1.msra.mxu0 %v131
  %903 = vmatprep.subr.mxu0 0.0
  %904 = vmatpush1.msra.mxu0 %v132
  %905 = vmatprep.subr.mxu0 0.0
  %906 = vmatpush1.msra.mxu0 %v133
  %907 = vmatprep.subr.mxu0 0.0
  %908 = vmatpush1.msra.mxu0 %v134
  %909 = vmatprep.subr.mxu0 0.0
  %910 = vmatpush1.msra.mxu0 %v135
  %911 = vmatprep.subr.mxu0 0.0
  %912 = vmatpush1.msra.mxu0 %v136
  %913 = vmatprep.subr.mxu0 0.0
  %914 = vmatpush1.msra.mxu0 %v137
  %915 = vmatprep.subr.mxu0 0.0
  %916 = vmatpush1.msra.mxu0 %v138
  %917 = vmatprep.subr.mxu0 0.0
  %918 = vmatpush1.msra.mxu0 %v139
  %919 = vmatprep.subr.mxu0 0.0
  %920 = vmatpush1.msra.mxu0 %v140
  %921 = vmatprep.subr.mxu0 0.0
  %922 = vmatpush1.msra.mxu0 %v141
  %923 = vmatprep.subr.mxu0 0.0
  %924 = vmatpush1.msra.mxu0 %v142
  %925 = vmatprep.subr.mxu0 0.0
  %926 = vmatpush1.msra.mxu0 %v143
  %927 = vmatprep.subr.mxu0 0.0
  %928 = vmatpush1.msra.mxu0 %v144
  %929 = vmatprep.subr.mxu0 0.0
  %930 = vmatpush1.msra.mxu0 %v145
  %931 = vmatprep.subr.mxu0 0.0
  %932 = vmatpush1.msra.mxu0 %v146
  %933 = vmatprep.subr.mxu0 0.0
  %934 = vmatpush1.msra.mxu0 %v147
  %935 = vmatprep.mubr.f32.mxu0 %v662
  %936 = vmatmul.mubr.f32.gmra.mrb[0].mxu0 %v661
  %v937 = vpop.f32.mrb[0].mxu0
  %v938 = vadd.f32 %v853, %v937
  %v939 = vpop.f32.mrb[0].mxu0
  %940 = vmatprep.mubr.f32.mxu0 %v670
  %941 = vmatmul.mubr.f32.gmra.mrb[0].mxu0 %v669
  %v942 = vpop.f32.mrb[0].mxu0
  %v943 = vadd.f32 %v858, %v942
  %v944 = vpop.f32.mrb[0].mxu0
  %945 = vmatprep.mubr.f32.mxu0 %v678
  %946 = vmatmul.mubr.f32.gmra.mrb[0].mxu0 %v677
  %v947 = vpop.f32.mrb[0].mxu0
  %v948 = vadd.f32 %v863, %v947
  %v949 = vpop.f32.mrb[0].mxu0
  %950 = vmatprep.mubr.f32.mxu0 %v686
  %951 = vmatmul.mubr.f32.gmra.mrb[0].mxu0 %v685
  %v952 = vpop.f32.mrb[0].mxu0
  %v953 = vadd.f32 %v868, %v952
  %v954 = vpop.f32.mrb[0].mxu0
  %955 = vdwg.mxu0
  %956 = vmatprep.subr.mxu0 0.0
  %957 = vmatpush1.msra.mxu0 %v148
  %958 = vmatprep.subr.mxu0 0.0
  %959 = vmatpush1.msra.mxu0 %v149
  %960 = vmatprep.subr.mxu0 0.0
  %961 = vmatpush1.msra.mxu0 %v150
  %962 = vmatprep.subr.mxu0 0.0
  %963 = vmatpush1.msra.mxu0 %v151
  %964 = vmatprep.subr.mxu0 0.0
  %965 = vmatpush1.msra.mxu0 %v152
  %966 = vmatprep.subr.mxu0 0.0
  %967 = vmatpush1.msra.mxu0 %v153
  %968 = vmatprep.subr.mxu0 0.0
  %969 = vmatpush1.msra.mxu0 %v154
  %970 = vmatprep.subr.mxu0 0.0
  %971 = vmatpush1.msra.mxu0 %v155
  %972 = vmatprep.subr.mxu0 0.0
  %973 = vmatpush1.msra.mxu0 %v156
  %974 = vmatprep.subr.mxu0 0.0
  %975 = vmatpush1.msra.mxu0 %v157
  %976 = vmatprep.subr.mxu0 0.0
  %977 = vmatpush1.msra.mxu0 %v158
  %978 = vmatprep.subr.mxu0 0.0
  %979 = vmatpush1.msra.mxu0 %v159
  %980 = vmatprep.subr.mxu0 0.0
  %981 = vmatpush1.msra.mxu0 %v160
  %982 = vmatprep.subr.mxu0 0.0
  %983 = vmatpush1.msra.mxu0 %v161
  %984 = vmatprep.subr.mxu0 0.0
  %985 = vmatpush1.msra.mxu0 %v162
  %986 = vmatprep.subr.mxu0 0.0
  %987 = vmatpush1.msra.mxu0 %v163
  %988 = vmatprep.subr.mxu0 0.0
  %989 = vmatpush1.msra.mxu0 %v164
  %990 = vmatprep.subr.mxu0 0.0
  %991 = vmatpush1.msra.mxu0 %v165
  %992 = vmatprep.subr.mxu0 0.0
  %993 = vmatpush1.msra.mxu0 %v166
  %994 = vmatprep.subr.mxu0 0.0
  %995 = vmatpush1.msra.mxu0 %v167
  %996 = vmatprep.subr.mxu0 0.0
  %997 = vmatpush1.msra.mxu0 %v168
  %998 = vmatprep.subr.mxu0 0.0
  %999 = vmatpush1.msra.mxu0 %v169
  %1000 = vmatprep.subr.mxu0 0.0
  %1001 = vmatpush1.msra.mxu0 %v170
  %1002 = vmatprep.subr.mxu0 0.0
  %1003 = vmatpush1.msra.mxu0 %v171
  %1004 = vmatprep.subr.mxu0 0.0
  %1005 = vmatpush1.msra.mxu0 0.0
  %1006 = vmatprep.subr.mxu0 0.0
  %1007 = vmatpush1.msra.mxu0 0.0
  %1008 = vmatprep.subr.mxu0 0.0
  %1009 = vmatpush1.msra.mxu0 0.0
  %1010 = vmatprep.subr.mxu0 0.0
  %1011 = vmatpush1.msra.mxu0 0.0
  %1012 = vmatprep.subr.mxu0 0.0
  %1013 = vmatpush1.msra.mxu0 0.0
  %1014 = vmatprep.subr.mxu0 0.0
  %1015 = vmatpush1.msra.mxu0 0.0
  %1016 = vmatprep.subr.mxu0 0.0
  %1017 = vmatpush1.msra.mxu0 0.0
  %1018 = vmatprep.subr.mxu0 0.0
  %1019 = vmatpush1.msra.mxu0 0.0
  %1020 = vmatprep.mubr.f32.mxu0 %v690
  %1021 = vmatmul.mubr.f32.gmra.mrb[0].mxu0 %v663
  %v1022 = vpop.f32.mrb[0].mxu0
  %v1023 = vadd.f32 %v938, %v1022
  %v1024 = vpop.f32.mrb[0].mxu0
  %1025 = vmatprep.mubr.f32.mxu0 %v693
  %1026 = vmatmul.mubr.f32.gmra.mrb[0].mxu0 %v671
  %v1027 = vpop.f32.mrb[0].mxu0
  %v1028 = vadd.f32 %v943, %v1027
  %v1029 = vpop.f32.mrb[0].mxu0
  %1030 = vmatprep.mubr.f32.mxu0 %v696
  %1031 = vmatmul.mubr.f32.gmra.mrb[0].mxu0 %v679
  %v1032 = vpop.f32.mrb[0].mxu0
  %v1033 = vadd.f32 %v948, %v1032
  %v1034 = vpop.f32.mrb[0].mxu0
  %1035 = vmatprep.mubr.f32.mxu0 %v699
  %1036 = vmatmul.mubr.f32.gmra.mrb[0].mxu0 %v687
  %v1037 = vpop.f32.mrb[0].mxu0
  %v1038 = vadd.f32 %v953, %v1037
  %v1039 = vpop.f32.mrb[0].mxu0
  %1040 = vdwg.mxu0
  %vm1041 = vcmp.ge.f32.partialorder %v1023, 0.0
  %vm1042 = vcmp.ge.f32.partialorder %v1028, 0.0
  %vm1043 = vcmp.ge.f32.partialorder %v1033, 0.0
  %vm1044 = vcmp.ge.f32.partialorder %v1038, 0.0
  %v1045 = vmul.f32 %v541, %v1023
  %v1046 = vmul.f32 %v541, %v1028
  %v1047 = vmul.f32 %v541, %v1033
  %v1048 = vmul.f32 %v541, %v1038
  %v1049 = vsel %vm1041, %v1023, %v1045
  %v1050 = vsel %vm1042, %v1028, %v1046
  %v1051 = vsel %vm1043, %v1033, %v1047
  %v1052 = vsel %vm1044, %v1038, %v1048
  %1053 = vmatprep.subr.mxu0 0.0
  %1054 = vmatpush1.msra.mxu0 %v551
  %1055 = vmatprep.subr.mxu0 0.0
  %1056 = vmatpush1.msra.mxu0 %v552
  %1057 = vmatprep.subr.mxu0 0.0
  %1058 = vmatpush1.msra.mxu0 %v553
  %1059 = vmatprep.subr.mxu0 0.0
  %1060 = vmatpush1.msra.mxu0 %v554
  %1061 = vmatprep.subr.mxu0 0.0
  %1062 = vmatpush1.msra.mxu0 %v555
  %1063 = vmatprep.subr.mxu0 0.0
  %1064 = vmatpush1.msra.mxu0 %v556
  %1065 = vmatprep.subr.mxu0 0.0
  %1066 = vmatpush1.msra.mxu0 %v557
  %1067 = vmatprep.subr.mxu0 0.0
  %1068 = vmatpush1.msra.mxu0 %v558
  %1069 = vmatprep.subr.mxu0 0.0
  %1070 = vmatpush1.msra.mxu0 %v559
  %1071 = vmatprep.subr.mxu0 0.0
  %1072 = vmatpush1.msra.mxu0 %v560
  %1073 = vmatprep.subr.mxu0 0.0
  %1074 = vmatpush1.msra.mxu0 %v561
  %1075 = vmatprep.subr.mxu0 0.0
  %1076 = vmatpush1.msra.mxu0 %v562
  %1077 = vmatprep.subr.mxu0 0.0
  %1078 = vmatpush1.msra.mxu0 %v563
  %1079 = vmatprep.subr.mxu0 0.0
  %1080 = vmatpush1.msra.mxu0 %v564
  %1081 = vmatprep.subr.mxu0 0.0
  %1082 = vmatpush1.msra.mxu0 %v565
  %1083 = vmatprep.subr.mxu0 0.0
  %1084 = vmatpush1.msra.mxu0 %v566
  %1085 = vmatprep.subr.mxu0 0.0
  %1086 = vmatpush1.msra.mxu0 0.0
  %1087 = vmatprep.subr.mxu0 0.0
  %1088 = vmatpush1.msra.mxu0 0.0
  %1089 = vmatprep.subr.mxu0 0.0
  %1090 = vmatpush1.msra.mxu0 0.0
  %1091 = vmatprep.subr.mxu0 0.0
  %1092 = vmatpush1.msra.mxu0 0.0
  %1093 = vmatprep.subr.mxu0 0.0
  %1094 = vmatpush1.msra.mxu0 0.0
  %1095 = vmatprep.subr.mxu0 0.0
  %1096 = vmatpush1.msra.mxu0 0.0
  %1097 = vmatprep.subr.mxu0 0.0
  %1098 = vmatpush1.msra.mxu0 0.0
  %1099 = vmatprep.subr.mxu0 0.0
  %1100 = vmatpush1.msra.mxu0 0.0
  %1101 = vmatprep.subr.mxu0 0.0
  %1102 = vmatpush1.msra.mxu0 0.0
  %1103 = vmatprep.subr.mxu0 0.0
  %1104 = vmatpush1.msra.mxu0 0.0
  %1105 = vmatprep.subr.mxu0 0.0
  %1106 = vmatpush1.msra.mxu0 0.0
  %1107 = vmatprep.subr.mxu0 0.0
  %1108 = vmatpush1.msra.mxu0 0.0
  %1109 = vmatprep.subr.mxu0 0.0
  %1110 = vmatpush1.msra.mxu0 0.0
  %1111 = vmatprep.subr.mxu0 0.0
  %1112 = vmatpush1.msra.mxu0 0.0
  %1113 = vmatprep.subr.mxu0 0.0
  %1114 = vmatpush1.msra.mxu0 0.0
  %1115 = vmatprep.subr.mxu0 0.0
  %1116 = vmatpush1.msra.mxu0 0.0
  %1117 = vmatprep.mubr.f32.mxu0 0.0
  %1118 = vmatmul.mubr.f32.gmra.mrb[0].mxu0 %v1049
  %v1119 = vpop.f32.mrb[0].mxu0
  %v1120 = vadd.f32 0.0, %v1119
  %v1121 = vpop.f32.mrb[0].mxu0
  %1122 = vmatprep.mubr.f32.mxu0 0.0
  %1123 = vmatmul.mubr.f32.gmra.mrb[0].mxu0 %v1050
  %v1124 = vpop.f32.mrb[0].mxu0
  %v1125 = vadd.f32 0.0, %v1124
  %v1126 = vpop.f32.mrb[0].mxu0
  %1127 = vmatprep.mubr.f32.mxu0 0.0
  %1128 = vmatmul.mubr.f32.gmra.mrb[0].mxu0 %v1051
  %v1129 = vpop.f32.mrb[0].mxu0
  %v1130 = vadd.f32 0.0, %v1129
  %v1131 = vpop.f32.mrb[0].mxu0
  %1132 = vmatprep.mubr.f32.mxu0 0.0
  %1133 = vmatmul.mubr.f32.gmra.mrb[0].mxu0 %v1052
  %v1134 = vpop.f32.mrb[0].mxu0
  %v1135 = vadd.f32 0.0, %v1134
  %v1136 = vpop.f32.mrb[0].mxu0
  %1137 = vdwg.mxu0
  %v1138 = vadd.f32 %v1049, %v1120
  %v1139 = vadd.f32 %v1050, %v1125
  %v1140 = vadd.f32 %v1051, %v1130
  %v1141 = vadd.f32 %v1052, %v1135
  %v1142 = vmax.f32 %v652, %v1138
  %v1143 = vmax.f32 %v653, %v1139
  %v1144 = vmax.f32 %v654, %v1140
  %v1145 = vmax.f32 %v655, %v1141
  %s1146 = scalar_lea.vmem %s0, 512
  %v1147 = vld [vmem:[%s1146] sm:$0xff]
  %v1148 = vld [vmem:[%s1146 + $0x8] sm:$0xff]
  %v1149 = vld [vmem:[%s1146 + $0x10] sm:$0xff]
  %v1150 = vld [vmem:[%s1146 + $0x18] sm:$0xff]
  %v1151 = vld [vmem:[%s1146 + $0x20] sm:$0xff]
  %v1152 = vld [vmem:[%s1146 + $0x28] sm:$0xff]
  %v1153 = vld [vmem:[%s1146 + $0x30] sm:$0xff]
  %v1154 = vld [vmem:[%s1146 + $0x38] sm:$0xff]
  %v1155 = vld [vmem:[%s1146 + $0x40] sm:$0xff]
  %v1156 = vld [vmem:[%s1146 + $0x48] sm:$0xff]
  %v1157 = vld [vmem:[%s1146 + $0x50] sm:$0xff]
  %v1158 = vld [vmem:[%s1146 + $0x58] sm:$0xff]
  %v1159 = vld [vmem:[%s1146 + $0x60] sm:$0xff]
  %v1160 = vld [vmem:[%s1146 + $0x68] sm:$0xff]
  %v1161 = vld [vmem:[%s1146 + $0x70] sm:$0xff]
  %v1162 = vld [vmem:[%s1146 + $0x78] sm:$0xff]
  %v1163 = vld [vmem:[%s1146 + $0x80] sm:$0xff]
  %v1164 = vld [vmem:[%s1146 + $0x88] sm:$0xff]
  %v1165 = vld [vmem:[%s1146 + $0x90] sm:$0xff]
  %v1166 = vld [vmem:[%s1146 + $0x98] sm:$0xff]
  %v1167 = vld [vmem:[%s1146 + $0xa0] sm:$0xff]
  %v1168 = vld [vmem:[%s1146 + $0xa8] sm:$0xff]
  %v1169 = vld [vmem:[%s1146 + $0xb0] sm:$0xff]
  %v1170 = vld [vmem:[%s1146 + $0xb8] sm:$0xff]
  %v1171 = vld [vmem:[%s1146 + $0xc0] sm:$0xff]
  %v1172 = vld [vmem:[%s1146 + $0xc8] sm:$0xff]
  %v1173 = vld [vmem:[%s1146 + $0xd0] sm:$0xff]
  %v1174 = vld [vmem:[%s1146 + $0xd8] sm:$0xff]
  %v1175 = vld [vmem:[%s1146 + $0xe0] sm:$0xff]
  %v1176 = vld [vmem:[%s1146 + $0xe8] sm:$0xff]
  %v1177 = vld [vmem:[%s1146 + $0xf0] sm:$0xff]
  %v1178 = vld [vmem:[%s1146 + $0xf8] sm:$0xff]
  %v1180 = vsel %vm179, %v1154, 0
  %v1183 = vsel %vm179, %v1162, 0
  %v1186 = vsel %vm179, %v1170, 0
  %v1189 = vsel %vm179, %v1178, 0
  %1191 = vmatprep.subr.mxu0 0.0
  %1192 = vmatpush1.msra.mxu0 %v52
  %1193 = vmatprep.subr.mxu0 0.0
  %1194 = vmatpush1.msra.mxu0 %v53
  %1195 = vmatprep.subr.mxu0 0.0
  %1196 = vmatpush1.msra.mxu0 %v54
  %1197 = vmatprep.subr.mxu0 0.0
  %1198 = vmatpush1.msra.mxu0 %v55
  %1199 = vmatprep.subr.mxu0 0.0
  %1200 = vmatpush1.msra.mxu0 %v56
  %1201 = vmatprep.subr.mxu0 0.0
  %1202 = vmatpush1.msra.mxu0 %v57
  %1203 = vmatprep.subr.mxu0 0.0
  %1204 = vmatpush1.msra.mxu0 %v58
  %1205 = vmatprep.subr.mxu0 0.0
  %1206 = vmatpush1.msra.mxu0 %v59
  %1207 = vmatprep.subr.mxu0 0.0
  %1208 = vmatpush1.msra.mxu0 %v60
  %1209 = vmatprep.subr.mxu0 0.0
  %1210 = vmatpush1.msra.mxu0 %v61
  %1211 = vmatprep.subr.mxu0 0.0
  %1212 = vmatpush1.msra.mxu0 %v62
  %1213 = vmatprep.subr.mxu0 0.0
  %1214 = vmatpush1.msra.mxu0 %v63
  %1215 = vmatprep.subr.mxu0 0.0
  %1216 = vmatpush1.msra.mxu0 %v64
  %1217 = vmatprep.subr.mxu0 0.0
  %1218 = vmatpush1.msra.mxu0 %v65
  %1219 = vmatprep.subr.mxu0 0.0
  %1220 = vmatpush1.msra.mxu0 %v66
  %1221 = vmatprep.subr.mxu0 0.0
  %1222 = vmatpush1.msra.mxu0 %v67
  %1223 = vmatprep.subr.mxu0 0.0
  %1224 = vmatpush1.msra.mxu0 %v68
  %1225 = vmatprep.subr.mxu0 0.0
  %1226 = vmatpush1.msra.mxu0 %v69
  %1227 = vmatprep.subr.mxu0 0.0
  %1228 = vmatpush1.msra.mxu0 %v70
  %1229 = vmatprep.subr.mxu0 0.0
  %1230 = vmatpush1.msra.mxu0 %v71
  %1231 = vmatprep.subr.mxu0 0.0
  %1232 = vmatpush1.msra.mxu0 %v72
  %1233 = vmatprep.subr.mxu0 0.0
  %1234 = vmatpush1.msra.mxu0 %v73
  %1235 = vmatprep.subr.mxu0 0.0
  %1236 = vmatpush1.msra.mxu0 %v74
  %1237 = vmatprep.subr.mxu0 0.0
  %1238 = vmatpush1.msra.mxu0 %v75
  %1239 = vmatprep.subr.mxu0 0.0
  %1240 = vmatpush1.msra.mxu0 %v76
  %1241 = vmatprep.subr.mxu0 0.0
  %1242 = vmatpush1.msra.mxu0 %v77
  %1243 = vmatprep.subr.mxu0 0.0
  %1244 = vmatpush1.msra.mxu0 %v78
  %1245 = vmatprep.subr.mxu0 0.0
  %1246 = vmatpush1.msra.mxu0 %v79
  %1247 = vmatprep.subr.mxu0 0.0
  %1248 = vmatpush1.msra.mxu0 %v80
  %1249 = vmatprep.subr.mxu0 0.0
  %1250 = vmatpush1.msra.mxu0 %v81
  %1251 = vmatprep.subr.mxu0 0.0
  %1252 = vmatpush1.msra.mxu0 %v82
  %1253 = vmatprep.subr.mxu0 0.0
  %1254 = vmatpush1.msra.mxu0 %v83
  %1255 = vmatprep.mubr.f32.mxu0 %v1148
  %1256 = vmatmul.mubr.f32.gmra.mrb[0].mxu0 %v1147
  %v1257 = vpop.f32.mrb[0].mxu0
  %v1258 = vadd.f32 %v177, %v1257
  %v1259 = vpop.f32.mrb[0].mxu0
  %1260 = vmatprep.mubr.f32.mxu0 %v1156
  %1261 = vmatmul.mubr.f32.gmra.mrb[0].mxu0 %v1155
  %v1262 = vpop.f32.mrb[0].mxu0
  %v1263 = vadd.f32 %v177, %v1262
  %v1264 = vpop.f32.mrb[0].mxu0
  %1265 = vmatprep.mubr.f32.mxu0 %v1164
  %1266 = vmatmul.mubr.f32.gmra.mrb[0].mxu0 %v1163
  %v1267 = vpop.f32.mrb[0].mxu0
  %v1268 = vadd.f32 %v177, %v1267
  %v1269 = vpop.f32.mrb[0].mxu0
  %1270 = vmatprep.mubr.f32.mxu0 %v1172
  %1271 = vmatmul.mubr.f32.gmra.mrb[0].mxu0 %v1171
  %v1272 = vpop.f32.mrb[0].mxu0
  %v1273 = vadd.f32 %v177, %v1272
  %v1274 = vpop.f32.mrb[0].mxu0
  %1275 = vdwg.mxu0
  %1276 = vmatprep.subr.mxu0 0.0
  %1277 = vmatpush1.msra.mxu0 %v84
  %1278 = vmatprep.subr.mxu0 0.0
  %1279 = vmatpush1.msra.mxu0 %v85
  %1280 = vmatprep.subr.mxu0 0.0
  %1281 = vmatpush1.msra.mxu0 %v86
  %1282 = vmatprep.subr.mxu0 0.0
  %1283 = vmatpush1.msra.mxu0 %v87
  %1284 = vmatprep.subr.mxu0 0.0
  %1285 = vmatpush1.msra.mxu0 %v88
  %1286 = vmatprep.subr.mxu0 0.0
  %1287 = vmatpush1.msra.mxu0 %v89
  %1288 = vmatprep.subr.mxu0 0.0
  %1289 = vmatpush1.msra.mxu0 %v90
  %1290 = vmatprep.subr.mxu0 0.0
  %1291 = vmatpush1.msra.mxu0 %v91
  %1292 = vmatprep.subr.mxu0 0.0
  %1293 = vmatpush1.msra.mxu0 %v92
  %1294 = vmatprep.subr.mxu0 0.0
  %1295 = vmatpush1.msra.mxu0 %v93
  %1296 = vmatprep.subr.mxu0 0.0
  %1297 = vmatpush1.msra.mxu0 %v94
  %1298 = vmatprep.subr.mxu0 0.0
  %1299 = vmatpush1.msra.mxu0 %v95
  %1300 = vmatprep.subr.mxu0 0.0
  %1301 = vmatpush1.msra.mxu0 %v96
  %1302 = vmatprep.subr.mxu0 0.0
  %1303 = vmatpush1.msra.mxu0 %v97
  %1304 = vmatprep.subr.mxu0 0.0
  %1305 = vmatpush1.msra.mxu0 %v98
  %1306 = vmatprep.subr.mxu0 0.0
  %1307 = vmatpush1.msra.mxu0 %v99
  %1308 = vmatprep.subr.mxu0 0.0
  %1309 = vmatpush1.msra.mxu0 %v100
  %1310 = vmatprep.subr.mxu0 0.0
  %1311 = vmatpush1.msra.mxu0 %v101
  %1312 = vmatprep.subr.mxu0 0.0
  %1313 = vmatpush1.msra.mxu0 %v102
  %1314 = vmatprep.subr.mxu0 0.0
  %1315 = vmatpush1.msra.mxu0 %v103
  %1316 = vmatprep.subr.mxu0 0.0
  %1317 = vmatpush1.msra.mxu0 %v104
  %1318 = vmatprep.subr.mxu0 0.0
  %1319 = vmatpush1.msra.mxu0 %v105
  %1320 = vmatprep.subr.mxu0 0.0
  %1321 = vmatpush1.msra.mxu0 %v106
  %1322 = vmatprep.subr.mxu0 0.0
  %1323 = vmatpush1.msra.mxu0 %v107
  %1324 = vmatprep.subr.mxu0 0.0
  %1325 = vmatpush1.msra.mxu0 %v108
  %1326 = vmatprep.subr.mxu0 0.0
  %1327 = vmatpush1.msra.mxu0 %v109
  %1328 = vmatprep.subr.mxu0 0.0
  %1329 = vmatpush1.msra.mxu0 %v110
  %1330 = vmatprep.subr.mxu0 0.0
  %1331 = vmatpush1.msra.mxu0 %v111
  %1332 = vmatprep.subr.mxu0 0.0
  %1333 = vmatpush1.msra.mxu0 %v112
  %1334 = vmatprep.subr.mxu0 0.0
  %1335 = vmatpush1.msra.mxu0 %v113
  %1336 = vmatprep.subr.mxu0 0.0
  %1337 = vmatpush1.msra.mxu0 %v114
  %1338 = vmatprep.subr.mxu0 0.0
  %1339 = vmatpush1.msra.mxu0 %v115
  %1340 = vmatprep.mubr.f32.mxu0 %v1150
  %1341 = vmatmul.mubr.f32.gmra.mrb[0].mxu0 %v1149
  %v1342 = vpop.f32.mrb[0].mxu0
  %v1343 = vadd.f32 %v1258, %v1342
  %v1344 = vpop.f32.mrb[0].mxu0
  %1345 = vmatprep.mubr.f32.mxu0 %v1158
  %1346 = vmatmul.mubr.f32.gmra.mrb[0].mxu0 %v1157
  %v1347 = vpop.f32.mrb[0].mxu0
  %v1348 = vadd.f32 %v1263, %v1347
  %v1349 = vpop.f32.mrb[0].mxu0
  %1350 = vmatprep.mubr.f32.mxu0 %v1166
  %1351 = vmatmul.mubr.f32.gmra.mrb[0].mxu0 %v1165
  %v1352 = vpop.f32.mrb[0].mxu0
  %v1353 = vadd.f32 %v1268, %v1352
  %v1354 = vpop.f32.mrb[0].mxu0
  %1355 = vmatprep.mubr.f32.mxu0 %v1174
  %1356 = vmatmul.mubr.f32.gmra.mrb[0].mxu0 %v1173
  %v1357 = vpop.f32.mrb[0].mxu0
  %v1358 = vadd.f32 %v1273, %v1357
  %v1359 = vpop.f32.mrb[0].mxu0
  %1360 = vdwg.mxu0
  %1361 = vmatprep.subr.mxu0 0.0
  %1362 = vmatpush1.msra.mxu0 %v116
  %1363 = vmatprep.subr.mxu0 0.0
  %1364 = vmatpush1.msra.mxu0 %v117
  %1365 = vmatprep.subr.mxu0 0.0
  %1366 = vmatpush1.msra.mxu0 %v118
  %1367 = vmatprep.subr.mxu0 0.0
  %1368 = vmatpush1.msra.mxu0 %v119
  %1369 = vmatprep.subr.mxu0 0.0
  %1370 = vmatpush1.msra.mxu0 %v120
  %1371 = vmatprep.subr.mxu0 0.0
  %1372 = vmatpush1.msra.mxu0 %v121
  %1373 = vmatprep.subr.mxu0 0.0
  %1374 = vmatpush1.msra.mxu0 %v122
  %1375 = vmatprep.subr.mxu0 0.0
  %1376 = vmatpush1.msra.mxu0 %v123
  %1377 = vmatprep.subr.mxu0 0.0
  %1378 = vmatpush1.msra.mxu0 %v124
  %1379 = vmatprep.subr.mxu0 0.0
  %1380 = vmatpush1.msra.mxu0 %v125
  %1381 = vmatprep.subr.mxu0 0.0
  %1382 = vmatpush1.msra.mxu0 %v126
  %1383 = vmatprep.subr.mxu0 0.0
  %1384 = vmatpush1.msra.mxu0 %v127
  %1385 = vmatprep.subr.mxu0 0.0
  %1386 = vmatpush1.msra.mxu0 %v128
  %1387 = vmatprep.subr.mxu0 0.0
  %1388 = vmatpush1.msra.mxu0 %v129
  %1389 = vmatprep.subr.mxu0 0.0
  %1390 = vmatpush1.msra.mxu0 %v130
  %1391 = vmatprep.subr.mxu0 0.0
  %1392 = vmatpush1.msra.mxu0 %v131
  %1393 = vmatprep.subr.mxu0 0.0
  %1394 = vmatpush1.msra.mxu0 %v132
  %1395 = vmatprep.subr.mxu0 0.0
  %1396 = vmatpush1.msra.mxu0 %v133
  %1397 = vmatprep.subr.mxu0 0.0
  %1398 = vmatpush1.msra.mxu0 %v134
  %1399 = vmatprep.subr.mxu0 0.0
  %1400 = vmatpush1.msra.mxu0 %v135
  %1401 = vmatprep.subr.mxu0 0.0
  %1402 = vmatpush1.msra.mxu0 %v136
  %1403 = vmatprep.subr.mxu0 0.0
  %1404 = vmatpush1.msra.mxu0 %v137
  %1405 = vmatprep.subr.mxu0 0.0
  %1406 = vmatpush1.msra.mxu0 %v138
  %1407 = vmatprep.subr.mxu0 0.0
  %1408 = vmatpush1.msra.mxu0 %v139
  %1409 = vmatprep.subr.mxu0 0.0
  %1410 = vmatpush1.msra.mxu0 %v140
  %1411 = vmatprep.subr.mxu0 0.0
  %1412 = vmatpush1.msra.mxu0 %v141
  %1413 = vmatprep.subr.mxu0 0.0
  %1414 = vmatpush1.msra.mxu0 %v142
  %1415 = vmatprep.subr.mxu0 0.0
  %1416 = vmatpush1.msra.mxu0 %v143
  %1417 = vmatprep.subr.mxu0 0.0
  %1418 = vmatpush1.msra.mxu0 %v144
  %1419 = vmatprep.subr.mxu0 0.0
  %1420 = vmatpush1.msra.mxu0 %v145
  %1421 = vmatprep.subr.mxu0 0.0
  %1422 = vmatpush1.msra.mxu0 %v146
  %1423 = vmatprep.subr.mxu0 0.0
  %1424 = vmatpush1.msra.mxu0 %v147
  %1425 = vmatprep.mubr.f32.mxu0 %v1152
  %1426 = vmatmul.mubr.f32.gmra.mrb[0].mxu0 %v1151
  %v1427 = vpop.f32.mrb[0].mxu0
  %v1428 = vadd.f32 %v1343, %v1427
  %v1429 = vpop.f32.mrb[0].mxu0
  %1430 = vmatprep.mubr.f32.mxu0 %v1160
  %1431 = vmatmul.mubr.f32.gmra.mrb[0].mxu0 %v1159
  %v1432 = vpop.f32.mrb[0].mxu0
  %v1433 = vadd.f32 %v1348, %v1432
  %v1434 = vpop.f32.mrb[0].mxu0
  %1435 = vmatprep.mubr.f32.mxu0 %v1168
  %1436 = vmatmul.mubr.f32.gmra.mrb[0].mxu0 %v1167
  %v1437 = vpop.f32.mrb[0].mxu0
  %v1438 = vadd.f32 %v1353, %v1437
  %v1439 = vpop.f32.mrb[0].mxu0
  %1440 = vmatprep.mubr.f32.mxu0 %v1176
  %1441 = vmatmul.mubr.f32.gmra.mrb[0].mxu0 %v1175
  %v1442 = vpop.f32.mrb[0].mxu0
  %v1443 = vadd.f32 %v1358, %v1442
  %v1444 = vpop.f32.mrb[0].mxu0
  %1445 = vdwg.mxu0
  %1446 = vmatprep.subr.mxu0 0.0
  %1447 = vmatpush1.msra.mxu0 %v148
  %1448 = vmatprep.subr.mxu0 0.0
  %1449 = vmatpush1.msra.mxu0 %v149
  %1450 = vmatprep.subr.mxu0 0.0
  %1451 = vmatpush1.msra.mxu0 %v150
  %1452 = vmatprep.subr.mxu0 0.0
  %1453 = vmatpush1.msra.mxu0 %v151
  %1454 = vmatprep.subr.mxu0 0.0
  %1455 = vmatpush1.msra.mxu0 %v152
  %1456 = vmatprep.subr.mxu0 0.0
  %1457 = vmatpush1.msra.mxu0 %v153
  %1458 = vmatprep.subr.mxu0 0.0
  %1459 = vmatpush1.msra.mxu0 %v154
  %1460 = vmatprep.subr.mxu0 0.0
  %1461 = vmatpush1.msra.mxu0 %v155
  %1462 = vmatprep.subr.mxu0 0.0
  %1463 = vmatpush1.msra.mxu0 %v156
  %1464 = vmatprep.subr.mxu0 0.0
  %1465 = vmatpush1.msra.mxu0 %v157
  %1466 = vmatprep.subr.mxu0 0.0
  %1467 = vmatpush1.msra.mxu0 %v158
  %1468 = vmatprep.subr.mxu0 0.0
  %1469 = vmatpush1.msra.mxu0 %v159
  %1470 = vmatprep.subr.mxu0 0.0
  %1471 = vmatpush1.msra.mxu0 %v160
  %1472 = vmatprep.subr.mxu0 0.0
  %1473 = vmatpush1.msra.mxu0 %v161
  %1474 = vmatprep.subr.mxu0 0.0
  %1475 = vmatpush1.msra.mxu0 %v162
  %1476 = vmatprep.subr.mxu0 0.0
  %1477 = vmatpush1.msra.mxu0 %v163
  %1478 = vmatprep.subr.mxu0 0.0
  %1479 = vmatpush1.msra.mxu0 %v164
  %1480 = vmatprep.subr.mxu0 0.0
  %1481 = vmatpush1.msra.mxu0 %v165
  %1482 = vmatprep.subr.mxu0 0.0
  %1483 = vmatpush1.msra.mxu0 %v166
  %1484 = vmatprep.subr.mxu0 0.0
  %1485 = vmatpush1.msra.mxu0 %v167
  %1486 = vmatprep.subr.mxu0 0.0
  %1487 = vmatpush1.msra.mxu0 %v168
  %1488 = vmatprep.subr.mxu0 0.0
  %1489 = vmatpush1.msra.mxu0 %v169
  %1490 = vmatprep.subr.mxu0 0.0
  %1491 = vmatpush1.msra.mxu0 %v170
  %1492 = vmatprep.subr.mxu0 0.0
  %1493 = vmatpush1.msra.mxu0 %v171
  %1494 = vmatprep.subr.mxu0 0.0
  %1495 = vmatpush1.msra.mxu0 0.0
  %1496 = vmatprep.subr.mxu0 0.0
  %1497 = vmatpush1.msra.mxu0 0.0
  %1498 = vmatprep.subr.mxu0 0.0
  %1499 = vmatpush1.msra.mxu0 0.0
  %1500 = vmatprep.subr.mxu0 0.0
  %1501 = vmatpush1.msra.mxu0 0.0
  %1502 = vmatprep.subr.mxu0 0.0
  %1503 = vmatpush1.msra.mxu0 0.0
  %1504 = vmatprep.subr.mxu0 0.0
  %1505 = vmatpush1.msra.mxu0 0.0
  %1506 = vmatprep.subr.mxu0 0.0
  %1507 = vmatpush1.msra.mxu0 0.0
  %1508 = vmatprep.subr.mxu0 0.0
  %1509 = vmatpush1.msra.mxu0 0.0
  %1510 = vmatprep.mubr.f32.mxu0 %v1180
  %1511 = vmatmul.mubr.f32.gmra.mrb[0].mxu0 %v1153
  %v1512 = vpop.f32.mrb[0].mxu0
  %v1513 = vadd.f32 %v1428, %v1512
  %v1514 = vpop.f32.mrb[0].mxu0
  %1515 = vmatprep.mubr.f32.mxu0 %v1183
  %1516 = vmatmul.mubr.f32.gmra.mrb[0].mxu0 %v1161
  %v1517 = vpop.f32.mrb[0].mxu0
  %v1518 = vadd.f32 %v1433, %v1517
  %v1519 = vpop.f32.mrb[0].mxu0
  %1520 = vmatprep.mubr.f32.mxu0 %v1186
  %1521 = vmatmul.mubr.f32.gmra.mrb[0].mxu0 %v1169
  %v1522 = vpop.f32.mrb[0].mxu0
  %v1523 = vadd.f32 %v1438, %v1522
  %v1524 = vpop.f32.mrb[0].mxu0
  %1525 = vmatprep.mubr.f32.mxu0 %v1189
  %1526 = vmatmul.mubr.f32.gmra.mrb[0].mxu0 %v1177
  %v1527 = vpop.f32.mrb[0].mxu0
  %v1528 = vadd.f32 %v1443, %v1527
  %v1529 = vpop.f32.mrb[0].mxu0
  %1530 = vdwg.mxu0
  %vm1531 = vcmp.ge.f32.partialorder %v1513, 0.0
  %vm1532 = vcmp.ge.f32.partialorder %v1518, 0.0
  %vm1533 = vcmp.ge.f32.partialorder %v1523, 0.0
  %vm1534 = vcmp.ge.f32.partialorder %v1528, 0.0
  %v1535 = vmul.f32 %v541, %v1513
  %v1536 = vmul.f32 %v541, %v1518
  %v1537 = vmul.f32 %v541, %v1523
  %v1538 = vmul.f32 %v541, %v1528
  %v1539 = vsel %vm1531, %v1513, %v1535
  %v1540 = vsel %vm1532, %v1518, %v1536
  %v1541 = vsel %vm1533, %v1523, %v1537
  %v1542 = vsel %vm1534, %v1528, %v1538
  %1543 = vmatprep.subr.mxu0 0.0
  %1544 = vmatpush1.msra.mxu0 %v551
  %1545 = vmatprep.subr.mxu0 0.0
  %1546 = vmatpush1.msra.mxu0 %v552
  %1547 = vmatprep.subr.mxu0 0.0
  %1548 = vmatpush1.msra.mxu0 %v553
  %1549 = vmatprep.subr.mxu0 0.0
  %1550 = vmatpush1.msra.mxu0 %v554
  %1551 = vmatprep.subr.mxu0 0.0
  %1552 = vmatpush1.msra.mxu0 %v555
  %1553 = vmatprep.subr.mxu0 0.0
  %1554 = vmatpush1.msra.mxu0 %v556
  %1555 = vmatprep.subr.mxu0 0.0
  %1556 = vmatpush1.msra.mxu0 %v557
  %1557 = vmatprep.subr.mxu0 0.0
  %1558 = vmatpush1.msra.mxu0 %v558
  %1559 = vmatprep.subr.mxu0 0.0
  %1560 = vmatpush1.msra.mxu0 %v559
  %1561 = vmatprep.subr.mxu0 0.0
  %1562 = vmatpush1.msra.mxu0 %v560
  %1563 = vmatprep.subr.mxu0 0.0
  %1564 = vmatpush1.msra.mxu0 %v561
  %1565 = vmatprep.subr.mxu0 0.0
  %1566 = vmatpush1.msra.mxu0 %v562
  %1567 = vmatprep.subr.mxu0 0.0
  %1568 = vmatpush1.msra.mxu0 %v563
  %1569 = vmatprep.subr.mxu0 0.0
  %1570 = vmatpush1.msra.mxu0 %v564
  %1571 = vmatprep.subr.mxu0 0.0
  %1572 = vmatpush1.msra.mxu0 %v565
  %1573 = vmatprep.subr.mxu0 0.0
  %1574 = vmatpush1.msra.mxu0 %v566
  %1575 = vmatprep.subr.mxu0 0.0
  %1576 = vmatpush1.msra.mxu0 0.0
  %1577 = vmatprep.subr.mxu0 0.0
  %1578 = vmatpush1.msra.mxu0 0.0
  %1579 = vmatprep.subr.mxu0 0.0
  %1580 = vmatpush1.msra.mxu0 0.0
  %1581 = vmatprep.subr.mxu0 0.0
  %1582 = vmatpush1.msra.mxu0 0.0
  %1583 = vmatprep.subr.mxu0 0.0
  %1584 = vmatpush1.msra.mxu0 0.0
  %1585 = vmatprep.subr.mxu0 0.0
  %1586 = vmatpush1.msra.mxu0 0.0
  %1587 = vmatprep.subr.mxu0 0.0
  %1588 = vmatpush1.msra.mxu0 0.0
  %1589 = vmatprep.subr.mxu0 0.0
  %1590 = vmatpush1.msra.mxu0 0.0
  %1591 = vmatprep.subr.mxu0 0.0
  %1592 = vmatpush1.msra.mxu0 0.0
  %1593 = vmatprep.subr.mxu0 0.0
  %1594 = vmatpush1.msra.mxu0 0.0
  %1595 = vmatprep.subr.mxu0 0.0
  %1596 = vmatpush1.msra.mxu0 0.0
  %1597 = vmatprep.subr.mxu0 0.0
  %1598 = vmatpush1.msra.mxu0 0.0
  %1599 = vmatprep.subr.mxu0 0.0
  %1600 = vmatpush1.msra.mxu0 0.0
  %1601 = vmatprep.subr.mxu0 0.0
  %1602 = vmatpush1.msra.mxu0 0.0
  %1603 = vmatprep.subr.mxu0 0.0
  %1604 = vmatpush1.msra.mxu0 0.0
  %1605 = vmatprep.subr.mxu0 0.0
  %1606 = vmatpush1.msra.mxu0 0.0
  %1607 = vmatprep.mubr.f32.mxu0 0.0
  %1608 = vmatmul.mubr.f32.gmra.mrb[0].mxu0 %v1539
  %v1609 = vpop.f32.mrb[0].mxu0
  %v1610 = vadd.f32 0.0, %v1609
  %v1611 = vpop.f32.mrb[0].mxu0
  %1612 = vmatprep.mubr.f32.mxu0 0.0
  %1613 = vmatmul.mubr.f32.gmra.mrb[0].mxu0 %v1540
  %v1614 = vpop.f32.mrb[0].mxu0
  %v1615 = vadd.f32 0.0, %v1614
  %v1616 = vpop.f32.mrb[0].mxu0
  %1617 = vmatprep.mubr.f32.mxu0 0.0
  %1618 = vmatmul.mubr.f32.gmra.mrb[0].mxu0 %v1541
  %v1619 = vpop.f32.mrb[0].mxu0
  %v1620 = vadd.f32 0.0, %v1619
  %v1621 = vpop.f32.mrb[0].mxu0
  %1622 = vmatprep.mubr.f32.mxu0 0.0
  %1623 = vmatmul.mubr.f32.gmra.mrb[0].mxu0 %v1542
  %v1624 = vpop.f32.mrb[0].mxu0
  %v1625 = vadd.f32 0.0, %v1624
  %v1626 = vpop.f32.mrb[0].mxu0
  %1627 = vdwg.mxu0
  %v1628 = vadd.f32 %v1539, %v1610
  %v1629 = vadd.f32 %v1540, %v1615
  %v1630 = vadd.f32 %v1541, %v1620
  %v1631 = vadd.f32 %v1542, %v1625
  %v1632 = vmax.f32 %v1142, %v1628
  %v1633 = vmax.f32 %v1143, %v1629
  %v1634 = vmax.f32 %v1144, %v1630
  %v1635 = vmax.f32 %v1145, %v1631
  %1636 = vst [vmem:[%s5] sm:$0xff] %v1632
  %1637 = vst [vmem:[%s5 + $0x8] sm:$0xff] %v1633
  %1638 = vst [vmem:[%s5 + $0x10] sm:$0xff] %v1634
  %1639 = vst [vmem:[%s5 + $0x18] sm:$0xff] %v1635
  // Predicated region
  $region22: #{target_network_forward.4} parent=0 // pred_check
    _
  $region23: #{target_network_forward.4} parent=0 // pred_check_branch
    %1641 = sbr.rel (0) target = $region25
  $region24: #{target_network_forward.4} parent=0 // pred_region
    _
  $region25: #{target_network_forward.4} parent=0 // pred_fallthru
    _
  // Predicated region
  $region26: #{target_network_forward.4} parent=0 // pred_check
    _
  $region27: #{target_network_forward.4} parent=0 // pred_check_branch
    %1643 = sbr.rel (0) target = $region29
  $region28: #{target_network_forward.4} parent=0 // pred_region
    _
  $region29: #{target_network_forward.4} parent=0 // pred_fallthru
    _

// kernel: target_network_forward.5
$region0: #{target_network_forward.5}
  #allocation0 [shape = 'u32[]', space=smem, size = 0x4, offset = 0x4, fixed_abs, tag = 'smem constant byte address 0x4 - core index']
  #allocation1 [shape = 'u32[144,128]{1,0:T(1,128)}', space=vmem, size = 0x12000, scoped, tag = 'internal scratch']
  %s0 = inlined_call_operand.vmem [shape: f32[2,1024], index: 0, kind: input, shape index: {}]
  %s1 = inlined_call_operand.vmem [shape: f32[2,1024], index: 1, kind: input, shape index: {}]
  %s2 = inlined_call_operand.vmem [shape: f32[1024,500], index: 2, kind: input, shape index: {}]
  %s3 = inlined_call_operand.vmem [shape: f32[1,500], index: 3, kind: input, shape index: {}]
  %s4 = inlined_call_operand.vmem [shape: f32[1,500], index: 4, kind: input, shape index: {}]
  %s5 = inlined_call_operand.vmem [shape: f32[1024,500], index: 5, kind: input, shape index: {}]
  %s6 = inlined_call_operand.vmem [shape: f32[1,500], index: 6, kind: input, shape index: {}]
  %s7 = inlined_call_operand.vmem [shape: f32[1,500], index: 7, kind: input, shape index: {}]
  %s8 = inlined_call_operand.vmem [shape: f32[1,500], index: 8, kind: input, shape index: {}]
  %s9 = inlined_call_operand.vmem [shape: f32[500,7], index: 9, kind: input, shape index: {}]
  %s10 = inlined_call_operand.vmem [shape: f32[1,7], index: 10, kind: input, shape index: {}]
  %s11 = inlined_call_operand.hbm [shape: f32[2,7], index: 11, kind: output, shape index: {}]
  %s12 = sld [smem:[#allocation0]]
  $region54: #{target_network_forward.5} parent=0
    _
  %s14 = ssub.s32 1, %s12
  %s15 = scalar_select 0, %s14, %s12
  $region1: #{target_network_forward.5} parent=0
    #allocation2 [shape = 'u8[1024]{0}', space=vmem, size = 0x400, scoped, tag = 'output window, operand 0, single buffered']
    #allocation3 [shape = 's32[1]{0}', space=sflag, size = 0x4, scoped, tag = 'scoped memory for target_network_forward.5']
    %16 = vsyncpa [#allocation3], 0
    // Predicated region
    $region2: #{target_network_forward.5} parent=1 // pred_check
      _
    $region3: #{target_network_forward.5} parent=1 // pred_check_branch
      %18 = sbr.rel (0) target = $region5
    $region4: #{target_network_forward.5} parent=1 // pred_region
      _
    $region5: #{target_network_forward.5} parent=1 // pred_fallthru
      _
    // Predicated region
    $region6: #{target_network_forward.5} parent=1 // pred_check
      _
    $region7: #{target_network_forward.5} parent=1 // pred_check_branch
      %20 = sbr.rel (0) target = $region9
    $region8: #{target_network_forward.5} parent=1 // pred_region
      _
    $region9: #{target_network_forward.5} parent=1 // pred_fallthru
      _
    // Predicated region
    $region10: #{target_network_forward.5} parent=1 // pred_check
      _
    $region11: #{target_network_forward.5} parent=1 // pred_check_branch
      %22 = sbr.rel (0) target = $region13
    $region12: #{target_network_forward.5} parent=1 // pred_region
      _
    $region13: #{target_network_forward.5} parent=1 // pred_fallthru
      _
    // Predicated region
    $region14: #{target_network_forward.5} parent=1 // pred_check
      _
    $region15: #{target_network_forward.5} parent=1 // pred_check_branch
      %24 = sbr.rel (0) target = $region17
    $region16: #{target_network_forward.5} parent=1 // pred_region
      _
    $region17: #{target_network_forward.5} parent=1 // pred_fallthru
      _
    // Predicated region
    $region18: #{target_network_forward.5} parent=1 // pred_check
      _
    $region19: #{target_network_forward.5} parent=1 // pred_check_branch
      %26 = sbr.rel (0) target = $region21
    $region20: #{target_network_forward.5} parent=1 // pred_region
      _
    $region21: #{target_network_forward.5} parent=1 // pred_fallthru
      _
    // Predicated region
    $region22: #{target_network_forward.5} parent=1 // pred_check
      _
    $region23: #{target_network_forward.5} parent=1 // pred_check_branch
      %28 = sbr.rel (0) target = $region25
    $region24: #{target_network_forward.5} parent=1 // pred_region
      _
    $region25: #{target_network_forward.5} parent=1 // pred_fallthru
      _
    // Predicated region
    $region26: #{target_network_forward.5} parent=1 // pred_check
      _
    $region27: #{target_network_forward.5} parent=1 // pred_check_branch
      %30 = sbr.rel (0) target = $region29
    $region28: #{target_network_forward.5} parent=1 // pred_region
      _
    $region29: #{target_network_forward.5} parent=1 // pred_fallthru
      _
    // Predicated region
    $region30: #{target_network_forward.5} parent=1 // pred_check
      _
    $region31: #{target_network_forward.5} parent=1 // pred_check_branch
      %32 = sbr.rel (0) target = $region33
    $region32: #{target_network_forward.5} parent=1 // pred_region
      _
    $region33: #{target_network_forward.5} parent=1 // pred_fallthru
      _
    // Predicated region
    $region34: #{target_network_forward.5} parent=1 // pred_check
      _
    $region35: #{target_network_forward.5} parent=1 // pred_check_branch
      %34 = sbr.rel (0) target = $region37
    $region36: #{target_network_forward.5} parent=1 // pred_region
      _
    $region37: #{target_network_forward.5} parent=1 // pred_fallthru
      _
    // Predicated region
    $region38: #{target_network_forward.5} parent=1 // pred_check
      _
    $region39: #{target_network_forward.5} parent=1 // pred_check_branch
      %36 = sbr.rel (0) target = $region41
    $region40: #{target_network_forward.5} parent=1 // pred_region
      _
    $region41: #{target_network_forward.5} parent=1 // pred_fallthru
      _
    // Predicated region
    $region42: #{target_network_forward.5} parent=1 // pred_check
      _
    $region43: #{target_network_forward.5} parent=1 // pred_check_branch
      %38 = sbr.rel (0) target = $region45
    $region44: #{target_network_forward.5} parent=1 // pred_region
      _
    $region45: #{target_network_forward.5} parent=1 // pred_fallthru
      _
    %v39 = vld [vmem:[%s0] sm:$0xff]
    %v40 = vld [vmem:[%s0 + $0x8] sm:$0xff]
    %v41 = vld [vmem:[%s2] sm:$0xff]
    %v42 = vld [vmem:[%s2 + $0x8] sm:$0xff]
    %v43 = vld [vmem:[%s2 + $0x10] sm:$0xff]
    %v44 = vld [vmem:[%s2 + $0x18] sm:$0xff]
    %v45 = vld [vmem:[%s2 + $0x20] sm:$0xff]
    %v46 = vld [vmem:[%s2 + $0x28] sm:$0xff]
    %v47 = vld [vmem:[%s2 + $0x30] sm:$0xff]
    %v48 = vld [vmem:[%s2 + $0x38] sm:$0xff]
    %v49 = vld [vmem:[%s2 + $0x40] sm:$0xff]
    %v50 = vld [vmem:[%s2 + $0x48] sm:$0xff]
    %v51 = vld [vmem:[%s2 + $0x50] sm:$0xff]
    %v52 = vld [vmem:[%s2 + $0x58] sm:$0xff]
    %v53 = vld [vmem:[%s2 + $0x60] sm:$0xff]
    %v54 = vld [vmem:[%s2 + $0x68] sm:$0xff]
    %v55 = vld [vmem:[%s2 + $0x70] sm:$0xff]
    %v56 = vld [vmem:[%s2 + $0x78] sm:$0xff]
    %v57 = vld [vmem:[%s2 + $0x80] sm:$0xff]
    %v58 = vld [vmem:[%s2 + $0x88] sm:$0xff]
    %v59 = vld [vmem:[%s2 + $0x90] sm:$0xff]
    %v60 = vld [vmem:[%s2 + $0x98] sm:$0xff]
    %v61 = vld [vmem:[%s2 + $0xa0] sm:$0xff]
    %v62 = vld [vmem:[%s2 + $0xa8] sm:$0xff]
    %v63 = vld [vmem:[%s2 + $0xb0] sm:$0xff]
    %v64 = vld [vmem:[%s2 + $0xb8] sm:$0xff]
    %v65 = vld [vmem:[%s2 + $0xc0] sm:$0xff]
    %v66 = vld [vmem:[%s2 + $0xc8] sm:$0xff]
    %v67 = vld [vmem:[%s2 + $0xd0] sm:$0xff]
    %v68 = vld [vmem:[%s2 + $0xd8] sm:$0xff]
    %v69 = vld [vmem:[%s2 + $0xe0] sm:$0xff]
    %v70 = vld [vmem:[%s2 + $0xe8] sm:$0xff]
    %v71 = vld [vmem:[%s2 + $0xf0] sm:$0xff]
    %v72 = vld [vmem:[%s2 + $0xf8] sm:$0xff]
    %v73 = vld [vmem:[%s2 + $0x100] sm:$0xff]
    %v74 = vld [vmem:[%s2 + $0x108] sm:$0xff]
    %v75 = vld [vmem:[%s2 + $0x110] sm:$0xff]
    %v76 = vld [vmem:[%s2 + $0x118] sm:$0xff]
    %v77 = vld [vmem:[%s2 + $0x120] sm:$0xff]
    %v78 = vld [vmem:[%s2 + $0x128] sm:$0xff]
    %v79 = vld [vmem:[%s2 + $0x130] sm:$0xff]
    %v80 = vld [vmem:[%s2 + $0x138] sm:$0xff]
    %v81 = vld [vmem:[%s2 + $0x140] sm:$0xff]
    %v82 = vld [vmem:[%s2 + $0x148] sm:$0xff]
    %v83 = vld [vmem:[%s2 + $0x150] sm:$0xff]
    %v84 = vld [vmem:[%s2 + $0x158] sm:$0xff]
    %v85 = vld [vmem:[%s2 + $0x160] sm:$0xff]
    %v86 = vld [vmem:[%s2 + $0x168] sm:$0xff]
    %v87 = vld [vmem:[%s2 + $0x170] sm:$0xff]
    %v88 = vld [vmem:[%s2 + $0x178] sm:$0xff]
    %v89 = vld [vmem:[%s2 + $0x180] sm:$0xff]
    %v90 = vld [vmem:[%s2 + $0x188] sm:$0xff]
    %v91 = vld [vmem:[%s2 + $0x190] sm:$0xff]
    %v92 = vld [vmem:[%s2 + $0x198] sm:$0xff]
    %v93 = vld [vmem:[%s2 + $0x1a0] sm:$0xff]
    %v94 = vld [vmem:[%s2 + $0x1a8] sm:$0xff]
    %v95 = vld [vmem:[%s2 + $0x1b0] sm:$0xff]
    %v96 = vld [vmem:[%s2 + $0x1b8] sm:$0xff]
    %v97 = vld [vmem:[%s2 + $0x1c0] sm:$0xff]
    %v98 = vld [vmem:[%s2 + $0x1c8] sm:$0xff]
    %v99 = vld [vmem:[%s2 + $0x1d0] sm:$0xff]
    %v100 = vld [vmem:[%s2 + $0x1d8] sm:$0xff]
    %v101 = vld [vmem:[%s2 + $0x1e0] sm:$0xff]
    %v102 = vld [vmem:[%s2 + $0x1e8] sm:$0xff]
    %v103 = vld [vmem:[%s2 + $0x1f0] sm:$0xff]
    %v104 = vld [vmem:[%s2 + $0x1f8] sm:$0xff]
    %v105 = vld [vmem:[%s2 + $0x200] sm:$0xff]
    %v106 = vld [vmem:[%s2 + $0x208] sm:$0xff]
    %v107 = vld [vmem:[%s2 + $0x210] sm:$0xff]
    %v108 = vld [vmem:[%s2 + $0x218] sm:$0xff]
    %v109 = vld [vmem:[%s2 + $0x220] sm:$0xff]
    %v110 = vld [vmem:[%s2 + $0x228] sm:$0xff]
    %v111 = vld [vmem:[%s2 + $0x230] sm:$0xff]
    %v112 = vld [vmem:[%s2 + $0x238] sm:$0xff]
    %v113 = vld [vmem:[%s2 + $0x240] sm:$0xff]
    %v114 = vld [vmem:[%s2 + $0x248] sm:$0xff]
    %v115 = vld [vmem:[%s2 + $0x250] sm:$0xff]
    %v116 = vld [vmem:[%s2 + $0x258] sm:$0xff]
    %v117 = vld [vmem:[%s2 + $0x260] sm:$0xff]
    %v118 = vld [vmem:[%s2 + $0x268] sm:$0xff]
    %v119 = vld [vmem:[%s2 + $0x270] sm:$0xff]
    %v120 = vld [vmem:[%s2 + $0x278] sm:$0xff]
    %v121 = vld [vmem:[%s2 + $0x280] sm:$0xff]
    %v122 = vld [vmem:[%s2 + $0x288] sm:$0xff]
    %v123 = vld [vmem:[%s2 + $0x290] sm:$0xff]
    %v124 = vld [vmem:[%s2 + $0x298] sm:$0xff]
    %v125 = vld [vmem:[%s2 + $0x2a0] sm:$0xff]
    %v126 = vld [vmem:[%s2 + $0x2a8] sm:$0xff]
    %v127 = vld [vmem:[%s2 + $0x2b0] sm:$0xff]
    %v128 = vld [vmem:[%s2 + $0x2b8] sm:$0xff]
    %v129 = vld [vmem:[%s2 + $0x2c0] sm:$0xff]
    %v130 = vld [vmem:[%s2 + $0x2c8] sm:$0xff]
    %v131 = vld [vmem:[%s2 + $0x2d0] sm:$0xff]
    %v132 = vld [vmem:[%s2 + $0x2d8] sm:$0xff]
    %v133 = vld [vmem:[%s2 + $0x2e0] sm:$0xff]
    %v134 = vld [vmem:[%s2 + $0x2e8] sm:$0xff]
    %v135 = vld [vmem:[%s2 + $0x2f0] sm:$0xff]
    %v136 = vld [vmem:[%s2 + $0x2f8] sm:$0xff]
    %v137 = vld [vmem:[%s2 + $0x300] sm:$0xff]
    %v138 = vld [vmem:[%s2 + $0x308] sm:$0xff]
    %v139 = vld [vmem:[%s2 + $0x310] sm:$0xff]
    %v140 = vld [vmem:[%s2 + $0x318] sm:$0xff]
    %v141 = vld [vmem:[%s2 + $0x320] sm:$0xff]
    %v142 = vld [vmem:[%s2 + $0x328] sm:$0xff]
    %v143 = vld [vmem:[%s2 + $0x330] sm:$0xff]
    %v144 = vld [vmem:[%s2 + $0x338] sm:$0xff]
    %v145 = vld [vmem:[%s2 + $0x340] sm:$0xff]
    %v146 = vld [vmem:[%s2 + $0x348] sm:$0xff]
    %v147 = vld [vmem:[%s2 + $0x350] sm:$0xff]
    %v148 = vld [vmem:[%s2 + $0x358] sm:$0xff]
    %v149 = vld [vmem:[%s2 + $0x360] sm:$0xff]
    %v150 = vld [vmem:[%s2 + $0x368] sm:$0xff]
    %v151 = vld [vmem:[%s2 + $0x370] sm:$0xff]
    %v152 = vld [vmem:[%s2 + $0x378] sm:$0xff]
    %v153 = vld [vmem:[%s2 + $0x380] sm:$0xff]
    %v154 = vld [vmem:[%s2 + $0x388] sm:$0xff]
    %v155 = vld [vmem:[%s2 + $0x390] sm:$0xff]
    %v156 = vld [vmem:[%s2 + $0x398] sm:$0xff]
    %v157 = vld [vmem:[%s2 + $0x3a0] sm:$0xff]
    %v158 = vld [vmem:[%s2 + $0x3a8] sm:$0xff]
    %v159 = vld [vmem:[%s2 + $0x3b0] sm:$0xff]
    %v160 = vld [vmem:[%s2 + $0x3b8] sm:$0xff]
    %v161 = vld [vmem:[%s2 + $0x3c0] sm:$0xff]
    %v162 = vld [vmem:[%s2 + $0x3c8] sm:$0xff]
    %v163 = vld [vmem:[%s2 + $0x3d0] sm:$0xff]
    %v164 = vld [vmem:[%s2 + $0x3d8] sm:$0xff]
    %v165 = vld [vmem:[%s2 + $0x3e0] sm:$0xff]
    %v166 = vld [vmem:[%s2 + $0x3e8] sm:$0xff]
    %v167 = vld [vmem:[%s2 + $0x3f0] sm:$0xff]
    %v168 = vld [vmem:[%s2 + $0x3f8] sm:$0xff]
    %v169 = vld [vmem:[%s2 + $0x400] sm:$0xff]
    %v170 = vld [vmem:[%s2 + $0x408] sm:$0xff]
    %v171 = vld [vmem:[%s2 + $0x410] sm:$0xff]
    %v172 = vld [vmem:[%s2 + $0x418] sm:$0xff]
    %v173 = vld [vmem:[%s2 + $0x420] sm:$0xff]
    %v174 = vld [vmem:[%s2 + $0x428] sm:$0xff]
    %v175 = vld [vmem:[%s2 + $0x430] sm:$0xff]
    %v176 = vld [vmem:[%s2 + $0x438] sm:$0xff]
    %v177 = vld [vmem:[%s2 + $0x440] sm:$0xff]
    %v178 = vld [vmem:[%s2 + $0x448] sm:$0xff]
    %v179 = vld [vmem:[%s2 + $0x450] sm:$0xff]
    %v180 = vld [vmem:[%s2 + $0x458] sm:$0xff]
    %v181 = vld [vmem:[%s2 + $0x460] sm:$0xff]
    %v182 = vld [vmem:[%s2 + $0x468] sm:$0xff]
    %v183 = vld [vmem:[%s2 + $0x470] sm:$0xff]
    %v184 = vld [vmem:[%s2 + $0x478] sm:$0xff]
    %v185 = vld [vmem:[%s2 + $0x480] sm:$0xff]
    %v186 = vld [vmem:[%s2 + $0x488] sm:$0xff]
    %v187 = vld [vmem:[%s2 + $0x490] sm:$0xff]
    %v188 = vld [vmem:[%s2 + $0x498] sm:$0xff]
    %v189 = vld [vmem:[%s2 + $0x4a0] sm:$0xff]
    %v190 = vld [vmem:[%s2 + $0x4a8] sm:$0xff]
    %v191 = vld [vmem:[%s2 + $0x4b0] sm:$0xff]
    %v192 = vld [vmem:[%s2 + $0x4b8] sm:$0xff]
    %v193 = vld [vmem:[%s2 + $0x4c0] sm:$0xff]
    %v194 = vld [vmem:[%s2 + $0x4c8] sm:$0xff]
    %v195 = vld [vmem:[%s2 + $0x4d0] sm:$0xff]
    %v196 = vld [vmem:[%s2 + $0x4d8] sm:$0xff]
    %v197 = vld [vmem:[%s2 + $0x4e0] sm:$0xff]
    %v198 = vld [vmem:[%s2 + $0x4e8] sm:$0xff]
    %v199 = vld [vmem:[%s2 + $0x4f0] sm:$0xff]
    %v200 = vld [vmem:[%s2 + $0x4f8] sm:$0xff]
    %v201 = vld [vmem:[%s2 + $0x500] sm:$0xff]
    %v202 = vld [vmem:[%s2 + $0x508] sm:$0xff]
    %v203 = vld [vmem:[%s2 + $0x510] sm:$0xff]
    %v204 = vld [vmem:[%s2 + $0x518] sm:$0xff]
    %v205 = vld [vmem:[%s2 + $0x520] sm:$0xff]
    %v206 = vld [vmem:[%s2 + $0x528] sm:$0xff]
    %v207 = vld [vmem:[%s2 + $0x530] sm:$0xff]
    %v208 = vld [vmem:[%s2 + $0x538] sm:$0xff]
    %v209 = vld [vmem:[%s2 + $0x540] sm:$0xff]
    %v210 = vld [vmem:[%s2 + $0x548] sm:$0xff]
    %v211 = vld [vmem:[%s2 + $0x550] sm:$0xff]
    %v212 = vld [vmem:[%s2 + $0x558] sm:$0xff]
    %v213 = vld [vmem:[%s2 + $0x560] sm:$0xff]
    %v214 = vld [vmem:[%s2 + $0x568] sm:$0xff]
    %v215 = vld [vmem:[%s2 + $0x570] sm:$0xff]
    %v216 = vld [vmem:[%s2 + $0x578] sm:$0xff]
    %v217 = vld [vmem:[%s2 + $0x580] sm:$0xff]
    %v218 = vld [vmem:[%s2 + $0x588] sm:$0xff]
    %v219 = vld [vmem:[%s2 + $0x590] sm:$0xff]
    %v220 = vld [vmem:[%s2 + $0x598] sm:$0xff]
    %v221 = vld [vmem:[%s2 + $0x5a0] sm:$0xff]
    %v222 = vld [vmem:[%s2 + $0x5a8] sm:$0xff]
    %v223 = vld [vmem:[%s2 + $0x5b0] sm:$0xff]
    %v224 = vld [vmem:[%s2 + $0x5b8] sm:$0xff]
    %v225 = vld [vmem:[%s2 + $0x5c0] sm:$0xff]
    %v226 = vld [vmem:[%s2 + $0x5c8] sm:$0xff]
    %v227 = vld [vmem:[%s2 + $0x5d0] sm:$0xff]
    %v228 = vld [vmem:[%s2 + $0x5d8] sm:$0xff]
    %v229 = vld [vmem:[%s2 + $0x5e0] sm:$0xff]
    %v230 = vld [vmem:[%s2 + $0x5e8] sm:$0xff]
    %v231 = vld [vmem:[%s2 + $0x5f0] sm:$0xff]
    %v232 = vld [vmem:[%s2 + $0x5f8] sm:$0xff]
    %v233 = vld [vmem:[%s2 + $0x600] sm:$0xff]
    %v234 = vld [vmem:[%s2 + $0x608] sm:$0xff]
    %v235 = vld [vmem:[%s2 + $0x610] sm:$0xff]
    %v236 = vld [vmem:[%s2 + $0x618] sm:$0xff]
    %v237 = vld [vmem:[%s2 + $0x620] sm:$0xff]
    %v238 = vld [vmem:[%s2 + $0x628] sm:$0xff]
    %v239 = vld [vmem:[%s2 + $0x630] sm:$0xff]
    %v240 = vld [vmem:[%s2 + $0x638] sm:$0xff]
    %v241 = vld [vmem:[%s2 + $0x640] sm:$0xff]
    %v242 = vld [vmem:[%s2 + $0x648] sm:$0xff]
    %v243 = vld [vmem:[%s2 + $0x650] sm:$0xff]
    %v244 = vld [vmem:[%s2 + $0x658] sm:$0xff]
    %v245 = vld [vmem:[%s2 + $0x660] sm:$0xff]
    %v246 = vld [vmem:[%s2 + $0x668] sm:$0xff]
    %v247 = vld [vmem:[%s2 + $0x670] sm:$0xff]
    %v248 = vld [vmem:[%s2 + $0x678] sm:$0xff]
    %v249 = vld [vmem:[%s2 + $0x680] sm:$0xff]
    %v250 = vld [vmem:[%s2 + $0x688] sm:$0xff]
    %v251 = vld [vmem:[%s2 + $0x690] sm:$0xff]
    %v252 = vld [vmem:[%s2 + $0x698] sm:$0xff]
    %v253 = vld [vmem:[%s2 + $0x6a0] sm:$0xff]
    %v254 = vld [vmem:[%s2 + $0x6a8] sm:$0xff]
    %v255 = vld [vmem:[%s2 + $0x6b0] sm:$0xff]
    %v256 = vld [vmem:[%s2 + $0x6b8] sm:$0xff]
    %v257 = vld [vmem:[%s2 + $0x6c0] sm:$0xff]
    %v258 = vld [vmem:[%s2 + $0x6c8] sm:$0xff]
    %v259 = vld [vmem:[%s2 + $0x6d0] sm:$0xff]
    %v260 = vld [vmem:[%s2 + $0x6d8] sm:$0xff]
    %v261 = vld [vmem:[%s2 + $0x6e0] sm:$0xff]
    %v262 = vld [vmem:[%s2 + $0x6e8] sm:$0xff]
    %v263 = vld [vmem:[%s2 + $0x6f0] sm:$0xff]
    %v264 = vld [vmem:[%s2 + $0x6f8] sm:$0xff]
    %v265 = vld [vmem:[%s2 + $0x700] sm:$0xff]
    %v266 = vld [vmem:[%s2 + $0x708] sm:$0xff]
    %v267 = vld [vmem:[%s2 + $0x710] sm:$0xff]
    %v268 = vld [vmem:[%s2 + $0x718] sm:$0xff]
    %v269 = vld [vmem:[%s2 + $0x720] sm:$0xff]
    %v270 = vld [vmem:[%s2 + $0x728] sm:$0xff]
    %v271 = vld [vmem:[%s2 + $0x730] sm:$0xff]
    %v272 = vld [vmem:[%s2 + $0x738] sm:$0xff]
    %v273 = vld [vmem:[%s2 + $0x740] sm:$0xff]
    %v274 = vld [vmem:[%s2 + $0x748] sm:$0xff]
    %v275 = vld [vmem:[%s2 + $0x750] sm:$0xff]
    %v276 = vld [vmem:[%s2 + $0x758] sm:$0xff]
    %v277 = vld [vmem:[%s2 + $0x760] sm:$0xff]
    %v278 = vld [vmem:[%s2 + $0x768] sm:$0xff]
    %v279 = vld [vmem:[%s2 + $0x770] sm:$0xff]
    %v280 = vld [vmem:[%s2 + $0x778] sm:$0xff]
    %v281 = vld [vmem:[%s2 + $0x780] sm:$0xff]
    %v282 = vld [vmem:[%s2 + $0x788] sm:$0xff]
    %v283 = vld [vmem:[%s2 + $0x790] sm:$0xff]
    %v284 = vld [vmem:[%s2 + $0x798] sm:$0xff]
    %v285 = vld [vmem:[%s2 + $0x7a0] sm:$0xff]
    %v286 = vld [vmem:[%s2 + $0x7a8] sm:$0xff]
    %v287 = vld [vmem:[%s2 + $0x7b0] sm:$0xff]
    %v288 = vld [vmem:[%s2 + $0x7b8] sm:$0xff]
    %v289 = vld [vmem:[%s2 + $0x7c0] sm:$0xff]
    %v290 = vld [vmem:[%s2 + $0x7c8] sm:$0xff]
    %v291 = vld [vmem:[%s2 + $0x7d0] sm:$0xff]
    %v292 = vld [vmem:[%s2 + $0x7d8] sm:$0xff]
    %v293 = vld [vmem:[%s2 + $0x7e0] sm:$0xff]
    %v294 = vld [vmem:[%s2 + $0x7e8] sm:$0xff]
    %v295 = vld [vmem:[%s2 + $0x7f0] sm:$0xff]
    %v296 = vld [vmem:[%s2 + $0x7f8] sm:$0xff]
    %v297 = vld [vmem:[%s2 + $0x800] sm:$0xff]
    %v298 = vld [vmem:[%s2 + $0x808] sm:$0xff]
    %v299 = vld [vmem:[%s2 + $0x810] sm:$0xff]
    %v300 = vld [vmem:[%s2 + $0x818] sm:$0xff]
    %v301 = vld [vmem:[%s2 + $0x820] sm:$0xff]
    %v302 = vld [vmem:[%s2 + $0x828] sm:$0xff]
    %v303 = vld [vmem:[%s2 + $0x830] sm:$0xff]
    %v304 = vld [vmem:[%s2 + $0x838] sm:$0xff]
    %v305 = vld [vmem:[%s2 + $0x840] sm:$0xff]
    %v306 = vld [vmem:[%s2 + $0x848] sm:$0xff]
    %v307 = vld [vmem:[%s2 + $0x850] sm:$0xff]
    %v308 = vld [vmem:[%s2 + $0x858] sm:$0xff]
    %v309 = vld [vmem:[%s2 + $0x860] sm:$0xff]
    %v310 = vld [vmem:[%s2 + $0x868] sm:$0xff]
    %v311 = vld [vmem:[%s2 + $0x870] sm:$0xff]
    %v312 = vld [vmem:[%s2 + $0x878] sm:$0xff]
    %v313 = vld [vmem:[%s2 + $0x880] sm:$0xff]
    %v314 = vld [vmem:[%s2 + $0x888] sm:$0xff]
    %v315 = vld [vmem:[%s2 + $0x890] sm:$0xff]
    %v316 = vld [vmem:[%s2 + $0x898] sm:$0xff]
    %v317 = vld [vmem:[%s2 + $0x8a0] sm:$0xff]
    %v318 = vld [vmem:[%s2 + $0x8a8] sm:$0xff]
    %v319 = vld [vmem:[%s2 + $0x8b0] sm:$0xff]
    %v320 = vld [vmem:[%s2 + $0x8b8] sm:$0xff]
    %v321 = vld [vmem:[%s2 + $0x8c0] sm:$0xff]
    %v322 = vld [vmem:[%s2 + $0x8c8] sm:$0xff]
    %v323 = vld [vmem:[%s2 + $0x8d0] sm:$0xff]
    %v324 = vld [vmem:[%s2 + $0x8d8] sm:$0xff]
    %v325 = vld [vmem:[%s2 + $0x8e0] sm:$0xff]
    %v326 = vld [vmem:[%s2 + $0x8e8] sm:$0xff]
    %v327 = vld [vmem:[%s2 + $0x8f0] sm:$0xff]
    %v328 = vld [vmem:[%s2 + $0x8f8] sm:$0xff]
    %v329 = vld [vmem:[%s2 + $0x900] sm:$0xff]
    %v330 = vld [vmem:[%s2 + $0x908] sm:$0xff]
    %v331 = vld [vmem:[%s2 + $0x910] sm:$0xff]
    %v332 = vld [vmem:[%s2 + $0x918] sm:$0xff]
    %v333 = vld [vmem:[%s2 + $0x920] sm:$0xff]
    %v334 = vld [vmem:[%s2 + $0x928] sm:$0xff]
    %v335 = vld [vmem:[%s2 + $0x930] sm:$0xff]
    %v336 = vld [vmem:[%s2 + $0x938] sm:$0xff]
    %v337 = vld [vmem:[%s2 + $0x940] sm:$0xff]
    %v338 = vld [vmem:[%s2 + $0x948] sm:$0xff]
    %v339 = vld [vmem:[%s2 + $0x950] sm:$0xff]
    %v340 = vld [vmem:[%s2 + $0x958] sm:$0xff]
    %v341 = vld [vmem:[%s2 + $0x960] sm:$0xff]
    %v342 = vld [vmem:[%s2 + $0x968] sm:$0xff]
    %v343 = vld [vmem:[%s2 + $0x970] sm:$0xff]
    %v344 = vld [vmem:[%s2 + $0x978] sm:$0xff]
    %v345 = vld [vmem:[%s2 + $0x980] sm:$0xff]
    %v346 = vld [vmem:[%s2 + $0x988] sm:$0xff]
    %v347 = vld [vmem:[%s2 + $0x990] sm:$0xff]
    %v348 = vld [vmem:[%s2 + $0x998] sm:$0xff]
    %v349 = vld [vmem:[%s2 + $0x9a0] sm:$0xff]
    %v350 = vld [vmem:[%s2 + $0x9a8] sm:$0xff]
    %v351 = vld [vmem:[%s2 + $0x9b0] sm:$0xff]
    %v352 = vld [vmem:[%s2 + $0x9b8] sm:$0xff]
    %v353 = vld [vmem:[%s2 + $0x9c0] sm:$0xff]
    %v354 = vld [vmem:[%s2 + $0x9c8] sm:$0xff]
    %v355 = vld [vmem:[%s2 + $0x9d0] sm:$0xff]
    %v356 = vld [vmem:[%s2 + $0x9d8] sm:$0xff]
    %v357 = vld [vmem:[%s2 + $0x9e0] sm:$0xff]
    %v358 = vld [vmem:[%s2 + $0x9e8] sm:$0xff]
    %v359 = vld [vmem:[%s2 + $0x9f0] sm:$0xff]
    %v360 = vld [vmem:[%s2 + $0x9f8] sm:$0xff]
    %v361 = vld [vmem:[%s2 + $0xa00] sm:$0xff]
    %v362 = vld [vmem:[%s2 + $0xa08] sm:$0xff]
    %v363 = vld [vmem:[%s2 + $0xa10] sm:$0xff]
    %v364 = vld [vmem:[%s2 + $0xa18] sm:$0xff]
    %v365 = vld [vmem:[%s2 + $0xa20] sm:$0xff]
    %v366 = vld [vmem:[%s2 + $0xa28] sm:$0xff]
    %v367 = vld [vmem:[%s2 + $0xa30] sm:$0xff]
    %v368 = vld [vmem:[%s2 + $0xa38] sm:$0xff]
    %v369 = vld [vmem:[%s2 + $0xa40] sm:$0xff]
    %v370 = vld [vmem:[%s2 + $0xa48] sm:$0xff]
    %v371 = vld [vmem:[%s2 + $0xa50] sm:$0xff]
    %v372 = vld [vmem:[%s2 + $0xa58] sm:$0xff]
    %v373 = vld [vmem:[%s2 + $0xa60] sm:$0xff]
    %v374 = vld [vmem:[%s2 + $0xa68] sm:$0xff]
    %v375 = vld [vmem:[%s2 + $0xa70] sm:$0xff]
    %v376 = vld [vmem:[%s2 + $0xa78] sm:$0xff]
    %v377 = vld [vmem:[%s2 + $0xa80] sm:$0xff]
    %v378 = vld [vmem:[%s2 + $0xa88] sm:$0xff]
    %v379 = vld [vmem:[%s2 + $0xa90] sm:$0xff]
    %v380 = vld [vmem:[%s2 + $0xa98] sm:$0xff]
    %v381 = vld [vmem:[%s2 + $0xaa0] sm:$0xff]
    %v382 = vld [vmem:[%s2 + $0xaa8] sm:$0xff]
    %v383 = vld [vmem:[%s2 + $0xab0] sm:$0xff]
    %v384 = vld [vmem:[%s2 + $0xab8] sm:$0xff]
    %v385 = vld [vmem:[%s2 + $0xac0] sm:$0xff]
    %v386 = vld [vmem:[%s2 + $0xac8] sm:$0xff]
    %v387 = vld [vmem:[%s2 + $0xad0] sm:$0xff]
    %v388 = vld [vmem:[%s2 + $0xad8] sm:$0xff]
    %v389 = vld [vmem:[%s2 + $0xae0] sm:$0xff]
    %v390 = vld [vmem:[%s2 + $0xae8] sm:$0xff]
    %v391 = vld [vmem:[%s2 + $0xaf0] sm:$0xff]
    %v392 = vld [vmem:[%s2 + $0xaf8] sm:$0xff]
    %v393 = vld [vmem:[%s2 + $0xb00] sm:$0xff]
    %v394 = vld [vmem:[%s2 + $0xb08] sm:$0xff]
    %v395 = vld [vmem:[%s2 + $0xb10] sm:$0xff]
    %v396 = vld [vmem:[%s2 + $0xb18] sm:$0xff]
    %v397 = vld [vmem:[%s2 + $0xb20] sm:$0xff]
    %v398 = vld [vmem:[%s2 + $0xb28] sm:$0xff]
    %v399 = vld [vmem:[%s2 + $0xb30] sm:$0xff]
    %v400 = vld [vmem:[%s2 + $0xb38] sm:$0xff]
    %v401 = vld [vmem:[%s2 + $0xb40] sm:$0xff]
    %v402 = vld [vmem:[%s2 + $0xb48] sm:$0xff]
    %v403 = vld [vmem:[%s2 + $0xb50] sm:$0xff]
    %v404 = vld [vmem:[%s2 + $0xb58] sm:$0xff]
    %v405 = vld [vmem:[%s2 + $0xb60] sm:$0xff]
    %v406 = vld [vmem:[%s2 + $0xb68] sm:$0xff]
    %v407 = vld [vmem:[%s2 + $0xb70] sm:$0xff]
    %v408 = vld [vmem:[%s2 + $0xb78] sm:$0xff]
    %v409 = vld [vmem:[%s2 + $0xb80] sm:$0xff]
    %v410 = vld [vmem:[%s2 + $0xb88] sm:$0xff]
    %v411 = vld [vmem:[%s2 + $0xb90] sm:$0xff]
    %v412 = vld [vmem:[%s2 + $0xb98] sm:$0xff]
    %v413 = vld [vmem:[%s2 + $0xba0] sm:$0xff]
    %v414 = vld [vmem:[%s2 + $0xba8] sm:$0xff]
    %v415 = vld [vmem:[%s2 + $0xbb0] sm:$0xff]
    %v416 = vld [vmem:[%s2 + $0xbb8] sm:$0xff]
    %v417 = vld [vmem:[%s2 + $0xbc0] sm:$0xff]
    %v418 = vld [vmem:[%s2 + $0xbc8] sm:$0xff]
    %v419 = vld [vmem:[%s2 + $0xbd0] sm:$0xff]
    %v420 = vld [vmem:[%s2 + $0xbd8] sm:$0xff]
    %v421 = vld [vmem:[%s2 + $0xbe0] sm:$0xff]
    %v422 = vld [vmem:[%s2 + $0xbe8] sm:$0xff]
    %v423 = vld [vmem:[%s2 + $0xbf0] sm:$0xff]
    %v424 = vld [vmem:[%s2 + $0xbf8] sm:$0xff]
    %v425 = vld [vmem:[%s2 + $0xc00] sm:$0xff]
    %v426 = vld [vmem:[%s2 + $0xc08] sm:$0xff]
    %v427 = vld [vmem:[%s2 + $0xc10] sm:$0xff]
    %v428 = vld [vmem:[%s2 + $0xc18] sm:$0xff]
    %v429 = vld [vmem:[%s2 + $0xc20] sm:$0xff]
    %v430 = vld [vmem:[%s2 + $0xc28] sm:$0xff]
    %v431 = vld [vmem:[%s2 + $0xc30] sm:$0xff]
    %v432 = vld [vmem:[%s2 + $0xc38] sm:$0xff]
    %v433 = vld [vmem:[%s2 + $0xc40] sm:$0xff]
    %v434 = vld [vmem:[%s2 + $0xc48] sm:$0xff]
    %v435 = vld [vmem:[%s2 + $0xc50] sm:$0xff]
    %v436 = vld [vmem:[%s2 + $0xc58] sm:$0xff]
    %v437 = vld [vmem:[%s2 + $0xc60] sm:$0xff]
    %v438 = vld [vmem:[%s2 + $0xc68] sm:$0xff]
    %v439 = vld [vmem:[%s2 + $0xc70] sm:$0xff]
    %v440 = vld [vmem:[%s2 + $0xc78] sm:$0xff]
    %v441 = vld [vmem:[%s2 + $0xc80] sm:$0xff]
    %v442 = vld [vmem:[%s2 + $0xc88] sm:$0xff]
    %v443 = vld [vmem:[%s2 + $0xc90] sm:$0xff]
    %v444 = vld [vmem:[%s2 + $0xc98] sm:$0xff]
    %v445 = vld [vmem:[%s2 + $0xca0] sm:$0xff]
    %v446 = vld [vmem:[%s2 + $0xca8] sm:$0xff]
    %v447 = vld [vmem:[%s2 + $0xcb0] sm:$0xff]
    %v448 = vld [vmem:[%s2 + $0xcb8] sm:$0xff]
    %v449 = vld [vmem:[%s2 + $0xcc0] sm:$0xff]
    %v450 = vld [vmem:[%s2 + $0xcc8] sm:$0xff]
    %v451 = vld [vmem:[%s2 + $0xcd0] sm:$0xff]
    %v452 = vld [vmem:[%s2 + $0xcd8] sm:$0xff]
    %v453 = vld [vmem:[%s2 + $0xce0] sm:$0xff]
    %v454 = vld [vmem:[%s2 + $0xce8] sm:$0xff]
    %v455 = vld [vmem:[%s2 + $0xcf0] sm:$0xff]
    %v456 = vld [vmem:[%s2 + $0xcf8] sm:$0xff]
    %v457 = vld [vmem:[%s2 + $0xd00] sm:$0xff]
    %v458 = vld [vmem:[%s2 + $0xd08] sm:$0xff]
    %v459 = vld [vmem:[%s2 + $0xd10] sm:$0xff]
    %v460 = vld [vmem:[%s2 + $0xd18] sm:$0xff]
    %v461 = vld [vmem:[%s2 + $0xd20] sm:$0xff]
    %v462 = vld [vmem:[%s2 + $0xd28] sm:$0xff]
    %v463 = vld [vmem:[%s2 + $0xd30] sm:$0xff]
    %v464 = vld [vmem:[%s2 + $0xd38] sm:$0xff]
    %v465 = vld [vmem:[%s2 + $0xd40] sm:$0xff]
    %v466 = vld [vmem:[%s2 + $0xd48] sm:$0xff]
    %v467 = vld [vmem:[%s2 + $0xd50] sm:$0xff]
    %v468 = vld [vmem:[%s2 + $0xd58] sm:$0xff]
    %v469 = vld [vmem:[%s2 + $0xd60] sm:$0xff]
    %v470 = vld [vmem:[%s2 + $0xd68] sm:$0xff]
    %v471 = vld [vmem:[%s2 + $0xd70] sm:$0xff]
    %v472 = vld [vmem:[%s2 + $0xd78] sm:$0xff]
    %v473 = vld [vmem:[%s2 + $0xd80] sm:$0xff]
    %v474 = vld [vmem:[%s2 + $0xd88] sm:$0xff]
    %v475 = vld [vmem:[%s2 + $0xd90] sm:$0xff]
    %v476 = vld [vmem:[%s2 + $0xd98] sm:$0xff]
    %v477 = vld [vmem:[%s2 + $0xda0] sm:$0xff]
    %v478 = vld [vmem:[%s2 + $0xda8] sm:$0xff]
    %v479 = vld [vmem:[%s2 + $0xdb0] sm:$0xff]
    %v480 = vld [vmem:[%s2 + $0xdb8] sm:$0xff]
    %v481 = vld [vmem:[%s2 + $0xdc0] sm:$0xff]
    %v482 = vld [vmem:[%s2 + $0xdc8] sm:$0xff]
    %v483 = vld [vmem:[%s2 + $0xdd0] sm:$0xff]
    %v484 = vld [vmem:[%s2 + $0xdd8] sm:$0xff]
    %v485 = vld [vmem:[%s2 + $0xde0] sm:$0xff]
    %v486 = vld [vmem:[%s2 + $0xde8] sm:$0xff]
    %v487 = vld [vmem:[%s2 + $0xdf0] sm:$0xff]
    %v488 = vld [vmem:[%s2 + $0xdf8] sm:$0xff]
    %v489 = vld [vmem:[%s2 + $0xe00] sm:$0xff]
    %v490 = vld [vmem:[%s2 + $0xe08] sm:$0xff]
    %v491 = vld [vmem:[%s2 + $0xe10] sm:$0xff]
    %v492 = vld [vmem:[%s2 + $0xe18] sm:$0xff]
    %v493 = vld [vmem:[%s2 + $0xe20] sm:$0xff]
    %v494 = vld [vmem:[%s2 + $0xe28] sm:$0xff]
    %v495 = vld [vmem:[%s2 + $0xe30] sm:$0xff]
    %v496 = vld [vmem:[%s2 + $0xe38] sm:$0xff]
    %v497 = vld [vmem:[%s2 + $0xe40] sm:$0xff]
    %v498 = vld [vmem:[%s2 + $0xe48] sm:$0xff]
    %v499 = vld [vmem:[%s2 + $0xe50] sm:$0xff]
    %v500 = vld [vmem:[%s2 + $0xe58] sm:$0xff]
    %v501 = vld [vmem:[%s2 + $0xe60] sm:$0xff]
    %v502 = vld [vmem:[%s2 + $0xe68] sm:$0xff]
    %v503 = vld [vmem:[%s2 + $0xe70] sm:$0xff]
    %v504 = vld [vmem:[%s2 + $0xe78] sm:$0xff]
    %v505 = vld [vmem:[%s2 + $0xe80] sm:$0xff]
    %v506 = vld [vmem:[%s2 + $0xe88] sm:$0xff]
    %v507 = vld [vmem:[%s2 + $0xe90] sm:$0xff]
    %v508 = vld [vmem:[%s2 + $0xe98] sm:$0xff]
    %v509 = vld [vmem:[%s2 + $0xea0] sm:$0xff]
    %v510 = vld [vmem:[%s2 + $0xea8] sm:$0xff]
    %v511 = vld [vmem:[%s2 + $0xeb0] sm:$0xff]
    %v512 = vld [vmem:[%s2 + $0xeb8] sm:$0xff]
    %v513 = vld [vmem:[%s2 + $0xec0] sm:$0xff]
    %v514 = vld [vmem:[%s2 + $0xec8] sm:$0xff]
    %v515 = vld [vmem:[%s2 + $0xed0] sm:$0xff]
    %v516 = vld [vmem:[%s2 + $0xed8] sm:$0xff]
    %v517 = vld [vmem:[%s2 + $0xee0] sm:$0xff]
    %v518 = vld [vmem:[%s2 + $0xee8] sm:$0xff]
    %v519 = vld [vmem:[%s2 + $0xef0] sm:$0xff]
    %v520 = vld [vmem:[%s2 + $0xef8] sm:$0xff]
    %v521 = vld [vmem:[%s2 + $0xf00] sm:$0xff]
    %v522 = vld [vmem:[%s2 + $0xf08] sm:$0xff]
    %v523 = vld [vmem:[%s2 + $0xf10] sm:$0xff]
    %v524 = vld [vmem:[%s2 + $0xf18] sm:$0xff]
    %v525 = vld [vmem:[%s2 + $0xf20] sm:$0xff]
    %v526 = vld [vmem:[%s2 + $0xf28] sm:$0xff]
    %v527 = vld [vmem:[%s2 + $0xf30] sm:$0xff]
    %v528 = vld [vmem:[%s2 + $0xf38] sm:$0xff]
    %v529 = vld [vmem:[%s2 + $0xf40] sm:$0xff]
    %v530 = vld [vmem:[%s2 + $0xf48] sm:$0xff]
    %v531 = vld [vmem:[%s2 + $0xf50] sm:$0xff]
    %v532 = vld [vmem:[%s2 + $0xf58] sm:$0xff]
    %v533 = vld [vmem:[%s2 + $0xf60] sm:$0xff]
    %v534 = vld [vmem:[%s2 + $0xf68] sm:$0xff]
    %v535 = vld [vmem:[%s2 + $0xf70] sm:$0xff]
    %v536 = vld [vmem:[%s2 + $0xf78] sm:$0xff]
    %v537 = vld [vmem:[%s2 + $0xf80] sm:$0xff]
    %v538 = vld [vmem:[%s2 + $0xf88] sm:$0xff]
    %v539 = vld [vmem:[%s2 + $0xf90] sm:$0xff]
    %v540 = vld [vmem:[%s2 + $0xf98] sm:$0xff]
    %v541 = vld [vmem:[%s2 + $0xfa0] sm:$0xff]
    %v542 = vld [vmem:[%s2 + $0xfa8] sm:$0xff]
    %v543 = vld [vmem:[%s2 + $0xfb0] sm:$0xff]
    %v544 = vld [vmem:[%s2 + $0xfb8] sm:$0xff]
    %v545 = vld [vmem:[%s2 + $0xfc0] sm:$0xff]
    %v546 = vld [vmem:[%s2 + $0xfc8] sm:$0xff]
    %v547 = vld [vmem:[%s2 + $0xfd0] sm:$0xff]
    %v548 = vld [vmem:[%s2 + $0xfd8] sm:$0xff]
    %v549 = vld [vmem:[%s2 + $0xfe0] sm:$0xff]
    %v550 = vld [vmem:[%s2 + $0xfe8] sm:$0xff]
    %v551 = vld [vmem:[%s2 + $0xff0] sm:$0xff]
    %v552 = vld [vmem:[%s2 + $0xff8] sm:$0xff]
    %v553 = vld [vmem:[%s3] sm:$0xf]
    %v555 = vlaneseq
    %v556 = vshrl.u32 %v555, 7
    %v557 = vsub.s32 0, %v556
    %v558 = vrot.slane %v553, %v557
    %v559 = vlaneseq
    %v560 = vshrl.u32 %v559, 7
    %v561 = vsub.s32 1, %v560
    %v562 = vrot.slane %v553, %v561
    %v563 = vlaneseq
    %v564 = vshrl.u32 %v563, 7
    %v565 = vsub.s32 2, %v564
    %v566 = vrot.slane %v553, %v565
    %v567 = vlaneseq
    %v568 = vshrl.u32 %v567, 7
    %v569 = vsub.s32 3, %v568
    %v570 = vrot.slane %v553, %v569
    %v577 = vcombine.high %v39, %v39
    %v579 = vunpack.c.l.s4 1983009808
    %v580 = vunpack.c.0.s8 %v579
    %v581 = vlaneseq
    %v582 = vshrl.u32 %v581, 7
    %v583 = vsub.s32 %v580, %v582
    %v584 = vrot.slane %v39, %v583
    %v586 = vunpack.c.l.s4 1983009808
    %v587 = vunpack.c.0.s8 %v586
    %v588 = vlaneseq
    %v589 = vshrl.u32 %v588, 7
    %v590 = vsub.s32 %v587, %v589
    %v591 = vrot.slane %v577, %v590
    %v592 = vcombine.high %v584, %v584
    %v593 = vcombine.high %v591, %v591
    %v594 = vcombine.high %v40, %v40
    %v596 = vunpack.c.l.s4 1983009808
    %v597 = vunpack.c.0.s8 %v596
    %v598 = vlaneseq
    %v599 = vshrl.u32 %v598, 7
    %v600 = vsub.s32 %v597, %v599
    %v601 = vrot.slane %v40, %v600
    %v603 = vunpack.c.l.s4 1983009808
    %v604 = vunpack.c.0.s8 %v603
    %v605 = vlaneseq
    %v606 = vshrl.u32 %v605, 7
    %v607 = vsub.s32 %v604, %v606
    %v608 = vrot.slane %v594, %v607
    %v609 = vcombine.high %v601, %v601
    %v610 = vcombine.high %v608, %v608
    %619 = vmatprep.subr.mxu0 %v42
    %620 = vmatpush1.msra.mxu0 %v41
    %621 = vmatprep.subr.mxu0 %v46
    %622 = vmatpush1.msra.mxu0 %v45
    %623 = vmatprep.subr.mxu0 %v50
    %624 = vmatpush1.msra.mxu0 %v49
    %625 = vmatprep.subr.mxu0 %v54
    %626 = vmatpush1.msra.mxu0 %v53
    %627 = vmatprep.subr.mxu0 %v58
    %628 = vmatpush1.msra.mxu0 %v57
    %629 = vmatprep.subr.mxu0 %v62
    %630 = vmatpush1.msra.mxu0 %v61
    %631 = vmatprep.subr.mxu0 %v66
    %632 = vmatpush1.msra.mxu0 %v65
    %633 = vmatprep.subr.mxu0 %v70
    %634 = vmatpush1.msra.mxu0 %v69
    %635 = vmatprep.subr.mxu0 %v74
    %636 = vmatpush1.msra.mxu0 %v73
    %637 = vmatprep.subr.mxu0 %v78
    %638 = vmatpush1.msra.mxu0 %v77
    %639 = vmatprep.subr.mxu0 %v82
    %640 = vmatpush1.msra.mxu0 %v81
    %641 = vmatprep.subr.mxu0 %v86
    %642 = vmatpush1.msra.mxu0 %v85
    %643 = vmatprep.subr.mxu0 %v90
    %644 = vmatpush1.msra.mxu0 %v89
    %645 = vmatprep.subr.mxu0 %v94
    %646 = vmatpush1.msra.mxu0 %v93
    %647 = vmatprep.subr.mxu0 %v98
    %648 = vmatpush1.msra.mxu0 %v97
    %649 = vmatprep.subr.mxu0 %v102
    %650 = vmatpush1.msra.mxu0 %v101
    %651 = vmatprep.subr.mxu0 %v106
    %652 = vmatpush1.msra.mxu0 %v105
    %653 = vmatprep.subr.mxu0 %v110
    %654 = vmatpush1.msra.mxu0 %v109
    %655 = vmatprep.subr.mxu0 %v114
    %656 = vmatpush1.msra.mxu0 %v113
    %657 = vmatprep.subr.mxu0 %v118
    %658 = vmatpush1.msra.mxu0 %v117
    %659 = vmatprep.subr.mxu0 %v122
    %660 = vmatpush1.msra.mxu0 %v121
    %661 = vmatprep.subr.mxu0 %v126
    %662 = vmatpush1.msra.mxu0 %v125
    %663 = vmatprep.subr.mxu0 %v130
    %664 = vmatpush1.msra.mxu0 %v129
    %665 = vmatprep.subr.mxu0 %v134
    %666 = vmatpush1.msra.mxu0 %v133
    %667 = vmatprep.subr.mxu0 %v138
    %668 = vmatpush1.msra.mxu0 %v137
    %669 = vmatprep.subr.mxu0 %v142
    %670 = vmatpush1.msra.mxu0 %v141
    %671 = vmatprep.subr.mxu0 %v146
    %672 = vmatpush1.msra.mxu0 %v145
    %673 = vmatprep.subr.mxu0 %v150
    %674 = vmatpush1.msra.mxu0 %v149
    %675 = vmatprep.subr.mxu0 %v154
    %676 = vmatpush1.msra.mxu0 %v153
    %677 = vmatprep.subr.mxu0 %v158
    %678 = vmatpush1.msra.mxu0 %v157
    %679 = vmatprep.subr.mxu0 %v162
    %680 = vmatpush1.msra.mxu0 %v161
    %681 = vmatprep.subr.mxu0 %v166
    %682 = vmatpush1.msra.mxu0 %v165
    %683 = vmatprep.mubr.f32.mxu0 %v592
    %684 = vmatmul.mubr.f32.gmra.mrb[0].mxu0 %v584
    %v685 = vpop.f32.mrb[0].mxu0
    %v686 = vadd.f32 %v558, %v685
    %v687 = vpop.f32.mrb[0].mxu0
    %v688 = vadd.f32 %v562, %v687
    %689 = vdwg.mxu0
    %690 = vmatprep.subr.mxu0 %v170
    %691 = vmatpush1.msra.mxu0 %v169
    %692 = vmatprep.subr.mxu0 %v174
    %693 = vmatpush1.msra.mxu0 %v173
    %694 = vmatprep.subr.mxu0 %v178
    %695 = vmatpush1.msra.mxu0 %v177
    %696 = vmatprep.subr.mxu0 %v182
    %697 = vmatpush1.msra.mxu0 %v181
    %698 = vmatprep.subr.mxu0 %v186
    %699 = vmatpush1.msra.mxu0 %v185
    %700 = vmatprep.subr.mxu0 %v190
    %701 = vmatpush1.msra.mxu0 %v189
    %702 = vmatprep.subr.mxu0 %v194
    %703 = vmatpush1.msra.mxu0 %v193
    %704 = vmatprep.subr.mxu0 %v198
    %705 = vmatpush1.msra.mxu0 %v197
    %706 = vmatprep.subr.mxu0 %v202
    %707 = vmatpush1.msra.mxu0 %v201
    %708 = vmatprep.subr.mxu0 %v206
    %709 = vmatpush1.msra.mxu0 %v205
    %710 = vmatprep.subr.mxu0 %v210
    %711 = vmatpush1.msra.mxu0 %v209
    %712 = vmatprep.subr.mxu0 %v214
    %713 = vmatpush1.msra.mxu0 %v213
    %714 = vmatprep.subr.mxu0 %v218
    %715 = vmatpush1.msra.mxu0 %v217
    %716 = vmatprep.subr.mxu0 %v222
    %717 = vmatpush1.msra.mxu0 %v221
    %718 = vmatprep.subr.mxu0 %v226
    %719 = vmatpush1.msra.mxu0 %v225
    %720 = vmatprep.subr.mxu0 %v230
    %721 = vmatpush1.msra.mxu0 %v229
    %722 = vmatprep.subr.mxu0 %v234
    %723 = vmatpush1.msra.mxu0 %v233
    %724 = vmatprep.subr.mxu0 %v238
    %725 = vmatpush1.msra.mxu0 %v237
    %726 = vmatprep.subr.mxu0 %v242
    %727 = vmatpush1.msra.mxu0 %v241
    %728 = vmatprep.subr.mxu0 %v246
    %729 = vmatpush1.msra.mxu0 %v245
    %730 = vmatprep.subr.mxu0 %v250
    %731 = vmatpush1.msra.mxu0 %v249
    %732 = vmatprep.subr.mxu0 %v254
    %733 = vmatpush1.msra.mxu0 %v253
    %734 = vmatprep.subr.mxu0 %v258
    %735 = vmatpush1.msra.mxu0 %v257
    %736 = vmatprep.subr.mxu0 %v262
    %737 = vmatpush1.msra.mxu0 %v261
    %738 = vmatprep.subr.mxu0 %v266
    %739 = vmatpush1.msra.mxu0 %v265
    %740 = vmatprep.subr.mxu0 %v270
    %741 = vmatpush1.msra.mxu0 %v269
    %742 = vmatprep.subr.mxu0 %v274
    %743 = vmatpush1.msra.mxu0 %v273
    %744 = vmatprep.subr.mxu0 %v278
    %745 = vmatpush1.msra.mxu0 %v277
    %746 = vmatprep.subr.mxu0 %v282
    %747 = vmatpush1.msra.mxu0 %v281
    %748 = vmatprep.subr.mxu0 %v286
    %749 = vmatpush1.msra.mxu0 %v285
    %750 = vmatprep.subr.mxu0 %v290
    %751 = vmatpush1.msra.mxu0 %v289
    %752 = vmatprep.subr.mxu0 %v294
    %753 = vmatpush1.msra.mxu0 %v293
    %754 = vmatprep.mubr.f32.mxu0 %v593
    %755 = vmatmul.mubr.f32.gmra.mrb[0].mxu0 %v591
    %v756 = vpop.f32.mrb[0].mxu0
    %v757 = vadd.f32 %v686, %v756
    %v758 = vpop.f32.mrb[0].mxu0
    %v759 = vadd.f32 %v688, %v758
    %760 = vdwg.mxu0
    %761 = vmatprep.subr.mxu0 %v298
    %762 = vmatpush1.msra.mxu0 %v297
    %763 = vmatprep.subr.mxu0 %v302
    %764 = vmatpush1.msra.mxu0 %v301
    %765 = vmatprep.subr.mxu0 %v306
    %766 = vmatpush1.msra.mxu0 %v305
    %767 = vmatprep.subr.mxu0 %v310
    %768 = vmatpush1.msra.mxu0 %v309
    %769 = vmatprep.subr.mxu0 %v314
    %770 = vmatpush1.msra.mxu0 %v313
    %771 = vmatprep.subr.mxu0 %v318
    %772 = vmatpush1.msra.mxu0 %v317
    %773 = vmatprep.subr.mxu0 %v322
    %774 = vmatpush1.msra.mxu0 %v321
    %775 = vmatprep.subr.mxu0 %v326
    %776 = vmatpush1.msra.mxu0 %v325
    %777 = vmatprep.subr.mxu0 %v330
    %778 = vmatpush1.msra.mxu0 %v329
    %779 = vmatprep.subr.mxu0 %v334
    %780 = vmatpush1.msra.mxu0 %v333
    %781 = vmatprep.subr.mxu0 %v338
    %782 = vmatpush1.msra.mxu0 %v337
    %783 = vmatprep.subr.mxu0 %v342
    %784 = vmatpush1.msra.mxu0 %v341
    %785 = vmatprep.subr.mxu0 %v346
    %786 = vmatpush1.msra.mxu0 %v345
    %787 = vmatprep.subr.mxu0 %v350
    %788 = vmatpush1.msra.mxu0 %v349
    %789 = vmatprep.subr.mxu0 %v354
    %790 = vmatpush1.msra.mxu0 %v353
    %791 = vmatprep.subr.mxu0 %v358
    %792 = vmatpush1.msra.mxu0 %v357
    %793 = vmatprep.subr.mxu0 %v362
    %794 = vmatpush1.msra.mxu0 %v361
    %795 = vmatprep.subr.mxu0 %v366
    %796 = vmatpush1.msra.mxu0 %v365
    %797 = vmatprep.subr.mxu0 %v370
    %798 = vmatpush1.msra.mxu0 %v369
    %799 = vmatprep.subr.mxu0 %v374
    %800 = vmatpush1.msra.mxu0 %v373
    %801 = vmatprep.subr.mxu0 %v378
    %802 = vmatpush1.msra.mxu0 %v377
    %803 = vmatprep.subr.mxu0 %v382
    %804 = vmatpush1.msra.mxu0 %v381
    %805 = vmatprep.subr.mxu0 %v386
    %806 = vmatpush1.msra.mxu0 %v385
    %807 = vmatprep.subr.mxu0 %v390
    %808 = vmatpush1.msra.mxu0 %v389
    %809 = vmatprep.subr.mxu0 %v394
    %810 = vmatpush1.msra.mxu0 %v393
    %811 = vmatprep.subr.mxu0 %v398
    %812 = vmatpush1.msra.mxu0 %v397
    %813 = vmatprep.subr.mxu0 %v402
    %814 = vmatpush1.msra.mxu0 %v401
    %815 = vmatprep.subr.mxu0 %v406
    %816 = vmatpush1.msra.mxu0 %v405
    %817 = vmatprep.subr.mxu0 %v410
    %818 = vmatpush1.msra.mxu0 %v409
    %819 = vmatprep.subr.mxu0 %v414
    %820 = vmatpush1.msra.mxu0 %v413
    %821 = vmatprep.subr.mxu0 %v418
    %822 = vmatpush1.msra.mxu0 %v417
    %823 = vmatprep.subr.mxu0 %v422
    %824 = vmatpush1.msra.mxu0 %v421
    %825 = vmatprep.mubr.f32.mxu0 %v609
    %826 = vmatmul.mubr.f32.gmra.mrb[0].mxu0 %v601
    %v827 = vpop.f32.mrb[0].mxu0
    %v828 = vadd.f32 %v757, %v827
    %v829 = vpop.f32.mrb[0].mxu0
    %v830 = vadd.f32 %v759, %v829
    %831 = vdwg.mxu0
    %832 = vmatprep.subr.mxu0 %v426
    %833 = vmatpush1.msra.mxu0 %v425
    %834 = vmatprep.subr.mxu0 %v430
    %835 = vmatpush1.msra.mxu0 %v429
    %836 = vmatprep.subr.mxu0 %v434
    %837 = vmatpush1.msra.mxu0 %v433
    %838 = vmatprep.subr.mxu0 %v438
    %839 = vmatpush1.msra.mxu0 %v437
    %840 = vmatprep.subr.mxu0 %v442
    %841 = vmatpush1.msra.mxu0 %v441
    %842 = vmatprep.subr.mxu0 %v446
    %843 = vmatpush1.msra.mxu0 %v445
    %844 = vmatprep.subr.mxu0 %v450
    %845 = vmatpush1.msra.mxu0 %v449
    %846 = vmatprep.subr.mxu0 %v454
    %847 = vmatpush1.msra.mxu0 %v453
    %848 = vmatprep.subr.mxu0 %v458
    %849 = vmatpush1.msra.mxu0 %v457
    %850 = vmatprep.subr.mxu0 %v462
    %851 = vmatpush1.msra.mxu0 %v461
    %852 = vmatprep.subr.mxu0 %v466
    %853 = vmatpush1.msra.mxu0 %v465
    %854 = vmatprep.subr.mxu0 %v470
    %855 = vmatpush1.msra.mxu0 %v469
    %856 = vmatprep.subr.mxu0 %v474
    %857 = vmatpush1.msra.mxu0 %v473
    %858 = vmatprep.subr.mxu0 %v478
    %859 = vmatpush1.msra.mxu0 %v477
    %860 = vmatprep.subr.mxu0 %v482
    %861 = vmatpush1.msra.mxu0 %v481
    %862 = vmatprep.subr.mxu0 %v486
    %863 = vmatpush1.msra.mxu0 %v485
    %864 = vmatprep.subr.mxu0 %v490
    %865 = vmatpush1.msra.mxu0 %v489
    %866 = vmatprep.subr.mxu0 %v494
    %867 = vmatpush1.msra.mxu0 %v493
    %868 = vmatprep.subr.mxu0 %v498
    %869 = vmatpush1.msra.mxu0 %v497
    %870 = vmatprep.subr.mxu0 %v502
    %871 = vmatpush1.msra.mxu0 %v501
    %872 = vmatprep.subr.mxu0 %v506
    %873 = vmatpush1.msra.mxu0 %v505
    %874 = vmatprep.subr.mxu0 %v510
    %875 = vmatpush1.msra.mxu0 %v509
    %876 = vmatprep.subr.mxu0 %v514
    %877 = vmatpush1.msra.mxu0 %v513
    %878 = vmatprep.subr.mxu0 %v518
    %879 = vmatpush1.msra.mxu0 %v517
    %880 = vmatprep.subr.mxu0 %v522
    %881 = vmatpush1.msra.mxu0 %v521
    %882 = vmatprep.subr.mxu0 %v526
    %883 = vmatpush1.msra.mxu0 %v525
    %884 = vmatprep.subr.mxu0 %v530
    %885 = vmatpush1.msra.mxu0 %v529
    %886 = vmatprep.subr.mxu0 %v534
    %887 = vmatpush1.msra.mxu0 %v533
    %888 = vmatprep.subr.mxu0 %v538
    %889 = vmatpush1.msra.mxu0 %v537
    %890 = vmatprep.subr.mxu0 %v542
    %891 = vmatpush1.msra.mxu0 %v541
    %892 = vmatprep.subr.mxu0 %v546
    %893 = vmatpush1.msra.mxu0 %v545
    %894 = vmatprep.subr.mxu0 %v550
    %895 = vmatpush1.msra.mxu0 %v549
    %896 = vmatprep.mubr.f32.mxu0 %v610
    %897 = vmatmul.mubr.f32.gmra.mrb[0].mxu0 %v608
    %v898 = vpop.f32.mrb[0].mxu0
    %v899 = vadd.f32 %v828, %v898
    %v900 = vpop.f32.mrb[0].mxu0
    %v901 = vadd.f32 %v830, %v900
    %902 = vdwg.mxu0
    %903 = vmatprep.subr.mxu0 %v44
    %904 = vmatpush1.msra.mxu0 %v43
    %905 = vmatprep.subr.mxu0 %v48
    %906 = vmatpush1.msra.mxu0 %v47
    %907 = vmatprep.subr.mxu0 %v52
    %908 = vmatpush1.msra.mxu0 %v51
    %909 = vmatprep.subr.mxu0 %v56
    %910 = vmatpush1.msra.mxu0 %v55
    %911 = vmatprep.subr.mxu0 %v60
    %912 = vmatpush1.msra.mxu0 %v59
    %913 = vmatprep.subr.mxu0 %v64
    %914 = vmatpush1.msra.mxu0 %v63
    %915 = vmatprep.subr.mxu0 %v68
    %916 = vmatpush1.msra.mxu0 %v67
    %917 = vmatprep.subr.mxu0 %v72
    %918 = vmatpush1.msra.mxu0 %v71
    %919 = vmatprep.subr.mxu0 %v76
    %920 = vmatpush1.msra.mxu0 %v75
    %921 = vmatprep.subr.mxu0 %v80
    %922 = vmatpush1.msra.mxu0 %v79
    %923 = vmatprep.subr.mxu0 %v84
    %924 = vmatpush1.msra.mxu0 %v83
    %925 = vmatprep.subr.mxu0 %v88
    %926 = vmatpush1.msra.mxu0 %v87
    %927 = vmatprep.subr.mxu0 %v92
    %928 = vmatpush1.msra.mxu0 %v91
    %929 = vmatprep.subr.mxu0 %v96
    %930 = vmatpush1.msra.mxu0 %v95
    %931 = vmatprep.subr.mxu0 %v100
    %932 = vmatpush1.msra.mxu0 %v99
    %933 = vmatprep.subr.mxu0 %v104
    %934 = vmatpush1.msra.mxu0 %v103
    %935 = vmatprep.subr.mxu0 %v108
    %936 = vmatpush1.msra.mxu0 %v107
    %937 = vmatprep.subr.mxu0 %v112
    %938 = vmatpush1.msra.mxu0 %v111
    %939 = vmatprep.subr.mxu0 %v116
    %940 = vmatpush1.msra.mxu0 %v115
    %941 = vmatprep.subr.mxu0 %v120
    %942 = vmatpush1.msra.mxu0 %v119
    %943 = vmatprep.subr.mxu0 %v124
    %944 = vmatpush1.msra.mxu0 %v123
    %945 = vmatprep.subr.mxu0 %v128
    %946 = vmatpush1.msra.mxu0 %v127
    %947 = vmatprep.subr.mxu0 %v132
    %948 = vmatpush1.msra.mxu0 %v131
    %949 = vmatprep.subr.mxu0 %v136
    %950 = vmatpush1.msra.mxu0 %v135
    %951 = vmatprep.subr.mxu0 %v140
    %952 = vmatpush1.msra.mxu0 %v139
    %953 = vmatprep.subr.mxu0 %v144
    %954 = vmatpush1.msra.mxu0 %v143
    %955 = vmatprep.subr.mxu0 %v148
    %956 = vmatpush1.msra.mxu0 %v147
    %957 = vmatprep.subr.mxu0 %v152
    %958 = vmatpush1.msra.mxu0 %v151
    %959 = vmatprep.subr.mxu0 %v156
    %960 = vmatpush1.msra.mxu0 %v155
    %961 = vmatprep.subr.mxu0 %v160
    %962 = vmatpush1.msra.mxu0 %v159
    %963 = vmatprep.subr.mxu0 %v164
    %964 = vmatpush1.msra.mxu0 %v163
    %965 = vmatprep.subr.mxu0 %v168
    %966 = vmatpush1.msra.mxu0 %v167
    %967 = vmatprep.mubr.f32.mxu0 %v592
    %968 = vmatmul.mubr.f32.gmra.mrb[0].mxu0 %v584
    %v969 = vpop.f32.mrb[0].mxu0
    %v970 = vadd.f32 %v566, %v969
    %v971 = vpop.f32.mrb[0].mxu0
    %v972 = vadd.f32 %v570, %v971
    %973 = vdwg.mxu0
    %974 = vmatprep.subr.mxu0 %v172
    %975 = vmatpush1.msra.mxu0 %v171
    %976 = vmatprep.subr.mxu0 %v176
    %977 = vmatpush1.msra.mxu0 %v175
    %978 = vmatprep.subr.mxu0 %v180
    %979 = vmatpush1.msra.mxu0 %v179
    %980 = vmatprep.subr.mxu0 %v184
    %981 = vmatpush1.msra.mxu0 %v183
    %982 = vmatprep.subr.mxu0 %v188
    %983 = vmatpush1.msra.mxu0 %v187
    %984 = vmatprep.subr.mxu0 %v192
    %985 = vmatpush1.msra.mxu0 %v191
    %986 = vmatprep.subr.mxu0 %v196
    %987 = vmatpush1.msra.mxu0 %v195
    %988 = vmatprep.subr.mxu0 %v200
    %989 = vmatpush1.msra.mxu0 %v199
    %990 = vmatprep.subr.mxu0 %v204
    %991 = vmatpush1.msra.mxu0 %v203
    %992 = vmatprep.subr.mxu0 %v208
    %993 = vmatpush1.msra.mxu0 %v207
    %994 = vmatprep.subr.mxu0 %v212
    %995 = vmatpush1.msra.mxu0 %v211
    %996 = vmatprep.subr.mxu0 %v216
    %997 = vmatpush1.msra.mxu0 %v215
    %998 = vmatprep.subr.mxu0 %v220
    %999 = vmatpush1.msra.mxu0 %v219
    %1000 = vmatprep.subr.mxu0 %v224
    %1001 = vmatpush1.msra.mxu0 %v223
    %1002 = vmatprep.subr.mxu0 %v228
    %1003 = vmatpush1.msra.mxu0 %v227
    %1004 = vmatprep.subr.mxu0 %v232
    %1005 = vmatpush1.msra.mxu0 %v231
    %1006 = vmatprep.subr.mxu0 %v236
    %1007 = vmatpush1.msra.mxu0 %v235
    %1008 = vmatprep.subr.mxu0 %v240
    %1009 = vmatpush1.msra.mxu0 %v239
    %1010 = vmatprep.subr.mxu0 %v244
    %1011 = vmatpush1.msra.mxu0 %v243
    %1012 = vmatprep.subr.mxu0 %v248
    %1013 = vmatpush1.msra.mxu0 %v247
    %1014 = vmatprep.subr.mxu0 %v252
    %1015 = vmatpush1.msra.mxu0 %v251
    %1016 = vmatprep.subr.mxu0 %v256
    %1017 = vmatpush1.msra.mxu0 %v255
    %1018 = vmatprep.subr.mxu0 %v260
    %1019 = vmatpush1.msra.mxu0 %v259
    %1020 = vmatprep.subr.mxu0 %v264
    %1021 = vmatpush1.msra.mxu0 %v263
    %1022 = vmatprep.subr.mxu0 %v268
    %1023 = vmatpush1.msra.mxu0 %v267
    %1024 = vmatprep.subr.mxu0 %v272
    %1025 = vmatpush1.msra.mxu0 %v271
    %1026 = vmatprep.subr.mxu0 %v276
    %1027 = vmatpush1.msra.mxu0 %v275
    %1028 = vmatprep.subr.mxu0 %v280
    %1029 = vmatpush1.msra.mxu0 %v279
    %1030 = vmatprep.subr.mxu0 %v284
    %1031 = vmatpush1.msra.mxu0 %v283
    %1032 = vmatprep.subr.mxu0 %v288
    %1033 = vmatpush1.msra.mxu0 %v287
    %1034 = vmatprep.subr.mxu0 %v292
    %1035 = vmatpush1.msra.mxu0 %v291
    %1036 = vmatprep.subr.mxu0 %v296
    %1037 = vmatpush1.msra.mxu0 %v295
    %1038 = vmatprep.mubr.f32.mxu0 %v593
    %1039 = vmatmul.mubr.f32.gmra.mrb[0].mxu0 %v591
    %v1040 = vpop.f32.mrb[0].mxu0
    %v1041 = vadd.f32 %v970, %v1040
    %v1042 = vpop.f32.mrb[0].mxu0
    %v1043 = vadd.f32 %v972, %v1042
    %1044 = vdwg.mxu0
    %1045 = vmatprep.subr.mxu0 %v300
    %1046 = vmatpush1.msra.mxu0 %v299
    %1047 = vmatprep.subr.mxu0 %v304
    %1048 = vmatpush1.msra.mxu0 %v303
    %1049 = vmatprep.subr.mxu0 %v308
    %1050 = vmatpush1.msra.mxu0 %v307
    %1051 = vmatprep.subr.mxu0 %v312
    %1052 = vmatpush1.msra.mxu0 %v311
    %1053 = vmatprep.subr.mxu0 %v316
    %1054 = vmatpush1.msra.mxu0 %v315
    %1055 = vmatprep.subr.mxu0 %v320
    %1056 = vmatpush1.msra.mxu0 %v319
    %1057 = vmatprep.subr.mxu0 %v324
    %1058 = vmatpush1.msra.mxu0 %v323
    %1059 = vmatprep.subr.mxu0 %v328
    %1060 = vmatpush1.msra.mxu0 %v327
    %1061 = vmatprep.subr.mxu0 %v332
    %1062 = vmatpush1.msra.mxu0 %v331
    %1063 = vmatprep.subr.mxu0 %v336
    %1064 = vmatpush1.msra.mxu0 %v335
    %1065 = vmatprep.subr.mxu0 %v340
    %1066 = vmatpush1.msra.mxu0 %v339
    %1067 = vmatprep.subr.mxu0 %v344
    %1068 = vmatpush1.msra.mxu0 %v343
    %1069 = vmatprep.subr.mxu0 %v348
    %1070 = vmatpush1.msra.mxu0 %v347
    %1071 = vmatprep.subr.mxu0 %v352
    %1072 = vmatpush1.msra.mxu0 %v351
    %1073 = vmatprep.subr.mxu0 %v356
    %1074 = vmatpush1.msra.mxu0 %v355
    %1075 = vmatprep.subr.mxu0 %v360
    %1076 = vmatpush1.msra.mxu0 %v359
    %1077 = vmatprep.subr.mxu0 %v364
    %1078 = vmatpush1.msra.mxu0 %v363
    %1079 = vmatprep.subr.mxu0 %v368
    %1080 = vmatpush1.msra.mxu0 %v367
    %1081 = vmatprep.subr.mxu0 %v372
    %1082 = vmatpush1.msra.mxu0 %v371
    %1083 = vmatprep.subr.mxu0 %v376
    %1084 = vmatpush1.msra.mxu0 %v375
    %1085 = vmatprep.subr.mxu0 %v380
    %1086 = vmatpush1.msra.mxu0 %v379
    %1087 = vmatprep.subr.mxu0 %v384
    %1088 = vmatpush1.msra.mxu0 %v383
    %1089 = vmatprep.subr.mxu0 %v388
    %1090 = vmatpush1.msra.mxu0 %v387
    %1091 = vmatprep.subr.mxu0 %v392
    %1092 = vmatpush1.msra.mxu0 %v391
    %1093 = vmatprep.subr.mxu0 %v396
    %1094 = vmatpush1.msra.mxu0 %v395
    %1095 = vmatprep.subr.mxu0 %v400
    %1096 = vmatpush1.msra.mxu0 %v399
    %1097 = vmatprep.subr.mxu0 %v404
    %1098 = vmatpush1.msra.mxu0 %v403
    %1099 = vmatprep.subr.mxu0 %v408
    %1100 = vmatpush1.msra.mxu0 %v407
    %1101 = vmatprep.subr.mxu0 %v412
    %1102 = vmatpush1.msra.mxu0 %v411
    %1103 = vmatprep.subr.mxu0 %v416
    %1104 = vmatpush1.msra.mxu0 %v415
    %1105 = vmatprep.subr.mxu0 %v420
    %1106 = vmatpush1.msra.mxu0 %v419
    %1107 = vmatprep.subr.mxu0 %v424
    %1108 = vmatpush1.msra.mxu0 %v423
    %1109 = vmatprep.mubr.f32.mxu0 %v609
    %1110 = vmatmul.mubr.f32.gmra.mrb[0].mxu0 %v601
    %v1111 = vpop.f32.mrb[0].mxu0
    %v1112 = vadd.f32 %v1041, %v1111
    %v1113 = vpop.f32.mrb[0].mxu0
    %v1114 = vadd.f32 %v1043, %v1113
    %1115 = vdwg.mxu0
    %1116 = vmatprep.subr.mxu0 %v428
    %1117 = vmatpush1.msra.mxu0 %v427
    %1118 = vmatprep.subr.mxu0 %v432
    %1119 = vmatpush1.msra.mxu0 %v431
    %1120 = vmatprep.subr.mxu0 %v436
    %1121 = vmatpush1.msra.mxu0 %v435
    %1122 = vmatprep.subr.mxu0 %v440
    %1123 = vmatpush1.msra.mxu0 %v439
    %1124 = vmatprep.subr.mxu0 %v444
    %1125 = vmatpush1.msra.mxu0 %v443
    %1126 = vmatprep.subr.mxu0 %v448
    %1127 = vmatpush1.msra.mxu0 %v447
    %1128 = vmatprep.subr.mxu0 %v452
    %1129 = vmatpush1.msra.mxu0 %v451
    %1130 = vmatprep.subr.mxu0 %v456
    %1131 = vmatpush1.msra.mxu0 %v455
    %1132 = vmatprep.subr.mxu0 %v460
    %1133 = vmatpush1.msra.mxu0 %v459
    %1134 = vmatprep.subr.mxu0 %v464
    %1135 = vmatpush1.msra.mxu0 %v463
    %1136 = vmatprep.subr.mxu0 %v468
    %1137 = vmatpush1.msra.mxu0 %v467
    %1138 = vmatprep.subr.mxu0 %v472
    %1139 = vmatpush1.msra.mxu0 %v471
    %1140 = vmatprep.subr.mxu0 %v476
    %1141 = vmatpush1.msra.mxu0 %v475
    %1142 = vmatprep.subr.mxu0 %v480
    %1143 = vmatpush1.msra.mxu0 %v479
    %1144 = vmatprep.subr.mxu0 %v484
    %1145 = vmatpush1.msra.mxu0 %v483
    %1146 = vmatprep.subr.mxu0 %v488
    %1147 = vmatpush1.msra.mxu0 %v487
    %1148 = vmatprep.subr.mxu0 %v492
    %1149 = vmatpush1.msra.mxu0 %v491
    %1150 = vmatprep.subr.mxu0 %v496
    %1151 = vmatpush1.msra.mxu0 %v495
    %1152 = vmatprep.subr.mxu0 %v500
    %1153 = vmatpush1.msra.mxu0 %v499
    %1154 = vmatprep.subr.mxu0 %v504
    %1155 = vmatpush1.msra.mxu0 %v503
    %1156 = vmatprep.subr.mxu0 %v508
    %1157 = vmatpush1.msra.mxu0 %v507
    %1158 = vmatprep.subr.mxu0 %v512
    %1159 = vmatpush1.msra.mxu0 %v511
    %1160 = vmatprep.subr.mxu0 %v516
    %1161 = vmatpush1.msra.mxu0 %v515
    %1162 = vmatprep.subr.mxu0 %v520
    %1163 = vmatpush1.msra.mxu0 %v519
    %1164 = vmatprep.subr.mxu0 %v524
    %1165 = vmatpush1.msra.mxu0 %v523
    %1166 = vmatprep.subr.mxu0 %v528
    %1167 = vmatpush1.msra.mxu0 %v527
    %1168 = vmatprep.subr.mxu0 %v532
    %1169 = vmatpush1.msra.mxu0 %v531
    %1170 = vmatprep.subr.mxu0 %v536
    %1171 = vmatpush1.msra.mxu0 %v535
    %1172 = vmatprep.subr.mxu0 %v540
    %1173 = vmatpush1.msra.mxu0 %v539
    %1174 = vmatprep.subr.mxu0 %v544
    %1175 = vmatpush1.msra.mxu0 %v543
    %1176 = vmatprep.subr.mxu0 %v548
    %1177 = vmatpush1.msra.mxu0 %v547
    %1178 = vmatprep.subr.mxu0 %v552
    %1179 = vmatpush1.msra.mxu0 %v551
    %1180 = vmatprep.mubr.f32.mxu0 %v610
    %1181 = vmatmul.mubr.f32.gmra.mrb[0].mxu0 %v608
    %v1182 = vpop.f32.mrb[0].mxu0
    %v1183 = vadd.f32 %v1112, %v1182
    %v1184 = vpop.f32.mrb[0].mxu0
    %v1185 = vadd.f32 %v1114, %v1184
    %1186 = vdwg.mxu0
    %vm1187 = vcmp.ge.f32.partialorder %v899, 0.0
    %vm1188 = vcmp.ge.f32.partialorder %v901, 0.0
    %vm1189 = vcmp.ge.f32.partialorder %v1183, 0.0
    %vm1190 = vcmp.ge.f32.partialorder %v1185, 0.0
    %v1191 = vld [vmem:[%s4] sm:$0xf]
    %v1193 = vlaneseq
    %v1194 = vshrl.u32 %v1193, 7
    %v1195 = vsub.s32 0, %v1194
    %v1196 = vrot.slane %v1191, %v1195
    %v1197 = vlaneseq
    %v1198 = vshrl.u32 %v1197, 7
    %v1199 = vsub.s32 1, %v1198
    %v1200 = vrot.slane %v1191, %v1199
    %v1201 = vlaneseq
    %v1202 = vshrl.u32 %v1201, 7
    %v1203 = vsub.s32 2, %v1202
    %v1204 = vrot.slane %v1191, %v1203
    %v1205 = vlaneseq
    %v1206 = vshrl.u32 %v1205, 7
    %v1207 = vsub.s32 3, %v1206
    %v1208 = vrot.slane %v1191, %v1207
    %v1213 = vmul.f32 %v1196, %v899
    %v1214 = vmul.f32 %v1200, %v901
    %v1215 = vmul.f32 %v1204, %v1183
    %v1216 = vmul.f32 %v1208, %v1185
    %v1217 = vsel %vm1187, %v899, %v1213
    %v1218 = vsel %vm1188, %v901, %v1214
    %v1219 = vsel %vm1189, %v1183, %v1215
    %v1220 = vsel %vm1190, %v1185, %v1216
    %v1221 = vld [vmem:[%s1] sm:$0xff]
    %v1222 = vld [vmem:[%s1 + $0x8] sm:$0xff]
    %v1223 = vld [vmem:[%s5] sm:$0xff]
    %v1224 = vld [vmem:[%s5 + $0x8] sm:$0xff]
    %v1225 = vld [vmem:[%s5 + $0x10] sm:$0xff]
    %v1226 = vld [vmem:[%s5 + $0x18] sm:$0xff]
    %v1227 = vld [vmem:[%s5 + $0x20] sm:$0xff]
    %v1228 = vld [vmem:[%s5 + $0x28] sm:$0xff]
    %v1229 = vld [vmem:[%s5 + $0x30] sm:$0xff]
    %v1230 = vld [vmem:[%s5 + $0x38] sm:$0xff]
    %v1231 = vld [vmem:[%s5 + $0x40] sm:$0xff]
    %v1232 = vld [vmem:[%s5 + $0x48] sm:$0xff]
    %v1233 = vld [vmem:[%s5 + $0x50] sm:$0xff]
    %v1234 = vld [vmem:[%s5 + $0x58] sm:$0xff]
    %v1235 = vld [vmem:[%s5 + $0x60] sm:$0xff]
    %v1236 = vld [vmem:[%s5 + $0x68] sm:$0xff]
    %v1237 = vld [vmem:[%s5 + $0x70] sm:$0xff]
    %v1238 = vld [vmem:[%s5 + $0x78] sm:$0xff]
    %v1239 = vld [vmem:[%s5 + $0x80] sm:$0xff]
    %v1240 = vld [vmem:[%s5 + $0x88] sm:$0xff]
    %v1241 = vld [vmem:[%s5 + $0x90] sm:$0xff]
    %v1242 = vld [vmem:[%s5 + $0x98] sm:$0xff]
    %v1243 = vld [vmem:[%s5 + $0xa0] sm:$0xff]
    %v1244 = vld [vmem:[%s5 + $0xa8] sm:$0xff]
    %v1245 = vld [vmem:[%s5 + $0xb0] sm:$0xff]
    %v1246 = vld [vmem:[%s5 + $0xb8] sm:$0xff]
    %v1247 = vld [vmem:[%s5 + $0xc0] sm:$0xff]
    %v1248 = vld [vmem:[%s5 + $0xc8] sm:$0xff]
    %v1249 = vld [vmem:[%s5 + $0xd0] sm:$0xff]
    %v1250 = vld [vmem:[%s5 + $0xd8] sm:$0xff]
    %v1251 = vld [vmem:[%s5 + $0xe0] sm:$0xff]
    %v1252 = vld [vmem:[%s5 + $0xe8] sm:$0xff]
    %v1253 = vld [vmem:[%s5 + $0xf0] sm:$0xff]
    %v1254 = vld [vmem:[%s5 + $0xf8] sm:$0xff]
    %v1255 = vld [vmem:[%s5 + $0x100] sm:$0xff]
    %v1256 = vld [vmem:[%s5 + $0x108] sm:$0xff]
    %v1257 = vld [vmem:[%s5 + $0x110] sm:$0xff]
    %v1258 = vld [vmem:[%s5 + $0x118] sm:$0xff]
    %v1259 = vld [vmem:[%s5 + $0x120] sm:$0xff]
    %v1260 = vld [vmem:[%s5 + $0x128] sm:$0xff]
    %v1261 = vld [vmem:[%s5 + $0x130] sm:$0xff]
    %v1262 = vld [vmem:[%s5 + $0x138] sm:$0xff]
    %v1263 = vld [vmem:[%s5 + $0x140] sm:$0xff]
    %v1264 = vld [vmem:[%s5 + $0x148] sm:$0xff]
    %v1265 = vld [vmem:[%s5 + $0x150] sm:$0xff]
    %v1266 = vld [vmem:[%s5 + $0x158] sm:$0xff]
    %v1267 = vld [vmem:[%s5 + $0x160] sm:$0xff]
    %v1268 = vld [vmem:[%s5 + $0x168] sm:$0xff]
    %v1269 = vld [vmem:[%s5 + $0x170] sm:$0xff]
    %v1270 = vld [vmem:[%s5 + $0x178] sm:$0xff]
    %v1271 = vld [vmem:[%s5 + $0x180] sm:$0xff]
    %v1272 = vld [vmem:[%s5 + $0x188] sm:$0xff]
    %v1273 = vld [vmem:[%s5 + $0x190] sm:$0xff]
    %v1274 = vld [vmem:[%s5 + $0x198] sm:$0xff]
    %v1275 = vld [vmem:[%s5 + $0x1a0] sm:$0xff]
    %v1276 = vld [vmem:[%s5 + $0x1a8] sm:$0xff]
    %v1277 = vld [vmem:[%s5 + $0x1b0] sm:$0xff]
    %v1278 = vld [vmem:[%s5 + $0x1b8] sm:$0xff]
    %v1279 = vld [vmem:[%s5 + $0x1c0] sm:$0xff]
    %v1280 = vld [vmem:[%s5 + $0x1c8] sm:$0xff]
    %v1281 = vld [vmem:[%s5 + $0x1d0] sm:$0xff]
    %v1282 = vld [vmem:[%s5 + $0x1d8] sm:$0xff]
    %v1283 = vld [vmem:[%s5 + $0x1e0] sm:$0xff]
    %v1284 = vld [vmem:[%s5 + $0x1e8] sm:$0xff]
    %v1285 = vld [vmem:[%s5 + $0x1f0] sm:$0xff]
    %v1286 = vld [vmem:[%s5 + $0x1f8] sm:$0xff]
    %v1287 = vld [vmem:[%s5 + $0x200] sm:$0xff]
    %v1288 = vld [vmem:[%s5 + $0x208] sm:$0xff]
    %v1289 = vld [vmem:[%s5 + $0x210] sm:$0xff]
    %v1290 = vld [vmem:[%s5 + $0x218] sm:$0xff]
    %v1291 = vld [vmem:[%s5 + $0x220] sm:$0xff]
    %v1292 = vld [vmem:[%s5 + $0x228] sm:$0xff]
    %v1293 = vld [vmem:[%s5 + $0x230] sm:$0xff]
    %v1294 = vld [vmem:[%s5 + $0x238] sm:$0xff]
    %v1295 = vld [vmem:[%s5 + $0x240] sm:$0xff]
    %v1296 = vld [vmem:[%s5 + $0x248] sm:$0xff]
    %v1297 = vld [vmem:[%s5 + $0x250] sm:$0xff]
    %v1298 = vld [vmem:[%s5 + $0x258] sm:$0xff]
    %v1299 = vld [vmem:[%s5 + $0x260] sm:$0xff]
    %v1300 = vld [vmem:[%s5 + $0x268] sm:$0xff]
    %v1301 = vld [vmem:[%s5 + $0x270] sm:$0xff]
    %v1302 = vld [vmem:[%s5 + $0x278] sm:$0xff]
    %v1303 = vld [vmem:[%s5 + $0x280] sm:$0xff]
    %v1304 = vld [vmem:[%s5 + $0x288] sm:$0xff]
    %v1305 = vld [vmem:[%s5 + $0x290] sm:$0xff]
    %v1306 = vld [vmem:[%s5 + $0x298] sm:$0xff]
    %v1307 = vld [vmem:[%s5 + $0x2a0] sm:$0xff]
    %v1308 = vld [vmem:[%s5 + $0x2a8] sm:$0xff]
    %v1309 = vld [vmem:[%s5 + $0x2b0] sm:$0xff]
    %v1310 = vld [vmem:[%s5 + $0x2b8] sm:$0xff]
    %v1311 = vld [vmem:[%s5 + $0x2c0] sm:$0xff]
    %v1312 = vld [vmem:[%s5 + $0x2c8] sm:$0xff]
    %v1313 = vld [vmem:[%s5 + $0x2d0] sm:$0xff]
    %v1314 = vld [vmem:[%s5 + $0x2d8] sm:$0xff]
    %v1315 = vld [vmem:[%s5 + $0x2e0] sm:$0xff]
    %v1316 = vld [vmem:[%s5 + $0x2e8] sm:$0xff]
    %v1317 = vld [vmem:[%s5 + $0x2f0] sm:$0xff]
    %v1318 = vld [vmem:[%s5 + $0x2f8] sm:$0xff]
    %v1319 = vld [vmem:[%s5 + $0x300] sm:$0xff]
    %v1320 = vld [vmem:[%s5 + $0x308] sm:$0xff]
    %v1321 = vld [vmem:[%s5 + $0x310] sm:$0xff]
    %v1322 = vld [vmem:[%s5 + $0x318] sm:$0xff]
    %v1323 = vld [vmem:[%s5 + $0x320] sm:$0xff]
    %v1324 = vld [vmem:[%s5 + $0x328] sm:$0xff]
    %v1325 = vld [vmem:[%s5 + $0x330] sm:$0xff]
    %v1326 = vld [vmem:[%s5 + $0x338] sm:$0xff]
    %v1327 = vld [vmem:[%s5 + $0x340] sm:$0xff]
    %v1328 = vld [vmem:[%s5 + $0x348] sm:$0xff]
    %v1329 = vld [vmem:[%s5 + $0x350] sm:$0xff]
    %v1330 = vld [vmem:[%s5 + $0x358] sm:$0xff]
    %v1331 = vld [vmem:[%s5 + $0x360] sm:$0xff]
    %v1332 = vld [vmem:[%s5 + $0x368] sm:$0xff]
    %v1333 = vld [vmem:[%s5 + $0x370] sm:$0xff]
    %v1334 = vld [vmem:[%s5 + $0x378] sm:$0xff]
    %v1335 = vld [vmem:[%s5 + $0x380] sm:$0xff]
    %v1336 = vld [vmem:[%s5 + $0x388] sm:$0xff]
    %v1337 = vld [vmem:[%s5 + $0x390] sm:$0xff]
    %v1338 = vld [vmem:[%s5 + $0x398] sm:$0xff]
    %v1339 = vld [vmem:[%s5 + $0x3a0] sm:$0xff]
    %v1340 = vld [vmem:[%s5 + $0x3a8] sm:$0xff]
    %v1341 = vld [vmem:[%s5 + $0x3b0] sm:$0xff]
    %v1342 = vld [vmem:[%s5 + $0x3b8] sm:$0xff]
    %v1343 = vld [vmem:[%s5 + $0x3c0] sm:$0xff]
    %v1344 = vld [vmem:[%s5 + $0x3c8] sm:$0xff]
    %v1345 = vld [vmem:[%s5 + $0x3d0] sm:$0xff]
    %v1346 = vld [vmem:[%s5 + $0x3d8] sm:$0xff]
    %v1347 = vld [vmem:[%s5 + $0x3e0] sm:$0xff]
    %v1348 = vld [vmem:[%s5 + $0x3e8] sm:$0xff]
    %v1349 = vld [vmem:[%s5 + $0x3f0] sm:$0xff]
    %v1350 = vld [vmem:[%s5 + $0x3f8] sm:$0xff]
    %v1351 = vld [vmem:[%s5 + $0x400] sm:$0xff]
    %v1352 = vld [vmem:[%s5 + $0x408] sm:$0xff]
    %v1353 = vld [vmem:[%s5 + $0x410] sm:$0xff]
    %v1354 = vld [vmem:[%s5 + $0x418] sm:$0xff]
    %v1355 = vld [vmem:[%s5 + $0x420] sm:$0xff]
    %v1356 = vld [vmem:[%s5 + $0x428] sm:$0xff]
    %v1357 = vld [vmem:[%s5 + $0x430] sm:$0xff]
    %v1358 = vld [vmem:[%s5 + $0x438] sm:$0xff]
    %v1359 = vld [vmem:[%s5 + $0x440] sm:$0xff]
    %v1360 = vld [vmem:[%s5 + $0x448] sm:$0xff]
    %v1361 = vld [vmem:[%s5 + $0x450] sm:$0xff]
    %v1362 = vld [vmem:[%s5 + $0x458] sm:$0xff]
    %v1363 = vld [vmem:[%s5 + $0x460] sm:$0xff]
    %v1364 = vld [vmem:[%s5 + $0x468] sm:$0xff]
    %v1365 = vld [vmem:[%s5 + $0x470] sm:$0xff]
    %v1366 = vld [vmem:[%s5 + $0x478] sm:$0xff]
    %v1367 = vld [vmem:[%s5 + $0x480] sm:$0xff]
    %v1368 = vld [vmem:[%s5 + $0x488] sm:$0xff]
    %v1369 = vld [vmem:[%s5 + $0x490] sm:$0xff]
    %v1370 = vld [vmem:[%s5 + $0x498] sm:$0xff]
    %v1371 = vld [vmem:[%s5 + $0x4a0] sm:$0xff]
    %v1372 = vld [vmem:[%s5 + $0x4a8] sm:$0xff]
    %v1373 = vld [vmem:[%s5 + $0x4b0] sm:$0xff]
    %v1374 = vld [vmem:[%s5 + $0x4b8] sm:$0xff]
    %v1375 = vld [vmem:[%s5 + $0x4c0] sm:$0xff]
    %v1376 = vld [vmem:[%s5 + $0x4c8] sm:$0xff]
    %v1377 = vld [vmem:[%s5 + $0x4d0] sm:$0xff]
    %v1378 = vld [vmem:[%s5 + $0x4d8] sm:$0xff]
    %v1379 = vld [vmem:[%s5 + $0x4e0] sm:$0xff]
    %v1380 = vld [vmem:[%s5 + $0x4e8] sm:$0xff]
    %v1381 = vld [vmem:[%s5 + $0x4f0] sm:$0xff]
    %v1382 = vld [vmem:[%s5 + $0x4f8] sm:$0xff]
    %v1383 = vld [vmem:[%s5 + $0x500] sm:$0xff]
    %v1384 = vld [vmem:[%s5 + $0x508] sm:$0xff]
    %v1385 = vld [vmem:[%s5 + $0x510] sm:$0xff]
    %v1386 = vld [vmem:[%s5 + $0x518] sm:$0xff]
    %v1387 = vld [vmem:[%s5 + $0x520] sm:$0xff]
    %v1388 = vld [vmem:[%s5 + $0x528] sm:$0xff]
    %v1389 = vld [vmem:[%s5 + $0x530] sm:$0xff]
    %v1390 = vld [vmem:[%s5 + $0x538] sm:$0xff]
    %v1391 = vld [vmem:[%s5 + $0x540] sm:$0xff]
    %v1392 = vld [vmem:[%s5 + $0x548] sm:$0xff]
    %v1393 = vld [vmem:[%s5 + $0x550] sm:$0xff]
    %v1394 = vld [vmem:[%s5 + $0x558] sm:$0xff]
    %v1395 = vld [vmem:[%s5 + $0x560] sm:$0xff]
    %v1396 = vld [vmem:[%s5 + $0x568] sm:$0xff]
    %v1397 = vld [vmem:[%s5 + $0x570] sm:$0xff]
    %v1398 = vld [vmem:[%s5 + $0x578] sm:$0xff]
    %v1399 = vld [vmem:[%s5 + $0x580] sm:$0xff]
    %v1400 = vld [vmem:[%s5 + $0x588] sm:$0xff]
    %v1401 = vld [vmem:[%s5 + $0x590] sm:$0xff]
    %v1402 = vld [vmem:[%s5 + $0x598] sm:$0xff]
    %v1403 = vld [vmem:[%s5 + $0x5a0] sm:$0xff]
    %v1404 = vld [vmem:[%s5 + $0x5a8] sm:$0xff]
    %v1405 = vld [vmem:[%s5 + $0x5b0] sm:$0xff]
    %v1406 = vld [vmem:[%s5 + $0x5b8] sm:$0xff]
    %v1407 = vld [vmem:[%s5 + $0x5c0] sm:$0xff]
    %v1408 = vld [vmem:[%s5 + $0x5c8] sm:$0xff]
    %v1409 = vld [vmem:[%s5 + $0x5d0] sm:$0xff]
    %v1410 = vld [vmem:[%s5 + $0x5d8] sm:$0xff]
    %v1411 = vld [vmem:[%s5 + $0x5e0] sm:$0xff]
    %v1412 = vld [vmem:[%s5 + $0x5e8] sm:$0xff]
    %v1413 = vld [vmem:[%s5 + $0x5f0] sm:$0xff]
    %v1414 = vld [vmem:[%s5 + $0x5f8] sm:$0xff]
    %v1415 = vld [vmem:[%s5 + $0x600] sm:$0xff]
    %v1416 = vld [vmem:[%s5 + $0x608] sm:$0xff]
    %v1417 = vld [vmem:[%s5 + $0x610] sm:$0xff]
    %v1418 = vld [vmem:[%s5 + $0x618] sm:$0xff]
    %v1419 = vld [vmem:[%s5 + $0x620] sm:$0xff]
    %v1420 = vld [vmem:[%s5 + $0x628] sm:$0xff]
    %v1421 = vld [vmem:[%s5 + $0x630] sm:$0xff]
    %v1422 = vld [vmem:[%s5 + $0x638] sm:$0xff]
    %v1423 = vld [vmem:[%s5 + $0x640] sm:$0xff]
    %v1424 = vld [vmem:[%s5 + $0x648] sm:$0xff]
    %v1425 = vld [vmem:[%s5 + $0x650] sm:$0xff]
    %v1426 = vld [vmem:[%s5 + $0x658] sm:$0xff]
    %v1427 = vld [vmem:[%s5 + $0x660] sm:$0xff]
    %v1428 = vld [vmem:[%s5 + $0x668] sm:$0xff]
    %v1429 = vld [vmem:[%s5 + $0x670] sm:$0xff]
    %v1430 = vld [vmem:[%s5 + $0x678] sm:$0xff]
    %v1431 = vld [vmem:[%s5 + $0x680] sm:$0xff]
    %v1432 = vld [vmem:[%s5 + $0x688] sm:$0xff]
    %v1433 = vld [vmem:[%s5 + $0x690] sm:$0xff]
    %v1434 = vld [vmem:[%s5 + $0x698] sm:$0xff]
    %v1435 = vld [vmem:[%s5 + $0x6a0] sm:$0xff]
    %v1436 = vld [vmem:[%s5 + $0x6a8] sm:$0xff]
    %v1437 = vld [vmem:[%s5 + $0x6b0] sm:$0xff]
    %v1438 = vld [vmem:[%s5 + $0x6b8] sm:$0xff]
    %v1439 = vld [vmem:[%s5 + $0x6c0] sm:$0xff]
    %v1440 = vld [vmem:[%s5 + $0x6c8] sm:$0xff]
    %v1441 = vld [vmem:[%s5 + $0x6d0] sm:$0xff]
    %v1442 = vld [vmem:[%s5 + $0x6d8] sm:$0xff]
    %v1443 = vld [vmem:[%s5 + $0x6e0] sm:$0xff]
    %v1444 = vld [vmem:[%s5 + $0x6e8] sm:$0xff]
    %v1445 = vld [vmem:[%s5 + $0x6f0] sm:$0xff]
    %v1446 = vld [vmem:[%s5 + $0x6f8] sm:$0xff]
    %v1447 = vld [vmem:[%s5 + $0x700] sm:$0xff]
    %v1448 = vld [vmem:[%s5 + $0x708] sm:$0xff]
    %v1449 = vld [vmem:[%s5 + $0x710] sm:$0xff]
    %v1450 = vld [vmem:[%s5 + $0x718] sm:$0xff]
    %v1451 = vld [vmem:[%s5 + $0x720] sm:$0xff]
    %v1452 = vld [vmem:[%s5 + $0x728] sm:$0xff]
    %v1453 = vld [vmem:[%s5 + $0x730] sm:$0xff]
    %v1454 = vld [vmem:[%s5 + $0x738] sm:$0xff]
    %v1455 = vld [vmem:[%s5 + $0x740] sm:$0xff]
    %v1456 = vld [vmem:[%s5 + $0x748] sm:$0xff]
    %v1457 = vld [vmem:[%s5 + $0x750] sm:$0xff]
    %v1458 = vld [vmem:[%s5 + $0x758] sm:$0xff]
    %v1459 = vld [vmem:[%s5 + $0x760] sm:$0xff]
    %v1460 = vld [vmem:[%s5 + $0x768] sm:$0xff]
    %v1461 = vld [vmem:[%s5 + $0x770] sm:$0xff]
    %v1462 = vld [vmem:[%s5 + $0x778] sm:$0xff]
    %v1463 = vld [vmem:[%s5 + $0x780] sm:$0xff]
    %v1464 = vld [vmem:[%s5 + $0x788] sm:$0xff]
    %v1465 = vld [vmem:[%s5 + $0x790] sm:$0xff]
    %v1466 = vld [vmem:[%s5 + $0x798] sm:$0xff]
    %v1467 = vld [vmem:[%s5 + $0x7a0] sm:$0xff]
    %v1468 = vld [vmem:[%s5 + $0x7a8] sm:$0xff]
    %v1469 = vld [vmem:[%s5 + $0x7b0] sm:$0xff]
    %v1470 = vld [vmem:[%s5 + $0x7b8] sm:$0xff]
    %v1471 = vld [vmem:[%s5 + $0x7c0] sm:$0xff]
    %v1472 = vld [vmem:[%s5 + $0x7c8] sm:$0xff]
    %v1473 = vld [vmem:[%s5 + $0x7d0] sm:$0xff]
    %v1474 = vld [vmem:[%s5 + $0x7d8] sm:$0xff]
    %v1475 = vld [vmem:[%s5 + $0x7e0] sm:$0xff]
    %v1476 = vld [vmem:[%s5 + $0x7e8] sm:$0xff]
    %v1477 = vld [vmem:[%s5 + $0x7f0] sm:$0xff]
    %v1478 = vld [vmem:[%s5 + $0x7f8] sm:$0xff]
    %v1479 = vld [vmem:[%s5 + $0x800] sm:$0xff]
    %v1480 = vld [vmem:[%s5 + $0x808] sm:$0xff]
    %v1481 = vld [vmem:[%s5 + $0x810] sm:$0xff]
    %v1482 = vld [vmem:[%s5 + $0x818] sm:$0xff]
    %v1483 = vld [vmem:[%s5 + $0x820] sm:$0xff]
    %v1484 = vld [vmem:[%s5 + $0x828] sm:$0xff]
    %v1485 = vld [vmem:[%s5 + $0x830] sm:$0xff]
    %v1486 = vld [vmem:[%s5 + $0x838] sm:$0xff]
    %v1487 = vld [vmem:[%s5 + $0x840] sm:$0xff]
    %v1488 = vld [vmem:[%s5 + $0x848] sm:$0xff]
    %v1489 = vld [vmem:[%s5 + $0x850] sm:$0xff]
    %v1490 = vld [vmem:[%s5 + $0x858] sm:$0xff]
    %v1491 = vld [vmem:[%s5 + $0x860] sm:$0xff]
    %v1492 = vld [vmem:[%s5 + $0x868] sm:$0xff]
    %v1493 = vld [vmem:[%s5 + $0x870] sm:$0xff]
    %v1494 = vld [vmem:[%s5 + $0x878] sm:$0xff]
    %v1495 = vld [vmem:[%s5 + $0x880] sm:$0xff]
    %v1496 = vld [vmem:[%s5 + $0x888] sm:$0xff]
    %v1497 = vld [vmem:[%s5 + $0x890] sm:$0xff]
    %v1498 = vld [vmem:[%s5 + $0x898] sm:$0xff]
    %v1499 = vld [vmem:[%s5 + $0x8a0] sm:$0xff]
    %v1500 = vld [vmem:[%s5 + $0x8a8] sm:$0xff]
    %v1501 = vld [vmem:[%s5 + $0x8b0] sm:$0xff]
    %v1502 = vld [vmem:[%s5 + $0x8b8] sm:$0xff]
    %v1503 = vld [vmem:[%s5 + $0x8c0] sm:$0xff]
    %v1504 = vld [vmem:[%s5 + $0x8c8] sm:$0xff]
    %v1505 = vld [vmem:[%s5 + $0x8d0] sm:$0xff]
    %v1506 = vld [vmem:[%s5 + $0x8d8] sm:$0xff]
    %v1507 = vld [vmem:[%s5 + $0x8e0] sm:$0xff]
    %v1508 = vld [vmem:[%s5 + $0x8e8] sm:$0xff]
    %v1509 = vld [vmem:[%s5 + $0x8f0] sm:$0xff]
    %v1510 = vld [vmem:[%s5 + $0x8f8] sm:$0xff]
    %v1511 = vld [vmem:[%s5 + $0x900] sm:$0xff]
    %v1512 = vld [vmem:[%s5 + $0x908] sm:$0xff]
    %v1513 = vld [vmem:[%s5 + $0x910] sm:$0xff]
    %v1514 = vld [vmem:[%s5 + $0x918] sm:$0xff]
    %v1515 = vld [vmem:[%s5 + $0x920] sm:$0xff]
    %v1516 = vld [vmem:[%s5 + $0x928] sm:$0xff]
    %v1517 = vld [vmem:[%s5 + $0x930] sm:$0xff]
    %v1518 = vld [vmem:[%s5 + $0x938] sm:$0xff]
    %v1519 = vld [vmem:[%s5 + $0x940] sm:$0xff]
    %v1520 = vld [vmem:[%s5 + $0x948] sm:$0xff]
    %v1521 = vld [vmem:[%s5 + $0x950] sm:$0xff]
    %v1522 = vld [vmem:[%s5 + $0x958] sm:$0xff]
    %v1523 = vld [vmem:[%s5 + $0x960] sm:$0xff]
    %v1524 = vld [vmem:[%s5 + $0x968] sm:$0xff]
    %v1525 = vld [vmem:[%s5 + $0x970] sm:$0xff]
    %v1526 = vld [vmem:[%s5 + $0x978] sm:$0xff]
    %v1527 = vld [vmem:[%s5 + $0x980] sm:$0xff]
    %v1528 = vld [vmem:[%s5 + $0x988] sm:$0xff]
    %v1529 = vld [vmem:[%s5 + $0x990] sm:$0xff]
    %v1530 = vld [vmem:[%s5 + $0x998] sm:$0xff]
    %v1531 = vld [vmem:[%s5 + $0x9a0] sm:$0xff]
    %v1532 = vld [vmem:[%s5 + $0x9a8] sm:$0xff]
    %v1533 = vld [vmem:[%s5 + $0x9b0] sm:$0xff]
    %v1534 = vld [vmem:[%s5 + $0x9b8] sm:$0xff]
    %v1535 = vld [vmem:[%s5 + $0x9c0] sm:$0xff]
    %v1536 = vld [vmem:[%s5 + $0x9c8] sm:$0xff]
    %v1537 = vld [vmem:[%s5 + $0x9d0] sm:$0xff]
    %v1538 = vld [vmem:[%s5 + $0x9d8] sm:$0xff]
    %v1539 = vld [vmem:[%s5 + $0x9e0] sm:$0xff]
    %v1540 = vld [vmem:[%s5 + $0x9e8] sm:$0xff]
    %v1541 = vld [vmem:[%s5 + $0x9f0] sm:$0xff]
    %v1542 = vld [vmem:[%s5 + $0x9f8] sm:$0xff]
    %v1543 = vld [vmem:[%s5 + $0xa00] sm:$0xff]
    %v1544 = vld [vmem:[%s5 + $0xa08] sm:$0xff]
    %v1545 = vld [vmem:[%s5 + $0xa10] sm:$0xff]
    %v1546 = vld [vmem:[%s5 + $0xa18] sm:$0xff]
    %v1547 = vld [vmem:[%s5 + $0xa20] sm:$0xff]
    %v1548 = vld [vmem:[%s5 + $0xa28] sm:$0xff]
    %v1549 = vld [vmem:[%s5 + $0xa30] sm:$0xff]
    %v1550 = vld [vmem:[%s5 + $0xa38] sm:$0xff]
    %v1551 = vld [vmem:[%s5 + $0xa40] sm:$0xff]
    %v1552 = vld [vmem:[%s5 + $0xa48] sm:$0xff]
    %v1553 = vld [vmem:[%s5 + $0xa50] sm:$0xff]
    %v1554 = vld [vmem:[%s5 + $0xa58] sm:$0xff]
    %v1555 = vld [vmem:[%s5 + $0xa60] sm:$0xff]
    %v1556 = vld [vmem:[%s5 + $0xa68] sm:$0xff]
    %v1557 = vld [vmem:[%s5 + $0xa70] sm:$0xff]
    %v1558 = vld [vmem:[%s5 + $0xa78] sm:$0xff]
    %v1559 = vld [vmem:[%s5 + $0xa80] sm:$0xff]
    %v1560 = vld [vmem:[%s5 + $0xa88] sm:$0xff]
    %v1561 = vld [vmem:[%s5 + $0xa90] sm:$0xff]
    %v1562 = vld [vmem:[%s5 + $0xa98] sm:$0xff]
    %v1563 = vld [vmem:[%s5 + $0xaa0] sm:$0xff]
    %v1564 = vld [vmem:[%s5 + $0xaa8] sm:$0xff]
    %v1565 = vld [vmem:[%s5 + $0xab0] sm:$0xff]
    %v1566 = vld [vmem:[%s5 + $0xab8] sm:$0xff]
    %v1567 = vld [vmem:[%s5 + $0xac0] sm:$0xff]
    %v1568 = vld [vmem:[%s5 + $0xac8] sm:$0xff]
    %v1569 = vld [vmem:[%s5 + $0xad0] sm:$0xff]
    %v1570 = vld [vmem:[%s5 + $0xad8] sm:$0xff]
    %v1571 = vld [vmem:[%s5 + $0xae0] sm:$0xff]
    %v1572 = vld [vmem:[%s5 + $0xae8] sm:$0xff]
    %v1573 = vld [vmem:[%s5 + $0xaf0] sm:$0xff]
    %v1574 = vld [vmem:[%s5 + $0xaf8] sm:$0xff]
    %v1575 = vld [vmem:[%s5 + $0xb00] sm:$0xff]
    %v1576 = vld [vmem:[%s5 + $0xb08] sm:$0xff]
    %v1577 = vld [vmem:[%s5 + $0xb10] sm:$0xff]
    %v1578 = vld [vmem:[%s5 + $0xb18] sm:$0xff]
    %v1579 = vld [vmem:[%s5 + $0xb20] sm:$0xff]
    %v1580 = vld [vmem:[%s5 + $0xb28] sm:$0xff]
    %v1581 = vld [vmem:[%s5 + $0xb30] sm:$0xff]
    %v1582 = vld [vmem:[%s5 + $0xb38] sm:$0xff]
    %v1583 = vld [vmem:[%s5 + $0xb40] sm:$0xff]
    %v1584 = vld [vmem:[%s5 + $0xb48] sm:$0xff]
    %v1585 = vld [vmem:[%s5 + $0xb50] sm:$0xff]
    %v1586 = vld [vmem:[%s5 + $0xb58] sm:$0xff]
    %v1587 = vld [vmem:[%s5 + $0xb60] sm:$0xff]
    %v1588 = vld [vmem:[%s5 + $0xb68] sm:$0xff]
    %v1589 = vld [vmem:[%s5 + $0xb70] sm:$0xff]
    %v1590 = vld [vmem:[%s5 + $0xb78] sm:$0xff]
    %v1591 = vld [vmem:[%s5 + $0xb80] sm:$0xff]
    %v1592 = vld [vmem:[%s5 + $0xb88] sm:$0xff]
    %v1593 = vld [vmem:[%s5 + $0xb90] sm:$0xff]
    %v1594 = vld [vmem:[%s5 + $0xb98] sm:$0xff]
    %v1595 = vld [vmem:[%s5 + $0xba0] sm:$0xff]
    %v1596 = vld [vmem:[%s5 + $0xba8] sm:$0xff]
    %v1597 = vld [vmem:[%s5 + $0xbb0] sm:$0xff]
    %v1598 = vld [vmem:[%s5 + $0xbb8] sm:$0xff]
    %v1599 = vld [vmem:[%s5 + $0xbc0] sm:$0xff]
    %v1600 = vld [vmem:[%s5 + $0xbc8] sm:$0xff]
    %v1601 = vld [vmem:[%s5 + $0xbd0] sm:$0xff]
    %v1602 = vld [vmem:[%s5 + $0xbd8] sm:$0xff]
    %v1603 = vld [vmem:[%s5 + $0xbe0] sm:$0xff]
    %v1604 = vld [vmem:[%s5 + $0xbe8] sm:$0xff]
    %v1605 = vld [vmem:[%s5 + $0xbf0] sm:$0xff]
    %v1606 = vld [vmem:[%s5 + $0xbf8] sm:$0xff]
    %v1607 = vld [vmem:[%s5 + $0xc00] sm:$0xff]
    %v1608 = vld [vmem:[%s5 + $0xc08] sm:$0xff]
    %v1609 = vld [vmem:[%s5 + $0xc10] sm:$0xff]
    %v1610 = vld [vmem:[%s5 + $0xc18] sm:$0xff]
    %v1611 = vld [vmem:[%s5 + $0xc20] sm:$0xff]
    %v1612 = vld [vmem:[%s5 + $0xc28] sm:$0xff]
    %v1613 = vld [vmem:[%s5 + $0xc30] sm:$0xff]
    %v1614 = vld [vmem:[%s5 + $0xc38] sm:$0xff]
    %v1615 = vld [vmem:[%s5 + $0xc40] sm:$0xff]
    %v1616 = vld [vmem:[%s5 + $0xc48] sm:$0xff]
    %v1617 = vld [vmem:[%s5 + $0xc50] sm:$0xff]
    %v1618 = vld [vmem:[%s5 + $0xc58] sm:$0xff]
    %v1619 = vld [vmem:[%s5 + $0xc60] sm:$0xff]
    %v1620 = vld [vmem:[%s5 + $0xc68] sm:$0xff]
    %v1621 = vld [vmem:[%s5 + $0xc70] sm:$0xff]
    %v1622 = vld [vmem:[%s5 + $0xc78] sm:$0xff]
    %v1623 = vld [vmem:[%s5 + $0xc80] sm:$0xff]
    %v1624 = vld [vmem:[%s5 + $0xc88] sm:$0xff]
    %v1625 = vld [vmem:[%s5 + $0xc90] sm:$0xff]
    %v1626 = vld [vmem:[%s5 + $0xc98] sm:$0xff]
    %v1627 = vld [vmem:[%s5 + $0xca0] sm:$0xff]
    %v1628 = vld [vmem:[%s5 + $0xca8] sm:$0xff]
    %v1629 = vld [vmem:[%s5 + $0xcb0] sm:$0xff]
    %v1630 = vld [vmem:[%s5 + $0xcb8] sm:$0xff]
    %v1631 = vld [vmem:[%s5 + $0xcc0] sm:$0xff]
    %v1632 = vld [vmem:[%s5 + $0xcc8] sm:$0xff]
    %v1633 = vld [vmem:[%s5 + $0xcd0] sm:$0xff]
    %v1634 = vld [vmem:[%s5 + $0xcd8] sm:$0xff]
    %v1635 = vld [vmem:[%s5 + $0xce0] sm:$0xff]
    %v1636 = vld [vmem:[%s5 + $0xce8] sm:$0xff]
    %v1637 = vld [vmem:[%s5 + $0xcf0] sm:$0xff]
    %v1638 = vld [vmem:[%s5 + $0xcf8] sm:$0xff]
    %v1639 = vld [vmem:[%s5 + $0xd00] sm:$0xff]
    %v1640 = vld [vmem:[%s5 + $0xd08] sm:$0xff]
    %v1641 = vld [vmem:[%s5 + $0xd10] sm:$0xff]
    %v1642 = vld [vmem:[%s5 + $0xd18] sm:$0xff]
    %v1643 = vld [vmem:[%s5 + $0xd20] sm:$0xff]
    %v1644 = vld [vmem:[%s5 + $0xd28] sm:$0xff]
    %v1645 = vld [vmem:[%s5 + $0xd30] sm:$0xff]
    %v1646 = vld [vmem:[%s5 + $0xd38] sm:$0xff]
    %v1647 = vld [vmem:[%s5 + $0xd40] sm:$0xff]
    %v1648 = vld [vmem:[%s5 + $0xd48] sm:$0xff]
    %v1649 = vld [vmem:[%s5 + $0xd50] sm:$0xff]
    %v1650 = vld [vmem:[%s5 + $0xd58] sm:$0xff]
    %v1651 = vld [vmem:[%s5 + $0xd60] sm:$0xff]
    %v1652 = vld [vmem:[%s5 + $0xd68] sm:$0xff]
    %v1653 = vld [vmem:[%s5 + $0xd70] sm:$0xff]
    %v1654 = vld [vmem:[%s5 + $0xd78] sm:$0xff]
    %v1655 = vld [vmem:[%s5 + $0xd80] sm:$0xff]
    %v1656 = vld [vmem:[%s5 + $0xd88] sm:$0xff]
    %v1657 = vld [vmem:[%s5 + $0xd90] sm:$0xff]
    %v1658 = vld [vmem:[%s5 + $0xd98] sm:$0xff]
    %v1659 = vld [vmem:[%s5 + $0xda0] sm:$0xff]
    %v1660 = vld [vmem:[%s5 + $0xda8] sm:$0xff]
    %v1661 = vld [vmem:[%s5 + $0xdb0] sm:$0xff]
    %v1662 = vld [vmem:[%s5 + $0xdb8] sm:$0xff]
    %v1663 = vld [vmem:[%s5 + $0xdc0] sm:$0xff]
    %v1664 = vld [vmem:[%s5 + $0xdc8] sm:$0xff]
    %v1665 = vld [vmem:[%s5 + $0xdd0] sm:$0xff]
    %v1666 = vld [vmem:[%s5 + $0xdd8] sm:$0xff]
    %v1667 = vld [vmem:[%s5 + $0xde0] sm:$0xff]
    %v1668 = vld [vmem:[%s5 + $0xde8] sm:$0xff]
    %v1669 = vld [vmem:[%s5 + $0xdf0] sm:$0xff]
    %v1670 = vld [vmem:[%s5 + $0xdf8] sm:$0xff]
    %v1671 = vld [vmem:[%s5 + $0xe00] sm:$0xff]
    %v1672 = vld [vmem:[%s5 + $0xe08] sm:$0xff]
    %v1673 = vld [vmem:[%s5 + $0xe10] sm:$0xff]
    %v1674 = vld [vmem:[%s5 + $0xe18] sm:$0xff]
    %v1675 = vld [vmem:[%s5 + $0xe20] sm:$0xff]
    %v1676 = vld [vmem:[%s5 + $0xe28] sm:$0xff]
    %v1677 = vld [vmem:[%s5 + $0xe30] sm:$0xff]
    %v1678 = vld [vmem:[%s5 + $0xe38] sm:$0xff]
    %v1679 = vld [vmem:[%s5 + $0xe40] sm:$0xff]
    %v1680 = vld [vmem:[%s5 + $0xe48] sm:$0xff]
    %v1681 = vld [vmem:[%s5 + $0xe50] sm:$0xff]
    %v1682 = vld [vmem:[%s5 + $0xe58] sm:$0xff]
    %v1683 = vld [vmem:[%s5 + $0xe60] sm:$0xff]
    %v1684 = vld [vmem:[%s5 + $0xe68] sm:$0xff]
    %v1685 = vld [vmem:[%s5 + $0xe70] sm:$0xff]
    %v1686 = vld [vmem:[%s5 + $0xe78] sm:$0xff]
    %v1687 = vld [vmem:[%s5 + $0xe80] sm:$0xff]
    %v1688 = vld [vmem:[%s5 + $0xe88] sm:$0xff]
    %v1689 = vld [vmem:[%s5 + $0xe90] sm:$0xff]
    %v1690 = vld [vmem:[%s5 + $0xe98] sm:$0xff]
    %v1691 = vld [vmem:[%s5 + $0xea0] sm:$0xff]
    %v1692 = vld [vmem:[%s5 + $0xea8] sm:$0xff]
    %v1693 = vld [vmem:[%s5 + $0xeb0] sm:$0xff]
    %v1694 = vld [vmem:[%s5 + $0xeb8] sm:$0xff]
    %v1695 = vld [vmem:[%s5 + $0xec0] sm:$0xff]
    %v1696 = vld [vmem:[%s5 + $0xec8] sm:$0xff]
    %v1697 = vld [vmem:[%s5 + $0xed0] sm:$0xff]
    %v1698 = vld [vmem:[%s5 + $0xed8] sm:$0xff]
    %v1699 = vld [vmem:[%s5 + $0xee0] sm:$0xff]
    %v1700 = vld [vmem:[%s5 + $0xee8] sm:$0xff]
    %v1701 = vld [vmem:[%s5 + $0xef0] sm:$0xff]
    %v1702 = vld [vmem:[%s5 + $0xef8] sm:$0xff]
    %v1703 = vld [vmem:[%s5 + $0xf00] sm:$0xff]
    %v1704 = vld [vmem:[%s5 + $0xf08] sm:$0xff]
    %v1705 = vld [vmem:[%s5 + $0xf10] sm:$0xff]
    %v1706 = vld [vmem:[%s5 + $0xf18] sm:$0xff]
    %v1707 = vld [vmem:[%s5 + $0xf20] sm:$0xff]
    %v1708 = vld [vmem:[%s5 + $0xf28] sm:$0xff]
    %v1709 = vld [vmem:[%s5 + $0xf30] sm:$0xff]
    %v1710 = vld [vmem:[%s5 + $0xf38] sm:$0xff]
    %v1711 = vld [vmem:[%s5 + $0xf40] sm:$0xff]
    %v1712 = vld [vmem:[%s5 + $0xf48] sm:$0xff]
    %v1713 = vld [vmem:[%s5 + $0xf50] sm:$0xff]
    %v1714 = vld [vmem:[%s5 + $0xf58] sm:$0xff]
    %v1715 = vld [vmem:[%s5 + $0xf60] sm:$0xff]
    %v1716 = vld [vmem:[%s5 + $0xf68] sm:$0xff]
    %v1717 = vld [vmem:[%s5 + $0xf70] sm:$0xff]
    %v1718 = vld [vmem:[%s5 + $0xf78] sm:$0xff]
    %v1719 = vld [vmem:[%s5 + $0xf80] sm:$0xff]
    %v1720 = vld [vmem:[%s5 + $0xf88] sm:$0xff]
    %v1721 = vld [vmem:[%s5 + $0xf90] sm:$0xff]
    %v1722 = vld [vmem:[%s5 + $0xf98] sm:$0xff]
    %v1723 = vld [vmem:[%s5 + $0xfa0] sm:$0xff]
    %v1724 = vld [vmem:[%s5 + $0xfa8] sm:$0xff]
    %v1725 = vld [vmem:[%s5 + $0xfb0] sm:$0xff]
    %v1726 = vld [vmem:[%s5 + $0xfb8] sm:$0xff]
    %v1727 = vld [vmem:[%s5 + $0xfc0] sm:$0xff]
    %v1728 = vld [vmem:[%s5 + $0xfc8] sm:$0xff]
    %v1729 = vld [vmem:[%s5 + $0xfd0] sm:$0xff]
    %v1730 = vld [vmem:[%s5 + $0xfd8] sm:$0xff]
    %v1731 = vld [vmem:[%s5 + $0xfe0] sm:$0xff]
    %v1732 = vld [vmem:[%s5 + $0xfe8] sm:$0xff]
    %v1733 = vld [vmem:[%s5 + $0xff0] sm:$0xff]
    %v1734 = vld [vmem:[%s5 + $0xff8] sm:$0xff]
    %v1735 = vld [vmem:[%s6] sm:$0xf]
    %v1737 = vlaneseq
    %v1738 = vshrl.u32 %v1737, 7
    %v1739 = vsub.s32 0, %v1738
    %v1740 = vrot.slane %v1735, %v1739
    %v1741 = vlaneseq
    %v1742 = vshrl.u32 %v1741, 7
    %v1743 = vsub.s32 1, %v1742
    %v1744 = vrot.slane %v1735, %v1743
    %v1745 = vlaneseq
    %v1746 = vshrl.u32 %v1745, 7
    %v1747 = vsub.s32 2, %v1746
    %v1748 = vrot.slane %v1735, %v1747
    %v1749 = vlaneseq
    %v1750 = vshrl.u32 %v1749, 7
    %v1751 = vsub.s32 3, %v1750
    %v1752 = vrot.slane %v1735, %v1751
    %v1759 = vcombine.high %v1221, %v1221
    %v1761 = vunpack.c.l.s4 1983009808
    %v1762 = vunpack.c.0.s8 %v1761
    %v1763 = vlaneseq
    %v1764 = vshrl.u32 %v1763, 7
    %v1765 = vsub.s32 %v1762, %v1764
    %v1766 = vrot.slane %v1221, %v1765
    %v1768 = vunpack.c.l.s4 1983009808
    %v1769 = vunpack.c.0.s8 %v1768
    %v1770 = vlaneseq
    %v1771 = vshrl.u32 %v1770, 7
    %v1772 = vsub.s32 %v1769, %v1771
    %v1773 = vrot.slane %v1759, %v1772
    %v1774 = vcombine.high %v1766, %v1766
    %v1775 = vcombine.high %v1773, %v1773
    %v1776 = vcombine.high %v1222, %v1222
    %v1778 = vunpack.c.l.s4 1983009808
    %v1779 = vunpack.c.0.s8 %v1778
    %v1780 = vlaneseq
    %v1781 = vshrl.u32 %v1780, 7
    %v1782 = vsub.s32 %v1779, %v1781
    %v1783 = vrot.slane %v1222, %v1782
    %v1785 = vunpack.c.l.s4 1983009808
    %v1786 = vunpack.c.0.s8 %v1785
    %v1787 = vlaneseq
    %v1788 = vshrl.u32 %v1787, 7
    %v1789 = vsub.s32 %v1786, %v1788
    %v1790 = vrot.slane %v1776, %v1789
    %v1791 = vcombine.high %v1783, %v1783
    %v1792 = vcombine.high %v1790, %v1790
    %1801 = vmatprep.subr.mxu0 %v1224
    %1802 = vmatpush1.msra.mxu0 %v1223
    %1803 = vmatprep.subr.mxu0 %v1228
    %1804 = vmatpush1.msra.mxu0 %v1227
    %1805 = vmatprep.subr.mxu0 %v1232
    %1806 = vmatpush1.msra.mxu0 %v1231
    %1807 = vmatprep.subr.mxu0 %v1236
    %1808 = vmatpush1.msra.mxu0 %v1235
    %1809 = vmatprep.subr.mxu0 %v1240
    %1810 = vmatpush1.msra.mxu0 %v1239
    %1811 = vmatprep.subr.mxu0 %v1244
    %1812 = vmatpush1.msra.mxu0 %v1243
    %1813 = vmatprep.subr.mxu0 %v1248
    %1814 = vmatpush1.msra.mxu0 %v1247
    %1815 = vmatprep.subr.mxu0 %v1252
    %1816 = vmatpush1.msra.mxu0 %v1251
    %1817 = vmatprep.subr.mxu0 %v1256
    %1818 = vmatpush1.msra.mxu0 %v1255
    %1819 = vmatprep.subr.mxu0 %v1260
    %1820 = vmatpush1.msra.mxu0 %v1259
    %1821 = vmatprep.subr.mxu0 %v1264
    %1822 = vmatpush1.msra.mxu0 %v1263
    %1823 = vmatprep.subr.mxu0 %v1268
    %1824 = vmatpush1.msra.mxu0 %v1267
    %1825 = vmatprep.subr.mxu0 %v1272
    %1826 = vmatpush1.msra.mxu0 %v1271
    %1827 = vmatprep.subr.mxu0 %v1276
    %1828 = vmatpush1.msra.mxu0 %v1275
    %1829 = vmatprep.subr.mxu0 %v1280
    %1830 = vmatpush1.msra.mxu0 %v1279
    %1831 = vmatprep.subr.mxu0 %v1284
    %1832 = vmatpush1.msra.mxu0 %v1283
    %1833 = vmatprep.subr.mxu0 %v1288
    %1834 = vmatpush1.msra.mxu0 %v1287
    %1835 = vmatprep.subr.mxu0 %v1292
    %1836 = vmatpush1.msra.mxu0 %v1291
    %1837 = vmatprep.subr.mxu0 %v1296
    %1838 = vmatpush1.msra.mxu0 %v1295
    %1839 = vmatprep.subr.mxu0 %v1300
    %1840 = vmatpush1.msra.mxu0 %v1299
    %1841 = vmatprep.subr.mxu0 %v1304
    %1842 = vmatpush1.msra.mxu0 %v1303
    %1843 = vmatprep.subr.mxu0 %v1308
    %1844 = vmatpush1.msra.mxu0 %v1307
    %1845 = vmatprep.subr.mxu0 %v1312
    %1846 = vmatpush1.msra.mxu0 %v1311
    %1847 = vmatprep.subr.mxu0 %v1316
    %1848 = vmatpush1.msra.mxu0 %v1315
    %1849 = vmatprep.subr.mxu0 %v1320
    %1850 = vmatpush1.msra.mxu0 %v1319
    %1851 = vmatprep.subr.mxu0 %v1324
    %1852 = vmatpush1.msra.mxu0 %v1323
    %1853 = vmatprep.subr.mxu0 %v1328
    %1854 = vmatpush1.msra.mxu0 %v1327
    %1855 = vmatprep.subr.mxu0 %v1332
    %1856 = vmatpush1.msra.mxu0 %v1331
    %1857 = vmatprep.subr.mxu0 %v1336
    %1858 = vmatpush1.msra.mxu0 %v1335
    %1859 = vmatprep.subr.mxu0 %v1340
    %1860 = vmatpush1.msra.mxu0 %v1339
    %1861 = vmatprep.subr.mxu0 %v1344
    %1862 = vmatpush1.msra.mxu0 %v1343
    %1863 = vmatprep.subr.mxu0 %v1348
    %1864 = vmatpush1.msra.mxu0 %v1347
    %1865 = vmatprep.mubr.f32.mxu0 %v1774
    %1866 = vmatmul.mubr.f32.gmra.mrb[0].mxu0 %v1766
    %v1867 = vpop.f32.mrb[0].mxu0
    %v1868 = vadd.f32 %v1740, %v1867
    %v1869 = vpop.f32.mrb[0].mxu0
    %v1870 = vadd.f32 %v1744, %v1869
    %1871 = vdwg.mxu0
    %1872 = vmatprep.subr.mxu0 %v1352
    %1873 = vmatpush1.msra.mxu0 %v1351
    %1874 = vmatprep.subr.mxu0 %v1356
    %1875 = vmatpush1.msra.mxu0 %v1355
    %1876 = vmatprep.subr.mxu0 %v1360
    %1877 = vmatpush1.msra.mxu0 %v1359
    %1878 = vmatprep.subr.mxu0 %v1364
    %1879 = vmatpush1.msra.mxu0 %v1363
    %1880 = vmatprep.subr.mxu0 %v1368
    %1881 = vmatpush1.msra.mxu0 %v1367
    %1882 = vmatprep.subr.mxu0 %v1372
    %1883 = vmatpush1.msra.mxu0 %v1371
    %1884 = vmatprep.subr.mxu0 %v1376
    %1885 = vmatpush1.msra.mxu0 %v1375
    %1886 = vmatprep.subr.mxu0 %v1380
    %1887 = vmatpush1.msra.mxu0 %v1379
    %1888 = vmatprep.subr.mxu0 %v1384
    %1889 = vmatpush1.msra.mxu0 %v1383
    %1890 = vmatprep.subr.mxu0 %v1388
    %1891 = vmatpush1.msra.mxu0 %v1387
    %1892 = vmatprep.subr.mxu0 %v1392
    %1893 = vmatpush1.msra.mxu0 %v1391
    %1894 = vmatprep.subr.mxu0 %v1396
    %1895 = vmatpush1.msra.mxu0 %v1395
    %1896 = vmatprep.subr.mxu0 %v1400
    %1897 = vmatpush1.msra.mxu0 %v1399
    %1898 = vmatprep.subr.mxu0 %v1404
    %1899 = vmatpush1.msra.mxu0 %v1403
    %1900 = vmatprep.subr.mxu0 %v1408
    %1901 = vmatpush1.msra.mxu0 %v1407
    %1902 = vmatprep.subr.mxu0 %v1412
    %1903 = vmatpush1.msra.mxu0 %v1411
    %1904 = vmatprep.subr.mxu0 %v1416
    %1905 = vmatpush1.msra.mxu0 %v1415
    %1906 = vmatprep.subr.mxu0 %v1420
    %1907 = vmatpush1.msra.mxu0 %v1419
    %1908 = vmatprep.subr.mxu0 %v1424
    %1909 = vmatpush1.msra.mxu0 %v1423
    %1910 = vmatprep.subr.mxu0 %v1428
    %1911 = vmatpush1.msra.mxu0 %v1427
    %1912 = vmatprep.subr.mxu0 %v1432
    %1913 = vmatpush1.msra.mxu0 %v1431
    %1914 = vmatprep.subr.mxu0 %v1436
    %1915 = vmatpush1.msra.mxu0 %v1435
    %1916 = vmatprep.subr.mxu0 %v1440
    %1917 = vmatpush1.msra.mxu0 %v1439
    %1918 = vmatprep.subr.mxu0 %v1444
    %1919 = vmatpush1.msra.mxu0 %v1443
    %1920 = vmatprep.subr.mxu0 %v1448
    %1921 = vmatpush1.msra.mxu0 %v1447
    %1922 = vmatprep.subr.mxu0 %v1452
    %1923 = vmatpush1.msra.mxu0 %v1451
    %1924 = vmatprep.subr.mxu0 %v1456
    %1925 = vmatpush1.msra.mxu0 %v1455
    %1926 = vmatprep.subr.mxu0 %v1460
    %1927 = vmatpush1.msra.mxu0 %v1459
    %1928 = vmatprep.subr.mxu0 %v1464
    %1929 = vmatpush1.msra.mxu0 %v1463
    %1930 = vmatprep.subr.mxu0 %v1468
    %1931 = vmatpush1.msra.mxu0 %v1467
    %1932 = vmatprep.subr.mxu0 %v1472
    %1933 = vmatpush1.msra.mxu0 %v1471
    %1934 = vmatprep.subr.mxu0 %v1476
    %1935 = vmatpush1.msra.mxu0 %v1475
    %1936 = vmatprep.mubr.f32.mxu0 %v1775
    %1937 = vmatmul.mubr.f32.gmra.mrb[0].mxu0 %v1773
    %v1938 = vpop.f32.mrb[0].mxu0
    %v1939 = vadd.f32 %v1868, %v1938
    %v1940 = vpop.f32.mrb[0].mxu0
    %v1941 = vadd.f32 %v1870, %v1940
    %1942 = vdwg.mxu0
    %1943 = vmatprep.subr.mxu0 %v1480
    %1944 = vmatpush1.msra.mxu0 %v1479
    %1945 = vmatprep.subr.mxu0 %v1484
    %1946 = vmatpush1.msra.mxu0 %v1483
    %1947 = vmatprep.subr.mxu0 %v1488
    %1948 = vmatpush1.msra.mxu0 %v1487
    %1949 = vmatprep.subr.mxu0 %v1492
    %1950 = vmatpush1.msra.mxu0 %v1491
    %1951 = vmatprep.subr.mxu0 %v1496
    %1952 = vmatpush1.msra.mxu0 %v1495
    %1953 = vmatprep.subr.mxu0 %v1500
    %1954 = vmatpush1.msra.mxu0 %v1499
    %1955 = vmatprep.subr.mxu0 %v1504
    %1956 = vmatpush1.msra.mxu0 %v1503
    %1957 = vmatprep.subr.mxu0 %v1508
    %1958 = vmatpush1.msra.mxu0 %v1507
    %1959 = vmatprep.subr.mxu0 %v1512
    %1960 = vmatpush1.msra.mxu0 %v1511
    %1961 = vmatprep.subr.mxu0 %v1516
    %1962 = vmatpush1.msra.mxu0 %v1515
    %1963 = vmatprep.subr.mxu0 %v1520
    %1964 = vmatpush1.msra.mxu0 %v1519
    %1965 = vmatprep.subr.mxu0 %v1524
    %1966 = vmatpush1.msra.mxu0 %v1523
    %1967 = vmatprep.subr.mxu0 %v1528
    %1968 = vmatpush1.msra.mxu0 %v1527
    %1969 = vmatprep.subr.mxu0 %v1532
    %1970 = vmatpush1.msra.mxu0 %v1531
    %1971 = vmatprep.subr.mxu0 %v1536
    %1972 = vmatpush1.msra.mxu0 %v1535
    %1973 = vmatprep.subr.mxu0 %v1540
    %1974 = vmatpush1.msra.mxu0 %v1539
    %1975 = vmatprep.subr.mxu0 %v1544
    %1976 = vmatpush1.msra.mxu0 %v1543
    %1977 = vmatprep.subr.mxu0 %v1548
    %1978 = vmatpush1.msra.mxu0 %v1547
    %1979 = vmatprep.subr.mxu0 %v1552
    %1980 = vmatpush1.msra.mxu0 %v1551
    %1981 = vmatprep.subr.mxu0 %v1556
    %1982 = vmatpush1.msra.mxu0 %v1555
    %1983 = vmatprep.subr.mxu0 %v1560
    %1984 = vmatpush1.msra.mxu0 %v1559
    %1985 = vmatprep.subr.mxu0 %v1564
    %1986 = vmatpush1.msra.mxu0 %v1563
    %1987 = vmatprep.subr.mxu0 %v1568
    %1988 = vmatpush1.msra.mxu0 %v1567
    %1989 = vmatprep.subr.mxu0 %v1572
    %1990 = vmatpush1.msra.mxu0 %v1571
    %1991 = vmatprep.subr.mxu0 %v1576
    %1992 = vmatpush1.msra.mxu0 %v1575
    %1993 = vmatprep.subr.mxu0 %v1580
    %1994 = vmatpush1.msra.mxu0 %v1579
    %1995 = vmatprep.subr.mxu0 %v1584
    %1996 = vmatpush1.msra.mxu0 %v1583
    %1997 = vmatprep.subr.mxu0 %v1588
    %1998 = vmatpush1.msra.mxu0 %v1587
    %1999 = vmatprep.subr.mxu0 %v1592
    %2000 = vmatpush1.msra.mxu0 %v1591
    %2001 = vmatprep.subr.mxu0 %v1596
    %2002 = vmatpush1.msra.mxu0 %v1595
    %2003 = vmatprep.subr.mxu0 %v1600
    %2004 = vmatpush1.msra.mxu0 %v1599
    %2005 = vmatprep.subr.mxu0 %v1604
    %2006 = vmatpush1.msra.mxu0 %v1603
    %2007 = vmatprep.mubr.f32.mxu0 %v1791
    %2008 = vmatmul.mubr.f32.gmra.mrb[0].mxu0 %v1783
    %v2009 = vpop.f32.mrb[0].mxu0
    %v2010 = vadd.f32 %v1939, %v2009
    %v2011 = vpop.f32.mrb[0].mxu0
    %v2012 = vadd.f32 %v1941, %v2011
    %2013 = vdwg.mxu0
    %2014 = vmatprep.subr.mxu0 %v1608
    %2015 = vmatpush1.msra.mxu0 %v1607
    %2016 = vmatprep.subr.mxu0 %v1612
    %2017 = vmatpush1.msra.mxu0 %v1611
    %2018 = vmatprep.subr.mxu0 %v1616
    %2019 = vmatpush1.msra.mxu0 %v1615
    %2020 = vmatprep.subr.mxu0 %v1620
    %2021 = vmatpush1.msra.mxu0 %v1619
    %2022 = vmatprep.subr.mxu0 %v1624
    %2023 = vmatpush1.msra.mxu0 %v1623
    %2024 = vmatprep.subr.mxu0 %v1628
    %2025 = vmatpush1.msra.mxu0 %v1627
    %2026 = vmatprep.subr.mxu0 %v1632
    %2027 = vmatpush1.msra.mxu0 %v1631
    %2028 = vmatprep.subr.mxu0 %v1636
    %2029 = vmatpush1.msra.mxu0 %v1635
    %2030 = vmatprep.subr.mxu0 %v1640
    %2031 = vmatpush1.msra.mxu0 %v1639
    %2032 = vmatprep.subr.mxu0 %v1644
    %2033 = vmatpush1.msra.mxu0 %v1643
    %2034 = vmatprep.subr.mxu0 %v1648
    %2035 = vmatpush1.msra.mxu0 %v1647
    %2036 = vmatprep.subr.mxu0 %v1652
    %2037 = vmatpush1.msra.mxu0 %v1651
    %2038 = vmatprep.subr.mxu0 %v1656
    %2039 = vmatpush1.msra.mxu0 %v1655
    %2040 = vmatprep.subr.mxu0 %v1660
    %2041 = vmatpush1.msra.mxu0 %v1659
    %2042 = vmatprep.subr.mxu0 %v1664
    %2043 = vmatpush1.msra.mxu0 %v1663
    %2044 = vmatprep.subr.mxu0 %v1668
    %2045 = vmatpush1.msra.mxu0 %v1667
    %2046 = vmatprep.subr.mxu0 %v1672
    %2047 = vmatpush1.msra.mxu0 %v1671
    %2048 = vmatprep.subr.mxu0 %v1676
    %2049 = vmatpush1.msra.mxu0 %v1675
    %2050 = vmatprep.subr.mxu0 %v1680
    %2051 = vmatpush1.msra.mxu0 %v1679
    %2052 = vmatprep.subr.mxu0 %v1684
    %2053 = vmatpush1.msra.mxu0 %v1683
    %2054 = vmatprep.subr.mxu0 %v1688
    %2055 = vmatpush1.msra.mxu0 %v1687
    %2056 = vmatprep.subr.mxu0 %v1692
    %2057 = vmatpush1.msra.mxu0 %v1691
    %2058 = vmatprep.subr.mxu0 %v1696
    %2059 = vmatpush1.msra.mxu0 %v1695
    %2060 = vmatprep.subr.mxu0 %v1700
    %2061 = vmatpush1.msra.mxu0 %v1699
    %2062 = vmatprep.subr.mxu0 %v1704
    %2063 = vmatpush1.msra.mxu0 %v1703
    %2064 = vmatprep.subr.mxu0 %v1708
    %2065 = vmatpush1.msra.mxu0 %v1707
    %2066 = vmatprep.subr.mxu0 %v1712
    %2067 = vmatpush1.msra.mxu0 %v1711
    %2068 = vmatprep.subr.mxu0 %v1716
    %2069 = vmatpush1.msra.mxu0 %v1715
    %2070 = vmatprep.subr.mxu0 %v1720
    %2071 = vmatpush1.msra.mxu0 %v1719
    %2072 = vmatprep.subr.mxu0 %v1724
    %2073 = vmatpush1.msra.mxu0 %v1723
    %2074 = vmatprep.subr.mxu0 %v1728
    %2075 = vmatpush1.msra.mxu0 %v1727
    %2076 = vmatprep.subr.mxu0 %v1732
    %2077 = vmatpush1.msra.mxu0 %v1731
    %2078 = vmatprep.mubr.f32.mxu0 %v1792
    %2079 = vmatmul.mubr.f32.gmra.mrb[0].mxu0 %v1790
    %v2080 = vpop.f32.mrb[0].mxu0
    %v2081 = vadd.f32 %v2010, %v2080
    %v2082 = vpop.f32.mrb[0].mxu0
    %v2083 = vadd.f32 %v2012, %v2082
    %2084 = vdwg.mxu0
    %2085 = vmatprep.subr.mxu0 %v1226
    %2086 = vmatpush1.msra.mxu0 %v1225
    %2087 = vmatprep.subr.mxu0 %v1230
    %2088 = vmatpush1.msra.mxu0 %v1229
    %2089 = vmatprep.subr.mxu0 %v1234
    %2090 = vmatpush1.msra.mxu0 %v1233
    %2091 = vmatprep.subr.mxu0 %v1238
    %2092 = vmatpush1.msra.mxu0 %v1237
    %2093 = vmatprep.subr.mxu0 %v1242
    %2094 = vmatpush1.msra.mxu0 %v1241
    %2095 = vmatprep.subr.mxu0 %v1246
    %2096 = vmatpush1.msra.mxu0 %v1245
    %2097 = vmatprep.subr.mxu0 %v1250
    %2098 = vmatpush1.msra.mxu0 %v1249
    %2099 = vmatprep.subr.mxu0 %v1254
    %2100 = vmatpush1.msra.mxu0 %v1253
    %2101 = vmatprep.subr.mxu0 %v1258
    %2102 = vmatpush1.msra.mxu0 %v1257
    %2103 = vmatprep.subr.mxu0 %v1262
    %2104 = vmatpush1.msra.mxu0 %v1261
    %2105 = vmatprep.subr.mxu0 %v1266
    %2106 = vmatpush1.msra.mxu0 %v1265
    %2107 = vmatprep.subr.mxu0 %v1270
    %2108 = vmatpush1.msra.mxu0 %v1269
    %2109 = vmatprep.subr.mxu0 %v1274
    %2110 = vmatpush1.msra.mxu0 %v1273
    %2111 = vmatprep.subr.mxu0 %v1278
    %2112 = vmatpush1.msra.mxu0 %v1277
    %2113 = vmatprep.subr.mxu0 %v1282
    %2114 = vmatpush1.msra.mxu0 %v1281
    %2115 = vmatprep.subr.mxu0 %v1286
    %2116 = vmatpush1.msra.mxu0 %v1285
    %2117 = vmatprep.subr.mxu0 %v1290
    %2118 = vmatpush1.msra.mxu0 %v1289
    %2119 = vmatprep.subr.mxu0 %v1294
    %2120 = vmatpush1.msra.mxu0 %v1293
    %2121 = vmatprep.subr.mxu0 %v1298
    %2122 = vmatpush1.msra.mxu0 %v1297
    %2123 = vmatprep.subr.mxu0 %v1302
    %2124 = vmatpush1.msra.mxu0 %v1301
    %2125 = vmatprep.subr.mxu0 %v1306
    %2126 = vmatpush1.msra.mxu0 %v1305
    %2127 = vmatprep.subr.mxu0 %v1310
    %2128 = vmatpush1.msra.mxu0 %v1309
    %2129 = vmatprep.subr.mxu0 %v1314
    %2130 = vmatpush1.msra.mxu0 %v1313
    %2131 = vmatprep.subr.mxu0 %v1318
    %2132 = vmatpush1.msra.mxu0 %v1317
    %2133 = vmatprep.subr.mxu0 %v1322
    %2134 = vmatpush1.msra.mxu0 %v1321
    %2135 = vmatprep.subr.mxu0 %v1326
    %2136 = vmatpush1.msra.mxu0 %v1325
    %2137 = vmatprep.subr.mxu0 %v1330
    %2138 = vmatpush1.msra.mxu0 %v1329
    %2139 = vmatprep.subr.mxu0 %v1334
    %2140 = vmatpush1.msra.mxu0 %v1333
    %2141 = vmatprep.subr.mxu0 %v1338
    %2142 = vmatpush1.msra.mxu0 %v1337
    %2143 = vmatprep.subr.mxu0 %v1342
    %2144 = vmatpush1.msra.mxu0 %v1341
    %2145 = vmatprep.subr.mxu0 %v1346
    %2146 = vmatpush1.msra.mxu0 %v1345
    %2147 = vmatprep.subr.mxu0 %v1350
    %2148 = vmatpush1.msra.mxu0 %v1349
    %2149 = vmatprep.mubr.f32.mxu0 %v1774
    %2150 = vmatmul.mubr.f32.gmra.mrb[0].mxu0 %v1766
    %v2151 = vpop.f32.mrb[0].mxu0
    %v2152 = vadd.f32 %v1748, %v2151
    %v2153 = vpop.f32.mrb[0].mxu0
    %v2154 = vadd.f32 %v1752, %v2153
    %2155 = vdwg.mxu0
    %2156 = vmatprep.subr.mxu0 %v1354
    %2157 = vmatpush1.msra.mxu0 %v1353
    %2158 = vmatprep.subr.mxu0 %v1358
    %2159 = vmatpush1.msra.mxu0 %v1357
    %2160 = vmatprep.subr.mxu0 %v1362
    %2161 = vmatpush1.msra.mxu0 %v1361
    %2162 = vmatprep.subr.mxu0 %v1366
    %2163 = vmatpush1.msra.mxu0 %v1365
    %2164 = vmatprep.subr.mxu0 %v1370
    %2165 = vmatpush1.msra.mxu0 %v1369
    %2166 = vmatprep.subr.mxu0 %v1374
    %2167 = vmatpush1.msra.mxu0 %v1373
    %2168 = vmatprep.subr.mxu0 %v1378
    %2169 = vmatpush1.msra.mxu0 %v1377
    %2170 = vmatprep.subr.mxu0 %v1382
    %2171 = vmatpush1.msra.mxu0 %v1381
    %2172 = vmatprep.subr.mxu0 %v1386
    %2173 = vmatpush1.msra.mxu0 %v1385
    %2174 = vmatprep.subr.mxu0 %v1390
    %2175 = vmatpush1.msra.mxu0 %v1389
    %2176 = vmatprep.subr.mxu0 %v1394
    %2177 = vmatpush1.msra.mxu0 %v1393
    %2178 = vmatprep.subr.mxu0 %v1398
    %2179 = vmatpush1.msra.mxu0 %v1397
    %2180 = vmatprep.subr.mxu0 %v1402
    %2181 = vmatpush1.msra.mxu0 %v1401
    %2182 = vmatprep.subr.mxu0 %v1406
    %2183 = vmatpush1.msra.mxu0 %v1405
    %2184 = vmatprep.subr.mxu0 %v1410
    %2185 = vmatpush1.msra.mxu0 %v1409
    %2186 = vmatprep.subr.mxu0 %v1414
    %2187 = vmatpush1.msra.mxu0 %v1413
    %2188 = vmatprep.subr.mxu0 %v1418
    %2189 = vmatpush1.msra.mxu0 %v1417
    %2190 = vmatprep.subr.mxu0 %v1422
    %2191 = vmatpush1.msra.mxu0 %v1421
    %2192 = vmatprep.subr.mxu0 %v1426
    %2193 = vmatpush1.msra.mxu0 %v1425
    %2194 = vmatprep.subr.mxu0 %v1430
    %2195 = vmatpush1.msra.mxu0 %v1429
    %2196 = vmatprep.subr.mxu0 %v1434
    %2197 = vmatpush1.msra.mxu0 %v1433
    %2198 = vmatprep.subr.mxu0 %v1438
    %2199 = vmatpush1.msra.mxu0 %v1437
    %2200 = vmatprep.subr.mxu0 %v1442
    %2201 = vmatpush1.msra.mxu0 %v1441
    %2202 = vmatprep.subr.mxu0 %v1446
    %2203 = vmatpush1.msra.mxu0 %v1445
    %2204 = vmatprep.subr.mxu0 %v1450
    %2205 = vmatpush1.msra.mxu0 %v1449
    %2206 = vmatprep.subr.mxu0 %v1454
    %2207 = vmatpush1.msra.mxu0 %v1453
    %2208 = vmatprep.subr.mxu0 %v1458
    %2209 = vmatpush1.msra.mxu0 %v1457
    %2210 = vmatprep.subr.mxu0 %v1462
    %2211 = vmatpush1.msra.mxu0 %v1461
    %2212 = vmatprep.subr.mxu0 %v1466
    %2213 = vmatpush1.msra.mxu0 %v1465
    %2214 = vmatprep.subr.mxu0 %v1470
    %2215 = vmatpush1.msra.mxu0 %v1469
    %2216 = vmatprep.subr.mxu0 %v1474
    %2217 = vmatpush1.msra.mxu0 %v1473
    %2218 = vmatprep.subr.mxu0 %v1478
    %2219 = vmatpush1.msra.mxu0 %v1477
    %2220 = vmatprep.mubr.f32.mxu0 %v1775
    %2221 = vmatmul.mubr.f32.gmra.mrb[0].mxu0 %v1773
    %v2222 = vpop.f32.mrb[0].mxu0
    %v2223 = vadd.f32 %v2152, %v2222
    %v2224 = vpop.f32.mrb[0].mxu0
    %v2225 = vadd.f32 %v2154, %v2224
    %2226 = vdwg.mxu0
    %2227 = vmatprep.subr.mxu0 %v1482
    %2228 = vmatpush1.msra.mxu0 %v1481
    %2229 = vmatprep.subr.mxu0 %v1486
    %2230 = vmatpush1.msra.mxu0 %v1485
    %2231 = vmatprep.subr.mxu0 %v1490
    %2232 = vmatpush1.msra.mxu0 %v1489
    %2233 = vmatprep.subr.mxu0 %v1494
    %2234 = vmatpush1.msra.mxu0 %v1493
    %2235 = vmatprep.subr.mxu0 %v1498
    %2236 = vmatpush1.msra.mxu0 %v1497
    %2237 = vmatprep.subr.mxu0 %v1502
    %2238 = vmatpush1.msra.mxu0 %v1501
    %2239 = vmatprep.subr.mxu0 %v1506
    %2240 = vmatpush1.msra.mxu0 %v1505
    %2241 = vmatprep.subr.mxu0 %v1510
    %2242 = vmatpush1.msra.mxu0 %v1509
    %2243 = vmatprep.subr.mxu0 %v1514
    %2244 = vmatpush1.msra.mxu0 %v1513
    %2245 = vmatprep.subr.mxu0 %v1518
    %2246 = vmatpush1.msra.mxu0 %v1517
    %2247 = vmatprep.subr.mxu0 %v1522
    %2248 = vmatpush1.msra.mxu0 %v1521
    %2249 = vmatprep.subr.mxu0 %v1526
    %2250 = vmatpush1.msra.mxu0 %v1525
    %2251 = vmatprep.subr.mxu0 %v1530
    %2252 = vmatpush1.msra.mxu0 %v1529
    %2253 = vmatprep.subr.mxu0 %v1534
    %2254 = vmatpush1.msra.mxu0 %v1533
    %2255 = vmatprep.subr.mxu0 %v1538
    %2256 = vmatpush1.msra.mxu0 %v1537
    %2257 = vmatprep.subr.mxu0 %v1542
    %2258 = vmatpush1.msra.mxu0 %v1541
    %2259 = vmatprep.subr.mxu0 %v1546
    %2260 = vmatpush1.msra.mxu0 %v1545
    %2261 = vmatprep.subr.mxu0 %v1550
    %2262 = vmatpush1.msra.mxu0 %v1549
    %2263 = vmatprep.subr.mxu0 %v1554
    %2264 = vmatpush1.msra.mxu0 %v1553
    %2265 = vmatprep.subr.mxu0 %v1558
    %2266 = vmatpush1.msra.mxu0 %v1557
    %2267 = vmatprep.subr.mxu0 %v1562
    %2268 = vmatpush1.msra.mxu0 %v1561
    %2269 = vmatprep.subr.mxu0 %v1566
    %2270 = vmatpush1.msra.mxu0 %v1565
    %2271 = vmatprep.subr.mxu0 %v1570
    %2272 = vmatpush1.msra.mxu0 %v1569
    %2273 = vmatprep.subr.mxu0 %v1574
    %2274 = vmatpush1.msra.mxu0 %v1573
    %2275 = vmatprep.subr.mxu0 %v1578
    %2276 = vmatpush1.msra.mxu0 %v1577
    %2277 = vmatprep.subr.mxu0 %v1582
    %2278 = vmatpush1.msra.mxu0 %v1581
    %2279 = vmatprep.subr.mxu0 %v1586
    %2280 = vmatpush1.msra.mxu0 %v1585
    %2281 = vmatprep.subr.mxu0 %v1590
    %2282 = vmatpush1.msra.mxu0 %v1589
    %2283 = vmatprep.subr.mxu0 %v1594
    %2284 = vmatpush1.msra.mxu0 %v1593
    %2285 = vmatprep.subr.mxu0 %v1598
    %2286 = vmatpush1.msra.mxu0 %v1597
    %2287 = vmatprep.subr.mxu0 %v1602
    %2288 = vmatpush1.msra.mxu0 %v1601
    %2289 = vmatprep.subr.mxu0 %v1606
    %2290 = vmatpush1.msra.mxu0 %v1605
    %2291 = vmatprep.mubr.f32.mxu0 %v1791
    %2292 = vmatmul.mubr.f32.gmra.mrb[0].mxu0 %v1783
    %v2293 = vpop.f32.mrb[0].mxu0
    %v2294 = vadd.f32 %v2223, %v2293
    %v2295 = vpop.f32.mrb[0].mxu0
    %v2296 = vadd.f32 %v2225, %v2295
    %2297 = vdwg.mxu0
    %2298 = vmatprep.subr.mxu0 %v1610
    %2299 = vmatpush1.msra.mxu0 %v1609
    %2300 = vmatprep.subr.mxu0 %v1614
    %2301 = vmatpush1.msra.mxu0 %v1613
    %2302 = vmatprep.subr.mxu0 %v1618
    %2303 = vmatpush1.msra.mxu0 %v1617
    %2304 = vmatprep.subr.mxu0 %v1622
    %2305 = vmatpush1.msra.mxu0 %v1621
    %2306 = vmatprep.subr.mxu0 %v1626
    %2307 = vmatpush1.msra.mxu0 %v1625
    %2308 = vmatprep.subr.mxu0 %v1630
    %2309 = vmatpush1.msra.mxu0 %v1629
    %2310 = vmatprep.subr.mxu0 %v1634
    %2311 = vmatpush1.msra.mxu0 %v1633
    %2312 = vmatprep.subr.mxu0 %v1638
    %2313 = vmatpush1.msra.mxu0 %v1637
    %2314 = vmatprep.subr.mxu0 %v1642
    %2315 = vmatpush1.msra.mxu0 %v1641
    %2316 = vmatprep.subr.mxu0 %v1646
    %2317 = vmatpush1.msra.mxu0 %v1645
    %2318 = vmatprep.subr.mxu0 %v1650
    %2319 = vmatpush1.msra.mxu0 %v1649
    %2320 = vmatprep.subr.mxu0 %v1654
    %2321 = vmatpush1.msra.mxu0 %v1653
    %2322 = vmatprep.subr.mxu0 %v1658
    %2323 = vmatpush1.msra.mxu0 %v1657
    %2324 = vmatprep.subr.mxu0 %v1662
    %2325 = vmatpush1.msra.mxu0 %v1661
    %2326 = vmatprep.subr.mxu0 %v1666
    %2327 = vmatpush1.msra.mxu0 %v1665
    %2328 = vmatprep.subr.mxu0 %v1670
    %2329 = vmatpush1.msra.mxu0 %v1669
    %2330 = vmatprep.subr.mxu0 %v1674
    %2331 = vmatpush1.msra.mxu0 %v1673
    %2332 = vmatprep.subr.mxu0 %v1678
    %2333 = vmatpush1.msra.mxu0 %v1677
    %2334 = vmatprep.subr.mxu0 %v1682
    %2335 = vmatpush1.msra.mxu0 %v1681
    %2336 = vmatprep.subr.mxu0 %v1686
    %2337 = vmatpush1.msra.mxu0 %v1685
    %2338 = vmatprep.subr.mxu0 %v1690
    %2339 = vmatpush1.msra.mxu0 %v1689
    %2340 = vmatprep.subr.mxu0 %v1694
    %2341 = vmatpush1.msra.mxu0 %v1693
    %2342 = vmatprep.subr.mxu0 %v1698
    %2343 = vmatpush1.msra.mxu0 %v1697
    %2344 = vmatprep.subr.mxu0 %v1702
    %2345 = vmatpush1.msra.mxu0 %v1701
    %2346 = vmatprep.subr.mxu0 %v1706
    %2347 = vmatpush1.msra.mxu0 %v1705
    %2348 = vmatprep.subr.mxu0 %v1710
    %2349 = vmatpush1.msra.mxu0 %v1709
    %2350 = vmatprep.subr.mxu0 %v1714
    %2351 = vmatpush1.msra.mxu0 %v1713
    %2352 = vmatprep.subr.mxu0 %v1718
    %2353 = vmatpush1.msra.mxu0 %v1717
    %2354 = vmatprep.subr.mxu0 %v1722
    %2355 = vmatpush1.msra.mxu0 %v1721
    %2356 = vmatprep.subr.mxu0 %v1726
    %2357 = vmatpush1.msra.mxu0 %v1725
    %2358 = vmatprep.subr.mxu0 %v1730
    %2359 = vmatpush1.msra.mxu0 %v1729
    %2360 = vmatprep.subr.mxu0 %v1734
    %2361 = vmatpush1.msra.mxu0 %v1733
    %2362 = vmatprep.mubr.f32.mxu0 %v1792
    %2363 = vmatmul.mubr.f32.gmra.mrb[0].mxu0 %v1790
    %v2364 = vpop.f32.mrb[0].mxu0
    %v2365 = vadd.f32 %v2294, %v2364
    %v2366 = vpop.f32.mrb[0].mxu0
    %v2367 = vadd.f32 %v2296, %v2366
    %2368 = vdwg.mxu0
    %vm2369 = vcmp.ge.f32.partialorder %v2081, 0.0
    %vm2370 = vcmp.ge.f32.partialorder %v2083, 0.0
    %vm2371 = vcmp.ge.f32.partialorder %v2365, 0.0
    %vm2372 = vcmp.ge.f32.partialorder %v2367, 0.0
    %v2373 = vld [vmem:[%s7] sm:$0xf]
    %v2375 = vlaneseq
    %v2376 = vshrl.u32 %v2375, 7
    %v2377 = vsub.s32 0, %v2376
    %v2378 = vrot.slane %v2373, %v2377
    %v2379 = vlaneseq
    %v2380 = vshrl.u32 %v2379, 7
    %v2381 = vsub.s32 1, %v2380
    %v2382 = vrot.slane %v2373, %v2381
    %v2383 = vlaneseq
    %v2384 = vshrl.u32 %v2383, 7
    %v2385 = vsub.s32 2, %v2384
    %v2386 = vrot.slane %v2373, %v2385
    %v2387 = vlaneseq
    %v2388 = vshrl.u32 %v2387, 7
    %v2389 = vsub.s32 3, %v2388
    %v2390 = vrot.slane %v2373, %v2389
    %v2395 = vmul.f32 %v2378, %v2081
    %v2396 = vmul.f32 %v2382, %v2083
    %v2397 = vmul.f32 %v2386, %v2365
    %v2398 = vmul.f32 %v2390, %v2367
    %v2399 = vsel %vm2369, %v2081, %v2395
    %v2400 = vsel %vm2370, %v2083, %v2396
    %v2401 = vsel %vm2371, %v2365, %v2397
    %v2402 = vsel %vm2372, %v2367, %v2398
    %v2403 = vld [vmem:[%s8] sm:$0xf]
    %v2405 = vlaneseq
    %v2406 = vshrl.u32 %v2405, 7
    %v2407 = vsub.s32 0, %v2406
    %v2408 = vrot.slane %v2403, %v2407
    %v2409 = vlaneseq
    %v2410 = vshrl.u32 %v2409, 7
    %v2411 = vsub.s32 1, %v2410
    %v2412 = vrot.slane %v2403, %v2411
    %v2413 = vlaneseq
    %v2414 = vshrl.u32 %v2413, 7
    %v2415 = vsub.s32 2, %v2414
    %v2416 = vrot.slane %v2403, %v2415
    %v2417 = vlaneseq
    %v2418 = vshrl.u32 %v2417, 7
    %v2419 = vsub.s32 3, %v2418
    %v2420 = vrot.slane %v2403, %v2419
    %v2425 = vmul.f32 %v2408, %v1217
    %v2426 = vmul.f32 %v2412, %v1218
    %v2427 = vmul.f32 %v2416, %v1219
    %v2428 = vmul.f32 %v2420, %v1220
    %v2429 = vadd.f32 %v2399, %v2425
    %v2430 = vadd.f32 %v2400, %v2426
    %v2431 = vadd.f32 %v2401, %v2427
    %v2432 = vadd.f32 %v2402, %v2428
    %v2433 = vld [vmem:[%s9] sm:$0xff]
    %v2434 = vld [vmem:[%s9 + $0x8] sm:$0xff]
    %v2435 = vld [vmem:[%s9 + $0x10] sm:$0xff]
    %v2436 = vld [vmem:[%s9 + $0x18] sm:$0xff]
    %v2437 = vld [vmem:[%s9 + $0x20] sm:$0xff]
    %v2438 = vld [vmem:[%s9 + $0x28] sm:$0xff]
    %v2439 = vld [vmem:[%s9 + $0x30] sm:$0xff]
    %v2440 = vld [vmem:[%s9 + $0x38] sm:$0xff]
    %v2441 = vld [vmem:[%s9 + $0x40] sm:$0xff]
    %v2442 = vld [vmem:[%s9 + $0x48] sm:$0xff]
    %v2443 = vld [vmem:[%s9 + $0x50] sm:$0xff]
    %v2444 = vld [vmem:[%s9 + $0x58] sm:$0xff]
    %v2445 = vld [vmem:[%s9 + $0x60] sm:$0xff]
    %v2446 = vld [vmem:[%s9 + $0x68] sm:$0xff]
    %v2447 = vld [vmem:[%s9 + $0x70] sm:$0xff]
    %v2448 = vld [vmem:[%s9 + $0x78] sm:$0xff]
    %v2449 = vld [vmem:[%s9 + $0x80] sm:$0xff]
    %v2450 = vld [vmem:[%s9 + $0x88] sm:$0xff]
    %v2451 = vld [vmem:[%s9 + $0x90] sm:$0xff]
    %v2452 = vld [vmem:[%s9 + $0x98] sm:$0xff]
    %v2453 = vld [vmem:[%s9 + $0xa0] sm:$0xff]
    %v2454 = vld [vmem:[%s9 + $0xa8] sm:$0xff]
    %v2455 = vld [vmem:[%s9 + $0xb0] sm:$0xff]
    %v2456 = vld [vmem:[%s9 + $0xb8] sm:$0xff]
    %v2457 = vld [vmem:[%s9 + $0xc0] sm:$0xff]
    %v2458 = vld [vmem:[%s9 + $0xc8] sm:$0xff]
    %v2459 = vld [vmem:[%s9 + $0xd0] sm:$0xff]
    %v2460 = vld [vmem:[%s9 + $0xd8] sm:$0xff]
    %v2461 = vld [vmem:[%s9 + $0xe0] sm:$0xff]
    %v2462 = vld [vmem:[%s9 + $0xe8] sm:$0xff]
    %v2463 = vld [vmem:[%s9 + $0xf0] sm:$0xff]
    %v2464 = vld [vmem:[%s9 + $0xf8] sm:$0xff]
    %v2465 = vld [vmem:[%s9 + $0x100] sm:$0xff]
    %v2466 = vld [vmem:[%s9 + $0x108] sm:$0xff]
    %v2467 = vld [vmem:[%s9 + $0x110] sm:$0xff]
    %v2468 = vld [vmem:[%s9 + $0x118] sm:$0xff]
    %v2469 = vld [vmem:[%s9 + $0x120] sm:$0xff]
    %v2470 = vld [vmem:[%s9 + $0x128] sm:$0xff]
    %v2471 = vld [vmem:[%s9 + $0x130] sm:$0xff]
    %v2472 = vld [vmem:[%s9 + $0x138] sm:$0xff]
    %v2473 = vld [vmem:[%s9 + $0x140] sm:$0xff]
    %v2474 = vld [vmem:[%s9 + $0x148] sm:$0xff]
    %v2475 = vld [vmem:[%s9 + $0x150] sm:$0xff]
    %v2476 = vld [vmem:[%s9 + $0x158] sm:$0xff]
    %v2477 = vld [vmem:[%s9 + $0x160] sm:$0xff]
    %v2478 = vld [vmem:[%s9 + $0x168] sm:$0xff]
    %v2479 = vld [vmem:[%s9 + $0x170] sm:$0xff]
    %v2480 = vld [vmem:[%s9 + $0x178] sm:$0xff]
    %v2481 = vld [vmem:[%s9 + $0x180] sm:$0xff]
    %v2482 = vld [vmem:[%s9 + $0x188] sm:$0xff]
    %v2483 = vld [vmem:[%s9 + $0x190] sm:$0xff]
    %v2484 = vld [vmem:[%s9 + $0x198] sm:$0xff]
    %v2485 = vld [vmem:[%s9 + $0x1a0] sm:$0xff]
    %v2486 = vld [vmem:[%s9 + $0x1a8] sm:$0xff]
    %v2487 = vld [vmem:[%s9 + $0x1b0] sm:$0xff]
    %v2488 = vld [vmem:[%s9 + $0x1b8] sm:$0xff]
    %v2489 = vld [vmem:[%s9 + $0x1c0] sm:$0xff]
    %v2490 = vld [vmem:[%s9 + $0x1c8] sm:$0xff]
    %v2491 = vld [vmem:[%s9 + $0x1d0] sm:$0xff]
    %v2492 = vld [vmem:[%s9 + $0x1d8] sm:$0xff]
    %v2493 = vld [vmem:[%s9 + $0x1e0] sm:$0xff]
    %v2494 = vld [vmem:[%s9 + $0x1e8] sm:$0xff]
    %v2495 = vld [vmem:[%s9 + $0x1f0] sm:$0xf]
    %v2496 = vld [vmem:[%s10] sm:$0x1]
    %v2498 = vlaneseq
    %v2499 = vshrl.u32 %v2498, 7
    %v2500 = vsub.s32 0, %v2499
    %v2501 = vrot.slane %v2496, %v2500
    %vm2503 = vcmask 949248
    %v2505 = vsel %vm2503, %v2432, 0
    %vm2507 = vcmask 1043456
    %v2509 = vsel %vm2507, %v2495, 0
    %2511 = vmatprep.subr.mxu0 0.0
    %2512 = vmatpush1.msra.mxu0 %v2433
    %2513 = vmatprep.subr.mxu0 0.0
    %2514 = vmatpush1.msra.mxu0 %v2434
    %2515 = vmatprep.subr.mxu0 0.0
    %2516 = vmatpush1.msra.mxu0 %v2435
    %2517 = vmatprep.subr.mxu0 0.0
    %2518 = vmatpush1.msra.mxu0 %v2436
    %2519 = vmatprep.subr.mxu0 0.0
    %2520 = vmatpush1.msra.mxu0 %v2437
    %2521 = vmatprep.subr.mxu0 0.0
    %2522 = vmatpush1.msra.mxu0 %v2438
    %2523 = vmatprep.subr.mxu0 0.0
    %2524 = vmatpush1.msra.mxu0 %v2439
    %2525 = vmatprep.subr.mxu0 0.0
    %2526 = vmatpush1.msra.mxu0 %v2440
    %2527 = vmatprep.subr.mxu0 0.0
    %2528 = vmatpush1.msra.mxu0 %v2441
    %2529 = vmatprep.subr.mxu0 0.0
    %2530 = vmatpush1.msra.mxu0 %v2442
    %2531 = vmatprep.subr.mxu0 0.0
    %2532 = vmatpush1.msra.mxu0 %v2443
    %2533 = vmatprep.subr.mxu0 0.0
    %2534 = vmatpush1.msra.mxu0 %v2444
    %2535 = vmatprep.subr.mxu0 0.0
    %2536 = vmatpush1.msra.mxu0 %v2445
    %2537 = vmatprep.subr.mxu0 0.0
    %2538 = vmatpush1.msra.mxu0 %v2446
    %2539 = vmatprep.subr.mxu0 0.0
    %2540 = vmatpush1.msra.mxu0 %v2447
    %2541 = vmatprep.subr.mxu0 0.0
    %2542 = vmatpush1.msra.mxu0 %v2448
    %2543 = vmatprep.subr.mxu0 0.0
    %2544 = vmatpush1.msra.mxu0 %v2449
    %2545 = vmatprep.subr.mxu0 0.0
    %2546 = vmatpush1.msra.mxu0 %v2450
    %2547 = vmatprep.subr.mxu0 0.0
    %2548 = vmatpush1.msra.mxu0 %v2451
    %2549 = vmatprep.subr.mxu0 0.0
    %2550 = vmatpush1.msra.mxu0 %v2452
    %2551 = vmatprep.subr.mxu0 0.0
    %2552 = vmatpush1.msra.mxu0 %v2453
    %2553 = vmatprep.subr.mxu0 0.0
    %2554 = vmatpush1.msra.mxu0 %v2454
    %2555 = vmatprep.subr.mxu0 0.0
    %2556 = vmatpush1.msra.mxu0 %v2455
    %2557 = vmatprep.subr.mxu0 0.0
    %2558 = vmatpush1.msra.mxu0 %v2456
    %2559 = vmatprep.subr.mxu0 0.0
    %2560 = vmatpush1.msra.mxu0 %v2457
    %2561 = vmatprep.subr.mxu0 0.0
    %2562 = vmatpush1.msra.mxu0 %v2458
    %2563 = vmatprep.subr.mxu0 0.0
    %2564 = vmatpush1.msra.mxu0 %v2459
    %2565 = vmatprep.subr.mxu0 0.0
    %2566 = vmatpush1.msra.mxu0 %v2460
    %2567 = vmatprep.subr.mxu0 0.0
    %2568 = vmatpush1.msra.mxu0 %v2461
    %2569 = vmatprep.subr.mxu0 0.0
    %2570 = vmatpush1.msra.mxu0 %v2462
    %2571 = vmatprep.subr.mxu0 0.0
    %2572 = vmatpush1.msra.mxu0 %v2463
    %2573 = vmatprep.subr.mxu0 0.0
    %2574 = vmatpush1.msra.mxu0 %v2464
    %2575 = vmatprep.mubr.f32.mxu0 %v2430
    %2576 = vmatmul.mubr.f32.gmra.mrb[0].mxu0 %v2429
    %v2577 = vpop.f32.mrb[0].mxu0
    %v2578 = vadd.f32 %v2501, %v2577
    %v2579 = vpop.f32.mrb[0].mxu0
    %2580 = vdwg.mxu0
    %2581 = vmatprep.subr.mxu0 0.0
    %2582 = vmatpush1.msra.mxu0 %v2465
    %2583 = vmatprep.subr.mxu0 0.0
    %2584 = vmatpush1.msra.mxu0 %v2466
    %2585 = vmatprep.subr.mxu0 0.0
    %2586 = vmatpush1.msra.mxu0 %v2467
    %2587 = vmatprep.subr.mxu0 0.0
    %2588 = vmatpush1.msra.mxu0 %v2468
    %2589 = vmatprep.subr.mxu0 0.0
    %2590 = vmatpush1.msra.mxu0 %v2469
    %2591 = vmatprep.subr.mxu0 0.0
    %2592 = vmatpush1.msra.mxu0 %v2470
    %2593 = vmatprep.subr.mxu0 0.0
    %2594 = vmatpush1.msra.mxu0 %v2471
    %2595 = vmatprep.subr.mxu0 0.0
    %2596 = vmatpush1.msra.mxu0 %v2472
    %2597 = vmatprep.subr.mxu0 0.0
    %2598 = vmatpush1.msra.mxu0 %v2473
    %2599 = vmatprep.subr.mxu0 0.0
    %2600 = vmatpush1.msra.mxu0 %v2474
    %2601 = vmatprep.subr.mxu0 0.0
    %2602 = vmatpush1.msra.mxu0 %v2475
    %2603 = vmatprep.subr.mxu0 0.0
    %2604 = vmatpush1.msra.mxu0 %v2476
    %2605 = vmatprep.subr.mxu0 0.0
    %2606 = vmatpush1.msra.mxu0 %v2477
    %2607 = vmatprep.subr.mxu0 0.0
    %2608 = vmatpush1.msra.mxu0 %v2478
    %2609 = vmatprep.subr.mxu0 0.0
    %2610 = vmatpush1.msra.mxu0 %v2479
    %2611 = vmatprep.subr.mxu0 0.0
    %2612 = vmatpush1.msra.mxu0 %v2480
    %2613 = vmatprep.subr.mxu0 0.0
    %2614 = vmatpush1.msra.mxu0 %v2481
    %2615 = vmatprep.subr.mxu0 0.0
    %2616 = vmatpush1.msra.mxu0 %v2482
    %2617 = vmatprep.subr.mxu0 0.0
    %2618 = vmatpush1.msra.mxu0 %v2483
    %2619 = vmatprep.subr.mxu0 0.0
    %2620 = vmatpush1.msra.mxu0 %v2484
    %2621 = vmatprep.subr.mxu0 0.0
    %2622 = vmatpush1.msra.mxu0 %v2485
    %2623 = vmatprep.subr.mxu0 0.0
    %2624 = vmatpush1.msra.mxu0 %v2486
    %2625 = vmatprep.subr.mxu0 0.0
    %2626 = vmatpush1.msra.mxu0 %v2487
    %2627 = vmatprep.subr.mxu0 0.0
    %2628 = vmatpush1.msra.mxu0 %v2488
    %2629 = vmatprep.subr.mxu0 0.0
    %2630 = vmatpush1.msra.mxu0 %v2489
    %2631 = vmatprep.subr.mxu0 0.0
    %2632 = vmatpush1.msra.mxu0 %v2490
    %2633 = vmatprep.subr.mxu0 0.0
    %2634 = vmatpush1.msra.mxu0 %v2491
    %2635 = vmatprep.subr.mxu0 0.0
    %2636 = vmatpush1.msra.mxu0 %v2492
    %2637 = vmatprep.subr.mxu0 0.0
    %2638 = vmatpush1.msra.mxu0 %v2493
    %2639 = vmatprep.subr.mxu0 0.0
    %2640 = vmatpush1.msra.mxu0 %v2494
    %2641 = vmatprep.subr.mxu0 0.0
    %2642 = vmatpush1.msra.mxu0 %v2509
    %2643 = vmatprep.subr.mxu0 0.0
    %2644 = vmatpush1.msra.mxu0 0.0
    %2645 = vmatprep.mubr.f32.mxu0 %v2505
    %2646 = vmatmul.mubr.f32.gmra.mrb[0].mxu0 %v2431
    %v2647 = vpop.f32.mrb[0].mxu0
    %v2648 = vadd.f32 %v2578, %v2647
    %v2649 = vpop.f32.mrb[0].mxu0
    %2650 = vdwg.mxu0
    %vm2651 = vcmask 50176
    %2652 = vst.msk [vmem:[#allocation2] sm:$0x3] %vm2651, %v2648
    // Predicated region
    $region46: #{target_network_forward.5} parent=1 // pred_check
      _
    $region47: #{target_network_forward.5} parent=1 // pred_check_branch
      %2654 = sbr.rel (0) target = $region49
    $region48: #{target_network_forward.5} parent=1 // pred_region
      %s2656 = ssub.s32 32, 32
      %2657 = vsyncadd [#allocation3], %s2656
      %s2659 = sshll.u32 [#allocation2], 4
      %s2660 = int_to_ptr.vmem [resolvable:$true] %s2659
      %2662 = dma.vmem_to_hbm [thread:$0]  %s2660, 32, %s11, [#allocation3]
    $region49: #{target_network_forward.5} parent=1 // pred_fallthru
      _
    // Predicated region
    $region50: #{target_network_forward.5} parent=1 // pred_check
      _
    $region51: #{target_network_forward.5} parent=1 // pred_check_branch
      %2664 = sbr.rel (0) target = $region53
    $region52: #{target_network_forward.5} parent=1 // pred_region
      %2665 = dma.done [#allocation3], 32
    $region53: #{target_network_forward.5} parent=1 // pred_fallthru
      _
    %2666 = vsyncpa [#allocation3], 1

</llo_original>
